<compile_context>
chip_gen: v7x
topology: tpu7x:2x2x1
jax: 0.10.0
libtpu: 0.0.40
codegen_flags: <defaults>
</compile_context>

<pallas_src>
import functools

import numpy as np
import jax
import jax.numpy as jnp
from jax.experimental import pallas as pl
from jax.experimental.pallas import tpu as pltpu

DIM = 128            # self.dim
M = 64               # 8x8 map latent tokens per (bs, T) slot
HID = 4 * DIM        # map_latent_adapter hidden width (512)
EPS = 1e-5           # LayerNorm eps (torch default)
OUT_DTYPE = jnp.bfloat16   # per perf review: halves HBM writeback + out buffers


# --------------------------------------------------------------------------
# shared helpers
# --------------------------------------------------------------------------
def _ln(x, g, b):
    # fused-stats LayerNorm: one pass of (sum, sum-of-squares); clamp var >= 0
    inv_n = 1.0 / x.shape[-1]
    s = jnp.sum(x, axis=-1, keepdims=True)
    ss = jnp.sum(x * x, axis=-1, keepdims=True)
    mu = s * inv_n
    var = jnp.maximum(ss * inv_n - mu * mu, 0.0)
    return (x - mu) * jax.lax.rsqrt(var + EPS) * g + b


def _ln_ref(x, g, b):
    mu = jnp.mean(x, axis=-1, keepdims=True)
    var = jnp.mean((x - mu) ** 2, axis=-1, keepdims=True)
    return (x - mu) * jax.lax.rsqrt(var + EPS) * g + b


def _sinusoid_table(n_position, d_hid):
    pos = np.arange(n_position, dtype=np.float64)[:, None]
    idx = np.arange(d_hid, dtype=np.float64)[None, :]
    angle = pos / np.power(10000.0, 2.0 * (idx // 2) / d_hid)
    table = np.zeros((n_position, d_hid), dtype=np.float32)
    table[:, 0::2] = np.sin(angle[:, 0::2])
    table[:, 1::2] = np.cos(angle[:, 1::2])
    return table


def _build_map_local_pos_emb():
    t = _sinusoid_table(8, 128)                                      # (8, 128)
    emb_x = np.broadcast_to(t[:, None, :], (8, 8, 128))
    emb_y = np.broadcast_to(t[None, :, :], (8, 8, 128))
    return np.concatenate([emb_x, emb_y], axis=-1).reshape(M, 256)   # (64, 256)


@functools.lru_cache(maxsize=None)
def _chip_budget():
    """(max (bs,T) slots per block, vmem_limit_bytes) per TPU generation."""
    try:
        cap = int(pltpu.get_tpu_info().vmem_capacity_bytes)
    except Exception:
        return 32, None
    if cap >= (100 << 20):       # v5e / v6e: 128 MiB VMEM -> big tiles
        return 64, 64 << 20
    if cap >= (48 << 20):        # v7x: 64 MiB per TensorCore -> cap at 32
        return 32, 48 << 20
    return 8, None               # older small-VMEM parts: stay conservative


# --------------------------------------------------------------------------
# Pallas kernels
# --------------------------------------------------------------------------
def agent_mlp_kernel(ap_ref, w1_ref, w2_ref, w3_ref, lnb_ref, o_ref):
    # agent_pos_emb: Lin(5->128)->LN->ReLU -> Lin(128->128)->LN->ReLU -> Lin(128->128)+b
    # Hoisted out of the main kernel: one M=N matmul chain per forward call.
    g1, b1 = lnb_ref[0:1, :], lnb_ref[1:2, :]
    g2, b2 = lnb_ref[2:3, :], lnb_ref[3:4, :]
    b3 = lnb_ref[4:5, :]
    a = jnp.dot(ap_ref[...], w1_ref[...], preferred_element_type=jnp.float32)
    a = jnp.maximum(_ln(a, g1, b1), 0.0)
    a = jnp.dot(a, w2_ref[...], preferred_element_type=jnp.float32)
    a = jnp.maximum(_ln(a, g2, b2), 0.0)
    o_ref[...] = jnp.dot(a, w3_ref[...], preferred_element_type=jnp.float32) + b3


def map_encoder_kernel(idx_ref, agent_ref, cbh_ref, cbl_ref, posemb_ref,
                       w1_ref, ln1_ref, w2_ref, b2_ref, o_ref):
    # One grid step = R (bs, T) slots = R * M map-token rows.
    r, m = idx_ref.shape            # (R, 64)
    rm = r * m

    # --- codebook lookup: lane-dense 3-D one-hot, exact hi/lo bf16 gather ---
    idx = idx_ref[...][..., None]                                   # (R, M, 1)
    iota = jax.lax.broadcasted_iota(jnp.int32, (r, m, DIM), 2)
    onehot = (iota == idx).astype(jnp.bfloat16).reshape(rm, DIM)    # 0/1, exact in bf16
    quant = (jnp.dot(onehot, cbh_ref[...], preferred_element_type=jnp.float32)
             + jnp.dot(onehot, cbl_ref[...], preferred_element_type=jnp.float32))

    # --- add map positional embed (per token) + agent embed (per slot) ---
    x = (quant.reshape(r, m, DIM)
         + posemb_ref[...][None]
         + agent_ref[...][:, None, :]).reshape(rm, DIM)

    # --- map_latent_adapter: Lin(128->512, no bias) -> LN -> ReLU -> Lin(512->128)+b ---
    h = jnp.dot(x.astype(jnp.bfloat16), w1_ref[...],
                preferred_element_type=jnp.float32)
    h = jnp.maximum(_ln(h, ln1_ref[0:1, :], ln1_ref[1:2, :]), 0.0)
    y = jnp.dot(h.astype(jnp.bfloat16), w2_ref[...],
                preferred_element_type=jnp.float32) + b2_ref[...]
    o_ref[...] = y.astype(o_ref.dtype)


# --------------------------------------------------------------------------
# Parameter init (deterministic, torch-like)
# --------------------------------------------------------------------------
def _init_linear(key, fan_in, fan_out, bias):
    kw, kb = jax.random.split(key)
    bound = 1.0 / np.sqrt(fan_in)
    w = jax.random.uniform(kw, (fan_in, fan_out), jnp.float32, -bound, bound)
    b = (jax.random.uniform(kb, (1, fan_out), jnp.float32, -bound, bound)
         if bias else None)
    return w, b


def init_params(key):
    keys = jax.random.split(key, 8)
    p = {}
    # map_tokenizer codebook (128 codes x 128 dims).
    # TODO(synk): real module loads this buffer from a .pt checkpoint; synthetic init here.
    p["codebook"] = jax.random.normal(keys[0], (DIM, DIM), jnp.float32) * 0.02
    # map_pos_mlp: 256 -> 128 (LN, ReLU) -> 128
    p["pos_w1"], _ = _init_linear(keys[1], 256, DIM, bias=False)
    p["pos_g1"] = jnp.ones((1, DIM), jnp.float32)
    p["pos_b1"] = jnp.zeros((1, DIM), jnp.float32)
    p["pos_w2"], p["pos_b2"] = _init_linear(keys[2], DIM, DIM, bias=True)
    # agent_pos_emb: 5 -> 128 (LN, ReLU) -> 128 (LN, ReLU) -> 128
    p["ag_w1"], _ = _init_linear(keys[3], 5, DIM, bias=False)
    p["ag_g1"] = jnp.ones((1, DIM), jnp.float32)
    p["ag_b1"] = jnp.zeros((1, DIM), jnp.float32)
    p["ag_w2"], _ = _init_linear(keys[4], DIM, DIM, bias=False)
    p["ag_g2"] = jnp.ones((1, DIM), jnp.float32)
    p["ag_b2"] = jnp.zeros((1, DIM), jnp.float32)
    p["ag_w3"], p["ag_b3"] = _init_linear(keys[5], DIM, DIM, bias=True)
    # map_latent_adapter: 128 -> 512 (LN, ReLU) -> 128
    p["ad_w1"], _ = _init_linear(keys[6], DIM, HID, bias=False)
    p["ad_g1"] = jnp.ones((1, HID), jnp.float32)
    p["ad_b1"] = jnp.zeros((1, HID), jnp.float32)
    p["ad_w2"], p["ad_b2"] = _init_linear(keys[7], HID, DIM, bias=True)
    # constant buffers
    p["map_local_pos_emb"] = jnp.asarray(_build_map_local_pos_emb())

    # map_pos_mlp output is constant w.r.t. the forward inputs: compute ONCE at
    # init (plain JAX, precision=HIGHEST -> exact f32 constant, per review).
    h = jnp.dot(p["map_local_pos_emb"], p["pos_w1"],
                precision=jax.lax.Precision.HIGHEST)
    h = jnp.maximum(_ln_ref(h, p["pos_g1"], p["pos_b1"]), 0.0)
    p["pos_emb"] = (jnp.dot(h, p["pos_w2"], precision=jax.lax.Precision.HIGHEST)
                    + p["pos_b2"])

    # packed / pre-cast operands for the kernels (built once, not per call)
    p["ag_lnb"] = jnp.concatenate(
        [p["ag_g1"], p["ag_b1"], p["ag_g2"], p["ag_b2"], p["ag_b3"]], axis=0)  # (5,128)
    p["ad_ln"] = jnp.concatenate([p["ad_g1"], p["ad_b1"]], axis=0)             # (2,512)
    p["cb_hi"] = p["codebook"].astype(jnp.bfloat16)
    p["cb_lo"] = (p["codebook"] - p["cb_hi"].astype(jnp.float32)).astype(jnp.bfloat16)
    p["ad_w1_bf16"] = p["ad_w1"].astype(jnp.bfloat16)
    p["ad_w2_bf16"] = p["ad_w2"].astype(jnp.bfloat16)
    return p


# --------------------------------------------------------------------------
# Forward wrapper
# --------------------------------------------------------------------------
@jax.jit
def map_latent_encoder(map_latent, position, heading, params):
    """map_latent: (bs, T, 64) int32; position: (bs, A, T, 2); heading: (bs, A, T)."""
    bs, T, Mm = map_latent.shape
    assert Mm == M, Mm
    N = bs * T

    # Per-chip block sizing: R (bs,T) slots per grid step (8-aligned so block
    # shapes satisfy the (8,128) constraint); >=2 blocks when possible so both
    # v7x TensorCores get work under dimension_semantics=("parallel",).
    r_max, vmem_limit = _chip_budget()
    n8 = -(-N // 8) * 8
    R = min(r_max, max(8, ((n8 // 2) // 8) * 8))
    n_blocks = pl.cdiv(n8, R)
    N_pad = n_blocks * R
    rows_total = N_pad * Mm

    # --- agent_pos feature build (glue) ---
    ego = heading[:, 0][..., None]                                    # (bs, T, 1)
    agent_pos = jnp.concatenate(
        [position[:, 0], ego, jnp.sin(ego), jnp.cos(ego)],
        axis=-1).reshape(N, 5).astype(jnp.float32)                    # (N, 5)
    idx = map_latent.reshape(N, Mm).astype(jnp.int32)                 # lane-dense (N, 64)
    if N_pad != N:
        agent_pos = jnp.pad(agent_pos, ((0, N_pad - N), (0, 0)))
        idx = jnp.pad(idx, ((0, N_pad - N), (0, 0)))

    # --- agent_pos_emb MLP: one small kernel over all N slots (hoisted) ---
    agent_emb = pl.pallas_call(
        agent_mlp_kernel,
        out_shape=jax.ShapeDtypeStruct((N_pad, DIM), jnp.float32),
    )(agent_pos, params["ag_w1"], params["ag_w2"], params["ag_w3"], params["ag_lnb"])

    full = lambda i: (0, 0)          # weights / constants: resident across grid steps
    rows = lambda i: (i, 0)          # per-block rows

    flops = 2 * rows_total * (2 * DIM * DIM + DIM * HID + HID * DIM)
    bytes_accessed = (N_pad * Mm * 4                         # indices
                      + N_pad * DIM * 4                      # agent embeddings
                      + rows_total * DIM * jnp.dtype(OUT_DTYPE).itemsize   # output
                      + 2 * (2 * DIM * DIM + DIM * HID + HID * DIM)        # bf16 weights
                      + 4 * (Mm * DIM + 2 * HID + DIM))                    # f32 consts
    cost = pl.CostEstimate(flops=flops, transcendentals=rows_total,
                           bytes_accessed=bytes_accessed)

    out = pl.pallas_call(
        map_encoder_kernel,
        out_shape=jax.ShapeDtypeStruct((rows_total, DIM), OUT_DTYPE),
        grid=(n_blocks,),
        in_specs=[
            pl.BlockSpec((R, Mm), rows),              # codebook indices (lane-dense)
            pl.BlockSpec((R, DIM), rows),             # agent embeddings (per slot)
            pl.BlockSpec((DIM, DIM), full),           # codebook hi (bf16)
            pl.BlockSpec((DIM, DIM), full),           # codebook lo (bf16)
            pl.BlockSpec((Mm, DIM), full),            # map positional embed (f32)
            pl.BlockSpec((DIM, HID), full),           # adapter W1 (bf16)
            pl.BlockSpec((2, HID), full),             # adapter LN [gamma; beta]
            pl.BlockSpec((HID, DIM), full),           # adapter W2 (bf16)
            pl.BlockSpec((1, DIM), full),             # adapter b2
        ],
        out_specs=pl.BlockSpec((R * Mm, DIM), rows),
        compiler_params=pltpu.CompilerParams(
            dimension_semantics=("parallel",),
            vmem_limit_bytes=vmem_limit),
        cost_estimate=cost,
    )(idx, agent_emb, params["cb_hi"], params["cb_lo"], params["pos_emb"],
      params["ad_w1_bf16"], params["ad_ln"], params["ad_w2_bf16"], params["ad_b2"])

    return out[:N * Mm].reshape(bs, T, Mm, DIM)


# --------------------------------------------------------------------------
# Pure-JAX reference (mirror of the PyTorch forward, all f32)
# --------------------------------------------------------------------------
def reference(map_latent, position, heading, p):
    bs, T, Mm = map_latent.shape
    onehot = jax.nn.one_hot(map_latent.reshape(-1), DIM, dtype=jnp.float32)
    quant = (onehot @ p["codebook"]).reshape(bs, T, Mm, DIM)

    h = p["map_local_pos_emb"] @ p["pos_w1"]
    h = jnp.maximum(_ln_ref(h, p["pos_g1"], p["pos_b1"]), 0.0)
    pos_emb = h @ p["pos_w2"] + p["pos_b2"]
    quant = quant + pos_emb[None, None]

    ego = heading[:, 0][..., None]
    agent_pos = jnp.concatenate(
        [position[:, 0], ego, jnp.sin(ego), jnp.cos(ego)], axis=-1)
    h = agent_pos @ p["ag_w1"]
    h = jnp.maximum(_ln_ref(h, p["ag_g1"], p["ag_b1"]), 0.0)
    h = h @ p["ag_w2"]
    h = jnp.maximum(_ln_ref(h, p["ag_g2"], p["ag_b2"]), 0.0)
    agent_emb = h @ p["ag_w3"] + p["ag_b3"]                          # (bs, T, DIM)

    x = quant + agent_emb[:, :, None, :]
    h = x @ p["ad_w1"]
    h = jnp.maximum(_ln_ref(h, p["ad_g1"], p["ad_b1"]), 0.0)
    return h @ p["ad_w2"] + p["ad_b2"]


# --------------------------------------------------------------------------
if __name__ == "__main__":
    key = jax.random.PRNGKey(0)
    k_param, k_idx, k_pos, k_head = jax.random.split(key, 4)

    bs, T, A = 2, 8, 3        # N = bs*T = 16 -> two 8-slot blocks (512 rows each)
    params = init_params(k_param)

    map_latent = jax.random.randint(k_idx, (bs, T, M), 0, DIM, dtype=jnp.int32)
    position = jax.random.normal(k_pos, (bs, A, T, 2), jnp.float32) * 10.0
    heading = jax.random.uniform(k_head, (bs, A, T), jnp.float32, -np.pi, np.pi)

    out = map_latent_encoder(map_latent, position, heading, params)
    out = jax.block_until_ready(out)
    assert out.shape == (bs, T, M, DIM), out.shape
    assert out.dtype == OUT_DTYPE, out.dtype

    ref = jax.block_until_ready(reference(map_latent, position, heading, params))
    # bf16 MXU operands + bf16 output store, f32 accumulation/epilogue inside.
    np.testing.assert_allclose(np.asarray(out.astype(jnp.float32)),
                               np.asarray(ref), rtol=3e-2, atol=3e-2)

    print("KERNEL_OK")
</pallas_src>

<mosaic_0001>
module attributes {stable_mosaic.version = 11 : i64} {
  func.func @agent_mlp_kernel(%arg0: memref<16x5xf32, #tpu.memory_space<vmem>>, %arg1: memref<5x128xf32, #tpu.memory_space<vmem>>, %arg2: memref<128x128xf32, #tpu.memory_space<vmem>>, %arg3: memref<128x128xf32, #tpu.memory_space<vmem>>, %arg4: memref<5x128xf32, #tpu.memory_space<vmem>>, %arg5: memref<16x128xf32, #tpu.memory_space<vmem>>) attributes {dimension_semantics = [], scalar_prefetch = 0 : i64, scratch_operands = 0 : i64, tpu.core_type = #tpu.core_type<tc>} {
    %c0 = arith.constant 0 : index
    %c0_0 = arith.constant 0 : index
    %0 = vector.load %arg4[%c0, %c0_0] : memref<5x128xf32, #tpu.memory_space<vmem>>, vector<1x128xf32>
    %c1 = arith.constant 1 : index
    %c0_1 = arith.constant 0 : index
    %1 = vector.load %arg4[%c1, %c0_1] : memref<5x128xf32, #tpu.memory_space<vmem>>, vector<1x128xf32>
    %c2 = arith.constant 2 : index
    %c0_2 = arith.constant 0 : index
    %2 = vector.load %arg4[%c2, %c0_2] : memref<5x128xf32, #tpu.memory_space<vmem>>, vector<1x128xf32>
    %c3 = arith.constant 3 : index
    %c0_3 = arith.constant 0 : index
    %3 = vector.load %arg4[%c3, %c0_3] : memref<5x128xf32, #tpu.memory_space<vmem>>, vector<1x128xf32>
    %c4 = arith.constant 4 : index
    %c0_4 = arith.constant 0 : index
    %4 = vector.load %arg4[%c4, %c0_4] : memref<5x128xf32, #tpu.memory_space<vmem>>, vector<1x128xf32>
    %c0_5 = arith.constant 0 : index
    %c0_6 = arith.constant 0 : index
    %5 = vector.load %arg0[%c0_5, %c0_6] : memref<16x5xf32, #tpu.memory_space<vmem>>, vector<16x5xf32>
    %c0_7 = arith.constant 0 : index
    %c0_8 = arith.constant 0 : index
    %6 = vector.load %arg1[%c0_7, %c0_8] : memref<5x128xf32, #tpu.memory_space<vmem>>, vector<5x128xf32>
    %cst = arith.constant dense<0.000000e+00> : vector<16x128xf32>
    %7 = tpu.matmul %5, %6, %cst {dimension_numbers = #tpu.dot_dimension_numbers<[1], [0], [0], [1], [0, 0, 1, 1], [], []>} : vector<16x5xf32>, vector<5x128xf32>, vector<16x128xf32> -> vector<16x128xf32>
    %cst_9 = arith.constant dense<0.000000e+00> : vector<16xf32>
    %8 = vector.multi_reduction <add>, %7, %cst_9 [1] : vector<16x128xf32> to vector<16xf32>
    %9 = vector.shape_cast %8 : vector<16xf32> to vector<16x1xf32>
    %10 = arith.mulf %7, %7 : vector<16x128xf32>
    %cst_10 = arith.constant dense<0.000000e+00> : vector<16xf32>
    %11 = vector.multi_reduction <add>, %10, %cst_10 [1] : vector<16x128xf32> to vector<16xf32>
    %12 = vector.shape_cast %11 : vector<16xf32> to vector<16x1xf32>
    %cst_11 = arith.constant 7.812500e-03 : f32
    %13 = vector.broadcast %cst_11 : f32 to vector<16x1xf32>
    %14 = arith.mulf %9, %13 : vector<16x1xf32>
    %cst_12 = arith.constant 7.812500e-03 : f32
    %15 = vector.broadcast %cst_12 : f32 to vector<16x1xf32>
    %16 = arith.mulf %12, %15 : vector<16x1xf32>
    %17 = arith.mulf %14, %14 : vector<16x1xf32>
    %18 = arith.subf %16, %17 : vector<16x1xf32>
    %cst_13 = arith.constant 0.000000e+00 : f32
    %19 = vector.broadcast %cst_13 : f32 to vector<16x1xf32>
    %20 = arith.maximumf %18, %19 : vector<16x1xf32>
    %21 = vector.broadcast %14 : vector<16x1xf32> to vector<16x128xf32>
    %22 = arith.subf %7, %21 : vector<16x128xf32>
    %cst_14 = arith.constant 9.99999974E-6 : f32
    %23 = vector.broadcast %cst_14 : f32 to vector<16x1xf32>
    %24 = arith.addf %20, %23 : vector<16x1xf32>
    %25 = math.rsqrt %24 : vector<16x1xf32>
    %26 = vector.broadcast %25 : vector<16x1xf32> to vector<16x128xf32>
    %27 = arith.mulf %22, %26 : vector<16x128xf32>
    %28 = vector.broadcast %0 : vector<1x128xf32> to vector<16x128xf32>
    %29 = arith.mulf %27, %28 : vector<16x128xf32>
    %30 = vector.broadcast %1 : vector<1x128xf32> to vector<16x128xf32>
    %31 = arith.addf %29, %30 : vector<16x128xf32>
    %cst_15 = arith.constant 0.000000e+00 : f32
    %32 = vector.broadcast %cst_15 : f32 to vector<16x128xf32>
    %33 = arith.maximumf %31, %32 : vector<16x128xf32>
    %c0_16 = arith.constant 0 : index
    %c0_17 = arith.constant 0 : index
    %34 = vector.load %arg2[%c0_16, %c0_17] : memref<128x128xf32, #tpu.memory_space<vmem>>, vector<128x128xf32>
    %cst_18 = arith.constant dense<0.000000e+00> : vector<16x128xf32>
    %35 = tpu.matmul %33, %34, %cst_18 {dimension_numbers = #tpu.dot_dimension_numbers<[1], [0], [0], [1], [0, 0, 1, 1], [], []>} : vector<16x128xf32>, vector<128x128xf32>, vector<16x128xf32> -> vector<16x128xf32>
    %cst_19 = arith.constant dense<0.000000e+00> : vector<16xf32>
    %36 = vector.multi_reduction <add>, %35, %cst_19 [1] : vector<16x128xf32> to vector<16xf32>
    %37 = vector.shape_cast %36 : vector<16xf32> to vector<16x1xf32>
    %38 = arith.mulf %35, %35 : vector<16x128xf32>
    %cst_20 = arith.constant dense<0.000000e+00> : vector<16xf32>
    %39 = vector.multi_reduction <add>, %38, %cst_20 [1] : vector<16x128xf32> to vector<16xf32>
    %40 = vector.shape_cast %39 : vector<16xf32> to vector<16x1xf32>
    %cst_21 = arith.constant 7.812500e-03 : f32
    %41 = vector.broadcast %cst_21 : f32 to vector<16x1xf32>
    %42 = arith.mulf %37, %41 : vector<16x1xf32>
    %cst_22 = arith.constant 7.812500e-03 : f32
    %43 = vector.broadcast %cst_22 : f32 to vector<16x1xf32>
    %44 = arith.mulf %40, %43 : vector<16x1xf32>
    %45 = arith.mulf %42, %42 : vector<16x1xf32>
    %46 = arith.subf %44, %45 : vector<16x1xf32>
    %cst_23 = arith.constant 0.000000e+00 : f32
    %47 = vector.broadcast %cst_23 : f32 to vector<16x1xf32>
    %48 = arith.maximumf %46, %47 : vector<16x1xf32>
    %49 = vector.broadcast %42 : vector<16x1xf32> to vector<16x128xf32>
    %50 = arith.subf %35, %49 : vector<16x128xf32>
    %cst_24 = arith.constant 9.99999974E-6 : f32
    %51 = vector.broadcast %cst_24 : f32 to vector<16x1xf32>
    %52 = arith.addf %48, %51 : vector<16x1xf32>
    %53 = math.rsqrt %52 : vector<16x1xf32>
    %54 = vector.broadcast %53 : vector<16x1xf32> to vector<16x128xf32>
    %55 = arith.mulf %50, %54 : vector<16x128xf32>
    %56 = vector.broadcast %2 : vector<1x128xf32> to vector<16x128xf32>
    %57 = arith.mulf %55, %56 : vector<16x128xf32>
    %58 = vector.broadcast %3 : vector<1x128xf32> to vector<16x128xf32>
    %59 = arith.addf %57, %58 : vector<16x128xf32>
    %cst_25 = arith.constant 0.000000e+00 : f32
    %60 = vector.broadcast %cst_25 : f32 to vector<16x128xf32>
    %61 = arith.maximumf %59, %60 : vector<16x128xf32>
    %c0_26 = arith.constant 0 : index
    %c0_27 = arith.constant 0 : index
    %62 = vector.load %arg3[%c0_26, %c0_27] : memref<128x128xf32, #tpu.memory_space<vmem>>, vector<128x128xf32>
    %cst_28 = arith.constant dense<0.000000e+00> : vector<16x128xf32>
    %63 = tpu.matmul %61, %62, %cst_28 {dimension_numbers = #tpu.dot_dimension_numbers<[1], [0], [0], [1], [0, 0, 1, 1], [], []>} : vector<16x128xf32>, vector<128x128xf32>, vector<16x128xf32> -> vector<16x128xf32>
    %64 = vector.broadcast %4 : vector<1x128xf32> to vector<16x128xf32>
    %65 = arith.addf %63, %64 : vector<16x128xf32>
    %c0_29 = arith.constant 0 : index
    %c0_30 = arith.constant 0 : index
    %66 = vector.load %arg5[%c0_29, %c0_30] : memref<16x128xf32, #tpu.memory_space<vmem>>, vector<16x128xf32>
    tpu.vector_store %arg5[%c0_29, %c0_30], %65 {strides = array<i32>} : memref<16x128xf32, #tpu.memory_space<vmem>>, vector<16x128xf32>,
    return
  }
}

module attributes {stable_mosaic.version = 11 : i64} {
  func.func @map_encoder_kernel(%arg0: i32, %arg1: memref<8x64xi32, #tpu.memory_space<vmem>>, %arg2: memref<8x128xf32, #tpu.memory_space<vmem>>, %arg3: memref<128x128xbf16, #tpu.memory_space<vmem>>, %arg4: memref<128x128xbf16, #tpu.memory_space<vmem>>, %arg5: memref<64x128xf32, #tpu.memory_space<vmem>>, %arg6: memref<128x512xbf16, #tpu.memory_space<vmem>>, %arg7: memref<2x512xf32, #tpu.memory_space<vmem>>, %arg8: memref<512x128xbf16, #tpu.memory_space<vmem>>, %arg9: memref<1x128xf32, #tpu.memory_space<vmem>>, %arg10: memref<512x128xbf16, #tpu.memory_space<vmem>>) attributes {dimension_semantics = [#tpu.dimension_semantics<parallel>], iteration_bounds = array<i64: 2>, scalar_prefetch = 0 : i64, scratch_operands = 0 : i64, tpu.core_type = #tpu.core_type<tc>, window_params = [{transform_indices = @transform_0, window_bounds = array<i64: 8, 64>}, {transform_indices = @transform_1, window_bounds = array<i64: 8, 128>}, {pipeline_mode = #tpu.pipeline_mode<synchronous>, transform_indices = @transform_2, window_bounds = array<i64: 128, 128>}, {pipeline_mode = #tpu.pipeline_mode<synchronous>, transform_indices = @transform_3, window_bounds = array<i64: 128, 128>}, {pipeline_mode = #tpu.pipeline_mode<synchronous>, transform_indices = @transform_4, window_bounds = array<i64: 64, 128>}, {pipeline_mode = #tpu.pipeline_mode<synchronous>, transform_indices = @transform_5, window_bounds = array<i64: 128, 512>}, {pipeline_mode = #tpu.pipeline_mode<synchronous>, transform_indices = @transform_6, window_bounds = array<i64: 2, 512>}, {pipeline_mode = #tpu.pipeline_mode<synchronous>, transform_indices = @transform_7, window_bounds = array<i64: 512, 128>}, {pipeline_mode = #tpu.pipeline_mode<synchronous>, transform_indices = @transform_8, window_bounds = array<i64: 1, 128>}, {transform_indices = @transform_9, window_bounds = array<i64: 512, 128>}]} {
    %c0 = arith.constant 0 : index
    %c0_0 = arith.constant 0 : index
    %0 = vector.load %arg1[%c0, %c0_0] : memref<8x64xi32, #tpu.memory_space<vmem>>, vector<8x64xi32>
    %1 = vector.shape_cast %0 : vector<8x64xi32> to vector<8x64x1xi32>
    %2 = tpu.iota {dimensions = array<i32: 2>} : vector<8x64x128xi32>
    %3 = vector.broadcast %1 : vector<8x64x1xi32> to vector<8x64x128xi32>
    %4 = arith.cmpi eq, %2, %3 : vector<8x64x128xi32>
    %5 = arith.extui %4 : vector<8x64x128xi1> to vector<8x64x128xi32>
    %6 = arith.sitofp %5 : vector<8x64x128xi32> to vector<8x64x128xf32>
    %7 = arith.truncf %6 : vector<8x64x128xf32> to vector<8x64x128xbf16>
    %8 = vector.shape_cast %7 : vector<8x64x128xbf16> to vector<512x128xbf16>
    %c0_1 = arith.constant 0 : index
    %c0_2 = arith.constant 0 : index
    %9 = vector.load %arg3[%c0_1, %c0_2] : memref<128x128xbf16, #tpu.memory_space<vmem>>, vector<128x128xbf16>
    %cst = arith.constant dense<0.000000e+00> : vector<512x128xf32>
    %10 = tpu.matmul %8, %9, %cst {dimension_numbers = #tpu.dot_dimension_numbers<[1], [0], [0], [1], [0, 0, 1, 1], [], []>} : vector<512x128xbf16>, vector<128x128xbf16>, vector<512x128xf32> -> vector<512x128xf32>
    %c0_3 = arith.constant 0 : index
    %c0_4 = arith.constant 0 : index
    %11 = vector.load %arg4[%c0_3, %c0_4] : memref<128x128xbf16, #tpu.memory_space<vmem>>, vector<128x128xbf16>
    %cst_5 = arith.constant dense<0.000000e+00> : vector<512x128xf32>
    %12 = tpu.matmul %8, %11, %cst_5 {dimension_numbers = #tpu.dot_dimension_numbers<[1], [0], [0], [1], [0, 0, 1, 1], [], []>} : vector<512x128xbf16>, vector<128x128xbf16>, vector<512x128xf32> -> vector<512x128xf32>
    %13 = arith.addf %10, %12 : vector<512x128xf32>
    %14 = vector.shape_cast %13 : vector<512x128xf32> to vector<8x64x128xf32>
    %c0_6 = arith.constant 0 : index
    %c0_7 = arith.constant 0 : index
    %15 = vector.load %arg5[%c0_6, %c0_7] : memref<64x128xf32, #tpu.memory_space<vmem>>, vector<64x128xf32>
    %16 = vector.shape_cast %15 : vector<64x128xf32> to vector<1x64x128xf32>
    %17 = vector.broadcast %16 : vector<1x64x128xf32> to vector<8x64x128xf32>
    %18 = arith.addf %14, %17 : vector<8x64x128xf32>
    %c0_8 = arith.constant 0 : index
    %c0_9 = arith.constant 0 : index
    %19 = vector.load %arg2[%c0_8, %c0_9] : memref<8x128xf32, #tpu.memory_space<vmem>>, vector<8x128xf32>
    %20 = vector.shape_cast %19 : vector<8x128xf32> to vector<8x1x128xf32>
    %21 = vector.broadcast %20 : vector<8x1x128xf32> to vector<8x64x128xf32>
    %22 = arith.addf %18, %21 : vector<8x64x128xf32>
    %23 = vector.shape_cast %22 : vector<8x64x128xf32> to vector<512x128xf32>
    %24 = arith.truncf %23 : vector<512x128xf32> to vector<512x128xbf16>
    %c0_10 = arith.constant 0 : index
    %c0_11 = arith.constant 0 : index
    %25 = vector.load %arg6[%c0_10, %c0_11] : memref<128x512xbf16, #tpu.memory_space<vmem>>, vector<128x512xbf16>
    %cst_12 = arith.constant dense<0.000000e+00> : vector<512x512xf32>
    %26 = tpu.matmul %24, %25, %cst_12 {dimension_numbers = #tpu.dot_dimension_numbers<[1], [0], [0], [1], [0, 0, 1, 1], [], []>} : vector<512x128xbf16>, vector<128x512xbf16>, vector<512x512xf32> -> vector<512x512xf32>
    %c0_13 = arith.constant 0 : index
    %c0_14 = arith.constant 0 : index
    %27 = vector.load %arg7[%c0_13, %c0_14] : memref<2x512xf32, #tpu.memory_space<vmem>>, vector<1x512xf32>
    %c1 = arith.constant 1 : index
    %c0_15 = arith.constant 0 : index
    %28 = vector.load %arg7[%c1, %c0_15] : memref<2x512xf32, #tpu.memory_space<vmem>>, vector<1x512xf32>
    %cst_16 = arith.constant dense<0.000000e+00> : vector<512xf32>
    %29 = vector.multi_reduction <add>, %26, %cst_16 [1] : vector<512x512xf32> to vector<512xf32>
    %30 = vector.shape_cast %29 : vector<512xf32> to vector<512x1xf32>
    %31 = arith.mulf %26, %26 : vector<512x512xf32>
    %cst_17 = arith.constant dense<0.000000e+00> : vector<512xf32>
    %32 = vector.multi_reduction <add>, %31, %cst_17 [1] : vector<512x512xf32> to vector<512xf32>
    %33 = vector.shape_cast %32 : vector<512xf32> to vector<512x1xf32>
    %cst_18 = arith.constant 0.001953125 : f32
    %34 = vector.broadcast %cst_18 : f32 to vector<512x1xf32>
    %35 = arith.mulf %30, %34 : vector<512x1xf32>
    %cst_19 = arith.constant 0.001953125 : f32
    %36 = vector.broadcast %cst_19 : f32 to vector<512x1xf32>
    %37 = arith.mulf %33, %36 : vector<512x1xf32>
    %38 = arith.mulf %35, %35 : vector<512x1xf32>
    %39 = arith.subf %37, %38 : vector<512x1xf32>
    %cst_20 = arith.constant 0.000000e+00 : f32
    %40 = vector.broadcast %cst_20 : f32 to vector<512x1xf32>
    %41 = arith.maximumf %39, %40 : vector<512x1xf32>
    %42 = vector.broadcast %35 : vector<512x1xf32> to vector<512x512xf32>
    %43 = arith.subf %26, %42 : vector<512x512xf32>
    %cst_21 = arith.constant 9.99999974E-6 : f32
    %44 = vector.broadcast %cst_21 : f32 to vector<512x1xf32>
    %45 = arith.addf %41, %44 : vector<512x1xf32>
    %46 = math.rsqrt %45 : vector<512x1xf32>
    %47 = vector.broadcast %46 : vector<512x1xf32> to vector<512x512xf32>
    %48 = arith.mulf %43, %47 : vector<512x512xf32>
    %49 = vector.broadcast %27 : vector<1x512xf32> to vector<512x512xf32>
    %50 = arith.mulf %48, %49 : vector<512x512xf32>
    %51 = vector.broadcast %28 : vector<1x512xf32> to vector<512x512xf32>
    %52 = arith.addf %50, %51 : vector<512x512xf32>
    %cst_22 = arith.constant 0.000000e+00 : f32
    %53 = vector.broadcast %cst_22 : f32 to vector<512x512xf32>
    %54 = arith.maximumf %52, %53 : vector<512x512xf32>
    %55 = arith.truncf %54 : vector<512x512xf32> to vector<512x512xbf16>
    %c0_23 = arith.constant 0 : index
    %c0_24 = arith.constant 0 : index
    %56 = vector.load %arg8[%c0_23, %c0_24] : memref<512x128xbf16, #tpu.memory_space<vmem>>, vector<512x128xbf16>
    %cst_25 = arith.constant dense<0.000000e+00> : vector<512x128xf32>
    %57 = tpu.matmul %55, %56, %cst_25 {dimension_numbers = #tpu.dot_dimension_numbers<[1], [0], [0], [1], [0, 0, 1, 1], [], []>} : vector<512x512xbf16>, vector<512x128xbf16>, vector<512x128xf32> -> vector<512x128xf32>
    %c0_26 = arith.constant 0 : index
    %c0_27 = arith.constant 0 : index
    %58 = vector.load %arg9[%c0_26, %c0_27] : memref<1x128xf32, #tpu.memory_space<vmem>>, vector<1x128xf32>
    %59 = vector.broadcast %58 : vector<1x128xf32> to vector<512x128xf32>
    %60 = arith.addf %57, %59 : vector<512x128xf32>
    %61 = arith.truncf %60 : vector<512x128xf32> to vector<512x128xbf16>
    %c0_28 = arith.constant 0 : index
    %c0_29 = arith.constant 0 : index
    %62 = vector.load %arg10[%c0_28, %c0_29] : memref<512x128xbf16, #tpu.memory_space<vmem>>, vector<512x128xbf16>
    tpu.vector_store %arg10[%c0_28, %c0_29], %61 {strides = array<i32>} : memref<512x128xbf16, #tpu.memory_space<vmem>>, vector<512x128xbf16>,
    return
  }
  func.func @transform_0(%arg0: i32) -> (i32, i32) {
    %c0_i32 = arith.constant 0 : i32
    %c0_i32_0 = arith.constant 0 : i32
    return %arg0, %c0_i32 : i32, i32
  }
  func.func @transform_1(%arg0: i32) -> (i32, i32) {
    %c0_i32 = arith.constant 0 : i32
    %c0_i32_0 = arith.constant 0 : i32
    return %arg0, %c0_i32 : i32, i32
  }
  func.func @transform_2(%arg0: i32) -> (i32, i32) {
    %c0_i32 = arith.constant 0 : i32
    %c0_i32_0 = arith.constant 0 : i32
    %c0_i32_1 = arith.constant 0 : i32
    return %c0_i32, %c0_i32_0 : i32, i32
  }
  func.func @transform_3(%arg0: i32) -> (i32, i32) {
    %c0_i32 = arith.constant 0 : i32
    %c0_i32_0 = arith.constant 0 : i32
    %c0_i32_1 = arith.constant 0 : i32
    return %c0_i32, %c0_i32_0 : i32, i32
  }
  func.func @transform_4(%arg0: i32) -> (i32, i32) {
    %c0_i32 = arith.constant 0 : i32
    %c0_i32_0 = arith.constant 0 : i32
    %c0_i32_1 = arith.constant 0 : i32
    return %c0_i32, %c0_i32_0 : i32, i32
  }
  func.func @transform_5(%arg0: i32) -> (i32, i32) {
    %c0_i32 = arith.constant 0 : i32
    %c0_i32_0 = arith.constant 0 : i32
    %c0_i32_1 = arith.constant 0 : i32
    return %c0_i32, %c0_i32_0 : i32, i32
  }
  func.func @transform_6(%arg0: i32) -> (i32, i32) {
    %c0_i32 = arith.constant 0 : i32
    %c0_i32_0 = arith.constant 0 : i32
    %c0_i32_1 = arith.constant 0 : i32
    return %c0_i32, %c0_i32_0 : i32, i32
  }
  func.func @transform_7(%arg0: i32) -> (i32, i32) {
    %c0_i32 = arith.constant 0 : i32
    %c0_i32_0 = arith.constant 0 : i32
    %c0_i32_1 = arith.constant 0 : i32
    return %c0_i32, %c0_i32_0 : i32, i32
  }
  func.func @transform_8(%arg0: i32) -> (i32, i32) {
    %c0_i32 = arith.constant 0 : i32
    %c0_i32_0 = arith.constant 0 : i32
    %c0_i32_1 = arith.constant 0 : i32
    return %c0_i32, %c0_i32_0 : i32, i32
  }
  func.func @transform_9(%arg0: i32) -> (i32, i32) {
    %c0_i32 = arith.constant 0 : i32
    %c0_i32_0 = arith.constant 0 : i32
    return %arg0, %c0_i32 : i32, i32
  }
}

</mosaic_0001>

<llo_original>
// kernel: map_latent_encoder.2
$region0: #{map_latent_encoder.2}
  #allocation0 [shape = 'u32[]', space=smem, size = 0x4, offset = 0x4, fixed_abs, tag = 'smem constant byte address 0x4 - core index']
  #allocation1 [shape = 'u32[144,128]{1,0:T(1,128)}', space=vmem, size = 0x12000, scoped, tag = 'internal scratch']
  %s0 = inlined_call_operand.vmem [shape: f32[16,5], index: 0, kind: input, shape index: {}]
  %s1 = inlined_call_operand.vmem [shape: f32[5,128], index: 1, kind: input, shape index: {}]
  %s2 = inlined_call_operand.vmem [shape: f32[128,128], index: 2, kind: input, shape index: {}]
  %s3 = inlined_call_operand.hbm [shape: f32[128,128], index: 3, kind: input, shape index: {}]
  %s4 = inlined_call_operand.vmem [shape: f32[5,128], index: 4, kind: input, shape index: {}]
  %s5 = inlined_call_operand.vmem [shape: f32[16,128], index: 5, kind: output, shape index: {}]
  %s6 = sld [smem:[#allocation0]]
  $region34: #{map_latent_encoder.2} parent=0
    _
  %s8 = ssub.s32 1, %s6
  %s9 = scalar_select 0, %s8, %s6
  $region1: #{map_latent_encoder.2} parent=0
    #allocation2 [shape = 'u8[65536]{0}', space=vmem, size = 0x10000, scoped, tag = 'input window, operand 3, single buffered']
    #allocation3 [shape = 's32[1]{0}', space=sflag, size = 0x4, scoped, tag = 'scoped memory for map_latent_encoder.2']
    %10 = vsyncpa [#allocation3], 0
    // Predicated region
    $region2: #{map_latent_encoder.2} parent=1 // pred_check
      _
    $region3: #{map_latent_encoder.2} parent=1 // pred_check_branch
      %12 = sbr.rel (0) target = $region5
    $region4: #{map_latent_encoder.2} parent=1 // pred_region
      _
    $region5: #{map_latent_encoder.2} parent=1 // pred_fallthru
      _
    // Predicated region
    $region6: #{map_latent_encoder.2} parent=1 // pred_check
      _
    $region7: #{map_latent_encoder.2} parent=1 // pred_check_branch
      %14 = sbr.rel (0) target = $region9
    $region8: #{map_latent_encoder.2} parent=1 // pred_region
      _
    $region9: #{map_latent_encoder.2} parent=1 // pred_fallthru
      _
    // Predicated region
    $region10: #{map_latent_encoder.2} parent=1 // pred_check
      _
    $region11: #{map_latent_encoder.2} parent=1 // pred_check_branch
      %16 = sbr.rel (0) target = $region13
    $region12: #{map_latent_encoder.2} parent=1 // pred_region
      _
    $region13: #{map_latent_encoder.2} parent=1 // pred_fallthru
      _
    // Predicated region
    $region14: #{map_latent_encoder.2} parent=1 // pred_check
      _
    $region15: #{map_latent_encoder.2} parent=1 // pred_check_branch
      %18 = sbr.rel (0) target = $region17
    $region16: #{map_latent_encoder.2} parent=1 // pred_region
      %s20 = ssub.s32 2048, 2048
      %21 = vsyncadd [#allocation3], %s20
      %s22 = sshll.u32 [#allocation2], 4
      %s23 = int_to_ptr.vmem [resolvable:$true] %s22
      %28 = dma.hbm_to_vmem [thread:$0]  %s3, 2048, %s23, [#allocation3], 128, 128, 8
    $region17: #{map_latent_encoder.2} parent=1 // pred_fallthru
      _
    // Predicated region
    $region18: #{map_latent_encoder.2} parent=1 // pred_check
      _
    $region19: #{map_latent_encoder.2} parent=1 // pred_check_branch
      %30 = sbr.rel (0) target = $region21
    $region20: #{map_latent_encoder.2} parent=1 // pred_region
      _
    $region21: #{map_latent_encoder.2} parent=1 // pred_fallthru
      _
    // Predicated region
    $region22: #{map_latent_encoder.2} parent=1 // pred_check
      _
    $region23: #{map_latent_encoder.2} parent=1 // pred_check_branch
      %32 = sbr.rel (0) target = $region25
    $region24: #{map_latent_encoder.2} parent=1 // pred_region
      %33 = dma.done [#allocation3], 2048
    $region25: #{map_latent_encoder.2} parent=1 // pred_fallthru
      _
    %v34 = vld [vmem:[%s4] sm:$0x1]
    %v35 = vld [vmem:[%s4 + $0x1] sm:$0x1]
    %v36 = vld [vmem:[%s4 + $0x2] sm:$0x1]
    %v37 = vld [vmem:[%s4 + $0x3] sm:$0x1]
    %v38 = vld [vmem:[%s4 + $0x4] sm:$0x1]
    %v39 = vld [vmem:[%s0] sm:$0xff]
    %v40 = vld [vmem:[%s0 + $0x8] sm:$0xff]
    %v41 = vld [vmem:[%s1] sm:$0x1f]
    %vm42 = vcmask 39936
    %v44 = vsel %vm42, %v39, 0
    %v47 = vsel %vm42, %v40, 0
    %vm49 = vcmask 1044480
    %v51 = vsel %vm49, %v41, 0
    %53 = vmatprep.subr.mxu0 0.0
    %54 = vmatpush1.msra.mxu0 %v51
    %55 = vmatprep.subr.mxu0 0.0
    %56 = vmatpush1.msra.mxu0 0.0
    %57 = vmatprep.subr.mxu0 0.0
    %58 = vmatpush1.msra.mxu0 0.0
    %59 = vmatprep.subr.mxu0 0.0
    %60 = vmatpush1.msra.mxu0 0.0
    %61 = vmatprep.subr.mxu0 0.0
    %62 = vmatpush1.msra.mxu0 0.0
    %63 = vmatprep.subr.mxu0 0.0
    %64 = vmatpush1.msra.mxu0 0.0
    %65 = vmatprep.subr.mxu0 0.0
    %66 = vmatpush1.msra.mxu0 0.0
    %67 = vmatprep.subr.mxu0 0.0
    %68 = vmatpush1.msra.mxu0 0.0
    %69 = vmatprep.subr.mxu0 0.0
    %70 = vmatpush1.msra.mxu0 0.0
    %71 = vmatprep.subr.mxu0 0.0
    %72 = vmatpush1.msra.mxu0 0.0
    %73 = vmatprep.subr.mxu0 0.0
    %74 = vmatpush1.msra.mxu0 0.0
    %75 = vmatprep.subr.mxu0 0.0
    %76 = vmatpush1.msra.mxu0 0.0
    %77 = vmatprep.subr.mxu0 0.0
    %78 = vmatpush1.msra.mxu0 0.0
    %79 = vmatprep.subr.mxu0 0.0
    %80 = vmatpush1.msra.mxu0 0.0
    %81 = vmatprep.subr.mxu0 0.0
    %82 = vmatpush1.msra.mxu0 0.0
    %83 = vmatprep.subr.mxu0 0.0
    %84 = vmatpush1.msra.mxu0 0.0
    %85 = vmatprep.subr.mxu0 0.0
    %86 = vmatpush1.msra.mxu0 0.0
    %87 = vmatprep.subr.mxu0 0.0
    %88 = vmatpush1.msra.mxu0 0.0
    %89 = vmatprep.subr.mxu0 0.0
    %90 = vmatpush1.msra.mxu0 0.0
    %91 = vmatprep.subr.mxu0 0.0
    %92 = vmatpush1.msra.mxu0 0.0
    %93 = vmatprep.subr.mxu0 0.0
    %94 = vmatpush1.msra.mxu0 0.0
    %95 = vmatprep.subr.mxu0 0.0
    %96 = vmatpush1.msra.mxu0 0.0
    %97 = vmatprep.subr.mxu0 0.0
    %98 = vmatpush1.msra.mxu0 0.0
    %99 = vmatprep.subr.mxu0 0.0
    %100 = vmatpush1.msra.mxu0 0.0
    %101 = vmatprep.subr.mxu0 0.0
    %102 = vmatpush1.msra.mxu0 0.0
    %103 = vmatprep.subr.mxu0 0.0
    %104 = vmatpush1.msra.mxu0 0.0
    %105 = vmatprep.subr.mxu0 0.0
    %106 = vmatpush1.msra.mxu0 0.0
    %107 = vmatprep.subr.mxu0 0.0
    %108 = vmatpush1.msra.mxu0 0.0
    %109 = vmatprep.subr.mxu0 0.0
    %110 = vmatpush1.msra.mxu0 0.0
    %111 = vmatprep.subr.mxu0 0.0
    %112 = vmatpush1.msra.mxu0 0.0
    %113 = vmatprep.subr.mxu0 0.0
    %114 = vmatpush1.msra.mxu0 0.0
    %115 = vmatprep.subr.mxu0 0.0
    %116 = vmatpush1.msra.mxu0 0.0
    %117 = vmatprep.mubr.f32.mxu0 0.0
    %118 = vmatmul.mubr.f32.gmra.mrb[0].mxu0 %v44
    %v119 = vpop.f32.mrb[0].mxu0
    %v120 = vadd.f32 0.0, %v119
    %v121 = vpop.f32.mrb[0].mxu0
    %122 = vmatprep.mubr.f32.mxu0 0.0
    %123 = vmatmul.mubr.f32.gmra.mrb[0].mxu0 %v47
    %v124 = vpop.f32.mrb[0].mxu0
    %v125 = vadd.f32 0.0, %v124
    %v126 = vpop.f32.mrb[0].mxu0
    %127 = vdwg.mxu0
    %128 = vadd.xlane.f32.xlu0 %v120
    %v129 = vpop.xlane.xlu0 %128
    %130 = vadd.xlane.f32.xlu0 %v125
    %v131 = vpop.xlane.xlu0 %130
    %v132 = vmul.f32 %v120, %v120
    %v133 = vmul.f32 %v125, %v125
    %134 = vadd.xlane.f32.xlu0 %v132
    %v135 = vpop.xlane.xlu0 %134
    %136 = vadd.xlane.f32.xlu0 %v133
    %v137 = vpop.xlane.xlu0 %136
    %v138 = vmul.f32 %v129, 0.0078125
    %v139 = vmul.f32 %v131, 0.0078125
    %v140 = vmul.f32 %v135, 0.0078125
    %v141 = vmul.f32 %v137, 0.0078125
    %v142 = vmul.f32 %v138, %v138
    %v143 = vmul.f32 %v139, %v139
    %v144 = vsub.f32 %v140, %v142
    %v145 = vsub.f32 %v141, %v143
    %v146 = vmax.f32 %v144, 0.0
    %v147 = vmax.f32 %v145, 0.0
    %v148 = vsub.f32 %v120, %v138
    %v149 = vsub.f32 %v125, %v139
    %v150 = vadd.f32 %v146, 1e-05
    %v151 = vadd.f32 %v147, 1e-05
    %v152 = vrsqrt.pop %v150
    %v153 = vrsqrt.pop %v151
    %v154 = vmul.f32 %v148, %v152
    %v155 = vmul.f32 %v149, %v153
    %v156 = vlaneseq
    %v157 = vshrl.u32 %v156, 7
    %v158 = vsub.s32 0, %v157
    %v159 = vrot.slane %v34, %v158
    %v160 = vmul.f32 %v154, %v159
    %v161 = vmul.f32 %v155, %v159
    %v162 = vlaneseq
    %v163 = vshrl.u32 %v162, 7
    %v164 = vsub.s32 0, %v163
    %v165 = vrot.slane %v35, %v164
    %v166 = vadd.f32 %v160, %v165
    %v167 = vadd.f32 %v161, %v165
    %v168 = vmax.f32 %v166, 0.0
    %v169 = vmax.f32 %v167, 0.0
    %v170 = vld [vmem:[%s2] sm:$0xff]
    %v171 = vld [vmem:[%s2 + $0x8] sm:$0xff]
    %v172 = vld [vmem:[%s2 + $0x10] sm:$0xff]
    %v173 = vld [vmem:[%s2 + $0x18] sm:$0xff]
    %v174 = vld [vmem:[%s2 + $0x20] sm:$0xff]
    %v175 = vld [vmem:[%s2 + $0x28] sm:$0xff]
    %v176 = vld [vmem:[%s2 + $0x30] sm:$0xff]
    %v177 = vld [vmem:[%s2 + $0x38] sm:$0xff]
    %v178 = vld [vmem:[%s2 + $0x40] sm:$0xff]
    %v179 = vld [vmem:[%s2 + $0x48] sm:$0xff]
    %v180 = vld [vmem:[%s2 + $0x50] sm:$0xff]
    %v181 = vld [vmem:[%s2 + $0x58] sm:$0xff]
    %v182 = vld [vmem:[%s2 + $0x60] sm:$0xff]
    %v183 = vld [vmem:[%s2 + $0x68] sm:$0xff]
    %v184 = vld [vmem:[%s2 + $0x70] sm:$0xff]
    %v185 = vld [vmem:[%s2 + $0x78] sm:$0xff]
    %186 = vmatprep.subr.mxu0 0.0
    %187 = vmatpush1.msra.mxu0 %v170
    %188 = vmatprep.subr.mxu0 0.0
    %189 = vmatpush1.msra.mxu0 %v171
    %190 = vmatprep.subr.mxu0 0.0
    %191 = vmatpush1.msra.mxu0 %v172
    %192 = vmatprep.subr.mxu0 0.0
    %193 = vmatpush1.msra.mxu0 %v173
    %194 = vmatprep.subr.mxu0 0.0
    %195 = vmatpush1.msra.mxu0 %v174
    %196 = vmatprep.subr.mxu0 0.0
    %197 = vmatpush1.msra.mxu0 %v175
    %198 = vmatprep.subr.mxu0 0.0
    %199 = vmatpush1.msra.mxu0 %v176
    %200 = vmatprep.subr.mxu0 0.0
    %201 = vmatpush1.msra.mxu0 %v177
    %202 = vmatprep.subr.mxu0 0.0
    %203 = vmatpush1.msra.mxu0 %v178
    %204 = vmatprep.subr.mxu0 0.0
    %205 = vmatpush1.msra.mxu0 %v179
    %206 = vmatprep.subr.mxu0 0.0
    %207 = vmatpush1.msra.mxu0 %v180
    %208 = vmatprep.subr.mxu0 0.0
    %209 = vmatpush1.msra.mxu0 %v181
    %210 = vmatprep.subr.mxu0 0.0
    %211 = vmatpush1.msra.mxu0 %v182
    %212 = vmatprep.subr.mxu0 0.0
    %213 = vmatpush1.msra.mxu0 %v183
    %214 = vmatprep.subr.mxu0 0.0
    %215 = vmatpush1.msra.mxu0 %v184
    %216 = vmatprep.subr.mxu0 0.0
    %217 = vmatpush1.msra.mxu0 %v185
    %218 = vmatprep.subr.mxu0 0.0
    %219 = vmatpush1.msra.mxu0 0.0
    %220 = vmatprep.subr.mxu0 0.0
    %221 = vmatpush1.msra.mxu0 0.0
    %222 = vmatprep.subr.mxu0 0.0
    %223 = vmatpush1.msra.mxu0 0.0
    %224 = vmatprep.subr.mxu0 0.0
    %225 = vmatpush1.msra.mxu0 0.0
    %226 = vmatprep.subr.mxu0 0.0
    %227 = vmatpush1.msra.mxu0 0.0
    %228 = vmatprep.subr.mxu0 0.0
    %229 = vmatpush1.msra.mxu0 0.0
    %230 = vmatprep.subr.mxu0 0.0
    %231 = vmatpush1.msra.mxu0 0.0
    %232 = vmatprep.subr.mxu0 0.0
    %233 = vmatpush1.msra.mxu0 0.0
    %234 = vmatprep.subr.mxu0 0.0
    %235 = vmatpush1.msra.mxu0 0.0
    %236 = vmatprep.subr.mxu0 0.0
    %237 = vmatpush1.msra.mxu0 0.0
    %238 = vmatprep.subr.mxu0 0.0
    %239 = vmatpush1.msra.mxu0 0.0
    %240 = vmatprep.subr.mxu0 0.0
    %241 = vmatpush1.msra.mxu0 0.0
    %242 = vmatprep.subr.mxu0 0.0
    %243 = vmatpush1.msra.mxu0 0.0
    %244 = vmatprep.subr.mxu0 0.0
    %245 = vmatpush1.msra.mxu0 0.0
    %246 = vmatprep.subr.mxu0 0.0
    %247 = vmatpush1.msra.mxu0 0.0
    %248 = vmatprep.subr.mxu0 0.0
    %249 = vmatpush1.msra.mxu0 0.0
    %250 = vmatprep.mubr.f32.mxu0 0.0
    %251 = vmatmul.mubr.f32.gmra.mrb[0].mxu0 %v168
    %v252 = vpop.f32.mrb[0].mxu0
    %v253 = vadd.f32 0.0, %v252
    %v254 = vpop.f32.mrb[0].mxu0
    %255 = vmatprep.mubr.f32.mxu0 0.0
    %256 = vmatmul.mubr.f32.gmra.mrb[0].mxu0 %v169
    %v257 = vpop.f32.mrb[0].mxu0
    %v258 = vadd.f32 0.0, %v257
    %v259 = vpop.f32.mrb[0].mxu0
    %260 = vdwg.mxu0
    %261 = vadd.xlane.f32.xlu0 %v253
    %v262 = vpop.xlane.xlu0 %261
    %263 = vadd.xlane.f32.xlu0 %v258
    %v264 = vpop.xlane.xlu0 %263
    %v265 = vmul.f32 %v253, %v253
    %v266 = vmul.f32 %v258, %v258
    %267 = vadd.xlane.f32.xlu0 %v265
    %v268 = vpop.xlane.xlu0 %267
    %269 = vadd.xlane.f32.xlu0 %v266
    %v270 = vpop.xlane.xlu0 %269
    %v271 = vmul.f32 %v262, 0.0078125
    %v272 = vmul.f32 %v264, 0.0078125
    %v273 = vmul.f32 %v268, 0.0078125
    %v274 = vmul.f32 %v270, 0.0078125
    %v275 = vmul.f32 %v271, %v271
    %v276 = vmul.f32 %v272, %v272
    %v277 = vsub.f32 %v273, %v275
    %v278 = vsub.f32 %v274, %v276
    %v279 = vmax.f32 %v277, 0.0
    %v280 = vmax.f32 %v278, 0.0
    %v281 = vsub.f32 %v253, %v271
    %v282 = vsub.f32 %v258, %v272
    %v283 = vadd.f32 %v279, 1e-05
    %v284 = vadd.f32 %v280, 1e-05
    %v285 = vrsqrt.pop %v283
    %v286 = vrsqrt.pop %v284
    %v287 = vmul.f32 %v281, %v285
    %v288 = vmul.f32 %v282, %v286
    %v289 = vlaneseq
    %v290 = vshrl.u32 %v289, 7
    %v291 = vsub.s32 0, %v290
    %v292 = vrot.slane %v36, %v291
    %v293 = vmul.f32 %v287, %v292
    %v294 = vmul.f32 %v288, %v292
    %v295 = vlaneseq
    %v296 = vshrl.u32 %v295, 7
    %v297 = vsub.s32 0, %v296
    %v298 = vrot.slane %v37, %v297
    %v299 = vadd.f32 %v293, %v298
    %v300 = vadd.f32 %v294, %v298
    %v301 = vmax.f32 %v299, 0.0
    %v302 = vmax.f32 %v300, 0.0
    %v303 = vld [vmem:[#allocation2] sm:$0xff]
    %v304 = vld [vmem:[#allocation2 + $0x8] sm:$0xff]
    %v305 = vld [vmem:[#allocation2 + $0x10] sm:$0xff]
    %v306 = vld [vmem:[#allocation2 + $0x18] sm:$0xff]
    %v307 = vld [vmem:[#allocation2 + $0x20] sm:$0xff]
    %v308 = vld [vmem:[#allocation2 + $0x28] sm:$0xff]
    %v309 = vld [vmem:[#allocation2 + $0x30] sm:$0xff]
    %v310 = vld [vmem:[#allocation2 + $0x38] sm:$0xff]
    %v311 = vld [vmem:[#allocation2 + $0x40] sm:$0xff]
    %v312 = vld [vmem:[#allocation2 + $0x48] sm:$0xff]
    %v313 = vld [vmem:[#allocation2 + $0x50] sm:$0xff]
    %v314 = vld [vmem:[#allocation2 + $0x58] sm:$0xff]
    %v315 = vld [vmem:[#allocation2 + $0x60] sm:$0xff]
    %v316 = vld [vmem:[#allocation2 + $0x68] sm:$0xff]
    %v317 = vld [vmem:[#allocation2 + $0x70] sm:$0xff]
    %v318 = vld [vmem:[#allocation2 + $0x78] sm:$0xff]
    %v319 = vlaneseq
    %v320 = vshrl.u32 %v319, 7
    %v321 = vsub.s32 0, %v320
    %v322 = vrot.slane %v38, %v321
    %323 = vmatprep.subr.mxu0 0.0
    %324 = vmatpush1.msra.mxu0 %v303
    %325 = vmatprep.subr.mxu0 0.0
    %326 = vmatpush1.msra.mxu0 %v304
    %327 = vmatprep.subr.mxu0 0.0
    %328 = vmatpush1.msra.mxu0 %v305
    %329 = vmatprep.subr.mxu0 0.0
    %330 = vmatpush1.msra.mxu0 %v306
    %331 = vmatprep.subr.mxu0 0.0
    %332 = vmatpush1.msra.mxu0 %v307
    %333 = vmatprep.subr.mxu0 0.0
    %334 = vmatpush1.msra.mxu0 %v308
    %335 = vmatprep.subr.mxu0 0.0
    %336 = vmatpush1.msra.mxu0 %v309
    %337 = vmatprep.subr.mxu0 0.0
    %338 = vmatpush1.msra.mxu0 %v310
    %339 = vmatprep.subr.mxu0 0.0
    %340 = vmatpush1.msra.mxu0 %v311
    %341 = vmatprep.subr.mxu0 0.0
    %342 = vmatpush1.msra.mxu0 %v312
    %343 = vmatprep.subr.mxu0 0.0
    %344 = vmatpush1.msra.mxu0 %v313
    %345 = vmatprep.subr.mxu0 0.0
    %346 = vmatpush1.msra.mxu0 %v314
    %347 = vmatprep.subr.mxu0 0.0
    %348 = vmatpush1.msra.mxu0 %v315
    %349 = vmatprep.subr.mxu0 0.0
    %350 = vmatpush1.msra.mxu0 %v316
    %351 = vmatprep.subr.mxu0 0.0
    %352 = vmatpush1.msra.mxu0 %v317
    %353 = vmatprep.subr.mxu0 0.0
    %354 = vmatpush1.msra.mxu0 %v318
    %355 = vmatprep.subr.mxu0 0.0
    %356 = vmatpush1.msra.mxu0 0.0
    %357 = vmatprep.subr.mxu0 0.0
    %358 = vmatpush1.msra.mxu0 0.0
    %359 = vmatprep.subr.mxu0 0.0
    %360 = vmatpush1.msra.mxu0 0.0
    %361 = vmatprep.subr.mxu0 0.0
    %362 = vmatpush1.msra.mxu0 0.0
    %363 = vmatprep.subr.mxu0 0.0
    %364 = vmatpush1.msra.mxu0 0.0
    %365 = vmatprep.subr.mxu0 0.0
    %366 = vmatpush1.msra.mxu0 0.0
    %367 = vmatprep.subr.mxu0 0.0
    %368 = vmatpush1.msra.mxu0 0.0
    %369 = vmatprep.subr.mxu0 0.0
    %370 = vmatpush1.msra.mxu0 0.0
    %371 = vmatprep.subr.mxu0 0.0
    %372 = vmatpush1.msra.mxu0 0.0
    %373 = vmatprep.subr.mxu0 0.0
    %374 = vmatpush1.msra.mxu0 0.0
    %375 = vmatprep.subr.mxu0 0.0
    %376 = vmatpush1.msra.mxu0 0.0
    %377 = vmatprep.subr.mxu0 0.0
    %378 = vmatpush1.msra.mxu0 0.0
    %379 = vmatprep.subr.mxu0 0.0
    %380 = vmatpush1.msra.mxu0 0.0
    %381 = vmatprep.subr.mxu0 0.0
    %382 = vmatpush1.msra.mxu0 0.0
    %383 = vmatprep.subr.mxu0 0.0
    %384 = vmatpush1.msra.mxu0 0.0
    %385 = vmatprep.subr.mxu0 0.0
    %386 = vmatpush1.msra.mxu0 0.0
    %387 = vmatprep.mubr.f32.mxu0 0.0
    %388 = vmatmul.mubr.f32.gmra.mrb[0].mxu0 %v301
    %v389 = vpop.f32.mrb[0].mxu0
    %v390 = vadd.f32 %v322, %v389
    %v391 = vpop.f32.mrb[0].mxu0
    %392 = vmatprep.mubr.f32.mxu0 0.0
    %393 = vmatmul.mubr.f32.gmra.mrb[0].mxu0 %v302
    %v394 = vpop.f32.mrb[0].mxu0
    %v395 = vadd.f32 %v322, %v394
    %v396 = vpop.f32.mrb[0].mxu0
    %397 = vdwg.mxu0
    %398 = vst [vmem:[%s5] sm:$0xff] %v390
    %399 = vst [vmem:[%s5 + $0x8] sm:$0xff] %v395
    // Predicated region
    $region26: #{map_latent_encoder.2} parent=1 // pred_check
      _
    $region27: #{map_latent_encoder.2} parent=1 // pred_check_branch
      %401 = sbr.rel (0) target = $region29
    $region28: #{map_latent_encoder.2} parent=1 // pred_region
      _
    $region29: #{map_latent_encoder.2} parent=1 // pred_fallthru
      _
    // Predicated region
    $region30: #{map_latent_encoder.2} parent=1 // pred_check
      _
    $region31: #{map_latent_encoder.2} parent=1 // pred_check_branch
      %403 = sbr.rel (0) target = $region33
    $region32: #{map_latent_encoder.2} parent=1 // pred_region
      _
    $region33: #{map_latent_encoder.2} parent=1 // pred_fallthru
      _
    %404 = vsyncpa [#allocation3], 1

// kernel: map_latent_encoder.3
$region0: #{map_latent_encoder.3}
  #allocation0 [shape = 'u32[]', space=smem, size = 0x4, offset = 0x4, fixed_abs, tag = 'smem constant byte address 0x4 - core index']
  #allocation1 [shape = 'u32[144,128]{1,0:T(1,128)}', space=vmem, size = 0x12000, scoped, tag = 'internal scratch']
  %s0 = inlined_call_operand.hbm [shape: s32[16,64], index: 0, kind: input, shape index: {}]
  %s1 = inlined_call_operand.vmem [shape: f32[16,128], index: 1, kind: input, shape index: {}]
  %s2 = inlined_call_operand.vmem [shape: bf16[128,128], index: 2, kind: input, shape index: {}]
  %s3 = inlined_call_operand.vmem [shape: bf16[128,128], index: 3, kind: input, shape index: {}]
  %s4 = inlined_call_operand.hbm [shape: f32[64,128], index: 4, kind: input, shape index: {}]
  %s5 = inlined_call_operand.vmem [shape: bf16[128,512], index: 5, kind: input, shape index: {}]
  %s6 = inlined_call_operand.hbm [shape: f32[2,512], index: 6, kind: input, shape index: {}]
  %s7 = inlined_call_operand.hbm [shape: bf16[512,128], index: 7, kind: input, shape index: {}]
  %s8 = inlined_call_operand.vmem [shape: f32[1,128], index: 8, kind: input, shape index: {}]
  %s9 = inlined_call_operand.hbm [shape: bf16[1024,128], index: 9, kind: output, shape index: {}]
  %s10 = sld [smem:[#allocation0]]
  $region85: #{map_latent_encoder.3} parent=0
    _
  %s12 = ssub.s32 1, %s10
  %s13 = scalar_select 0, %s12, %s10
  $region1: #{map_latent_encoder.3} parent=0
    #allocation2 [shape = 'u8[8192]{0}', space=vmem, size = 0x2000, scoped, tag = 'input window, operand 0']
    #allocation3 [shape = 's32[2]{0}', space=sflag, size = 0x8, scoped, tag = 'scoped memory for map_latent_encoder.3']
    #allocation4 [shape = 's32[2]{0}', space=sflag, size = 0x8, scoped, tag = 'scoped memory for map_latent_encoder.3']
    #allocation5 [shape = 'u8[32768]{0}', space=vmem, size = 0x8000, scoped, tag = 'input window, operand 4, single buffered']
    #allocation6 [shape = 's32[1]{0}', space=sflag, size = 0x4, scoped, tag = 'scoped memory for map_latent_encoder.3']
    #allocation7 [shape = 'u8[4096]{0}', space=vmem, size = 0x1000, scoped, tag = 'input window, operand 6, single buffered']
    #allocation8 [shape = 'u8[131072]{0}', space=vmem, size = 0x20000, scoped, tag = 'input window, operand 7, single buffered']
    #allocation9 [shape = 's32[1]{0}', space=sflag, size = 0x4, scoped, tag = 'scoped memory for map_latent_encoder.3']
    #allocation10 [shape = 'u8[262144]{0}', space=vmem, size = 0x40000, scoped, tag = 'output window, operand 0']
    %14 = vsyncpa [#allocation3], 0
    %s15 = scalar_lea.sflag [#allocation3], 1
    %16 = vsyncpa %s15, 0
    %17 = vsyncpa [#allocation6], 0
    %18 = vsyncpa [#allocation9], 0
    %19 = vsyncpa [#allocation4], 0
    %s20 = scalar_lea.sflag [#allocation4], 1
    %21 = vsyncpa %s20, 0
    loop: start=0, step=1, limit=4
    $region2: #{map_latent_encoder.3} parent=1 // loop_pre_header
      _
    $region3: #{map_latent_encoder.3} parent=1 // loop_header
      %s23 = sphi 0, %s27
      %p24 = scmp.ge.s32.totalorder %s23, 4
      %s33 = sphi 0, %s35
      %s36 = sphi 0, %s33
      %s37 = sphi 0, %s36
      %s53 = sphi 0, %s37
      %s59 = sphi 0, %s61
      %s62 = sphi 0, %s59
      %s63 = sphi 0, %s62
      %s79 = sphi 0, %s63
      %s83 = sphi 0, %s83
      %s85 = sphi 0, %s83
      %s86 = sphi 0, %s85
      %s100 = sphi 0, %s86
      %s104 = sphi 0, %s104
      %s106 = sphi 0, %s104
      %s107 = sphi 0, %s106
      %s121 = sphi 0, %s107
      %s125 = sphi 0, %s125
      %s127 = sphi 0, %s125
      %s128 = sphi 0, %s127
      %s142 = sphi 0, %s128
      %s146 = sphi 0, %s146
      %s148 = sphi 0, %s146
      %s149 = sphi 0, %s148
      %s163 = sphi 0, %s149
      %s167 = sphi 0, %s167
      %s169 = sphi 0, %s167
      %s170 = sphi 0, %s169
      %s184 = sphi 0, %s170
      %s188 = sphi 0, %s188
      %s190 = sphi 0, %s188
      %s191 = sphi 0, %s190
      %s205 = sphi 0, %s191
      %s209 = sphi 0, %s209
      %s211 = sphi 0, %s209
      %s212 = sphi 0, %s211
      %s226 = sphi 0, %s212
      %s232 = sphi 0, %s234
      %s235 = sphi 0, %s232
      %s236 = sphi 0, %s235
      %s252 = sphi 0, %s236
    $region4: #{map_latent_encoder.3} parent=1 // loop_header_branch
      %26 = sbr.rel (%p24) target = $region8
    $region5: #{map_latent_encoder.3} parent=1 // loop_body
      %s28 = ssub.s32 %s23, 1
      %s29 = ssub.s32 %s23, 2
      %s30 = sadd.s32 %s23, 1
      %s31 = ssub.s32 %s23, %s30
      %p32 = scmp.eq.s32.totalorder %s31, 0
      %s34 = sadd.s32 %s33, 1
      %s35 = scalar_select %p32, %s33, %s34
      %p38 = pneg %p32
      %p39 = scmp.eq.s32.totalorder %s23, 1
      %p40 = por %p38, %p39
      %p41 = scmp.ne.s32.totalorder %s33, %s36
      %p42 = scmp.eq.s32.totalorder %s23, 0
      %p43 = por %p41, %p42
      %p44 = scmp.ne.s32.totalorder %s33, %s36
      %p45 = scmp.eq.s32.totalorder %s28, 1
      %p46 = por %p44, %p45
      %p47 = scmp.ne.s32.totalorder %s36, %s37
      %p48 = scmp.eq.s32.totalorder %s28, 0
      %p49 = por %p47, %p48
      %p50 = scmp.ne.s32.totalorder %s36, %s37
      %p51 = scmp.eq.s32.totalorder %s29, 1
      %p52 = por %p50, %p51
      %p54 = scmp.ne.s32.totalorder %s37, %s53
      %p55 = scmp.eq.s32.totalorder %s29, 0
      %p56 = por %p54, %p55
      %s57 = ssub.s32 %s23, %s30
      %p58 = scmp.eq.s32.totalorder %s57, 0
      %s60 = sadd.s32 %s59, 1
      %s61 = scalar_select %p58, %s59, %s60
      %p64 = pneg %p58
      %p65 = scmp.eq.s32.totalorder %s23, 1
      %p66 = por %p64, %p65
      %p67 = scmp.ne.s32.totalorder %s59, %s62
      %p68 = scmp.eq.s32.totalorder %s23, 0
      %p69 = por %p67, %p68
      %p70 = scmp.ne.s32.totalorder %s59, %s62
      %p71 = scmp.eq.s32.totalorder %s28, 1
      %p72 = por %p70, %p71
      %p73 = scmp.ne.s32.totalorder %s62, %s63
      %p74 = scmp.eq.s32.totalorder %s28, 0
      %p75 = por %p73, %p74
      %p76 = scmp.ne.s32.totalorder %s62, %s63
      %p77 = scmp.eq.s32.totalorder %s29, 1
      %p78 = por %p76, %p77
      %p80 = scmp.ne.s32.totalorder %s63, %s79
      %p81 = scmp.eq.s32.totalorder %s29, 0
      %p82 = por %p80, %p81
      %s84 = sadd.s32 %s83, 1
      %p87 = scmp.eq.s32.totalorder %s23, 1
      %p88 = scmp.ne.s32.totalorder %s83, %s85
      %p89 = scmp.eq.s32.totalorder %s23, 0
      %p90 = por %p88, %p89
      %p91 = scmp.ne.s32.totalorder %s83, %s85
      %p92 = scmp.eq.s32.totalorder %s28, 1
      %p93 = por %p91, %p92
      %p94 = scmp.ne.s32.totalorder %s85, %s86
      %p95 = scmp.eq.s32.totalorder %s28, 0
      %p96 = por %p94, %p95
      %p97 = scmp.ne.s32.totalorder %s85, %s86
      %p98 = scmp.eq.s32.totalorder %s29, 1
      %p99 = por %p97, %p98
      %p101 = scmp.ne.s32.totalorder %s86, %s100
      %p102 = scmp.eq.s32.totalorder %s29, 0
      %p103 = por %p101, %p102
      %s105 = sadd.s32 %s104, 1
      %p108 = scmp.eq.s32.totalorder %s23, 1
      %p109 = scmp.ne.s32.totalorder %s104, %s106
      %p110 = scmp.eq.s32.totalorder %s23, 0
      %p111 = por %p109, %p110
      %p112 = scmp.ne.s32.totalorder %s104, %s106
      %p113 = scmp.eq.s32.totalorder %s28, 1
      %p114 = por %p112, %p113
      %p115 = scmp.ne.s32.totalorder %s106, %s107
      %p116 = scmp.eq.s32.totalorder %s28, 0
      %p117 = por %p115, %p116
      %p118 = scmp.ne.s32.totalorder %s106, %s107
      %p119 = scmp.eq.s32.totalorder %s29, 1
      %p120 = por %p118, %p119
      %p122 = scmp.ne.s32.totalorder %s107, %s121
      %p123 = scmp.eq.s32.totalorder %s29, 0
      %p124 = por %p122, %p123
      %s126 = sadd.s32 %s125, 1
      %p129 = scmp.eq.s32.totalorder %s23, 1
      %p130 = scmp.ne.s32.totalorder %s125, %s127
      %p131 = scmp.eq.s32.totalorder %s23, 0
      %p132 = por %p130, %p131
      %p133 = scmp.ne.s32.totalorder %s125, %s127
      %p134 = scmp.eq.s32.totalorder %s28, 1
      %p135 = por %p133, %p134
      %p136 = scmp.ne.s32.totalorder %s127, %s128
      %p137 = scmp.eq.s32.totalorder %s28, 0
      %p138 = por %p136, %p137
      %p139 = scmp.ne.s32.totalorder %s127, %s128
      %p140 = scmp.eq.s32.totalorder %s29, 1
      %p141 = por %p139, %p140
      %p143 = scmp.ne.s32.totalorder %s128, %s142
      %p144 = scmp.eq.s32.totalorder %s29, 0
      %p145 = por %p143, %p144
      %s147 = sadd.s32 %s146, 1
      %p150 = scmp.eq.s32.totalorder %s23, 1
      %p151 = scmp.ne.s32.totalorder %s146, %s148
      %p152 = scmp.eq.s32.totalorder %s23, 0
      %p153 = por %p151, %p152
      %p154 = scmp.ne.s32.totalorder %s146, %s148
      %p155 = scmp.eq.s32.totalorder %s28, 1
      %p156 = por %p154, %p155
      %p157 = scmp.ne.s32.totalorder %s148, %s149
      %p158 = scmp.eq.s32.totalorder %s28, 0
      %p159 = por %p157, %p158
      %p160 = scmp.ne.s32.totalorder %s148, %s149
      %p161 = scmp.eq.s32.totalorder %s29, 1
      %p162 = por %p160, %p161
      %p164 = scmp.ne.s32.totalorder %s149, %s163
      %p165 = scmp.eq.s32.totalorder %s29, 0
      %p166 = por %p164, %p165
      %s168 = sadd.s32 %s167, 1
      %p171 = scmp.eq.s32.totalorder %s23, 1
      %p172 = scmp.ne.s32.totalorder %s167, %s169
      %p173 = scmp.eq.s32.totalorder %s23, 0
      %p174 = por %p172, %p173
      %p175 = scmp.ne.s32.totalorder %s167, %s169
      %p176 = scmp.eq.s32.totalorder %s28, 1
      %p177 = por %p175, %p176
      %p178 = scmp.ne.s32.totalorder %s169, %s170
      %p179 = scmp.eq.s32.totalorder %s28, 0
      %p180 = por %p178, %p179
      %p181 = scmp.ne.s32.totalorder %s169, %s170
      %p182 = scmp.eq.s32.totalorder %s29, 1
      %p183 = por %p181, %p182
      %p185 = scmp.ne.s32.totalorder %s170, %s184
      %p186 = scmp.eq.s32.totalorder %s29, 0
      %p187 = por %p185, %p186
      %s189 = sadd.s32 %s188, 1
      %p192 = scmp.eq.s32.totalorder %s23, 1
      %p193 = scmp.ne.s32.totalorder %s188, %s190
      %p194 = scmp.eq.s32.totalorder %s23, 0
      %p195 = por %p193, %p194
      %p196 = scmp.ne.s32.totalorder %s188, %s190
      %p197 = scmp.eq.s32.totalorder %s28, 1
      %p198 = por %p196, %p197
      %p199 = scmp.ne.s32.totalorder %s190, %s191
      %p200 = scmp.eq.s32.totalorder %s28, 0
      %p201 = por %p199, %p200
      %p202 = scmp.ne.s32.totalorder %s190, %s191
      %p203 = scmp.eq.s32.totalorder %s29, 1
      %p204 = por %p202, %p203
      %p206 = scmp.ne.s32.totalorder %s191, %s205
      %p207 = scmp.eq.s32.totalorder %s29, 0
      %p208 = por %p206, %p207
      %s210 = sadd.s32 %s209, 1
      %p213 = scmp.eq.s32.totalorder %s23, 1
      %p214 = scmp.ne.s32.totalorder %s209, %s211
      %p215 = scmp.eq.s32.totalorder %s23, 0
      %p216 = por %p214, %p215
      %p217 = scmp.ne.s32.totalorder %s209, %s211
      %p218 = scmp.eq.s32.totalorder %s28, 1
      %p219 = por %p217, %p218
      %p220 = scmp.ne.s32.totalorder %s211, %s212
      %p221 = scmp.eq.s32.totalorder %s28, 0
      %p222 = por %p220, %p221
      %p223 = scmp.ne.s32.totalorder %s211, %s212
      %p224 = scmp.eq.s32.totalorder %s29, 1
      %p225 = por %p223, %p224
      %p227 = scmp.ne.s32.totalorder %s212, %s226
      %p228 = scmp.eq.s32.totalorder %s29, 0
      %p229 = por %p227, %p228
      %s230 = ssub.s32 %s23, %s30
      %p231 = scmp.eq.s32.totalorder %s230, 0
      %s233 = sadd.s32 %s232, 1
      %s234 = scalar_select %p231, %s232, %s233
      %p237 = pneg %p231
      %p238 = scmp.eq.s32.totalorder %s23, 1
      %p239 = por %p237, %p238
      %p240 = scmp.ne.s32.totalorder %s232, %s235
      %p241 = scmp.eq.s32.totalorder %s23, 0
      %p242 = por %p240, %p241
      %p243 = scmp.ne.s32.totalorder %s232, %s235
      %p244 = scmp.eq.s32.totalorder %s28, 1
      %p245 = por %p243, %p244
      %p246 = scmp.ne.s32.totalorder %s235, %s236
      %p247 = scmp.eq.s32.totalorder %s28, 0
      %p248 = por %p246, %p247
      %p249 = scmp.ne.s32.totalorder %s235, %s236
      %p250 = scmp.eq.s32.totalorder %s29, 1
      %p251 = por %p249, %p250
      %p253 = scmp.ne.s32.totalorder %s236, %s252
      %p254 = scmp.eq.s32.totalorder %s29, 0
      %p255 = por %p253, %p254
      %p256 = scmp.le.s32.totalorder 1, %s23
      %p257 = scmp.lt.s32.totalorder %s23, 3
      %p258 = pnand %p256, %p257
      %p259 = pneg %p258
      // Predicated region
      $region9: #{map_latent_encoder.3} parent=5 // pred_check
        _
      $region10: #{map_latent_encoder.3} parent=5 // pred_check_branch
        %261 = sbr.rel (%p258) target = $region12
      $region11: #{map_latent_encoder.3} parent=5 // pred_region
        %s262 = ssub.s32 %s23, 1
        // Predicated region
        $region13: #{map_latent_encoder.3} parent=11 // pred_check
          %p263 = pneg %p96
        $region14: #{map_latent_encoder.3} parent=11 // pred_check_branch
          %265 = sbr.rel (%p263) target = $region16
        $region15: #{map_latent_encoder.3} parent=11 // pred_region
          _
        $region16: #{map_latent_encoder.3} parent=11 // pred_fallthru
          _
        // Predicated region
        $region17: #{map_latent_encoder.3} parent=11 // pred_check
          %p266 = pneg %p117
        $region18: #{map_latent_encoder.3} parent=11 // pred_check_branch
          %268 = sbr.rel (%p266) target = $region20
        $region19: #{map_latent_encoder.3} parent=11 // pred_region
          _
        $region20: #{map_latent_encoder.3} parent=11 // pred_fallthru
          _
        // Predicated region
        $region21: #{map_latent_encoder.3} parent=11 // pred_check
          %p269 = pneg %p138
        $region22: #{map_latent_encoder.3} parent=11 // pred_check_branch
          %271 = sbr.rel (%p269) target = $region24
        $region23: #{map_latent_encoder.3} parent=11 // pred_region
          %s273 = ssub.s32 1024, 1024
          %274 = vsyncadd [#allocation6], %s273
          %s275 = sshll.u32 [#allocation5], 4
          %s276 = int_to_ptr.vmem [resolvable:$true] %s275
          %281 = dma.hbm_to_vmem [thread:$0]  %s4, 1024, %s276, [#allocation6], 128, 128, 8
        $region24: #{map_latent_encoder.3} parent=11 // pred_fallthru
          _
        // Predicated region
        $region25: #{map_latent_encoder.3} parent=11 // pred_check
          %p282 = pneg %p159
        $region26: #{map_latent_encoder.3} parent=11 // pred_check_branch
          %284 = sbr.rel (%p282) target = $region28
        $region27: #{map_latent_encoder.3} parent=11 // pred_region
          _
        $region28: #{map_latent_encoder.3} parent=11 // pred_fallthru
          _
        // Predicated region
        $region29: #{map_latent_encoder.3} parent=11 // pred_check
          %p285 = pneg %p180
        $region30: #{map_latent_encoder.3} parent=11 // pred_check_branch
          %287 = sbr.rel (%p285) target = $region32
        $region31: #{map_latent_encoder.3} parent=11 // pred_region
          %s289 = ssub.s32 128, 128
          %290 = vsyncadd [#allocation6], %s289
          %s292 = sshll.u32 [#allocation7], 4
          %s293 = int_to_ptr.vmem [resolvable:$true] %s292
          %295 = dma.hbm_to_vmem [thread:$0]  %s6, 128, %s293, [#allocation6]
        $region32: #{map_latent_encoder.3} parent=11 // pred_fallthru
          _
        // Predicated region
        $region33: #{map_latent_encoder.3} parent=11 // pred_check
          %p296 = pneg %p201
        $region34: #{map_latent_encoder.3} parent=11 // pred_check_branch
          %298 = sbr.rel (%p296) target = $region36
        $region35: #{map_latent_encoder.3} parent=11 // pred_region
          %s300 = ssub.s32 4096, 4096
          %301 = vsyncadd [#allocation9], %s300
          %s302 = sshll.u32 [#allocation8], 4
          %s303 = int_to_ptr.vmem [resolvable:$true] %s302
          %308 = dma.hbm_to_vmem [thread:$0]  %s7, 4096, %s303, [#allocation9], 64, 64, 4
        $region36: #{map_latent_encoder.3} parent=11 // pred_fallthru
          _
        // Predicated region
        $region37: #{map_latent_encoder.3} parent=11 // pred_check
          %p309 = pneg %p222
        $region38: #{map_latent_encoder.3} parent=11 // pred_check_branch
          %311 = sbr.rel (%p309) target = $region40
        $region39: #{map_latent_encoder.3} parent=11 // pred_region
          _
        $region40: #{map_latent_encoder.3} parent=11 // pred_fallthru
          _
      $region12: #{map_latent_encoder.3} parent=5 // pred_fallthru
        _
      %p312 = scmp.lt.s32.totalorder %s23, 2
      // Predicated region
      $region41: #{map_latent_encoder.3} parent=5 // pred_check
        %p313 = pneg %p312
      $region42: #{map_latent_encoder.3} parent=5 // pred_check_branch
        %315 = sbr.rel (%p313) target = $region44
      $region43: #{map_latent_encoder.3} parent=5 // pred_region
        // Predicated region
        $region45: #{map_latent_encoder.3} parent=43 // pred_check
          %p316 = pneg %p43
        $region46: #{map_latent_encoder.3} parent=43 // pred_check_branch
          %318 = sbr.rel (%p316) target = $region48
        $region47: #{map_latent_encoder.3} parent=43 // pred_region
          %s319 = sand.u32 %s33, 1
          %s320 = scalar_lea.sflag [#allocation3], %s319
          %s321 = sand.u32 %s33, 1
          %s322 = smul.addr %s321, 8
          %s323 = scalar_lea.vmem [#allocation2], %s322
          %s325 = ssub.s32 128, 128
          %326 = vsyncadd %s320, %s325
          %s327 = smul.addr %s23, 128
          %s328 = scalar_lea.hbm %s0, %s327
          %s330 = sshll.u32 %s323, 4
          %s331 = int_to_ptr.vmem [resolvable:$true] %s330
          %333 = dma.hbm_to_vmem [thread:$0]  %s328, 128, %s331, %s320
        $region48: #{map_latent_encoder.3} parent=43 // pred_fallthru
          _
        // Predicated region
        $region49: #{map_latent_encoder.3} parent=43 // pred_check
          %p334 = pneg %p69
        $region50: #{map_latent_encoder.3} parent=43 // pred_check_branch
          %336 = sbr.rel (%p334) target = $region52
        $region51: #{map_latent_encoder.3} parent=43 // pred_region
          %p337 = scmp.lt.s32.totalorder %s23, 1
          %s338 = scalar_select %p337, %s23, 1
          %s339 = smul.addr %s338, 8
          %s340 = scalar_lea.vmem %s1, %s339
        $region52: #{map_latent_encoder.3} parent=43 // pred_fallthru
          _
      $region44: #{map_latent_encoder.3} parent=5 // pred_fallthru
        _
      %p341 = scmp.le.s32.totalorder 1, %s23
      %p342 = scmp.lt.s32.totalorder %s23, 3
      %p343 = pnand %p341, %p342
      %p344 = pneg %p343
      // Predicated region
      $region53: #{map_latent_encoder.3} parent=5 // pred_check
        _
      $region54: #{map_latent_encoder.3} parent=5 // pred_check_branch
        %346 = sbr.rel (%p343) target = $region56
      $region55: #{map_latent_encoder.3} parent=5 // pred_region
        %s347 = ssub.s32 %s23, 1
        %s348 = sand.u32 %s36, 1
        %s349 = scalar_lea.sflag [#allocation3], %s348
        %s350 = sand.u32 %s36, 1
        %s351 = smul.addr %s350, 8
        %s352 = scalar_lea.vmem [#allocation2], %s351
        // Predicated region
        $region57: #{map_latent_encoder.3} parent=55 // pred_check
          %p353 = pneg %p49
        $region58: #{map_latent_encoder.3} parent=55 // pred_check_branch
          %355 = sbr.rel (%p353) target = $region60
        $region59: #{map_latent_encoder.3} parent=55 // pred_region
          %356 = dma.done %s349, 128
        $region60: #{map_latent_encoder.3} parent=55 // pred_fallthru
          _
        // Predicated region
        $region61: #{map_latent_encoder.3} parent=55 // pred_check
          %p357 = pneg %p138
        $region62: #{map_latent_encoder.3} parent=55 // pred_check_branch
          %359 = sbr.rel (%p357) target = $region64
        $region63: #{map_latent_encoder.3} parent=55 // pred_region
          %360 = dma.done [#allocation6], 1024
        $region64: #{map_latent_encoder.3} parent=55 // pred_fallthru
          _
        // Predicated region
        $region65: #{map_latent_encoder.3} parent=55 // pred_check
          %p361 = pneg %p180
        $region66: #{map_latent_encoder.3} parent=55 // pred_check_branch
          %363 = sbr.rel (%p361) target = $region68
        $region67: #{map_latent_encoder.3} parent=55 // pred_region
          %364 = dma.done [#allocation6], 128
        $region68: #{map_latent_encoder.3} parent=55 // pred_fallthru
          _
        // Predicated region
        $region69: #{map_latent_encoder.3} parent=55 // pred_check
          %p365 = pneg %p201
        $region70: #{map_latent_encoder.3} parent=55 // pred_check_branch
          %367 = sbr.rel (%p365) target = $region72
        $region71: #{map_latent_encoder.3} parent=55 // pred_region
          %368 = dma.done [#allocation9], 4096
        $region72: #{map_latent_encoder.3} parent=55 // pred_fallthru
          _
        %s369 = sand.u32 %s36, 1
        %s370 = scalar_lea.sflag [#allocation3], %s369
        %s371 = sand.u32 %s36, 1
        %s372 = smul.addr %s371, 8
        %s373 = scalar_lea.vmem [#allocation2], %s372
        %p374 = pneg %p49
        %p375 = pneg %p46
        %p376 = scmp.lt.s32.totalorder %s28, 1
        %s377 = scalar_select %p376, %s28, 1
        %s378 = smul.addr %s377, 8
        %s379 = scalar_lea.vmem %s1, %s378
        %p380 = pneg %p75
        %p381 = pneg %p72
        %p382 = pneg %p96
        %p383 = pneg %p93
        %p384 = pneg %p117
        %p385 = pneg %p114
        %p386 = pneg %p138
        %p387 = pneg %p135
        %p388 = pneg %p159
        %p389 = pneg %p156
        %p390 = pneg %p180
        %p391 = pneg %p177
        %p392 = pneg %p201
        %p393 = pneg %p198
        %p394 = pneg %p222
        %p395 = pneg %p219
        %p396 = pneg %p248
        %p397 = pneg %p245
        %s398 = sand.u32 %s235, 1
        %s399 = scalar_lea.sflag [#allocation4], %s398
        %s400 = sand.u32 %s235, 1
        %s401 = smul.addr %s400, 256
        %s402 = scalar_lea.vmem [#allocation10], %s401
        %p403 = scmp.lt.s32.totalorder %s28, 1
        %s404 = scalar_select %p403, %s28, 1
        %s405 = smul.addr %s404, 8
        %s406 = scalar_lea.vmem %s1, %s405
        %s407 = smul.u32 64, %s28
        %v409 = vld [vmem:[%s352] sm:$0xff]
        %v410 = vlaneseq
        %v411 = vshrl.u32 %v410, 7
        %v412 = vsub.s32 0, %v411
        %v413 = vrot.slane %v409, %v412
        %415 = vbcast.lane.b32.xlu0 %v413, 256
        %v416 = vpop.permute.xlu0 %415
        %s418 = sor.u32 256, 8
        %419 = vbcast.lane.b32.xlu0 %v413, %s418
        %v420 = vpop.permute.xlu0 %419
        %s422 = sor.u32 256, 16
        %423 = vbcast.lane.b32.xlu0 %v413, %s422
        %v424 = vpop.permute.xlu0 %423
        %s426 = sor.u32 256, 24
        %427 = vbcast.lane.b32.xlu0 %v413, %s426
        %v428 = vpop.permute.xlu0 %427
        %s430 = sor.u32 256, 32
        %431 = vbcast.lane.b32.xlu0 %v413, %s430
        %v432 = vpop.permute.xlu0 %431
        %s434 = sor.u32 256, 40
        %435 = vbcast.lane.b32.xlu0 %v413, %s434
        %v436 = vpop.permute.xlu0 %435
        %s438 = sor.u32 256, 48
        %439 = vbcast.lane.b32.xlu0 %v413, %s438
        %v440 = vpop.permute.xlu0 %439
        %s442 = sor.u32 256, 56
        %443 = vbcast.lane.b32.xlu0 %v413, %s442
        %v444 = vpop.permute.xlu0 %443
        %v445 = vlaneseq
        %v446 = vshrl.u32 %v445, 7
        %v447 = vsub.s32 1, %v446
        %v448 = vrot.slane %v409, %v447
        %450 = vbcast.lane.b32.xlu0 %v448, 256
        %v451 = vpop.permute.xlu0 %450
        %s453 = sor.u32 256, 8
        %454 = vbcast.lane.b32.xlu0 %v448, %s453
        %v455 = vpop.permute.xlu0 %454
        %s457 = sor.u32 256, 16
        %458 = vbcast.lane.b32.xlu0 %v448, %s457
        %v459 = vpop.permute.xlu0 %458
        %s461 = sor.u32 256, 24
        %462 = vbcast.lane.b32.xlu0 %v448, %s461
        %v463 = vpop.permute.xlu0 %462
        %s465 = sor.u32 256, 32
        %466 = vbcast.lane.b32.xlu0 %v448, %s465
        %v467 = vpop.permute.xlu0 %466
        %s469 = sor.u32 256, 40
        %470 = vbcast.lane.b32.xlu0 %v448, %s469
        %v471 = vpop.permute.xlu0 %470
        %s473 = sor.u32 256, 48
        %474 = vbcast.lane.b32.xlu0 %v448, %s473
        %v475 = vpop.permute.xlu0 %474
        %s477 = sor.u32 256, 56
        %478 = vbcast.lane.b32.xlu0 %v448, %s477
        %v479 = vpop.permute.xlu0 %478
        %v480 = vlaneseq
        %v481 = vshrl.u32 %v480, 7
        %v482 = vsub.s32 2, %v481
        %v483 = vrot.slane %v409, %v482
        %485 = vbcast.lane.b32.xlu0 %v483, 256
        %v486 = vpop.permute.xlu0 %485
        %s488 = sor.u32 256, 8
        %489 = vbcast.lane.b32.xlu0 %v483, %s488
        %v490 = vpop.permute.xlu0 %489
        %s492 = sor.u32 256, 16
        %493 = vbcast.lane.b32.xlu0 %v483, %s492
        %v494 = vpop.permute.xlu0 %493
        %s496 = sor.u32 256, 24
        %497 = vbcast.lane.b32.xlu0 %v483, %s496
        %v498 = vpop.permute.xlu0 %497
        %s500 = sor.u32 256, 32
        %501 = vbcast.lane.b32.xlu0 %v483, %s500
        %v502 = vpop.permute.xlu0 %501
        %s504 = sor.u32 256, 40
        %505 = vbcast.lane.b32.xlu0 %v483, %s504
        %v506 = vpop.permute.xlu0 %505
        %s508 = sor.u32 256, 48
        %509 = vbcast.lane.b32.xlu0 %v483, %s508
        %v510 = vpop.permute.xlu0 %509
        %s512 = sor.u32 256, 56
        %513 = vbcast.lane.b32.xlu0 %v483, %s512
        %v514 = vpop.permute.xlu0 %513
        %v515 = vlaneseq
        %v516 = vshrl.u32 %v515, 7
        %v517 = vsub.s32 3, %v516
        %v518 = vrot.slane %v409, %v517
        %520 = vbcast.lane.b32.xlu0 %v518, 256
        %v521 = vpop.permute.xlu0 %520
        %s523 = sor.u32 256, 8
        %524 = vbcast.lane.b32.xlu0 %v518, %s523
        %v525 = vpop.permute.xlu0 %524
        %s527 = sor.u32 256, 16
        %528 = vbcast.lane.b32.xlu0 %v518, %s527
        %v529 = vpop.permute.xlu0 %528
        %s531 = sor.u32 256, 24
        %532 = vbcast.lane.b32.xlu0 %v518, %s531
        %v533 = vpop.permute.xlu0 %532
        %s535 = sor.u32 256, 32
        %536 = vbcast.lane.b32.xlu0 %v518, %s535
        %v537 = vpop.permute.xlu0 %536
        %s539 = sor.u32 256, 40
        %540 = vbcast.lane.b32.xlu0 %v518, %s539
        %v541 = vpop.permute.xlu0 %540
        %s543 = sor.u32 256, 48
        %544 = vbcast.lane.b32.xlu0 %v518, %s543
        %v545 = vpop.permute.xlu0 %544
        %s547 = sor.u32 256, 56
        %548 = vbcast.lane.b32.xlu0 %v518, %s547
        %v549 = vpop.permute.xlu0 %548
        %v550 = vlaneseq
        %v551 = vshrl.u32 %v550, 7
        %v552 = vsub.s32 4, %v551
        %v553 = vrot.slane %v409, %v552
        %555 = vbcast.lane.b32.xlu0 %v553, 256
        %v556 = vpop.permute.xlu0 %555
        %s558 = sor.u32 256, 8
        %559 = vbcast.lane.b32.xlu0 %v553, %s558
        %v560 = vpop.permute.xlu0 %559
        %s562 = sor.u32 256, 16
        %563 = vbcast.lane.b32.xlu0 %v553, %s562
        %v564 = vpop.permute.xlu0 %563
        %s566 = sor.u32 256, 24
        %567 = vbcast.lane.b32.xlu0 %v553, %s566
        %v568 = vpop.permute.xlu0 %567
        %s570 = sor.u32 256, 32
        %571 = vbcast.lane.b32.xlu0 %v553, %s570
        %v572 = vpop.permute.xlu0 %571
        %s574 = sor.u32 256, 40
        %575 = vbcast.lane.b32.xlu0 %v553, %s574
        %v576 = vpop.permute.xlu0 %575
        %s578 = sor.u32 256, 48
        %579 = vbcast.lane.b32.xlu0 %v553, %s578
        %v580 = vpop.permute.xlu0 %579
        %s582 = sor.u32 256, 56
        %583 = vbcast.lane.b32.xlu0 %v553, %s582
        %v584 = vpop.permute.xlu0 %583
        %v585 = vlaneseq
        %v586 = vshrl.u32 %v585, 7
        %v587 = vsub.s32 5, %v586
        %v588 = vrot.slane %v409, %v587
        %590 = vbcast.lane.b32.xlu0 %v588, 256
        %v591 = vpop.permute.xlu0 %590
        %s593 = sor.u32 256, 8
        %594 = vbcast.lane.b32.xlu0 %v588, %s593
        %v595 = vpop.permute.xlu0 %594
        %s597 = sor.u32 256, 16
        %598 = vbcast.lane.b32.xlu0 %v588, %s597
        %v599 = vpop.permute.xlu0 %598
        %s601 = sor.u32 256, 24
        %602 = vbcast.lane.b32.xlu0 %v588, %s601
        %v603 = vpop.permute.xlu0 %602
        %s605 = sor.u32 256, 32
        %606 = vbcast.lane.b32.xlu0 %v588, %s605
        %v607 = vpop.permute.xlu0 %606
        %s609 = sor.u32 256, 40
        %610 = vbcast.lane.b32.xlu0 %v588, %s609
        %v611 = vpop.permute.xlu0 %610
        %s613 = sor.u32 256, 48
        %614 = vbcast.lane.b32.xlu0 %v588, %s613
        %v615 = vpop.permute.xlu0 %614
        %s617 = sor.u32 256, 56
        %618 = vbcast.lane.b32.xlu0 %v588, %s617
        %v619 = vpop.permute.xlu0 %618
        %v620 = vlaneseq
        %v621 = vshrl.u32 %v620, 7
        %v622 = vsub.s32 6, %v621
        %v623 = vrot.slane %v409, %v622
        %625 = vbcast.lane.b32.xlu0 %v623, 256
        %v626 = vpop.permute.xlu0 %625
        %s628 = sor.u32 256, 8
        %629 = vbcast.lane.b32.xlu0 %v623, %s628
        %v630 = vpop.permute.xlu0 %629
        %s632 = sor.u32 256, 16
        %633 = vbcast.lane.b32.xlu0 %v623, %s632
        %v634 = vpop.permute.xlu0 %633
        %s636 = sor.u32 256, 24
        %637 = vbcast.lane.b32.xlu0 %v623, %s636
        %v638 = vpop.permute.xlu0 %637
        %s640 = sor.u32 256, 32
        %641 = vbcast.lane.b32.xlu0 %v623, %s640
        %v642 = vpop.permute.xlu0 %641
        %s644 = sor.u32 256, 40
        %645 = vbcast.lane.b32.xlu0 %v623, %s644
        %v646 = vpop.permute.xlu0 %645
        %s648 = sor.u32 256, 48
        %649 = vbcast.lane.b32.xlu0 %v623, %s648
        %v650 = vpop.permute.xlu0 %649
        %s652 = sor.u32 256, 56
        %653 = vbcast.lane.b32.xlu0 %v623, %s652
        %v654 = vpop.permute.xlu0 %653
        %v655 = vlaneseq
        %v656 = vshrl.u32 %v655, 7
        %v657 = vsub.s32 7, %v656
        %v658 = vrot.slane %v409, %v657
        %660 = vbcast.lane.b32.xlu0 %v658, 256
        %v661 = vpop.permute.xlu0 %660
        %s663 = sor.u32 256, 8
        %664 = vbcast.lane.b32.xlu0 %v658, %s663
        %v665 = vpop.permute.xlu0 %664
        %s667 = sor.u32 256, 16
        %668 = vbcast.lane.b32.xlu0 %v658, %s667
        %v669 = vpop.permute.xlu0 %668
        %s671 = sor.u32 256, 24
        %672 = vbcast.lane.b32.xlu0 %v658, %s671
        %v673 = vpop.permute.xlu0 %672
        %s675 = sor.u32 256, 32
        %676 = vbcast.lane.b32.xlu0 %v658, %s675
        %v677 = vpop.permute.xlu0 %676
        %s679 = sor.u32 256, 40
        %680 = vbcast.lane.b32.xlu0 %v658, %s679
        %v681 = vpop.permute.xlu0 %680
        %s683 = sor.u32 256, 48
        %684 = vbcast.lane.b32.xlu0 %v658, %s683
        %v685 = vpop.permute.xlu0 %684
        %s687 = sor.u32 256, 56
        %688 = vbcast.lane.b32.xlu0 %v658, %s687
        %v689 = vpop.permute.xlu0 %688
        %v690 = vlaneseq
        %v691 = vand.u32 %v690, 127
        %vm692 = vcmp.eq.s32.totalorder %v691, %v416
        %vm693 = vcmp.eq.s32.totalorder %v691, %v420
        %vm694 = vcmp.eq.s32.totalorder %v691, %v424
        %vm695 = vcmp.eq.s32.totalorder %v691, %v428
        %vm696 = vcmp.eq.s32.totalorder %v691, %v432
        %vm697 = vcmp.eq.s32.totalorder %v691, %v436
        %vm698 = vcmp.eq.s32.totalorder %v691, %v440
        %vm699 = vcmp.eq.s32.totalorder %v691, %v444
        %vm700 = vcmp.eq.s32.totalorder %v691, %v451
        %vm701 = vcmp.eq.s32.totalorder %v691, %v455
        %vm702 = vcmp.eq.s32.totalorder %v691, %v459
        %vm703 = vcmp.eq.s32.totalorder %v691, %v463
        %vm704 = vcmp.eq.s32.totalorder %v691, %v467
        %vm705 = vcmp.eq.s32.totalorder %v691, %v471
        %vm706 = vcmp.eq.s32.totalorder %v691, %v475
        %vm707 = vcmp.eq.s32.totalorder %v691, %v479
        %vm708 = vcmp.eq.s32.totalorder %v691, %v486
        %vm709 = vcmp.eq.s32.totalorder %v691, %v490
        %vm710 = vcmp.eq.s32.totalorder %v691, %v494
        %vm711 = vcmp.eq.s32.totalorder %v691, %v498
        %vm712 = vcmp.eq.s32.totalorder %v691, %v502
        %vm713 = vcmp.eq.s32.totalorder %v691, %v506
        %vm714 = vcmp.eq.s32.totalorder %v691, %v510
        %vm715 = vcmp.eq.s32.totalorder %v691, %v514
        %vm716 = vcmp.eq.s32.totalorder %v691, %v521
        %vm717 = vcmp.eq.s32.totalorder %v691, %v525
        %vm718 = vcmp.eq.s32.totalorder %v691, %v529
        %vm719 = vcmp.eq.s32.totalorder %v691, %v533
        %vm720 = vcmp.eq.s32.totalorder %v691, %v537
        %vm721 = vcmp.eq.s32.totalorder %v691, %v541
        %vm722 = vcmp.eq.s32.totalorder %v691, %v545
        %vm723 = vcmp.eq.s32.totalorder %v691, %v549
        %vm724 = vcmp.eq.s32.totalorder %v691, %v556
        %vm725 = vcmp.eq.s32.totalorder %v691, %v560
        %vm726 = vcmp.eq.s32.totalorder %v691, %v564
        %vm727 = vcmp.eq.s32.totalorder %v691, %v568
        %vm728 = vcmp.eq.s32.totalorder %v691, %v572
        %vm729 = vcmp.eq.s32.totalorder %v691, %v576
        %vm730 = vcmp.eq.s32.totalorder %v691, %v580
        %vm731 = vcmp.eq.s32.totalorder %v691, %v584
        %vm732 = vcmp.eq.s32.totalorder %v691, %v591
        %vm733 = vcmp.eq.s32.totalorder %v691, %v595
        %vm734 = vcmp.eq.s32.totalorder %v691, %v599
        %vm735 = vcmp.eq.s32.totalorder %v691, %v603
        %vm736 = vcmp.eq.s32.totalorder %v691, %v607
        %vm737 = vcmp.eq.s32.totalorder %v691, %v611
        %vm738 = vcmp.eq.s32.totalorder %v691, %v615
        %vm739 = vcmp.eq.s32.totalorder %v691, %v619
        %vm740 = vcmp.eq.s32.totalorder %v691, %v626
        %vm741 = vcmp.eq.s32.totalorder %v691, %v630
        %vm742 = vcmp.eq.s32.totalorder %v691, %v634
        %vm743 = vcmp.eq.s32.totalorder %v691, %v638
        %vm744 = vcmp.eq.s32.totalorder %v691, %v642
        %vm745 = vcmp.eq.s32.totalorder %v691, %v646
        %vm746 = vcmp.eq.s32.totalorder %v691, %v650
        %vm747 = vcmp.eq.s32.totalorder %v691, %v654
        %vm748 = vcmp.eq.s32.totalorder %v691, %v661
        %vm749 = vcmp.eq.s32.totalorder %v691, %v665
        %vm750 = vcmp.eq.s32.totalorder %v691, %v669
        %vm751 = vcmp.eq.s32.totalorder %v691, %v673
        %vm752 = vcmp.eq.s32.totalorder %v691, %v677
        %vm753 = vcmp.eq.s32.totalorder %v691, %v681
        %vm754 = vcmp.eq.s32.totalorder %v691, %v685
        %vm755 = vcmp.eq.s32.totalorder %v691, %v689
        %v756 = vsel %vm692, 1, 0
        %v757 = vsel %vm693, 1, 0
        %v758 = vsel %vm694, 1, 0
        %v759 = vsel %vm695, 1, 0
        %v760 = vsel %vm696, 1, 0
        %v761 = vsel %vm697, 1, 0
        %v762 = vsel %vm698, 1, 0
        %v763 = vsel %vm699, 1, 0
        %v764 = vsel %vm700, 1, 0
        %v765 = vsel %vm701, 1, 0
        %v766 = vsel %vm702, 1, 0
        %v767 = vsel %vm703, 1, 0
        %v768 = vsel %vm704, 1, 0
        %v769 = vsel %vm705, 1, 0
        %v770 = vsel %vm706, 1, 0
        %v771 = vsel %vm707, 1, 0
        %v772 = vsel %vm708, 1, 0
        %v773 = vsel %vm709, 1, 0
        %v774 = vsel %vm710, 1, 0
        %v775 = vsel %vm711, 1, 0
        %v776 = vsel %vm712, 1, 0
        %v777 = vsel %vm713, 1, 0
        %v778 = vsel %vm714, 1, 0
        %v779 = vsel %vm715, 1, 0
        %v780 = vsel %vm716, 1, 0
        %v781 = vsel %vm717, 1, 0
        %v782 = vsel %vm718, 1, 0
        %v783 = vsel %vm719, 1, 0
        %v784 = vsel %vm720, 1, 0
        %v785 = vsel %vm721, 1, 0
        %v786 = vsel %vm722, 1, 0
        %v787 = vsel %vm723, 1, 0
        %v788 = vsel %vm724, 1, 0
        %v789 = vsel %vm725, 1, 0
        %v790 = vsel %vm726, 1, 0
        %v791 = vsel %vm727, 1, 0
        %v792 = vsel %vm728, 1, 0
        %v793 = vsel %vm729, 1, 0
        %v794 = vsel %vm730, 1, 0
        %v795 = vsel %vm731, 1, 0
        %v796 = vsel %vm732, 1, 0
        %v797 = vsel %vm733, 1, 0
        %v798 = vsel %vm734, 1, 0
        %v799 = vsel %vm735, 1, 0
        %v800 = vsel %vm736, 1, 0
        %v801 = vsel %vm737, 1, 0
        %v802 = vsel %vm738, 1, 0
        %v803 = vsel %vm739, 1, 0
        %v804 = vsel %vm740, 1, 0
        %v805 = vsel %vm741, 1, 0
        %v806 = vsel %vm742, 1, 0
        %v807 = vsel %vm743, 1, 0
        %v808 = vsel %vm744, 1, 0
        %v809 = vsel %vm745, 1, 0
        %v810 = vsel %vm746, 1, 0
        %v811 = vsel %vm747, 1, 0
        %v812 = vsel %vm748, 1, 0
        %v813 = vsel %vm749, 1, 0
        %v814 = vsel %vm750, 1, 0
        %v815 = vsel %vm751, 1, 0
        %v816 = vsel %vm752, 1, 0
        %v817 = vsel %vm753, 1, 0
        %v818 = vsel %vm754, 1, 0
        %v819 = vsel %vm755, 1, 0
        %v820 = vcvt.s32.f32 %v756
        %v821 = vcvt.s32.f32 %v757
        %v822 = vcvt.s32.f32 %v758
        %v823 = vcvt.s32.f32 %v759
        %v824 = vcvt.s32.f32 %v760
        %v825 = vcvt.s32.f32 %v761
        %v826 = vcvt.s32.f32 %v762
        %v827 = vcvt.s32.f32 %v763
        %v828 = vcvt.s32.f32 %v764
        %v829 = vcvt.s32.f32 %v765
        %v830 = vcvt.s32.f32 %v766
        %v831 = vcvt.s32.f32 %v767
        %v832 = vcvt.s32.f32 %v768
        %v833 = vcvt.s32.f32 %v769
        %v834 = vcvt.s32.f32 %v770
        %v835 = vcvt.s32.f32 %v771
        %v836 = vcvt.s32.f32 %v772
        %v837 = vcvt.s32.f32 %v773
        %v838 = vcvt.s32.f32 %v774
        %v839 = vcvt.s32.f32 %v775
        %v840 = vcvt.s32.f32 %v776
        %v841 = vcvt.s32.f32 %v777
        %v842 = vcvt.s32.f32 %v778
        %v843 = vcvt.s32.f32 %v779
        %v844 = vcvt.s32.f32 %v780
        %v845 = vcvt.s32.f32 %v781
        %v846 = vcvt.s32.f32 %v782
        %v847 = vcvt.s32.f32 %v783
        %v848 = vcvt.s32.f32 %v784
        %v849 = vcvt.s32.f32 %v785
        %v850 = vcvt.s32.f32 %v786
        %v851 = vcvt.s32.f32 %v787
        %v852 = vcvt.s32.f32 %v788
        %v853 = vcvt.s32.f32 %v789
        %v854 = vcvt.s32.f32 %v790
        %v855 = vcvt.s32.f32 %v791
        %v856 = vcvt.s32.f32 %v792
        %v857 = vcvt.s32.f32 %v793
        %v858 = vcvt.s32.f32 %v794
        %v859 = vcvt.s32.f32 %v795
        %v860 = vcvt.s32.f32 %v796
        %v861 = vcvt.s32.f32 %v797
        %v862 = vcvt.s32.f32 %v798
        %v863 = vcvt.s32.f32 %v799
        %v864 = vcvt.s32.f32 %v800
        %v865 = vcvt.s32.f32 %v801
        %v866 = vcvt.s32.f32 %v802
        %v867 = vcvt.s32.f32 %v803
        %v868 = vcvt.s32.f32 %v804
        %v869 = vcvt.s32.f32 %v805
        %v870 = vcvt.s32.f32 %v806
        %v871 = vcvt.s32.f32 %v807
        %v872 = vcvt.s32.f32 %v808
        %v873 = vcvt.s32.f32 %v809
        %v874 = vcvt.s32.f32 %v810
        %v875 = vcvt.s32.f32 %v811
        %v876 = vcvt.s32.f32 %v812
        %v877 = vcvt.s32.f32 %v813
        %v878 = vcvt.s32.f32 %v814
        %v879 = vcvt.s32.f32 %v815
        %v880 = vcvt.s32.f32 %v816
        %v881 = vcvt.s32.f32 %v817
        %v882 = vcvt.s32.f32 %v818
        %v883 = vcvt.s32.f32 %v819
        %v884 = vpack.c.bf16 %v821, %v820
        %v885 = vpack.c.bf16 %v823, %v822
        %v886 = vpack.c.bf16 %v825, %v824
        %v887 = vpack.c.bf16 %v827, %v826
        %v888 = vpack.c.bf16 %v829, %v828
        %v889 = vpack.c.bf16 %v831, %v830
        %v890 = vpack.c.bf16 %v833, %v832
        %v891 = vpack.c.bf16 %v835, %v834
        %v892 = vpack.c.bf16 %v837, %v836
        %v893 = vpack.c.bf16 %v839, %v838
        %v894 = vpack.c.bf16 %v841, %v840
        %v895 = vpack.c.bf16 %v843, %v842
        %v896 = vpack.c.bf16 %v845, %v844
        %v897 = vpack.c.bf16 %v847, %v846
        %v898 = vpack.c.bf16 %v849, %v848
        %v899 = vpack.c.bf16 %v851, %v850
        %v900 = vpack.c.bf16 %v853, %v852
        %v901 = vpack.c.bf16 %v855, %v854
        %v902 = vpack.c.bf16 %v857, %v856
        %v903 = vpack.c.bf16 %v859, %v858
        %v904 = vpack.c.bf16 %v861, %v860
        %v905 = vpack.c.bf16 %v863, %v862
        %v906 = vpack.c.bf16 %v865, %v864
        %v907 = vpack.c.bf16 %v867, %v866
        %v908 = vpack.c.bf16 %v869, %v868
        %v909 = vpack.c.bf16 %v871, %v870
        %v910 = vpack.c.bf16 %v873, %v872
        %v911 = vpack.c.bf16 %v875, %v874
        %v912 = vpack.c.bf16 %v877, %v876
        %v913 = vpack.c.bf16 %v879, %v878
        %v914 = vpack.c.bf16 %v881, %v880
        %v915 = vpack.c.bf16 %v883, %v882
        %v916 = vld [vmem:[%s2] sm:$0xf]
        %v917 = vld [vmem:[%s2 + $0x4] sm:$0xf]
        %v918 = vld [vmem:[%s2 + $0x8] sm:$0xf]
        %v919 = vld [vmem:[%s2 + $0xc] sm:$0xf]
        %v920 = vld [vmem:[%s2 + $0x10] sm:$0xf]
        %v921 = vld [vmem:[%s2 + $0x14] sm:$0xf]
        %v922 = vld [vmem:[%s2 + $0x18] sm:$0xf]
        %v923 = vld [vmem:[%s2 + $0x1c] sm:$0xf]
        %v924 = vld [vmem:[%s2 + $0x20] sm:$0xf]
        %v925 = vld [vmem:[%s2 + $0x24] sm:$0xf]
        %v926 = vld [vmem:[%s2 + $0x28] sm:$0xf]
        %v927 = vld [vmem:[%s2 + $0x2c] sm:$0xf]
        %v928 = vld [vmem:[%s2 + $0x30] sm:$0xf]
        %v929 = vld [vmem:[%s2 + $0x34] sm:$0xf]
        %v930 = vld [vmem:[%s2 + $0x38] sm:$0xf]
        %v931 = vld [vmem:[%s2 + $0x3c] sm:$0xf]
        %v932 = vld [vmem:[%s3] sm:$0xf]
        %v933 = vld [vmem:[%s3 + $0x4] sm:$0xf]
        %v934 = vld [vmem:[%s3 + $0x8] sm:$0xf]
        %v935 = vld [vmem:[%s3 + $0xc] sm:$0xf]
        %v936 = vld [vmem:[%s3 + $0x10] sm:$0xf]
        %v937 = vld [vmem:[%s3 + $0x14] sm:$0xf]
        %v938 = vld [vmem:[%s3 + $0x18] sm:$0xf]
        %v939 = vld [vmem:[%s3 + $0x1c] sm:$0xf]
        %v940 = vld [vmem:[%s3 + $0x20] sm:$0xf]
        %v941 = vld [vmem:[%s3 + $0x24] sm:$0xf]
        %v942 = vld [vmem:[%s3 + $0x28] sm:$0xf]
        %v943 = vld [vmem:[%s3 + $0x2c] sm:$0xf]
        %v944 = vld [vmem:[%s3 + $0x30] sm:$0xf]
        %v945 = vld [vmem:[%s3 + $0x34] sm:$0xf]
        %v946 = vld [vmem:[%s3 + $0x38] sm:$0xf]
        %v947 = vld [vmem:[%s3 + $0x3c] sm:$0xf]
        %v964 = vunpack.c.l.b16 %v932
        %v965 = vunpack.c.l.b16 %v933
        %v966 = vunpack.c.l.b16 %v934
        %v967 = vunpack.c.l.b16 %v935
        %v968 = vunpack.c.l.b16 %v936
        %v969 = vunpack.c.l.b16 %v937
        %v970 = vunpack.c.l.b16 %v938
        %v971 = vunpack.c.l.b16 %v939
        %v972 = vunpack.c.l.b16 %v940
        %v973 = vunpack.c.l.b16 %v941
        %v974 = vunpack.c.l.b16 %v942
        %v975 = vunpack.c.l.b16 %v943
        %v976 = vunpack.c.l.b16 %v944
        %v977 = vunpack.c.l.b16 %v945
        %v978 = vunpack.c.l.b16 %v946
        %v979 = vunpack.c.l.b16 %v947
        %v980 = vpack.c.b16 %v965, %v964
        %v981 = vpack.c.b16 %v967, %v966
        %v982 = vpack.c.b16 %v969, %v968
        %v983 = vpack.c.b16 %v971, %v970
        %v984 = vpack.c.b16 %v973, %v972
        %v985 = vpack.c.b16 %v975, %v974
        %v986 = vpack.c.b16 %v977, %v976
        %v987 = vpack.c.b16 %v979, %v978
        %996 = vmatprep.subr.bf16.mxu0 0
        %997 = vmatpush1.bf16.msra.mxu0 %v980
        %998 = vmatprep.subr.bf16.mxu0 0
        %999 = vmatpush1.bf16.msra.mxu0 %v981
        %1000 = vmatprep.subr.bf16.mxu0 0
        %1001 = vmatpush1.bf16.msra.mxu0 %v982
        %1002 = vmatprep.subr.bf16.mxu0 0
        %1003 = vmatpush1.bf16.msra.mxu0 %v983
        %1004 = vmatprep.subr.bf16.mxu0 0
        %1005 = vmatpush1.bf16.msra.mxu0 %v984
        %1006 = vmatprep.subr.bf16.mxu0 0
        %1007 = vmatpush1.bf16.msra.mxu0 %v985
        %1008 = vmatprep.subr.bf16.mxu0 0
        %1009 = vmatpush1.bf16.msra.mxu0 %v986
        %1010 = vmatprep.subr.bf16.mxu0 0
        %1011 = vmatpush1.bf16.msra.mxu0 %v987
        %1012 = vmatprep.subr.bf16.mxu0 0
        %1013 = vmatpush1.bf16.msra.mxu0 0
        %1014 = vmatprep.subr.bf16.mxu0 0
        %1015 = vmatpush1.bf16.msra.mxu0 0
        %1016 = vmatprep.subr.bf16.mxu0 0
        %1017 = vmatpush1.bf16.msra.mxu0 0
        %1018 = vmatprep.subr.bf16.mxu0 0
        %1019 = vmatpush1.bf16.msra.mxu0 0
        %1020 = vmatprep.subr.bf16.mxu0 0
        %1021 = vmatpush1.bf16.msra.mxu0 0
        %1022 = vmatprep.subr.bf16.mxu0 0
        %1023 = vmatpush1.bf16.msra.mxu0 0
        %1024 = vmatprep.subr.bf16.mxu0 0
        %1025 = vmatpush1.bf16.msra.mxu0 0
        %1026 = vmatprep.subr.bf16.mxu0 0
        %1027 = vmatpush1.bf16.msra.mxu0 0
        %1028 = vmatprep.mubr.bf16.mxu0 0
        %1029 = vmatmul.mubr.bf16.gmra.mrb[0].mxu0 %v884
        %v1030 = vpop.f32.mrb[0].mxu0
        %v1031 = vadd.f32 0.0, %v1030
        %v1032 = vpop.f32.mrb[0].mxu0
        %v1033 = vpop.f32.mrb[0].mxu0
        %v1034 = vadd.f32 0.0, %v1033
        %v1035 = vpop.f32.mrb[0].mxu0
        %1036 = vmatprep.mubr.bf16.mxu0 0
        %1037 = vmatmul.mubr.bf16.gmra.mrb[0].mxu0 %v885
        %v1038 = vpop.f32.mrb[0].mxu0
        %v1039 = vadd.f32 0.0, %v1038
        %v1040 = vpop.f32.mrb[0].mxu0
        %v1041 = vpop.f32.mrb[0].mxu0
        %v1042 = vadd.f32 0.0, %v1041
        %v1043 = vpop.f32.mrb[0].mxu0
        %1044 = vmatprep.mubr.bf16.mxu0 0
        %1045 = vmatmul.mubr.bf16.gmra.mrb[0].mxu0 %v886
        %v1046 = vpop.f32.mrb[0].mxu0
        %v1047 = vadd.f32 0.0, %v1046
        %v1048 = vpop.f32.mrb[0].mxu0
        %v1049 = vpop.f32.mrb[0].mxu0
        %v1050 = vadd.f32 0.0, %v1049
        %v1051 = vpop.f32.mrb[0].mxu0
        %1052 = vmatprep.mubr.bf16.mxu0 0
        %1053 = vmatmul.mubr.bf16.gmra.mrb[0].mxu0 %v887
        %v1054 = vpop.f32.mrb[0].mxu0
        %v1055 = vadd.f32 0.0, %v1054
        %v1056 = vpop.f32.mrb[0].mxu0
        %v1057 = vpop.f32.mrb[0].mxu0
        %v1058 = vadd.f32 0.0, %v1057
        %v1059 = vpop.f32.mrb[0].mxu0
        %1060 = vmatprep.mubr.bf16.mxu0 0
        %1061 = vmatmul.mubr.bf16.gmra.mrb[0].mxu0 %v888
        %v1062 = vpop.f32.mrb[0].mxu0
        %v1063 = vadd.f32 0.0, %v1062
        %v1064 = vpop.f32.mrb[0].mxu0
        %v1065 = vpop.f32.mrb[0].mxu0
        %v1066 = vadd.f32 0.0, %v1065
        %v1067 = vpop.f32.mrb[0].mxu0
        %1068 = vmatprep.mubr.bf16.mxu0 0
        %1069 = vmatmul.mubr.bf16.gmra.mrb[0].mxu0 %v889
        %v1070 = vpop.f32.mrb[0].mxu0
        %v1071 = vadd.f32 0.0, %v1070
        %v1072 = vpop.f32.mrb[0].mxu0
        %v1073 = vpop.f32.mrb[0].mxu0
        %v1074 = vadd.f32 0.0, %v1073
        %v1075 = vpop.f32.mrb[0].mxu0
        %1076 = vmatprep.mubr.bf16.mxu0 0
        %1077 = vmatmul.mubr.bf16.gmra.mrb[0].mxu0 %v890
        %v1078 = vpop.f32.mrb[0].mxu0
        %v1079 = vadd.f32 0.0, %v1078
        %v1080 = vpop.f32.mrb[0].mxu0
        %v1081 = vpop.f32.mrb[0].mxu0
        %v1082 = vadd.f32 0.0, %v1081
        %v1083 = vpop.f32.mrb[0].mxu0
        %1084 = vmatprep.mubr.bf16.mxu0 0
        %1085 = vmatmul.mubr.bf16.gmra.mrb[0].mxu0 %v891
        %v1086 = vpop.f32.mrb[0].mxu0
        %v1087 = vadd.f32 0.0, %v1086
        %v1088 = vpop.f32.mrb[0].mxu0
        %v1089 = vpop.f32.mrb[0].mxu0
        %v1090 = vadd.f32 0.0, %v1089
        %v1091 = vpop.f32.mrb[0].mxu0
        %1092 = vmatprep.mubr.bf16.mxu0 0
        %1093 = vmatmul.mubr.bf16.gmra.mrb[0].mxu0 %v892
        %v1094 = vpop.f32.mrb[0].mxu0
        %v1095 = vadd.f32 0.0, %v1094
        %v1096 = vpop.f32.mrb[0].mxu0
        %v1097 = vpop.f32.mrb[0].mxu0
        %v1098 = vadd.f32 0.0, %v1097
        %v1099 = vpop.f32.mrb[0].mxu0
        %1100 = vmatprep.mubr.bf16.mxu0 0
        %1101 = vmatmul.mubr.bf16.gmra.mrb[0].mxu0 %v893
        %v1102 = vpop.f32.mrb[0].mxu0
        %v1103 = vadd.f32 0.0, %v1102
        %v1104 = vpop.f32.mrb[0].mxu0
        %v1105 = vpop.f32.mrb[0].mxu0
        %v1106 = vadd.f32 0.0, %v1105
        %v1107 = vpop.f32.mrb[0].mxu0
        %1108 = vmatprep.mubr.bf16.mxu0 0
        %1109 = vmatmul.mubr.bf16.gmra.mrb[0].mxu0 %v894
        %v1110 = vpop.f32.mrb[0].mxu0
        %v1111 = vadd.f32 0.0, %v1110
        %v1112 = vpop.f32.mrb[0].mxu0
        %v1113 = vpop.f32.mrb[0].mxu0
        %v1114 = vadd.f32 0.0, %v1113
        %v1115 = vpop.f32.mrb[0].mxu0
        %1116 = vmatprep.mubr.bf16.mxu0 0
        %1117 = vmatmul.mubr.bf16.gmra.mrb[0].mxu0 %v895
        %v1118 = vpop.f32.mrb[0].mxu0
        %v1119 = vadd.f32 0.0, %v1118
        %v1120 = vpop.f32.mrb[0].mxu0
        %v1121 = vpop.f32.mrb[0].mxu0
        %v1122 = vadd.f32 0.0, %v1121
        %v1123 = vpop.f32.mrb[0].mxu0
        %1124 = vmatprep.mubr.bf16.mxu0 0
        %1125 = vmatmul.mubr.bf16.gmra.mrb[0].mxu0 %v896
        %v1126 = vpop.f32.mrb[0].mxu0
        %v1127 = vadd.f32 0.0, %v1126
        %v1128 = vpop.f32.mrb[0].mxu0
        %v1129 = vpop.f32.mrb[0].mxu0
        %v1130 = vadd.f32 0.0, %v1129
        %v1131 = vpop.f32.mrb[0].mxu0
        %1132 = vmatprep.mubr.bf16.mxu0 0
        %1133 = vmatmul.mubr.bf16.gmra.mrb[0].mxu0 %v897
        %v1134 = vpop.f32.mrb[0].mxu0
        %v1135 = vadd.f32 0.0, %v1134
        %v1136 = vpop.f32.mrb[0].mxu0
        %v1137 = vpop.f32.mrb[0].mxu0
        %v1138 = vadd.f32 0.0, %v1137
        %v1139 = vpop.f32.mrb[0].mxu0
        %1140 = vmatprep.mubr.bf16.mxu0 0
        %1141 = vmatmul.mubr.bf16.gmra.mrb[0].mxu0 %v898
        %v1142 = vpop.f32.mrb[0].mxu0
        %v1143 = vadd.f32 0.0, %v1142
        %v1144 = vpop.f32.mrb[0].mxu0
        %v1145 = vpop.f32.mrb[0].mxu0
        %v1146 = vadd.f32 0.0, %v1145
        %v1147 = vpop.f32.mrb[0].mxu0
        %1148 = vmatprep.mubr.bf16.mxu0 0
        %1149 = vmatmul.mubr.bf16.gmra.mrb[0].mxu0 %v899
        %v1150 = vpop.f32.mrb[0].mxu0
        %v1151 = vadd.f32 0.0, %v1150
        %v1152 = vpop.f32.mrb[0].mxu0
        %v1153 = vpop.f32.mrb[0].mxu0
        %v1154 = vadd.f32 0.0, %v1153
        %v1155 = vpop.f32.mrb[0].mxu0
        %1156 = vmatprep.mubr.bf16.mxu0 0
        %1157 = vmatmul.mubr.bf16.gmra.mrb[0].mxu0 %v900
        %v1158 = vpop.f32.mrb[0].mxu0
        %v1159 = vadd.f32 0.0, %v1158
        %v1160 = vpop.f32.mrb[0].mxu0
        %v1161 = vpop.f32.mrb[0].mxu0
        %v1162 = vadd.f32 0.0, %v1161
        %v1163 = vpop.f32.mrb[0].mxu0
        %1164 = vmatprep.mubr.bf16.mxu0 0
        %1165 = vmatmul.mubr.bf16.gmra.mrb[0].mxu0 %v901
        %v1166 = vpop.f32.mrb[0].mxu0
        %v1167 = vadd.f32 0.0, %v1166
        %v1168 = vpop.f32.mrb[0].mxu0
        %v1169 = vpop.f32.mrb[0].mxu0
        %v1170 = vadd.f32 0.0, %v1169
        %v1171 = vpop.f32.mrb[0].mxu0
        %1172 = vmatprep.mubr.bf16.mxu0 0
        %1173 = vmatmul.mubr.bf16.gmra.mrb[0].mxu0 %v902
        %v1174 = vpop.f32.mrb[0].mxu0
        %v1175 = vadd.f32 0.0, %v1174
        %v1176 = vpop.f32.mrb[0].mxu0
        %v1177 = vpop.f32.mrb[0].mxu0
        %v1178 = vadd.f32 0.0, %v1177
        %v1179 = vpop.f32.mrb[0].mxu0
        %1180 = vmatprep.mubr.bf16.mxu0 0
        %1181 = vmatmul.mubr.bf16.gmra.mrb[0].mxu0 %v903
        %v1182 = vpop.f32.mrb[0].mxu0
        %v1183 = vadd.f32 0.0, %v1182
        %v1184 = vpop.f32.mrb[0].mxu0
        %v1185 = vpop.f32.mrb[0].mxu0
        %v1186 = vadd.f32 0.0, %v1185
        %v1187 = vpop.f32.mrb[0].mxu0
        %1188 = vmatprep.mubr.bf16.mxu0 0
        %1189 = vmatmul.mubr.bf16.gmra.mrb[0].mxu0 %v904
        %v1190 = vpop.f32.mrb[0].mxu0
        %v1191 = vadd.f32 0.0, %v1190
        %v1192 = vpop.f32.mrb[0].mxu0
        %v1193 = vpop.f32.mrb[0].mxu0
        %v1194 = vadd.f32 0.0, %v1193
        %v1195 = vpop.f32.mrb[0].mxu0
        %1196 = vmatprep.mubr.bf16.mxu0 0
        %1197 = vmatmul.mubr.bf16.gmra.mrb[0].mxu0 %v905
        %v1198 = vpop.f32.mrb[0].mxu0
        %v1199 = vadd.f32 0.0, %v1198
        %v1200 = vpop.f32.mrb[0].mxu0
        %v1201 = vpop.f32.mrb[0].mxu0
        %v1202 = vadd.f32 0.0, %v1201
        %v1203 = vpop.f32.mrb[0].mxu0
        %1204 = vmatprep.mubr.bf16.mxu0 0
        %1205 = vmatmul.mubr.bf16.gmra.mrb[0].mxu0 %v906
        %v1206 = vpop.f32.mrb[0].mxu0
        %v1207 = vadd.f32 0.0, %v1206
        %v1208 = vpop.f32.mrb[0].mxu0
        %v1209 = vpop.f32.mrb[0].mxu0
        %v1210 = vadd.f32 0.0, %v1209
        %v1211 = vpop.f32.mrb[0].mxu0
        %1212 = vmatprep.mubr.bf16.mxu0 0
        %1213 = vmatmul.mubr.bf16.gmra.mrb[0].mxu0 %v907
        %v1214 = vpop.f32.mrb[0].mxu0
        %v1215 = vadd.f32 0.0, %v1214
        %v1216 = vpop.f32.mrb[0].mxu0
        %v1217 = vpop.f32.mrb[0].mxu0
        %v1218 = vadd.f32 0.0, %v1217
        %v1219 = vpop.f32.mrb[0].mxu0
        %1220 = vmatprep.mubr.bf16.mxu0 0
        %1221 = vmatmul.mubr.bf16.gmra.mrb[0].mxu0 %v908
        %v1222 = vpop.f32.mrb[0].mxu0
        %v1223 = vadd.f32 0.0, %v1222
        %v1224 = vpop.f32.mrb[0].mxu0
        %v1225 = vpop.f32.mrb[0].mxu0
        %v1226 = vadd.f32 0.0, %v1225
        %v1227 = vpop.f32.mrb[0].mxu0
        %1228 = vmatprep.mubr.bf16.mxu0 0
        %1229 = vmatmul.mubr.bf16.gmra.mrb[0].mxu0 %v909
        %v1230 = vpop.f32.mrb[0].mxu0
        %v1231 = vadd.f32 0.0, %v1230
        %v1232 = vpop.f32.mrb[0].mxu0
        %v1233 = vpop.f32.mrb[0].mxu0
        %v1234 = vadd.f32 0.0, %v1233
        %v1235 = vpop.f32.mrb[0].mxu0
        %1236 = vmatprep.mubr.bf16.mxu0 0
        %1237 = vmatmul.mubr.bf16.gmra.mrb[0].mxu0 %v910
        %v1238 = vpop.f32.mrb[0].mxu0
        %v1239 = vadd.f32 0.0, %v1238
        %v1240 = vpop.f32.mrb[0].mxu0
        %v1241 = vpop.f32.mrb[0].mxu0
        %v1242 = vadd.f32 0.0, %v1241
        %v1243 = vpop.f32.mrb[0].mxu0
        %1244 = vmatprep.mubr.bf16.mxu0 0
        %1245 = vmatmul.mubr.bf16.gmra.mrb[0].mxu0 %v911
        %v1246 = vpop.f32.mrb[0].mxu0
        %v1247 = vadd.f32 0.0, %v1246
        %v1248 = vpop.f32.mrb[0].mxu0
        %v1249 = vpop.f32.mrb[0].mxu0
        %v1250 = vadd.f32 0.0, %v1249
        %v1251 = vpop.f32.mrb[0].mxu0
        %1252 = vmatprep.mubr.bf16.mxu0 0
        %1253 = vmatmul.mubr.bf16.gmra.mrb[0].mxu0 %v912
        %v1254 = vpop.f32.mrb[0].mxu0
        %v1255 = vadd.f32 0.0, %v1254
        %v1256 = vpop.f32.mrb[0].mxu0
        %v1257 = vpop.f32.mrb[0].mxu0
        %v1258 = vadd.f32 0.0, %v1257
        %v1259 = vpop.f32.mrb[0].mxu0
        %1260 = vmatprep.mubr.bf16.mxu0 0
        %1261 = vmatmul.mubr.bf16.gmra.mrb[0].mxu0 %v913
        %v1262 = vpop.f32.mrb[0].mxu0
        %v1263 = vadd.f32 0.0, %v1262
        %v1264 = vpop.f32.mrb[0].mxu0
        %v1265 = vpop.f32.mrb[0].mxu0
        %v1266 = vadd.f32 0.0, %v1265
        %v1267 = vpop.f32.mrb[0].mxu0
        %1268 = vmatprep.mubr.bf16.mxu0 0
        %1269 = vmatmul.mubr.bf16.gmra.mrb[0].mxu0 %v914
        %v1270 = vpop.f32.mrb[0].mxu0
        %v1271 = vadd.f32 0.0, %v1270
        %v1272 = vpop.f32.mrb[0].mxu0
        %v1273 = vpop.f32.mrb[0].mxu0
        %v1274 = vadd.f32 0.0, %v1273
        %v1275 = vpop.f32.mrb[0].mxu0
        %1276 = vmatprep.mubr.bf16.mxu0 0
        %1277 = vmatmul.mubr.bf16.gmra.mrb[0].mxu0 %v915
        %v1278 = vpop.f32.mrb[0].mxu0
        %v1279 = vadd.f32 0.0, %v1278
        %v1280 = vpop.f32.mrb[0].mxu0
        %v1281 = vpop.f32.mrb[0].mxu0
        %v1282 = vadd.f32 0.0, %v1281
        %v1283 = vpop.f32.mrb[0].mxu0
        %1284 = vdwg.mxu0
        %v1301 = vunpack.c.l.b16 %v916
        %v1302 = vunpack.c.l.b16 %v917
        %v1303 = vunpack.c.l.b16 %v918
        %v1304 = vunpack.c.l.b16 %v919
        %v1305 = vunpack.c.l.b16 %v920
        %v1306 = vunpack.c.l.b16 %v921
        %v1307 = vunpack.c.l.b16 %v922
        %v1308 = vunpack.c.l.b16 %v923
        %v1309 = vunpack.c.l.b16 %v924
        %v1310 = vunpack.c.l.b16 %v925
        %v1311 = vunpack.c.l.b16 %v926
        %v1312 = vunpack.c.l.b16 %v927
        %v1313 = vunpack.c.l.b16 %v928
        %v1314 = vunpack.c.l.b16 %v929
        %v1315 = vunpack.c.l.b16 %v930
        %v1316 = vunpack.c.l.b16 %v931
        %v1317 = vpack.c.b16 %v1302, %v1301
        %v1318 = vpack.c.b16 %v1304, %v1303
        %v1319 = vpack.c.b16 %v1306, %v1305
        %v1320 = vpack.c.b16 %v1308, %v1307
        %v1321 = vpack.c.b16 %v1310, %v1309
        %v1322 = vpack.c.b16 %v1312, %v1311
        %v1323 = vpack.c.b16 %v1314, %v1313
        %v1324 = vpack.c.b16 %v1316, %v1315
        %1333 = vmatprep.subr.bf16.mxu0 0
        %1334 = vmatpush1.bf16.msra.mxu0 %v1317
        %1335 = vmatprep.subr.bf16.mxu0 0
        %1336 = vmatpush1.bf16.msra.mxu0 %v1318
        %1337 = vmatprep.subr.bf16.mxu0 0
        %1338 = vmatpush1.bf16.msra.mxu0 %v1319
        %1339 = vmatprep.subr.bf16.mxu0 0
        %1340 = vmatpush1.bf16.msra.mxu0 %v1320
        %1341 = vmatprep.subr.bf16.mxu0 0
        %1342 = vmatpush1.bf16.msra.mxu0 %v1321
        %1343 = vmatprep.subr.bf16.mxu0 0
        %1344 = vmatpush1.bf16.msra.mxu0 %v1322
        %1345 = vmatprep.subr.bf16.mxu0 0
        %1346 = vmatpush1.bf16.msra.mxu0 %v1323
        %1347 = vmatprep.subr.bf16.mxu0 0
        %1348 = vmatpush1.bf16.msra.mxu0 %v1324
        %1349 = vmatprep.subr.bf16.mxu0 0
        %1350 = vmatpush1.bf16.msra.mxu0 0
        %1351 = vmatprep.subr.bf16.mxu0 0
        %1352 = vmatpush1.bf16.msra.mxu0 0
        %1353 = vmatprep.subr.bf16.mxu0 0
        %1354 = vmatpush1.bf16.msra.mxu0 0
        %1355 = vmatprep.subr.bf16.mxu0 0
        %1356 = vmatpush1.bf16.msra.mxu0 0
        %1357 = vmatprep.subr.bf16.mxu0 0
        %1358 = vmatpush1.bf16.msra.mxu0 0
        %1359 = vmatprep.subr.bf16.mxu0 0
        %1360 = vmatpush1.bf16.msra.mxu0 0
        %1361 = vmatprep.subr.bf16.mxu0 0
        %1362 = vmatpush1.bf16.msra.mxu0 0
        %1363 = vmatprep.subr.bf16.mxu0 0
        %1364 = vmatpush1.bf16.msra.mxu0 0
        %1365 = vmatprep.mubr.bf16.mxu0 0
        %1366 = vmatmul.mubr.bf16.gmra.mrb[0].mxu0 %v884
        %v1367 = vpop.f32.mrb[0].mxu0
        %v1368 = vadd.f32 %v1031, %v1367
        %v1369 = vpop.f32.mrb[0].mxu0
        %v1370 = vpop.f32.mrb[0].mxu0
        %v1371 = vadd.f32 %v1034, %v1370
        %v1372 = vpop.f32.mrb[0].mxu0
        %1373 = vmatprep.mubr.bf16.mxu0 0
        %1374 = vmatmul.mubr.bf16.gmra.mrb[0].mxu0 %v885
        %v1375 = vpop.f32.mrb[0].mxu0
        %v1376 = vadd.f32 %v1039, %v1375
        %v1377 = vpop.f32.mrb[0].mxu0
        %v1378 = vpop.f32.mrb[0].mxu0
        %v1379 = vadd.f32 %v1042, %v1378
        %v1380 = vpop.f32.mrb[0].mxu0
        %1381 = vmatprep.mubr.bf16.mxu0 0
        %1382 = vmatmul.mubr.bf16.gmra.mrb[0].mxu0 %v886
        %v1383 = vpop.f32.mrb[0].mxu0
        %v1384 = vadd.f32 %v1047, %v1383
        %v1385 = vpop.f32.mrb[0].mxu0
        %v1386 = vpop.f32.mrb[0].mxu0
        %v1387 = vadd.f32 %v1050, %v1386
        %v1388 = vpop.f32.mrb[0].mxu0
        %1389 = vmatprep.mubr.bf16.mxu0 0
        %1390 = vmatmul.mubr.bf16.gmra.mrb[0].mxu0 %v887
        %v1391 = vpop.f32.mrb[0].mxu0
        %v1392 = vadd.f32 %v1055, %v1391
        %v1393 = vpop.f32.mrb[0].mxu0
        %v1394 = vpop.f32.mrb[0].mxu0
        %v1395 = vadd.f32 %v1058, %v1394
        %v1396 = vpop.f32.mrb[0].mxu0
        %1397 = vmatprep.mubr.bf16.mxu0 0
        %1398 = vmatmul.mubr.bf16.gmra.mrb[0].mxu0 %v888
        %v1399 = vpop.f32.mrb[0].mxu0
        %v1400 = vadd.f32 %v1063, %v1399
        %v1401 = vpop.f32.mrb[0].mxu0
        %v1402 = vpop.f32.mrb[0].mxu0
        %v1403 = vadd.f32 %v1066, %v1402
        %v1404 = vpop.f32.mrb[0].mxu0
        %1405 = vmatprep.mubr.bf16.mxu0 0
        %1406 = vmatmul.mubr.bf16.gmra.mrb[0].mxu0 %v889
        %v1407 = vpop.f32.mrb[0].mxu0
        %v1408 = vadd.f32 %v1071, %v1407
        %v1409 = vpop.f32.mrb[0].mxu0
        %v1410 = vpop.f32.mrb[0].mxu0
        %v1411 = vadd.f32 %v1074, %v1410
        %v1412 = vpop.f32.mrb[0].mxu0
        %1413 = vmatprep.mubr.bf16.mxu0 0
        %1414 = vmatmul.mubr.bf16.gmra.mrb[0].mxu0 %v890
        %v1415 = vpop.f32.mrb[0].mxu0
        %v1416 = vadd.f32 %v1079, %v1415
        %v1417 = vpop.f32.mrb[0].mxu0
        %v1418 = vpop.f32.mrb[0].mxu0
        %v1419 = vadd.f32 %v1082, %v1418
        %v1420 = vpop.f32.mrb[0].mxu0
        %1421 = vmatprep.mubr.bf16.mxu0 0
        %1422 = vmatmul.mubr.bf16.gmra.mrb[0].mxu0 %v891
        %v1423 = vpop.f32.mrb[0].mxu0
        %v1424 = vadd.f32 %v1087, %v1423
        %v1425 = vpop.f32.mrb[0].mxu0
        %v1426 = vpop.f32.mrb[0].mxu0
        %v1427 = vadd.f32 %v1090, %v1426
        %v1428 = vpop.f32.mrb[0].mxu0
        %1429 = vmatprep.mubr.bf16.mxu0 0
        %1430 = vmatmul.mubr.bf16.gmra.mrb[0].mxu0 %v892
        %v1431 = vpop.f32.mrb[0].mxu0
        %v1432 = vadd.f32 %v1095, %v1431
        %v1433 = vpop.f32.mrb[0].mxu0
        %v1434 = vpop.f32.mrb[0].mxu0
        %v1435 = vadd.f32 %v1098, %v1434
        %v1436 = vpop.f32.mrb[0].mxu0
        %1437 = vmatprep.mubr.bf16.mxu0 0
        %1438 = vmatmul.mubr.bf16.gmra.mrb[0].mxu0 %v893
        %v1439 = vpop.f32.mrb[0].mxu0
        %v1440 = vadd.f32 %v1103, %v1439
        %v1441 = vpop.f32.mrb[0].mxu0
        %v1442 = vpop.f32.mrb[0].mxu0
        %v1443 = vadd.f32 %v1106, %v1442
        %v1444 = vpop.f32.mrb[0].mxu0
        %1445 = vmatprep.mubr.bf16.mxu0 0
        %1446 = vmatmul.mubr.bf16.gmra.mrb[0].mxu0 %v894
        %v1447 = vpop.f32.mrb[0].mxu0
        %v1448 = vadd.f32 %v1111, %v1447
        %v1449 = vpop.f32.mrb[0].mxu0
        %v1450 = vpop.f32.mrb[0].mxu0
        %v1451 = vadd.f32 %v1114, %v1450
        %v1452 = vpop.f32.mrb[0].mxu0
        %1453 = vmatprep.mubr.bf16.mxu0 0
        %1454 = vmatmul.mubr.bf16.gmra.mrb[0].mxu0 %v895
        %v1455 = vpop.f32.mrb[0].mxu0
        %v1456 = vadd.f32 %v1119, %v1455
        %v1457 = vpop.f32.mrb[0].mxu0
        %v1458 = vpop.f32.mrb[0].mxu0
        %v1459 = vadd.f32 %v1122, %v1458
        %v1460 = vpop.f32.mrb[0].mxu0
        %1461 = vmatprep.mubr.bf16.mxu0 0
        %1462 = vmatmul.mubr.bf16.gmra.mrb[0].mxu0 %v896
        %v1463 = vpop.f32.mrb[0].mxu0
        %v1464 = vadd.f32 %v1127, %v1463
        %v1465 = vpop.f32.mrb[0].mxu0
        %v1466 = vpop.f32.mrb[0].mxu0
        %v1467 = vadd.f32 %v1130, %v1466
        %v1468 = vpop.f32.mrb[0].mxu0
        %1469 = vmatprep.mubr.bf16.mxu0 0
        %1470 = vmatmul.mubr.bf16.gmra.mrb[0].mxu0 %v897
        %v1471 = vpop.f32.mrb[0].mxu0
        %v1472 = vadd.f32 %v1135, %v1471
        %v1473 = vpop.f32.mrb[0].mxu0
        %v1474 = vpop.f32.mrb[0].mxu0
        %v1475 = vadd.f32 %v1138, %v1474
        %v1476 = vpop.f32.mrb[0].mxu0
        %1477 = vmatprep.mubr.bf16.mxu0 0
        %1478 = vmatmul.mubr.bf16.gmra.mrb[0].mxu0 %v898
        %v1479 = vpop.f32.mrb[0].mxu0
        %v1480 = vadd.f32 %v1143, %v1479
        %v1481 = vpop.f32.mrb[0].mxu0
        %v1482 = vpop.f32.mrb[0].mxu0
        %v1483 = vadd.f32 %v1146, %v1482
        %v1484 = vpop.f32.mrb[0].mxu0
        %1485 = vmatprep.mubr.bf16.mxu0 0
        %1486 = vmatmul.mubr.bf16.gmra.mrb[0].mxu0 %v899
        %v1487 = vpop.f32.mrb[0].mxu0
        %v1488 = vadd.f32 %v1151, %v1487
        %v1489 = vpop.f32.mrb[0].mxu0
        %v1490 = vpop.f32.mrb[0].mxu0
        %v1491 = vadd.f32 %v1154, %v1490
        %v1492 = vpop.f32.mrb[0].mxu0
        %1493 = vmatprep.mubr.bf16.mxu0 0
        %1494 = vmatmul.mubr.bf16.gmra.mrb[0].mxu0 %v900
        %v1495 = vpop.f32.mrb[0].mxu0
        %v1496 = vadd.f32 %v1159, %v1495
        %v1497 = vpop.f32.mrb[0].mxu0
        %v1498 = vpop.f32.mrb[0].mxu0
        %v1499 = vadd.f32 %v1162, %v1498
        %v1500 = vpop.f32.mrb[0].mxu0
        %1501 = vmatprep.mubr.bf16.mxu0 0
        %1502 = vmatmul.mubr.bf16.gmra.mrb[0].mxu0 %v901
        %v1503 = vpop.f32.mrb[0].mxu0
        %v1504 = vadd.f32 %v1167, %v1503
        %v1505 = vpop.f32.mrb[0].mxu0
        %v1506 = vpop.f32.mrb[0].mxu0
        %v1507 = vadd.f32 %v1170, %v1506
        %v1508 = vpop.f32.mrb[0].mxu0
        %1509 = vmatprep.mubr.bf16.mxu0 0
        %1510 = vmatmul.mubr.bf16.gmra.mrb[0].mxu0 %v902
        %v1511 = vpop.f32.mrb[0].mxu0
        %v1512 = vadd.f32 %v1175, %v1511
        %v1513 = vpop.f32.mrb[0].mxu0
        %v1514 = vpop.f32.mrb[0].mxu0
        %v1515 = vadd.f32 %v1178, %v1514
        %v1516 = vpop.f32.mrb[0].mxu0
        %1517 = vmatprep.mubr.bf16.mxu0 0
        %1518 = vmatmul.mubr.bf16.gmra.mrb[0].mxu0 %v903
        %v1519 = vpop.f32.mrb[0].mxu0
        %v1520 = vadd.f32 %v1183, %v1519
        %v1521 = vpop.f32.mrb[0].mxu0
        %v1522 = vpop.f32.mrb[0].mxu0
        %v1523 = vadd.f32 %v1186, %v1522
        %v1524 = vpop.f32.mrb[0].mxu0
        %1525 = vmatprep.mubr.bf16.mxu0 0
        %1526 = vmatmul.mubr.bf16.gmra.mrb[0].mxu0 %v904
        %v1527 = vpop.f32.mrb[0].mxu0
        %v1528 = vadd.f32 %v1191, %v1527
        %v1529 = vpop.f32.mrb[0].mxu0
        %v1530 = vpop.f32.mrb[0].mxu0
        %v1531 = vadd.f32 %v1194, %v1530
        %v1532 = vpop.f32.mrb[0].mxu0
        %1533 = vmatprep.mubr.bf16.mxu0 0
        %1534 = vmatmul.mubr.bf16.gmra.mrb[0].mxu0 %v905
        %v1535 = vpop.f32.mrb[0].mxu0
        %v1536 = vadd.f32 %v1199, %v1535
        %v1537 = vpop.f32.mrb[0].mxu0
        %v1538 = vpop.f32.mrb[0].mxu0
        %v1539 = vadd.f32 %v1202, %v1538
        %v1540 = vpop.f32.mrb[0].mxu0
        %1541 = vmatprep.mubr.bf16.mxu0 0
        %1542 = vmatmul.mubr.bf16.gmra.mrb[0].mxu0 %v906
        %v1543 = vpop.f32.mrb[0].mxu0
        %v1544 = vadd.f32 %v1207, %v1543
        %v1545 = vpop.f32.mrb[0].mxu0
        %v1546 = vpop.f32.mrb[0].mxu0
        %v1547 = vadd.f32 %v1210, %v1546
        %v1548 = vpop.f32.mrb[0].mxu0
        %1549 = vmatprep.mubr.bf16.mxu0 0
        %1550 = vmatmul.mubr.bf16.gmra.mrb[0].mxu0 %v907
        %v1551 = vpop.f32.mrb[0].mxu0
        %v1552 = vadd.f32 %v1215, %v1551
        %v1553 = vpop.f32.mrb[0].mxu0
        %v1554 = vpop.f32.mrb[0].mxu0
        %v1555 = vadd.f32 %v1218, %v1554
        %v1556 = vpop.f32.mrb[0].mxu0
        %1557 = vmatprep.mubr.bf16.mxu0 0
        %1558 = vmatmul.mubr.bf16.gmra.mrb[0].mxu0 %v908
        %v1559 = vpop.f32.mrb[0].mxu0
        %v1560 = vadd.f32 %v1223, %v1559
        %v1561 = vpop.f32.mrb[0].mxu0
        %v1562 = vpop.f32.mrb[0].mxu0
        %v1563 = vadd.f32 %v1226, %v1562
        %v1564 = vpop.f32.mrb[0].mxu0
        %1565 = vmatprep.mubr.bf16.mxu0 0
        %1566 = vmatmul.mubr.bf16.gmra.mrb[0].mxu0 %v909
        %v1567 = vpop.f32.mrb[0].mxu0
        %v1568 = vadd.f32 %v1231, %v1567
        %v1569 = vpop.f32.mrb[0].mxu0
        %v1570 = vpop.f32.mrb[0].mxu0
        %v1571 = vadd.f32 %v1234, %v1570
        %v1572 = vpop.f32.mrb[0].mxu0
        %1573 = vmatprep.mubr.bf16.mxu0 0
        %1574 = vmatmul.mubr.bf16.gmra.mrb[0].mxu0 %v910
        %v1575 = vpop.f32.mrb[0].mxu0
        %v1576 = vadd.f32 %v1239, %v1575
        %v1577 = vpop.f32.mrb[0].mxu0
        %v1578 = vpop.f32.mrb[0].mxu0
        %v1579 = vadd.f32 %v1242, %v1578
        %v1580 = vpop.f32.mrb[0].mxu0
        %1581 = vmatprep.mubr.bf16.mxu0 0
        %1582 = vmatmul.mubr.bf16.gmra.mrb[0].mxu0 %v911
        %v1583 = vpop.f32.mrb[0].mxu0
        %v1584 = vadd.f32 %v1247, %v1583
        %v1585 = vpop.f32.mrb[0].mxu0
        %v1586 = vpop.f32.mrb[0].mxu0
        %v1587 = vadd.f32 %v1250, %v1586
        %v1588 = vpop.f32.mrb[0].mxu0
        %1589 = vmatprep.mubr.bf16.mxu0 0
        %1590 = vmatmul.mubr.bf16.gmra.mrb[0].mxu0 %v912
        %v1591 = vpop.f32.mrb[0].mxu0
        %v1592 = vadd.f32 %v1255, %v1591
        %v1593 = vpop.f32.mrb[0].mxu0
        %v1594 = vpop.f32.mrb[0].mxu0
        %v1595 = vadd.f32 %v1258, %v1594
        %v1596 = vpop.f32.mrb[0].mxu0
        %1597 = vmatprep.mubr.bf16.mxu0 0
        %1598 = vmatmul.mubr.bf16.gmra.mrb[0].mxu0 %v913
        %v1599 = vpop.f32.mrb[0].mxu0
        %v1600 = vadd.f32 %v1263, %v1599
        %v1601 = vpop.f32.mrb[0].mxu0
        %v1602 = vpop.f32.mrb[0].mxu0
        %v1603 = vadd.f32 %v1266, %v1602
        %v1604 = vpop.f32.mrb[0].mxu0
        %1605 = vmatprep.mubr.bf16.mxu0 0
        %1606 = vmatmul.mubr.bf16.gmra.mrb[0].mxu0 %v914
        %v1607 = vpop.f32.mrb[0].mxu0
        %v1608 = vadd.f32 %v1271, %v1607
        %v1609 = vpop.f32.mrb[0].mxu0
        %v1610 = vpop.f32.mrb[0].mxu0
        %v1611 = vadd.f32 %v1274, %v1610
        %v1612 = vpop.f32.mrb[0].mxu0
        %1613 = vmatprep.mubr.bf16.mxu0 0
        %1614 = vmatmul.mubr.bf16.gmra.mrb[0].mxu0 %v915
        %v1615 = vpop.f32.mrb[0].mxu0
        %v1616 = vadd.f32 %v1279, %v1615
        %v1617 = vpop.f32.mrb[0].mxu0
        %v1618 = vpop.f32.mrb[0].mxu0
        %v1619 = vadd.f32 %v1282, %v1618
        %v1620 = vpop.f32.mrb[0].mxu0
        %1621 = vdwg.mxu0
        %v1622 = vld [vmem:[#allocation5] sm:$0xff]
        %v1623 = vld [vmem:[#allocation5 + $0x8] sm:$0xff]
        %v1624 = vld [vmem:[#allocation5 + $0x10] sm:$0xff]
        %v1625 = vld [vmem:[#allocation5 + $0x18] sm:$0xff]
        %v1626 = vld [vmem:[#allocation5 + $0x20] sm:$0xff]
        %v1627 = vld [vmem:[#allocation5 + $0x28] sm:$0xff]
        %v1628 = vld [vmem:[#allocation5 + $0x30] sm:$0xff]
        %v1629 = vld [vmem:[#allocation5 + $0x38] sm:$0xff]
        %v1630 = vadd.f32 %v1368, %v1622
        %v1631 = vadd.f32 %v1371, %v1623
        %v1632 = vadd.f32 %v1376, %v1624
        %v1633 = vadd.f32 %v1379, %v1625
        %v1634 = vadd.f32 %v1384, %v1626
        %v1635 = vadd.f32 %v1387, %v1627
        %v1636 = vadd.f32 %v1392, %v1628
        %v1637 = vadd.f32 %v1395, %v1629
        %v1638 = vadd.f32 %v1400, %v1622
        %v1639 = vadd.f32 %v1403, %v1623
        %v1640 = vadd.f32 %v1408, %v1624
        %v1641 = vadd.f32 %v1411, %v1625
        %v1642 = vadd.f32 %v1416, %v1626
        %v1643 = vadd.f32 %v1419, %v1627
        %v1644 = vadd.f32 %v1424, %v1628
        %v1645 = vadd.f32 %v1427, %v1629
        %v1646 = vadd.f32 %v1432, %v1622
        %v1647 = vadd.f32 %v1435, %v1623
        %v1648 = vadd.f32 %v1440, %v1624
        %v1649 = vadd.f32 %v1443, %v1625
        %v1650 = vadd.f32 %v1448, %v1626
        %v1651 = vadd.f32 %v1451, %v1627
        %v1652 = vadd.f32 %v1456, %v1628
        %v1653 = vadd.f32 %v1459, %v1629
        %v1654 = vadd.f32 %v1464, %v1622
        %v1655 = vadd.f32 %v1467, %v1623
        %v1656 = vadd.f32 %v1472, %v1624
        %v1657 = vadd.f32 %v1475, %v1625
        %v1658 = vadd.f32 %v1480, %v1626
        %v1659 = vadd.f32 %v1483, %v1627
        %v1660 = vadd.f32 %v1488, %v1628
        %v1661 = vadd.f32 %v1491, %v1629
        %v1662 = vadd.f32 %v1496, %v1622
        %v1663 = vadd.f32 %v1499, %v1623
        %v1664 = vadd.f32 %v1504, %v1624
        %v1665 = vadd.f32 %v1507, %v1625
        %v1666 = vadd.f32 %v1512, %v1626
        %v1667 = vadd.f32 %v1515, %v1627
        %v1668 = vadd.f32 %v1520, %v1628
        %v1669 = vadd.f32 %v1523, %v1629
        %v1670 = vadd.f32 %v1528, %v1622
        %v1671 = vadd.f32 %v1531, %v1623
        %v1672 = vadd.f32 %v1536, %v1624
        %v1673 = vadd.f32 %v1539, %v1625
        %v1674 = vadd.f32 %v1544, %v1626
        %v1675 = vadd.f32 %v1547, %v1627
        %v1676 = vadd.f32 %v1552, %v1628
        %v1677 = vadd.f32 %v1555, %v1629
        %v1678 = vadd.f32 %v1560, %v1622
        %v1679 = vadd.f32 %v1563, %v1623
        %v1680 = vadd.f32 %v1568, %v1624
        %v1681 = vadd.f32 %v1571, %v1625
        %v1682 = vadd.f32 %v1576, %v1626
        %v1683 = vadd.f32 %v1579, %v1627
        %v1684 = vadd.f32 %v1584, %v1628
        %v1685 = vadd.f32 %v1587, %v1629
        %v1686 = vadd.f32 %v1592, %v1622
        %v1687 = vadd.f32 %v1595, %v1623
        %v1688 = vadd.f32 %v1600, %v1624
        %v1689 = vadd.f32 %v1603, %v1625
        %v1690 = vadd.f32 %v1608, %v1626
        %v1691 = vadd.f32 %v1611, %v1627
        %v1692 = vadd.f32 %v1616, %v1628
        %v1693 = vadd.f32 %v1619, %v1629
        %v1694 = vld [vmem:[%s406] sm:$0xff]
        %v1696 = vcombine.high %v1694, %v1694
        %v1698 = vunpack.c.l.s4 1966171168
        %v1699 = vunpack.c.0.s8 %v1698
        %v1700 = vlaneseq
        %v1701 = vshrl.u32 %v1700, 7
        %v1702 = vsub.s32 %v1699, %v1701
        %v1703 = vrot.slane %v1694, %v1702
        %v1705 = vunpack.c.l.s4 1966171168
        %v1706 = vunpack.c.0.s8 %v1705
        %v1707 = vlaneseq
        %v1708 = vshrl.u32 %v1707, 7
        %v1709 = vsub.s32 %v1706, %v1708
        %v1710 = vrot.slane %v1696, %v1709
        %v1711 = vcombine.high %v1703, %v1703
        %v1712 = vcombine.high %v1710, %v1710
        %v1714 = vunpack.c.l.s4 1966171168
        %v1715 = vunpack.c.0.s8 %v1714
        %v1716 = vlaneseq
        %v1717 = vshrl.u32 %v1716, 7
        %v1718 = vsub.s32 %v1715, %v1717
        %v1719 = vrot.slane %v1703, %v1718
        %v1721 = vunpack.c.l.s4 1966171168
        %v1722 = vunpack.c.0.s8 %v1721
        %v1723 = vlaneseq
        %v1724 = vshrl.u32 %v1723, 7
        %v1725 = vsub.s32 %v1722, %v1724
        %v1726 = vrot.slane %v1710, %v1725
        %v1728 = vunpack.c.l.s4 1966171168
        %v1729 = vunpack.c.0.s8 %v1728
        %v1730 = vlaneseq
        %v1731 = vshrl.u32 %v1730, 7
        %v1732 = vsub.s32 %v1729, %v1731
        %v1733 = vrot.slane %v1711, %v1732
        %v1735 = vunpack.c.l.s4 1966171168
        %v1736 = vunpack.c.0.s8 %v1735
        %v1737 = vlaneseq
        %v1738 = vshrl.u32 %v1737, 7
        %v1739 = vsub.s32 %v1736, %v1738
        %v1740 = vrot.slane %v1712, %v1739
        %v1741 = vcombine.high %v1719, %v1719
        %v1742 = vcombine.high %v1726, %v1726
        %v1743 = vcombine.high %v1733, %v1733
        %v1744 = vcombine.high %v1740, %v1740
        %v1745 = vlaneseq
        %v1746 = vshrl.u32 %v1745, 7
        %v1747 = vsub.s32 0, %v1746
        %v1748 = vrot.slane %v1719, %v1747
        %v1749 = vlaneseq
        %v1750 = vshrl.u32 %v1749, 7
        %v1751 = vsub.s32 0, %v1750
        %v1752 = vrot.slane %v1733, %v1751
        %v1753 = vlaneseq
        %v1754 = vshrl.u32 %v1753, 7
        %v1755 = vsub.s32 0, %v1754
        %v1756 = vrot.slane %v1741, %v1755
        %v1757 = vlaneseq
        %v1758 = vshrl.u32 %v1757, 7
        %v1759 = vsub.s32 0, %v1758
        %v1760 = vrot.slane %v1743, %v1759
        %v1761 = vlaneseq
        %v1762 = vshrl.u32 %v1761, 7
        %v1763 = vsub.s32 0, %v1762
        %v1764 = vrot.slane %v1726, %v1763
        %v1765 = vlaneseq
        %v1766 = vshrl.u32 %v1765, 7
        %v1767 = vsub.s32 0, %v1766
        %v1768 = vrot.slane %v1740, %v1767
        %v1769 = vlaneseq
        %v1770 = vshrl.u32 %v1769, 7
        %v1771 = vsub.s32 0, %v1770
        %v1772 = vrot.slane %v1742, %v1771
        %v1773 = vlaneseq
        %v1774 = vshrl.u32 %v1773, 7
        %v1775 = vsub.s32 0, %v1774
        %v1776 = vrot.slane %v1744, %v1775
        %v1785 = vadd.f32 %v1630, %v1748
        %v1786 = vadd.f32 %v1631, %v1748
        %v1787 = vadd.f32 %v1632, %v1748
        %v1788 = vadd.f32 %v1633, %v1748
        %v1789 = vadd.f32 %v1634, %v1748
        %v1790 = vadd.f32 %v1635, %v1748
        %v1791 = vadd.f32 %v1636, %v1748
        %v1792 = vadd.f32 %v1637, %v1748
        %v1793 = vadd.f32 %v1638, %v1752
        %v1794 = vadd.f32 %v1639, %v1752
        %v1795 = vadd.f32 %v1640, %v1752
        %v1796 = vadd.f32 %v1641, %v1752
        %v1797 = vadd.f32 %v1642, %v1752
        %v1798 = vadd.f32 %v1643, %v1752
        %v1799 = vadd.f32 %v1644, %v1752
        %v1800 = vadd.f32 %v1645, %v1752
        %v1801 = vadd.f32 %v1646, %v1756
        %v1802 = vadd.f32 %v1647, %v1756
        %v1803 = vadd.f32 %v1648, %v1756
        %v1804 = vadd.f32 %v1649, %v1756
        %v1805 = vadd.f32 %v1650, %v1756
        %v1806 = vadd.f32 %v1651, %v1756
        %v1807 = vadd.f32 %v1652, %v1756
        %v1808 = vadd.f32 %v1653, %v1756
        %v1809 = vadd.f32 %v1654, %v1760
        %v1810 = vadd.f32 %v1655, %v1760
        %v1811 = vadd.f32 %v1656, %v1760
        %v1812 = vadd.f32 %v1657, %v1760
        %v1813 = vadd.f32 %v1658, %v1760
        %v1814 = vadd.f32 %v1659, %v1760
        %v1815 = vadd.f32 %v1660, %v1760
        %v1816 = vadd.f32 %v1661, %v1760
        %v1817 = vadd.f32 %v1662, %v1764
        %v1818 = vadd.f32 %v1663, %v1764
        %v1819 = vadd.f32 %v1664, %v1764
        %v1820 = vadd.f32 %v1665, %v1764
        %v1821 = vadd.f32 %v1666, %v1764
        %v1822 = vadd.f32 %v1667, %v1764
        %v1823 = vadd.f32 %v1668, %v1764
        %v1824 = vadd.f32 %v1669, %v1764
        %v1825 = vadd.f32 %v1670, %v1768
        %v1826 = vadd.f32 %v1671, %v1768
        %v1827 = vadd.f32 %v1672, %v1768
        %v1828 = vadd.f32 %v1673, %v1768
        %v1829 = vadd.f32 %v1674, %v1768
        %v1830 = vadd.f32 %v1675, %v1768
        %v1831 = vadd.f32 %v1676, %v1768
        %v1832 = vadd.f32 %v1677, %v1768
        %v1833 = vadd.f32 %v1678, %v1772
        %v1834 = vadd.f32 %v1679, %v1772
        %v1835 = vadd.f32 %v1680, %v1772
        %v1836 = vadd.f32 %v1681, %v1772
        %v1837 = vadd.f32 %v1682, %v1772
        %v1838 = vadd.f32 %v1683, %v1772
        %v1839 = vadd.f32 %v1684, %v1772
        %v1840 = vadd.f32 %v1685, %v1772
        %v1841 = vadd.f32 %v1686, %v1776
        %v1842 = vadd.f32 %v1687, %v1776
        %v1843 = vadd.f32 %v1688, %v1776
        %v1844 = vadd.f32 %v1689, %v1776
        %v1845 = vadd.f32 %v1690, %v1776
        %v1846 = vadd.f32 %v1691, %v1776
        %v1847 = vadd.f32 %v1692, %v1776
        %v1848 = vadd.f32 %v1693, %v1776
        %v1849 = vpack.c.bf16 %v1786, %v1785
        %v1850 = vpack.c.bf16 %v1788, %v1787
        %v1851 = vpack.c.bf16 %v1790, %v1789
        %v1852 = vpack.c.bf16 %v1792, %v1791
        %v1853 = vpack.c.bf16 %v1794, %v1793
        %v1854 = vpack.c.bf16 %v1796, %v1795
        %v1855 = vpack.c.bf16 %v1798, %v1797
        %v1856 = vpack.c.bf16 %v1800, %v1799
        %v1857 = vpack.c.bf16 %v1802, %v1801
        %v1858 = vpack.c.bf16 %v1804, %v1803
        %v1859 = vpack.c.bf16 %v1806, %v1805
        %v1860 = vpack.c.bf16 %v1808, %v1807
        %v1861 = vpack.c.bf16 %v1810, %v1809
        %v1862 = vpack.c.bf16 %v1812, %v1811
        %v1863 = vpack.c.bf16 %v1814, %v1813
        %v1864 = vpack.c.bf16 %v1816, %v1815
        %v1865 = vpack.c.bf16 %v1818, %v1817
        %v1866 = vpack.c.bf16 %v1820, %v1819
        %v1867 = vpack.c.bf16 %v1822, %v1821
        %v1868 = vpack.c.bf16 %v1824, %v1823
        %v1869 = vpack.c.bf16 %v1826, %v1825
        %v1870 = vpack.c.bf16 %v1828, %v1827
        %v1871 = vpack.c.bf16 %v1830, %v1829
        %v1872 = vpack.c.bf16 %v1832, %v1831
        %v1873 = vpack.c.bf16 %v1834, %v1833
        %v1874 = vpack.c.bf16 %v1836, %v1835
        %v1875 = vpack.c.bf16 %v1838, %v1837
        %v1876 = vpack.c.bf16 %v1840, %v1839
        %v1877 = vpack.c.bf16 %v1842, %v1841
        %v1878 = vpack.c.bf16 %v1844, %v1843
        %v1879 = vpack.c.bf16 %v1846, %v1845
        %v1880 = vpack.c.bf16 %v1848, %v1847
        %v1881 = vld [vmem:[%s5] sm:$0xff]
        %v1882 = vld [vmem:[%s5 + $0x8] sm:$0xff]
        %v1883 = vld [vmem:[%s5 + $0x10] sm:$0xff]
        %v1884 = vld [vmem:[%s5 + $0x18] sm:$0xff]
        %v1885 = vld [vmem:[%s5 + $0x20] sm:$0xff]
        %v1886 = vld [vmem:[%s5 + $0x28] sm:$0xff]
        %v1887 = vld [vmem:[%s5 + $0x30] sm:$0xff]
        %v1888 = vld [vmem:[%s5 + $0x38] sm:$0xff]
        %v1889 = vld [vmem:[%s5 + $0x40] sm:$0xff]
        %v1890 = vld [vmem:[%s5 + $0x48] sm:$0xff]
        %v1891 = vld [vmem:[%s5 + $0x50] sm:$0xff]
        %v1892 = vld [vmem:[%s5 + $0x58] sm:$0xff]
        %v1893 = vld [vmem:[%s5 + $0x60] sm:$0xff]
        %v1894 = vld [vmem:[%s5 + $0x68] sm:$0xff]
        %v1895 = vld [vmem:[%s5 + $0x70] sm:$0xff]
        %v1896 = vld [vmem:[%s5 + $0x78] sm:$0xff]
        %v1897 = vld [vmem:[%s5 + $0x80] sm:$0xff]
        %v1898 = vld [vmem:[%s5 + $0x88] sm:$0xff]
        %v1899 = vld [vmem:[%s5 + $0x90] sm:$0xff]
        %v1900 = vld [vmem:[%s5 + $0x98] sm:$0xff]
        %v1901 = vld [vmem:[%s5 + $0xa0] sm:$0xff]
        %v1902 = vld [vmem:[%s5 + $0xa8] sm:$0xff]
        %v1903 = vld [vmem:[%s5 + $0xb0] sm:$0xff]
        %v1904 = vld [vmem:[%s5 + $0xb8] sm:$0xff]
        %v1905 = vld [vmem:[%s5 + $0xc0] sm:$0xff]
        %v1906 = vld [vmem:[%s5 + $0xc8] sm:$0xff]
        %v1907 = vld [vmem:[%s5 + $0xd0] sm:$0xff]
        %v1908 = vld [vmem:[%s5 + $0xd8] sm:$0xff]
        %v1909 = vld [vmem:[%s5 + $0xe0] sm:$0xff]
        %v1910 = vld [vmem:[%s5 + $0xe8] sm:$0xff]
        %v1911 = vld [vmem:[%s5 + $0xf0] sm:$0xff]
        %v1912 = vld [vmem:[%s5 + $0xf8] sm:$0xff]
        %v1945 = vunpack.c.l.b16 %v1881
        %v1946 = vunpack.c.h.b16 %v1881
        %v1947 = vunpack.c.l.b16 %v1882
        %v1948 = vunpack.c.h.b16 %v1882
        %v1949 = vunpack.c.l.b16 %v1883
        %v1950 = vunpack.c.h.b16 %v1883
        %v1951 = vunpack.c.l.b16 %v1884
        %v1952 = vunpack.c.h.b16 %v1884
        %v1953 = vunpack.c.l.b16 %v1885
        %v1954 = vunpack.c.h.b16 %v1885
        %v1955 = vunpack.c.l.b16 %v1886
        %v1956 = vunpack.c.h.b16 %v1886
        %v1957 = vunpack.c.l.b16 %v1887
        %v1958 = vunpack.c.h.b16 %v1887
        %v1959 = vunpack.c.l.b16 %v1888
        %v1960 = vunpack.c.h.b16 %v1888
        %v1961 = vunpack.c.l.b16 %v1889
        %v1962 = vunpack.c.h.b16 %v1889
        %v1963 = vunpack.c.l.b16 %v1890
        %v1964 = vunpack.c.h.b16 %v1890
        %v1965 = vunpack.c.l.b16 %v1891
        %v1966 = vunpack.c.h.b16 %v1891
        %v1967 = vunpack.c.l.b16 %v1892
        %v1968 = vunpack.c.h.b16 %v1892
        %v1969 = vunpack.c.l.b16 %v1893
        %v1970 = vunpack.c.h.b16 %v1893
        %v1971 = vunpack.c.l.b16 %v1894
        %v1972 = vunpack.c.h.b16 %v1894
        %v1973 = vunpack.c.l.b16 %v1895
        %v1974 = vunpack.c.h.b16 %v1895
        %v1975 = vunpack.c.l.b16 %v1896
        %v1976 = vunpack.c.h.b16 %v1896
        %v1977 = vunpack.c.l.b16 %v1897
        %v1978 = vunpack.c.h.b16 %v1897
        %v1979 = vunpack.c.l.b16 %v1898
        %v1980 = vunpack.c.h.b16 %v1898
        %v1981 = vunpack.c.l.b16 %v1899
        %v1982 = vunpack.c.h.b16 %v1899
        %v1983 = vunpack.c.l.b16 %v1900
        %v1984 = vunpack.c.h.b16 %v1900
        %v1985 = vunpack.c.l.b16 %v1901
        %v1986 = vunpack.c.h.b16 %v1901
        %v1987 = vunpack.c.l.b16 %v1902
        %v1988 = vunpack.c.h.b16 %v1902
        %v1989 = vunpack.c.l.b16 %v1903
        %v1990 = vunpack.c.h.b16 %v1903
        %v1991 = vunpack.c.l.b16 %v1904
        %v1992 = vunpack.c.h.b16 %v1904
        %v1993 = vunpack.c.l.b16 %v1905
        %v1994 = vunpack.c.h.b16 %v1905
        %v1995 = vunpack.c.l.b16 %v1906
        %v1996 = vunpack.c.h.b16 %v1906
        %v1997 = vunpack.c.l.b16 %v1907
        %v1998 = vunpack.c.h.b16 %v1907
        %v1999 = vunpack.c.l.b16 %v1908
        %v2000 = vunpack.c.h.b16 %v1908
        %v2001 = vunpack.c.l.b16 %v1909
        %v2002 = vunpack.c.h.b16 %v1909
        %v2003 = vunpack.c.l.b16 %v1910
        %v2004 = vunpack.c.h.b16 %v1910
        %v2005 = vunpack.c.l.b16 %v1911
        %v2006 = vunpack.c.h.b16 %v1911
        %v2007 = vunpack.c.l.b16 %v1912
        %v2008 = vunpack.c.h.b16 %v1912
        %v2009 = vpack.c.b16 %v1949, %v1945
        %v2010 = vpack.c.b16 %v1950, %v1946
        %v2011 = vpack.c.b16 %v1951, %v1947
        %v2012 = vpack.c.b16 %v1952, %v1948
        %v2013 = vpack.c.b16 %v1957, %v1953
        %v2014 = vpack.c.b16 %v1958, %v1954
        %v2015 = vpack.c.b16 %v1959, %v1955
        %v2016 = vpack.c.b16 %v1960, %v1956
        %v2017 = vpack.c.b16 %v1965, %v1961
        %v2018 = vpack.c.b16 %v1966, %v1962
        %v2019 = vpack.c.b16 %v1967, %v1963
        %v2020 = vpack.c.b16 %v1968, %v1964
        %v2021 = vpack.c.b16 %v1973, %v1969
        %v2022 = vpack.c.b16 %v1974, %v1970
        %v2023 = vpack.c.b16 %v1975, %v1971
        %v2024 = vpack.c.b16 %v1976, %v1972
        %v2025 = vpack.c.b16 %v1981, %v1977
        %v2026 = vpack.c.b16 %v1982, %v1978
        %v2027 = vpack.c.b16 %v1983, %v1979
        %v2028 = vpack.c.b16 %v1984, %v1980
        %v2029 = vpack.c.b16 %v1989, %v1985
        %v2030 = vpack.c.b16 %v1990, %v1986
        %v2031 = vpack.c.b16 %v1991, %v1987
        %v2032 = vpack.c.b16 %v1992, %v1988
        %v2033 = vpack.c.b16 %v1997, %v1993
        %v2034 = vpack.c.b16 %v1998, %v1994
        %v2035 = vpack.c.b16 %v1999, %v1995
        %v2036 = vpack.c.b16 %v2000, %v1996
        %v2037 = vpack.c.b16 %v2005, %v2001
        %v2038 = vpack.c.b16 %v2006, %v2002
        %v2039 = vpack.c.b16 %v2007, %v2003
        %v2040 = vpack.c.b16 %v2008, %v2004
        %2073 = vmatprep.subr.bf16.mxu0 %v2010
        %2074 = vmatpush1.bf16.msra.mxu0 %v2009
        %2075 = vmatprep.subr.bf16.mxu0 %v2014
        %2076 = vmatpush1.bf16.msra.mxu0 %v2013
        %2077 = vmatprep.subr.bf16.mxu0 %v2018
        %2078 = vmatpush1.bf16.msra.mxu0 %v2017
        %2079 = vmatprep.subr.bf16.mxu0 %v2022
        %2080 = vmatpush1.bf16.msra.mxu0 %v2021
        %2081 = vmatprep.subr.bf16.mxu0 %v2026
        %2082 = vmatpush1.bf16.msra.mxu0 %v2025
        %2083 = vmatprep.subr.bf16.mxu0 %v2030
        %2084 = vmatpush1.bf16.msra.mxu0 %v2029
        %2085 = vmatprep.subr.bf16.mxu0 %v2034
        %2086 = vmatpush1.bf16.msra.mxu0 %v2033
        %2087 = vmatprep.subr.bf16.mxu0 %v2038
        %2088 = vmatpush1.bf16.msra.mxu0 %v2037
        %2089 = vmatprep.subr.bf16.mxu0 0
        %2090 = vmatpush1.bf16.msra.mxu0 0
        %2091 = vmatprep.subr.bf16.mxu0 0
        %2092 = vmatpush1.bf16.msra.mxu0 0
        %2093 = vmatprep.subr.bf16.mxu0 0
        %2094 = vmatpush1.bf16.msra.mxu0 0
        %2095 = vmatprep.subr.bf16.mxu0 0
        %2096 = vmatpush1.bf16.msra.mxu0 0
        %2097 = vmatprep.subr.bf16.mxu0 0
        %2098 = vmatpush1.bf16.msra.mxu0 0
        %2099 = vmatprep.subr.bf16.mxu0 0
        %2100 = vmatpush1.bf16.msra.mxu0 0
        %2101 = vmatprep.subr.bf16.mxu0 0
        %2102 = vmatpush1.bf16.msra.mxu0 0
        %2103 = vmatprep.subr.bf16.mxu0 0
        %2104 = vmatpush1.bf16.msra.mxu0 0
        %2105 = vmatprep.mubr.bf16.mxu0 0
        %2106 = vmatmul.mubr.bf16.gmra.mrb[0].mxu0 %v1849
        %v2107 = vpop.f32.mrb[0].mxu0
        %v2108 = vadd.f32 0.0, %v2107
        %v2109 = vpop.f32.mrb[0].mxu0
        %v2110 = vadd.f32 0.0, %v2109
        %v2111 = vpop.f32.mrb[0].mxu0
        %v2112 = vadd.f32 0.0, %v2111
        %v2113 = vpop.f32.mrb[0].mxu0
        %v2114 = vadd.f32 0.0, %v2113
        %2115 = vmatprep.mubr.bf16.mxu0 0
        %2116 = vmatmul.mubr.bf16.gmra.mrb[0].mxu0 %v1850
        %v2117 = vpop.f32.mrb[0].mxu0
        %v2118 = vadd.f32 0.0, %v2117
        %v2119 = vpop.f32.mrb[0].mxu0
        %v2120 = vadd.f32 0.0, %v2119
        %v2121 = vpop.f32.mrb[0].mxu0
        %v2122 = vadd.f32 0.0, %v2121
        %v2123 = vpop.f32.mrb[0].mxu0
        %v2124 = vadd.f32 0.0, %v2123
        %2125 = vmatprep.mubr.bf16.mxu0 0
        %2126 = vmatmul.mubr.bf16.gmra.mrb[0].mxu0 %v1851
        %v2127 = vpop.f32.mrb[0].mxu0
        %v2128 = vadd.f32 0.0, %v2127
        %v2129 = vpop.f32.mrb[0].mxu0
        %v2130 = vadd.f32 0.0, %v2129
        %v2131 = vpop.f32.mrb[0].mxu0
        %v2132 = vadd.f32 0.0, %v2131
        %v2133 = vpop.f32.mrb[0].mxu0
        %v2134 = vadd.f32 0.0, %v2133
        %2135 = vmatprep.mubr.bf16.mxu0 0
        %2136 = vmatmul.mubr.bf16.gmra.mrb[0].mxu0 %v1852
        %v2137 = vpop.f32.mrb[0].mxu0
        %v2138 = vadd.f32 0.0, %v2137
        %v2139 = vpop.f32.mrb[0].mxu0
        %v2140 = vadd.f32 0.0, %v2139
        %v2141 = vpop.f32.mrb[0].mxu0
        %v2142 = vadd.f32 0.0, %v2141
        %v2143 = vpop.f32.mrb[0].mxu0
        %v2144 = vadd.f32 0.0, %v2143
        %2145 = vmatprep.mubr.bf16.mxu0 0
        %2146 = vmatmul.mubr.bf16.gmra.mrb[0].mxu0 %v1853
        %v2147 = vpop.f32.mrb[0].mxu0
        %v2148 = vadd.f32 0.0, %v2147
        %v2149 = vpop.f32.mrb[0].mxu0
        %v2150 = vadd.f32 0.0, %v2149
        %v2151 = vpop.f32.mrb[0].mxu0
        %v2152 = vadd.f32 0.0, %v2151
        %v2153 = vpop.f32.mrb[0].mxu0
        %v2154 = vadd.f32 0.0, %v2153
        %2155 = vmatprep.mubr.bf16.mxu0 0
        %2156 = vmatmul.mubr.bf16.gmra.mrb[0].mxu0 %v1854
        %v2157 = vpop.f32.mrb[0].mxu0
        %v2158 = vadd.f32 0.0, %v2157
        %v2159 = vpop.f32.mrb[0].mxu0
        %v2160 = vadd.f32 0.0, %v2159
        %v2161 = vpop.f32.mrb[0].mxu0
        %v2162 = vadd.f32 0.0, %v2161
        %v2163 = vpop.f32.mrb[0].mxu0
        %v2164 = vadd.f32 0.0, %v2163
        %2165 = vmatprep.mubr.bf16.mxu0 0
        %2166 = vmatmul.mubr.bf16.gmra.mrb[0].mxu0 %v1855
        %v2167 = vpop.f32.mrb[0].mxu0
        %v2168 = vadd.f32 0.0, %v2167
        %v2169 = vpop.f32.mrb[0].mxu0
        %v2170 = vadd.f32 0.0, %v2169
        %v2171 = vpop.f32.mrb[0].mxu0
        %v2172 = vadd.f32 0.0, %v2171
        %v2173 = vpop.f32.mrb[0].mxu0
        %v2174 = vadd.f32 0.0, %v2173
        %2175 = vmatprep.mubr.bf16.mxu0 0
        %2176 = vmatmul.mubr.bf16.gmra.mrb[0].mxu0 %v1856
        %v2177 = vpop.f32.mrb[0].mxu0
        %v2178 = vadd.f32 0.0, %v2177
        %v2179 = vpop.f32.mrb[0].mxu0
        %v2180 = vadd.f32 0.0, %v2179
        %v2181 = vpop.f32.mrb[0].mxu0
        %v2182 = vadd.f32 0.0, %v2181
        %v2183 = vpop.f32.mrb[0].mxu0
        %v2184 = vadd.f32 0.0, %v2183
        %2185 = vmatprep.mubr.bf16.mxu0 0
        %2186 = vmatmul.mubr.bf16.gmra.mrb[0].mxu0 %v1857
        %v2187 = vpop.f32.mrb[0].mxu0
        %v2188 = vadd.f32 0.0, %v2187
        %v2189 = vpop.f32.mrb[0].mxu0
        %v2190 = vadd.f32 0.0, %v2189
        %v2191 = vpop.f32.mrb[0].mxu0
        %v2192 = vadd.f32 0.0, %v2191
        %v2193 = vpop.f32.mrb[0].mxu0
        %v2194 = vadd.f32 0.0, %v2193
        %2195 = vmatprep.mubr.bf16.mxu0 0
        %2196 = vmatmul.mubr.bf16.gmra.mrb[0].mxu0 %v1858
        %v2197 = vpop.f32.mrb[0].mxu0
        %v2198 = vadd.f32 0.0, %v2197
        %v2199 = vpop.f32.mrb[0].mxu0
        %v2200 = vadd.f32 0.0, %v2199
        %v2201 = vpop.f32.mrb[0].mxu0
        %v2202 = vadd.f32 0.0, %v2201
        %v2203 = vpop.f32.mrb[0].mxu0
        %v2204 = vadd.f32 0.0, %v2203
        %2205 = vmatprep.mubr.bf16.mxu0 0
        %2206 = vmatmul.mubr.bf16.gmra.mrb[0].mxu0 %v1859
        %v2207 = vpop.f32.mrb[0].mxu0
        %v2208 = vadd.f32 0.0, %v2207
        %v2209 = vpop.f32.mrb[0].mxu0
        %v2210 = vadd.f32 0.0, %v2209
        %v2211 = vpop.f32.mrb[0].mxu0
        %v2212 = vadd.f32 0.0, %v2211
        %v2213 = vpop.f32.mrb[0].mxu0
        %v2214 = vadd.f32 0.0, %v2213
        %2215 = vmatprep.mubr.bf16.mxu0 0
        %2216 = vmatmul.mubr.bf16.gmra.mrb[0].mxu0 %v1860
        %v2217 = vpop.f32.mrb[0].mxu0
        %v2218 = vadd.f32 0.0, %v2217
        %v2219 = vpop.f32.mrb[0].mxu0
        %v2220 = vadd.f32 0.0, %v2219
        %v2221 = vpop.f32.mrb[0].mxu0
        %v2222 = vadd.f32 0.0, %v2221
        %v2223 = vpop.f32.mrb[0].mxu0
        %v2224 = vadd.f32 0.0, %v2223
        %2225 = vmatprep.mubr.bf16.mxu0 0
        %2226 = vmatmul.mubr.bf16.gmra.mrb[0].mxu0 %v1861
        %v2227 = vpop.f32.mrb[0].mxu0
        %v2228 = vadd.f32 0.0, %v2227
        %v2229 = vpop.f32.mrb[0].mxu0
        %v2230 = vadd.f32 0.0, %v2229
        %v2231 = vpop.f32.mrb[0].mxu0
        %v2232 = vadd.f32 0.0, %v2231
        %v2233 = vpop.f32.mrb[0].mxu0
        %v2234 = vadd.f32 0.0, %v2233
        %2235 = vmatprep.mubr.bf16.mxu0 0
        %2236 = vmatmul.mubr.bf16.gmra.mrb[0].mxu0 %v1862
        %v2237 = vpop.f32.mrb[0].mxu0
        %v2238 = vadd.f32 0.0, %v2237
        %v2239 = vpop.f32.mrb[0].mxu0
        %v2240 = vadd.f32 0.0, %v2239
        %v2241 = vpop.f32.mrb[0].mxu0
        %v2242 = vadd.f32 0.0, %v2241
        %v2243 = vpop.f32.mrb[0].mxu0
        %v2244 = vadd.f32 0.0, %v2243
        %2245 = vmatprep.mubr.bf16.mxu0 0
        %2246 = vmatmul.mubr.bf16.gmra.mrb[0].mxu0 %v1863
        %v2247 = vpop.f32.mrb[0].mxu0
        %v2248 = vadd.f32 0.0, %v2247
        %v2249 = vpop.f32.mrb[0].mxu0
        %v2250 = vadd.f32 0.0, %v2249
        %v2251 = vpop.f32.mrb[0].mxu0
        %v2252 = vadd.f32 0.0, %v2251
        %v2253 = vpop.f32.mrb[0].mxu0
        %v2254 = vadd.f32 0.0, %v2253
        %2255 = vmatprep.mubr.bf16.mxu0 0
        %2256 = vmatmul.mubr.bf16.gmra.mrb[0].mxu0 %v1864
        %v2257 = vpop.f32.mrb[0].mxu0
        %v2258 = vadd.f32 0.0, %v2257
        %v2259 = vpop.f32.mrb[0].mxu0
        %v2260 = vadd.f32 0.0, %v2259
        %v2261 = vpop.f32.mrb[0].mxu0
        %v2262 = vadd.f32 0.0, %v2261
        %v2263 = vpop.f32.mrb[0].mxu0
        %v2264 = vadd.f32 0.0, %v2263
        %2265 = vmatprep.mubr.bf16.mxu0 0
        %2266 = vmatmul.mubr.bf16.gmra.mrb[0].mxu0 %v1865
        %v2267 = vpop.f32.mrb[0].mxu0
        %v2268 = vadd.f32 0.0, %v2267
        %v2269 = vpop.f32.mrb[0].mxu0
        %v2270 = vadd.f32 0.0, %v2269
        %v2271 = vpop.f32.mrb[0].mxu0
        %v2272 = vadd.f32 0.0, %v2271
        %v2273 = vpop.f32.mrb[0].mxu0
        %v2274 = vadd.f32 0.0, %v2273
        %2275 = vmatprep.mubr.bf16.mxu0 0
        %2276 = vmatmul.mubr.bf16.gmra.mrb[0].mxu0 %v1866
        %v2277 = vpop.f32.mrb[0].mxu0
        %v2278 = vadd.f32 0.0, %v2277
        %v2279 = vpop.f32.mrb[0].mxu0
        %v2280 = vadd.f32 0.0, %v2279
        %v2281 = vpop.f32.mrb[0].mxu0
        %v2282 = vadd.f32 0.0, %v2281
        %v2283 = vpop.f32.mrb[0].mxu0
        %v2284 = vadd.f32 0.0, %v2283
        %2285 = vmatprep.mubr.bf16.mxu0 0
        %2286 = vmatmul.mubr.bf16.gmra.mrb[0].mxu0 %v1867
        %v2287 = vpop.f32.mrb[0].mxu0
        %v2288 = vadd.f32 0.0, %v2287
        %v2289 = vpop.f32.mrb[0].mxu0
        %v2290 = vadd.f32 0.0, %v2289
        %v2291 = vpop.f32.mrb[0].mxu0
        %v2292 = vadd.f32 0.0, %v2291
        %v2293 = vpop.f32.mrb[0].mxu0
        %v2294 = vadd.f32 0.0, %v2293
        %2295 = vmatprep.mubr.bf16.mxu0 0
        %2296 = vmatmul.mubr.bf16.gmra.mrb[0].mxu0 %v1868
        %v2297 = vpop.f32.mrb[0].mxu0
        %v2298 = vadd.f32 0.0, %v2297
        %v2299 = vpop.f32.mrb[0].mxu0
        %v2300 = vadd.f32 0.0, %v2299
        %v2301 = vpop.f32.mrb[0].mxu0
        %v2302 = vadd.f32 0.0, %v2301
        %v2303 = vpop.f32.mrb[0].mxu0
        %v2304 = vadd.f32 0.0, %v2303
        %2305 = vmatprep.mubr.bf16.mxu0 0
        %2306 = vmatmul.mubr.bf16.gmra.mrb[0].mxu0 %v1869
        %v2307 = vpop.f32.mrb[0].mxu0
        %v2308 = vadd.f32 0.0, %v2307
        %v2309 = vpop.f32.mrb[0].mxu0
        %v2310 = vadd.f32 0.0, %v2309
        %v2311 = vpop.f32.mrb[0].mxu0
        %v2312 = vadd.f32 0.0, %v2311
        %v2313 = vpop.f32.mrb[0].mxu0
        %v2314 = vadd.f32 0.0, %v2313
        %2315 = vmatprep.mubr.bf16.mxu0 0
        %2316 = vmatmul.mubr.bf16.gmra.mrb[0].mxu0 %v1870
        %v2317 = vpop.f32.mrb[0].mxu0
        %v2318 = vadd.f32 0.0, %v2317
        %v2319 = vpop.f32.mrb[0].mxu0
        %v2320 = vadd.f32 0.0, %v2319
        %v2321 = vpop.f32.mrb[0].mxu0
        %v2322 = vadd.f32 0.0, %v2321
        %v2323 = vpop.f32.mrb[0].mxu0
        %v2324 = vadd.f32 0.0, %v2323
        %2325 = vmatprep.mubr.bf16.mxu0 0
        %2326 = vmatmul.mubr.bf16.gmra.mrb[0].mxu0 %v1871
        %v2327 = vpop.f32.mrb[0].mxu0
        %v2328 = vadd.f32 0.0, %v2327
        %v2329 = vpop.f32.mrb[0].mxu0
        %v2330 = vadd.f32 0.0, %v2329
        %v2331 = vpop.f32.mrb[0].mxu0
        %v2332 = vadd.f32 0.0, %v2331
        %v2333 = vpop.f32.mrb[0].mxu0
        %v2334 = vadd.f32 0.0, %v2333
        %2335 = vmatprep.mubr.bf16.mxu0 0
        %2336 = vmatmul.mubr.bf16.gmra.mrb[0].mxu0 %v1872
        %v2337 = vpop.f32.mrb[0].mxu0
        %v2338 = vadd.f32 0.0, %v2337
        %v2339 = vpop.f32.mrb[0].mxu0
        %v2340 = vadd.f32 0.0, %v2339
        %v2341 = vpop.f32.mrb[0].mxu0
        %v2342 = vadd.f32 0.0, %v2341
        %v2343 = vpop.f32.mrb[0].mxu0
        %v2344 = vadd.f32 0.0, %v2343
        %2345 = vmatprep.mubr.bf16.mxu0 0
        %2346 = vmatmul.mubr.bf16.gmra.mrb[0].mxu0 %v1873
        %v2347 = vpop.f32.mrb[0].mxu0
        %v2348 = vadd.f32 0.0, %v2347
        %v2349 = vpop.f32.mrb[0].mxu0
        %v2350 = vadd.f32 0.0, %v2349
        %v2351 = vpop.f32.mrb[0].mxu0
        %v2352 = vadd.f32 0.0, %v2351
        %v2353 = vpop.f32.mrb[0].mxu0
        %v2354 = vadd.f32 0.0, %v2353
        %2355 = vmatprep.mubr.bf16.mxu0 0
        %2356 = vmatmul.mubr.bf16.gmra.mrb[0].mxu0 %v1874
        %v2357 = vpop.f32.mrb[0].mxu0
        %v2358 = vadd.f32 0.0, %v2357
        %v2359 = vpop.f32.mrb[0].mxu0
        %v2360 = vadd.f32 0.0, %v2359
        %v2361 = vpop.f32.mrb[0].mxu0
        %v2362 = vadd.f32 0.0, %v2361
        %v2363 = vpop.f32.mrb[0].mxu0
        %v2364 = vadd.f32 0.0, %v2363
        %2365 = vmatprep.mubr.bf16.mxu0 0
        %2366 = vmatmul.mubr.bf16.gmra.mrb[0].mxu0 %v1875
        %v2367 = vpop.f32.mrb[0].mxu0
        %v2368 = vadd.f32 0.0, %v2367
        %v2369 = vpop.f32.mrb[0].mxu0
        %v2370 = vadd.f32 0.0, %v2369
        %v2371 = vpop.f32.mrb[0].mxu0
        %v2372 = vadd.f32 0.0, %v2371
        %v2373 = vpop.f32.mrb[0].mxu0
        %v2374 = vadd.f32 0.0, %v2373
        %2375 = vmatprep.mubr.bf16.mxu0 0
        %2376 = vmatmul.mubr.bf16.gmra.mrb[0].mxu0 %v1876
        %v2377 = vpop.f32.mrb[0].mxu0
        %v2378 = vadd.f32 0.0, %v2377
        %v2379 = vpop.f32.mrb[0].mxu0
        %v2380 = vadd.f32 0.0, %v2379
        %v2381 = vpop.f32.mrb[0].mxu0
        %v2382 = vadd.f32 0.0, %v2381
        %v2383 = vpop.f32.mrb[0].mxu0
        %v2384 = vadd.f32 0.0, %v2383
        %2385 = vmatprep.mubr.bf16.mxu0 0
        %2386 = vmatmul.mubr.bf16.gmra.mrb[0].mxu0 %v1877
        %v2387 = vpop.f32.mrb[0].mxu0
        %v2388 = vadd.f32 0.0, %v2387
        %v2389 = vpop.f32.mrb[0].mxu0
        %v2390 = vadd.f32 0.0, %v2389
        %v2391 = vpop.f32.mrb[0].mxu0
        %v2392 = vadd.f32 0.0, %v2391
        %v2393 = vpop.f32.mrb[0].mxu0
        %v2394 = vadd.f32 0.0, %v2393
        %2395 = vmatprep.mubr.bf16.mxu0 0
        %2396 = vmatmul.mubr.bf16.gmra.mrb[0].mxu0 %v1878
        %v2397 = vpop.f32.mrb[0].mxu0
        %v2398 = vadd.f32 0.0, %v2397
        %v2399 = vpop.f32.mrb[0].mxu0
        %v2400 = vadd.f32 0.0, %v2399
        %v2401 = vpop.f32.mrb[0].mxu0
        %v2402 = vadd.f32 0.0, %v2401
        %v2403 = vpop.f32.mrb[0].mxu0
        %v2404 = vadd.f32 0.0, %v2403
        %2405 = vmatprep.mubr.bf16.mxu0 0
        %2406 = vmatmul.mubr.bf16.gmra.mrb[0].mxu0 %v1879
        %v2407 = vpop.f32.mrb[0].mxu0
        %v2408 = vadd.f32 0.0, %v2407
        %v2409 = vpop.f32.mrb[0].mxu0
        %v2410 = vadd.f32 0.0, %v2409
        %v2411 = vpop.f32.mrb[0].mxu0
        %v2412 = vadd.f32 0.0, %v2411
        %v2413 = vpop.f32.mrb[0].mxu0
        %v2414 = vadd.f32 0.0, %v2413
        %2415 = vmatprep.mubr.bf16.mxu0 0
        %2416 = vmatmul.mubr.bf16.gmra.mrb[0].mxu0 %v1880
        %v2417 = vpop.f32.mrb[0].mxu0
        %v2418 = vadd.f32 0.0, %v2417
        %v2419 = vpop.f32.mrb[0].mxu0
        %v2420 = vadd.f32 0.0, %v2419
        %v2421 = vpop.f32.mrb[0].mxu0
        %v2422 = vadd.f32 0.0, %v2421
        %v2423 = vpop.f32.mrb[0].mxu0
        %v2424 = vadd.f32 0.0, %v2423
        %2425 = vdwg.mxu0
        %2426 = vmatprep.subr.bf16.mxu0 %v2012
        %2427 = vmatpush1.bf16.msra.mxu0 %v2011
        %2428 = vmatprep.subr.bf16.mxu0 %v2016
        %2429 = vmatpush1.bf16.msra.mxu0 %v2015
        %2430 = vmatprep.subr.bf16.mxu0 %v2020
        %2431 = vmatpush1.bf16.msra.mxu0 %v2019
        %2432 = vmatprep.subr.bf16.mxu0 %v2024
        %2433 = vmatpush1.bf16.msra.mxu0 %v2023
        %2434 = vmatprep.subr.bf16.mxu0 %v2028
        %2435 = vmatpush1.bf16.msra.mxu0 %v2027
        %2436 = vmatprep.subr.bf16.mxu0 %v2032
        %2437 = vmatpush1.bf16.msra.mxu0 %v2031
        %2438 = vmatprep.subr.bf16.mxu0 %v2036
        %2439 = vmatpush1.bf16.msra.mxu0 %v2035
        %2440 = vmatprep.subr.bf16.mxu0 %v2040
        %2441 = vmatpush1.bf16.msra.mxu0 %v2039
        %2442 = vmatprep.subr.bf16.mxu0 0
        %2443 = vmatpush1.bf16.msra.mxu0 0
        %2444 = vmatprep.subr.bf16.mxu0 0
        %2445 = vmatpush1.bf16.msra.mxu0 0
        %2446 = vmatprep.subr.bf16.mxu0 0
        %2447 = vmatpush1.bf16.msra.mxu0 0
        %2448 = vmatprep.subr.bf16.mxu0 0
        %2449 = vmatpush1.bf16.msra.mxu0 0
        %2450 = vmatprep.subr.bf16.mxu0 0
        %2451 = vmatpush1.bf16.msra.mxu0 0
        %2452 = vmatprep.subr.bf16.mxu0 0
        %2453 = vmatpush1.bf16.msra.mxu0 0
        %2454 = vmatprep.subr.bf16.mxu0 0
        %2455 = vmatpush1.bf16.msra.mxu0 0
        %2456 = vmatprep.subr.bf16.mxu0 0
        %2457 = vmatpush1.bf16.msra.mxu0 0
        %2458 = vmatprep.mubr.bf16.mxu0 0
        %2459 = vmatmul.mubr.bf16.gmra.mrb[0].mxu0 %v1849
        %v2460 = vpop.f32.mrb[0].mxu0
        %v2461 = vadd.f32 0.0, %v2460
        %v2462 = vpop.f32.mrb[0].mxu0
        %v2463 = vadd.f32 0.0, %v2462
        %v2464 = vpop.f32.mrb[0].mxu0
        %v2465 = vadd.f32 0.0, %v2464
        %v2466 = vpop.f32.mrb[0].mxu0
        %v2467 = vadd.f32 0.0, %v2466
        %2468 = vmatprep.mubr.bf16.mxu0 0
        %2469 = vmatmul.mubr.bf16.gmra.mrb[0].mxu0 %v1850
        %v2470 = vpop.f32.mrb[0].mxu0
        %v2471 = vadd.f32 0.0, %v2470
        %v2472 = vpop.f32.mrb[0].mxu0
        %v2473 = vadd.f32 0.0, %v2472
        %v2474 = vpop.f32.mrb[0].mxu0
        %v2475 = vadd.f32 0.0, %v2474
        %v2476 = vpop.f32.mrb[0].mxu0
        %v2477 = vadd.f32 0.0, %v2476
        %2478 = vmatprep.mubr.bf16.mxu0 0
        %2479 = vmatmul.mubr.bf16.gmra.mrb[0].mxu0 %v1851
        %v2480 = vpop.f32.mrb[0].mxu0
        %v2481 = vadd.f32 0.0, %v2480
        %v2482 = vpop.f32.mrb[0].mxu0
        %v2483 = vadd.f32 0.0, %v2482
        %v2484 = vpop.f32.mrb[0].mxu0
        %v2485 = vadd.f32 0.0, %v2484
        %v2486 = vpop.f32.mrb[0].mxu0
        %v2487 = vadd.f32 0.0, %v2486
        %2488 = vmatprep.mubr.bf16.mxu0 0
        %2489 = vmatmul.mubr.bf16.gmra.mrb[0].mxu0 %v1852
        %v2490 = vpop.f32.mrb[0].mxu0
        %v2491 = vadd.f32 0.0, %v2490
        %v2492 = vpop.f32.mrb[0].mxu0
        %v2493 = vadd.f32 0.0, %v2492
        %v2494 = vpop.f32.mrb[0].mxu0
        %v2495 = vadd.f32 0.0, %v2494
        %v2496 = vpop.f32.mrb[0].mxu0
        %v2497 = vadd.f32 0.0, %v2496
        %2498 = vmatprep.mubr.bf16.mxu0 0
        %2499 = vmatmul.mubr.bf16.gmra.mrb[0].mxu0 %v1853
        %v2500 = vpop.f32.mrb[0].mxu0
        %v2501 = vadd.f32 0.0, %v2500
        %v2502 = vpop.f32.mrb[0].mxu0
        %v2503 = vadd.f32 0.0, %v2502
        %v2504 = vpop.f32.mrb[0].mxu0
        %v2505 = vadd.f32 0.0, %v2504
        %v2506 = vpop.f32.mrb[0].mxu0
        %v2507 = vadd.f32 0.0, %v2506
        %2508 = vmatprep.mubr.bf16.mxu0 0
        %2509 = vmatmul.mubr.bf16.gmra.mrb[0].mxu0 %v1854
        %v2510 = vpop.f32.mrb[0].mxu0
        %v2511 = vadd.f32 0.0, %v2510
        %v2512 = vpop.f32.mrb[0].mxu0
        %v2513 = vadd.f32 0.0, %v2512
        %v2514 = vpop.f32.mrb[0].mxu0
        %v2515 = vadd.f32 0.0, %v2514
        %v2516 = vpop.f32.mrb[0].mxu0
        %v2517 = vadd.f32 0.0, %v2516
        %2518 = vmatprep.mubr.bf16.mxu0 0
        %2519 = vmatmul.mubr.bf16.gmra.mrb[0].mxu0 %v1855
        %v2520 = vpop.f32.mrb[0].mxu0
        %v2521 = vadd.f32 0.0, %v2520
        %v2522 = vpop.f32.mrb[0].mxu0
        %v2523 = vadd.f32 0.0, %v2522
        %v2524 = vpop.f32.mrb[0].mxu0
        %v2525 = vadd.f32 0.0, %v2524
        %v2526 = vpop.f32.mrb[0].mxu0
        %v2527 = vadd.f32 0.0, %v2526
        %2528 = vmatprep.mubr.bf16.mxu0 0
        %2529 = vmatmul.mubr.bf16.gmra.mrb[0].mxu0 %v1856
        %v2530 = vpop.f32.mrb[0].mxu0
        %v2531 = vadd.f32 0.0, %v2530
        %v2532 = vpop.f32.mrb[0].mxu0
        %v2533 = vadd.f32 0.0, %v2532
        %v2534 = vpop.f32.mrb[0].mxu0
        %v2535 = vadd.f32 0.0, %v2534
        %v2536 = vpop.f32.mrb[0].mxu0
        %v2537 = vadd.f32 0.0, %v2536
        %2538 = vmatprep.mubr.bf16.mxu0 0
        %2539 = vmatmul.mubr.bf16.gmra.mrb[0].mxu0 %v1857
        %v2540 = vpop.f32.mrb[0].mxu0
        %v2541 = vadd.f32 0.0, %v2540
        %v2542 = vpop.f32.mrb[0].mxu0
        %v2543 = vadd.f32 0.0, %v2542
        %v2544 = vpop.f32.mrb[0].mxu0
        %v2545 = vadd.f32 0.0, %v2544
        %v2546 = vpop.f32.mrb[0].mxu0
        %v2547 = vadd.f32 0.0, %v2546
        %2548 = vmatprep.mubr.bf16.mxu0 0
        %2549 = vmatmul.mubr.bf16.gmra.mrb[0].mxu0 %v1858
        %v2550 = vpop.f32.mrb[0].mxu0
        %v2551 = vadd.f32 0.0, %v2550
        %v2552 = vpop.f32.mrb[0].mxu0
        %v2553 = vadd.f32 0.0, %v2552
        %v2554 = vpop.f32.mrb[0].mxu0
        %v2555 = vadd.f32 0.0, %v2554
        %v2556 = vpop.f32.mrb[0].mxu0
        %v2557 = vadd.f32 0.0, %v2556
        %2558 = vmatprep.mubr.bf16.mxu0 0
        %2559 = vmatmul.mubr.bf16.gmra.mrb[0].mxu0 %v1859
        %v2560 = vpop.f32.mrb[0].mxu0
        %v2561 = vadd.f32 0.0, %v2560
        %v2562 = vpop.f32.mrb[0].mxu0
        %v2563 = vadd.f32 0.0, %v2562
        %v2564 = vpop.f32.mrb[0].mxu0
        %v2565 = vadd.f32 0.0, %v2564
        %v2566 = vpop.f32.mrb[0].mxu0
        %v2567 = vadd.f32 0.0, %v2566
        %2568 = vmatprep.mubr.bf16.mxu0 0
        %2569 = vmatmul.mubr.bf16.gmra.mrb[0].mxu0 %v1860
        %v2570 = vpop.f32.mrb[0].mxu0
        %v2571 = vadd.f32 0.0, %v2570
        %v2572 = vpop.f32.mrb[0].mxu0
        %v2573 = vadd.f32 0.0, %v2572
        %v2574 = vpop.f32.mrb[0].mxu0
        %v2575 = vadd.f32 0.0, %v2574
        %v2576 = vpop.f32.mrb[0].mxu0
        %v2577 = vadd.f32 0.0, %v2576
        %2578 = vmatprep.mubr.bf16.mxu0 0
        %2579 = vmatmul.mubr.bf16.gmra.mrb[0].mxu0 %v1861
        %v2580 = vpop.f32.mrb[0].mxu0
        %v2581 = vadd.f32 0.0, %v2580
        %v2582 = vpop.f32.mrb[0].mxu0
        %v2583 = vadd.f32 0.0, %v2582
        %v2584 = vpop.f32.mrb[0].mxu0
        %v2585 = vadd.f32 0.0, %v2584
        %v2586 = vpop.f32.mrb[0].mxu0
        %v2587 = vadd.f32 0.0, %v2586
        %2588 = vmatprep.mubr.bf16.mxu0 0
        %2589 = vmatmul.mubr.bf16.gmra.mrb[0].mxu0 %v1862
        %v2590 = vpop.f32.mrb[0].mxu0
        %v2591 = vadd.f32 0.0, %v2590
        %v2592 = vpop.f32.mrb[0].mxu0
        %v2593 = vadd.f32 0.0, %v2592
        %v2594 = vpop.f32.mrb[0].mxu0
        %v2595 = vadd.f32 0.0, %v2594
        %v2596 = vpop.f32.mrb[0].mxu0
        %v2597 = vadd.f32 0.0, %v2596
        %2598 = vmatprep.mubr.bf16.mxu0 0
        %2599 = vmatmul.mubr.bf16.gmra.mrb[0].mxu0 %v1863
        %v2600 = vpop.f32.mrb[0].mxu0
        %v2601 = vadd.f32 0.0, %v2600
        %v2602 = vpop.f32.mrb[0].mxu0
        %v2603 = vadd.f32 0.0, %v2602
        %v2604 = vpop.f32.mrb[0].mxu0
        %v2605 = vadd.f32 0.0, %v2604
        %v2606 = vpop.f32.mrb[0].mxu0
        %v2607 = vadd.f32 0.0, %v2606
        %2608 = vmatprep.mubr.bf16.mxu0 0
        %2609 = vmatmul.mubr.bf16.gmra.mrb[0].mxu0 %v1864
        %v2610 = vpop.f32.mrb[0].mxu0
        %v2611 = vadd.f32 0.0, %v2610
        %v2612 = vpop.f32.mrb[0].mxu0
        %v2613 = vadd.f32 0.0, %v2612
        %v2614 = vpop.f32.mrb[0].mxu0
        %v2615 = vadd.f32 0.0, %v2614
        %v2616 = vpop.f32.mrb[0].mxu0
        %v2617 = vadd.f32 0.0, %v2616
        %2618 = vmatprep.mubr.bf16.mxu0 0
        %2619 = vmatmul.mubr.bf16.gmra.mrb[0].mxu0 %v1865
        %v2620 = vpop.f32.mrb[0].mxu0
        %v2621 = vadd.f32 0.0, %v2620
        %v2622 = vpop.f32.mrb[0].mxu0
        %v2623 = vadd.f32 0.0, %v2622
        %v2624 = vpop.f32.mrb[0].mxu0
        %v2625 = vadd.f32 0.0, %v2624
        %v2626 = vpop.f32.mrb[0].mxu0
        %v2627 = vadd.f32 0.0, %v2626
        %2628 = vmatprep.mubr.bf16.mxu0 0
        %2629 = vmatmul.mubr.bf16.gmra.mrb[0].mxu0 %v1866
        %v2630 = vpop.f32.mrb[0].mxu0
        %v2631 = vadd.f32 0.0, %v2630
        %v2632 = vpop.f32.mrb[0].mxu0
        %v2633 = vadd.f32 0.0, %v2632
        %v2634 = vpop.f32.mrb[0].mxu0
        %v2635 = vadd.f32 0.0, %v2634
        %v2636 = vpop.f32.mrb[0].mxu0
        %v2637 = vadd.f32 0.0, %v2636
        %2638 = vmatprep.mubr.bf16.mxu0 0
        %2639 = vmatmul.mubr.bf16.gmra.mrb[0].mxu0 %v1867
        %v2640 = vpop.f32.mrb[0].mxu0
        %v2641 = vadd.f32 0.0, %v2640
        %v2642 = vpop.f32.mrb[0].mxu0
        %v2643 = vadd.f32 0.0, %v2642
        %v2644 = vpop.f32.mrb[0].mxu0
        %v2645 = vadd.f32 0.0, %v2644
        %v2646 = vpop.f32.mrb[0].mxu0
        %v2647 = vadd.f32 0.0, %v2646
        %2648 = vmatprep.mubr.bf16.mxu0 0
        %2649 = vmatmul.mubr.bf16.gmra.mrb[0].mxu0 %v1868
        %v2650 = vpop.f32.mrb[0].mxu0
        %v2651 = vadd.f32 0.0, %v2650
        %v2652 = vpop.f32.mrb[0].mxu0
        %v2653 = vadd.f32 0.0, %v2652
        %v2654 = vpop.f32.mrb[0].mxu0
        %v2655 = vadd.f32 0.0, %v2654
        %v2656 = vpop.f32.mrb[0].mxu0
        %v2657 = vadd.f32 0.0, %v2656
        %2658 = vmatprep.mubr.bf16.mxu0 0
        %2659 = vmatmul.mubr.bf16.gmra.mrb[0].mxu0 %v1869
        %v2660 = vpop.f32.mrb[0].mxu0
        %v2661 = vadd.f32 0.0, %v2660
        %v2662 = vpop.f32.mrb[0].mxu0
        %v2663 = vadd.f32 0.0, %v2662
        %v2664 = vpop.f32.mrb[0].mxu0
        %v2665 = vadd.f32 0.0, %v2664
        %v2666 = vpop.f32.mrb[0].mxu0
        %v2667 = vadd.f32 0.0, %v2666
        %2668 = vmatprep.mubr.bf16.mxu0 0
        %2669 = vmatmul.mubr.bf16.gmra.mrb[0].mxu0 %v1870
        %v2670 = vpop.f32.mrb[0].mxu0
        %v2671 = vadd.f32 0.0, %v2670
        %v2672 = vpop.f32.mrb[0].mxu0
        %v2673 = vadd.f32 0.0, %v2672
        %v2674 = vpop.f32.mrb[0].mxu0
        %v2675 = vadd.f32 0.0, %v2674
        %v2676 = vpop.f32.mrb[0].mxu0
        %v2677 = vadd.f32 0.0, %v2676
        %2678 = vmatprep.mubr.bf16.mxu0 0
        %2679 = vmatmul.mubr.bf16.gmra.mrb[0].mxu0 %v1871
        %v2680 = vpop.f32.mrb[0].mxu0
        %v2681 = vadd.f32 0.0, %v2680
        %v2682 = vpop.f32.mrb[0].mxu0
        %v2683 = vadd.f32 0.0, %v2682
        %v2684 = vpop.f32.mrb[0].mxu0
        %v2685 = vadd.f32 0.0, %v2684
        %v2686 = vpop.f32.mrb[0].mxu0
        %v2687 = vadd.f32 0.0, %v2686
        %2688 = vmatprep.mubr.bf16.mxu0 0
        %2689 = vmatmul.mubr.bf16.gmra.mrb[0].mxu0 %v1872
        %v2690 = vpop.f32.mrb[0].mxu0
        %v2691 = vadd.f32 0.0, %v2690
        %v2692 = vpop.f32.mrb[0].mxu0
        %v2693 = vadd.f32 0.0, %v2692
        %v2694 = vpop.f32.mrb[0].mxu0
        %v2695 = vadd.f32 0.0, %v2694
        %v2696 = vpop.f32.mrb[0].mxu0
        %v2697 = vadd.f32 0.0, %v2696
        %2698 = vmatprep.mubr.bf16.mxu0 0
        %2699 = vmatmul.mubr.bf16.gmra.mrb[0].mxu0 %v1873
        %v2700 = vpop.f32.mrb[0].mxu0
        %v2701 = vadd.f32 0.0, %v2700
        %v2702 = vpop.f32.mrb[0].mxu0
        %v2703 = vadd.f32 0.0, %v2702
        %v2704 = vpop.f32.mrb[0].mxu0
        %v2705 = vadd.f32 0.0, %v2704
        %v2706 = vpop.f32.mrb[0].mxu0
        %v2707 = vadd.f32 0.0, %v2706
        %2708 = vmatprep.mubr.bf16.mxu0 0
        %2709 = vmatmul.mubr.bf16.gmra.mrb[0].mxu0 %v1874
        %v2710 = vpop.f32.mrb[0].mxu0
        %v2711 = vadd.f32 0.0, %v2710
        %v2712 = vpop.f32.mrb[0].mxu0
        %v2713 = vadd.f32 0.0, %v2712
        %v2714 = vpop.f32.mrb[0].mxu0
        %v2715 = vadd.f32 0.0, %v2714
        %v2716 = vpop.f32.mrb[0].mxu0
        %v2717 = vadd.f32 0.0, %v2716
        %2718 = vmatprep.mubr.bf16.mxu0 0
        %2719 = vmatmul.mubr.bf16.gmra.mrb[0].mxu0 %v1875
        %v2720 = vpop.f32.mrb[0].mxu0
        %v2721 = vadd.f32 0.0, %v2720
        %v2722 = vpop.f32.mrb[0].mxu0
        %v2723 = vadd.f32 0.0, %v2722
        %v2724 = vpop.f32.mrb[0].mxu0
        %v2725 = vadd.f32 0.0, %v2724
        %v2726 = vpop.f32.mrb[0].mxu0
        %v2727 = vadd.f32 0.0, %v2726
        %2728 = vmatprep.mubr.bf16.mxu0 0
        %2729 = vmatmul.mubr.bf16.gmra.mrb[0].mxu0 %v1876
        %v2730 = vpop.f32.mrb[0].mxu0
        %v2731 = vadd.f32 0.0, %v2730
        %v2732 = vpop.f32.mrb[0].mxu0
        %v2733 = vadd.f32 0.0, %v2732
        %v2734 = vpop.f32.mrb[0].mxu0
        %v2735 = vadd.f32 0.0, %v2734
        %v2736 = vpop.f32.mrb[0].mxu0
        %v2737 = vadd.f32 0.0, %v2736
        %2738 = vmatprep.mubr.bf16.mxu0 0
        %2739 = vmatmul.mubr.bf16.gmra.mrb[0].mxu0 %v1877
        %v2740 = vpop.f32.mrb[0].mxu0
        %v2741 = vadd.f32 0.0, %v2740
        %v2742 = vpop.f32.mrb[0].mxu0
        %v2743 = vadd.f32 0.0, %v2742
        %v2744 = vpop.f32.mrb[0].mxu0
        %v2745 = vadd.f32 0.0, %v2744
        %v2746 = vpop.f32.mrb[0].mxu0
        %v2747 = vadd.f32 0.0, %v2746
        %2748 = vmatprep.mubr.bf16.mxu0 0
        %2749 = vmatmul.mubr.bf16.gmra.mrb[0].mxu0 %v1878
        %v2750 = vpop.f32.mrb[0].mxu0
        %v2751 = vadd.f32 0.0, %v2750
        %v2752 = vpop.f32.mrb[0].mxu0
        %v2753 = vadd.f32 0.0, %v2752
        %v2754 = vpop.f32.mrb[0].mxu0
        %v2755 = vadd.f32 0.0, %v2754
        %v2756 = vpop.f32.mrb[0].mxu0
        %v2757 = vadd.f32 0.0, %v2756
        %2758 = vmatprep.mubr.bf16.mxu0 0
        %2759 = vmatmul.mubr.bf16.gmra.mrb[0].mxu0 %v1879
        %v2760 = vpop.f32.mrb[0].mxu0
        %v2761 = vadd.f32 0.0, %v2760
        %v2762 = vpop.f32.mrb[0].mxu0
        %v2763 = vadd.f32 0.0, %v2762
        %v2764 = vpop.f32.mrb[0].mxu0
        %v2765 = vadd.f32 0.0, %v2764
        %v2766 = vpop.f32.mrb[0].mxu0
        %v2767 = vadd.f32 0.0, %v2766
        %2768 = vmatprep.mubr.bf16.mxu0 0
        %2769 = vmatmul.mubr.bf16.gmra.mrb[0].mxu0 %v1880
        %v2770 = vpop.f32.mrb[0].mxu0
        %v2771 = vadd.f32 0.0, %v2770
        %v2772 = vpop.f32.mrb[0].mxu0
        %v2773 = vadd.f32 0.0, %v2772
        %v2774 = vpop.f32.mrb[0].mxu0
        %v2775 = vadd.f32 0.0, %v2774
        %v2776 = vpop.f32.mrb[0].mxu0
        %v2777 = vadd.f32 0.0, %v2776
        %2778 = vdwg.mxu0
        %v2779 = vld [vmem:[#allocation7] ss:$2 sm:$0xf]
        %s2780 = scalar_lea.vmem [#allocation7], 1
        %v2781 = vld [vmem:[%s2780] ss:$2 sm:$0xf]
        %v2782 = vadd.f32 %v2108, %v2110
        %v2783 = vadd.f32 %v2782, %v2461
        %v2784 = vadd.f32 %v2783, %v2463
        %2785 = vadd.xlane.f32.xlu0 %v2784
        %v2786 = vpop.xlane.xlu0 %2785
        %v2787 = vadd.f32 %v2112, %v2114
        %v2788 = vadd.f32 %v2787, %v2465
        %v2789 = vadd.f32 %v2788, %v2467
        %2790 = vadd.xlane.f32.xlu0 %v2789
        %v2791 = vpop.xlane.xlu0 %2790
        %v2792 = vadd.f32 %v2118, %v2120
        %v2793 = vadd.f32 %v2792, %v2471
        %v2794 = vadd.f32 %v2793, %v2473
        %2795 = vadd.xlane.f32.xlu0 %v2794
        %v2796 = vpop.xlane.xlu0 %2795
        %v2797 = vadd.f32 %v2122, %v2124
        %v2798 = vadd.f32 %v2797, %v2475
        %v2799 = vadd.f32 %v2798, %v2477
        %2800 = vadd.xlane.f32.xlu0 %v2799
        %v2801 = vpop.xlane.xlu0 %2800
        %v2802 = vadd.f32 %v2128, %v2130
        %v2803 = vadd.f32 %v2802, %v2481
        %v2804 = vadd.f32 %v2803, %v2483
        %2805 = vadd.xlane.f32.xlu0 %v2804
        %v2806 = vpop.xlane.xlu0 %2805
        %v2807 = vadd.f32 %v2132, %v2134
        %v2808 = vadd.f32 %v2807, %v2485
        %v2809 = vadd.f32 %v2808, %v2487
        %2810 = vadd.xlane.f32.xlu0 %v2809
        %v2811 = vpop.xlane.xlu0 %2810
        %v2812 = vadd.f32 %v2138, %v2140
        %v2813 = vadd.f32 %v2812, %v2491
        %v2814 = vadd.f32 %v2813, %v2493
        %2815 = vadd.xlane.f32.xlu0 %v2814
        %v2816 = vpop.xlane.xlu0 %2815
        %v2817 = vadd.f32 %v2142, %v2144
        %v2818 = vadd.f32 %v2817, %v2495
        %v2819 = vadd.f32 %v2818, %v2497
        %2820 = vadd.xlane.f32.xlu0 %v2819
        %v2821 = vpop.xlane.xlu0 %2820
        %v2822 = vadd.f32 %v2148, %v2150
        %v2823 = vadd.f32 %v2822, %v2501
        %v2824 = vadd.f32 %v2823, %v2503
        %2825 = vadd.xlane.f32.xlu0 %v2824
        %v2826 = vpop.xlane.xlu0 %2825
        %v2827 = vadd.f32 %v2152, %v2154
        %v2828 = vadd.f32 %v2827, %v2505
        %v2829 = vadd.f32 %v2828, %v2507
        %2830 = vadd.xlane.f32.xlu0 %v2829
        %v2831 = vpop.xlane.xlu0 %2830
        %v2832 = vadd.f32 %v2158, %v2160
        %v2833 = vadd.f32 %v2832, %v2511
        %v2834 = vadd.f32 %v2833, %v2513
        %2835 = vadd.xlane.f32.xlu0 %v2834
        %v2836 = vpop.xlane.xlu0 %2835
        %v2837 = vadd.f32 %v2162, %v2164
        %v2838 = vadd.f32 %v2837, %v2515
        %v2839 = vadd.f32 %v2838, %v2517
        %2840 = vadd.xlane.f32.xlu0 %v2839
        %v2841 = vpop.xlane.xlu0 %2840
        %v2842 = vadd.f32 %v2168, %v2170
        %v2843 = vadd.f32 %v2842, %v2521
        %v2844 = vadd.f32 %v2843, %v2523
        %2845 = vadd.xlane.f32.xlu0 %v2844
        %v2846 = vpop.xlane.xlu0 %2845
        %v2847 = vadd.f32 %v2172, %v2174
        %v2848 = vadd.f32 %v2847, %v2525
        %v2849 = vadd.f32 %v2848, %v2527
        %2850 = vadd.xlane.f32.xlu0 %v2849
        %v2851 = vpop.xlane.xlu0 %2850
        %v2852 = vadd.f32 %v2178, %v2180
        %v2853 = vadd.f32 %v2852, %v2531
        %v2854 = vadd.f32 %v2853, %v2533
        %2855 = vadd.xlane.f32.xlu0 %v2854
        %v2856 = vpop.xlane.xlu0 %2855
        %v2857 = vadd.f32 %v2182, %v2184
        %v2858 = vadd.f32 %v2857, %v2535
        %v2859 = vadd.f32 %v2858, %v2537
        %2860 = vadd.xlane.f32.xlu0 %v2859
        %v2861 = vpop.xlane.xlu0 %2860
        %v2862 = vadd.f32 %v2188, %v2190
        %v2863 = vadd.f32 %v2862, %v2541
        %v2864 = vadd.f32 %v2863, %v2543
        %2865 = vadd.xlane.f32.xlu0 %v2864
        %v2866 = vpop.xlane.xlu0 %2865
        %v2867 = vadd.f32 %v2192, %v2194
        %v2868 = vadd.f32 %v2867, %v2545
        %v2869 = vadd.f32 %v2868, %v2547
        %2870 = vadd.xlane.f32.xlu0 %v2869
        %v2871 = vpop.xlane.xlu0 %2870
        %v2872 = vadd.f32 %v2198, %v2200
        %v2873 = vadd.f32 %v2872, %v2551
        %v2874 = vadd.f32 %v2873, %v2553
        %2875 = vadd.xlane.f32.xlu0 %v2874
        %v2876 = vpop.xlane.xlu0 %2875
        %v2877 = vadd.f32 %v2202, %v2204
        %v2878 = vadd.f32 %v2877, %v2555
        %v2879 = vadd.f32 %v2878, %v2557
        %2880 = vadd.xlane.f32.xlu0 %v2879
        %v2881 = vpop.xlane.xlu0 %2880
        %v2882 = vadd.f32 %v2208, %v2210
        %v2883 = vadd.f32 %v2882, %v2561
        %v2884 = vadd.f32 %v2883, %v2563
        %2885 = vadd.xlane.f32.xlu0 %v2884
        %v2886 = vpop.xlane.xlu0 %2885
        %v2887 = vadd.f32 %v2212, %v2214
        %v2888 = vadd.f32 %v2887, %v2565
        %v2889 = vadd.f32 %v2888, %v2567
        %2890 = vadd.xlane.f32.xlu0 %v2889
        %v2891 = vpop.xlane.xlu0 %2890
        %v2892 = vadd.f32 %v2218, %v2220
        %v2893 = vadd.f32 %v2892, %v2571
        %v2894 = vadd.f32 %v2893, %v2573
        %2895 = vadd.xlane.f32.xlu0 %v2894
        %v2896 = vpop.xlane.xlu0 %2895
        %v2897 = vadd.f32 %v2222, %v2224
        %v2898 = vadd.f32 %v2897, %v2575
        %v2899 = vadd.f32 %v2898, %v2577
        %2900 = vadd.xlane.f32.xlu0 %v2899
        %v2901 = vpop.xlane.xlu0 %2900
        %v2902 = vadd.f32 %v2228, %v2230
        %v2903 = vadd.f32 %v2902, %v2581
        %v2904 = vadd.f32 %v2903, %v2583
        %2905 = vadd.xlane.f32.xlu0 %v2904
        %v2906 = vpop.xlane.xlu0 %2905
        %v2907 = vadd.f32 %v2232, %v2234
        %v2908 = vadd.f32 %v2907, %v2585
        %v2909 = vadd.f32 %v2908, %v2587
        %2910 = vadd.xlane.f32.xlu0 %v2909
        %v2911 = vpop.xlane.xlu0 %2910
        %v2912 = vadd.f32 %v2238, %v2240
        %v2913 = vadd.f32 %v2912, %v2591
        %v2914 = vadd.f32 %v2913, %v2593
        %2915 = vadd.xlane.f32.xlu0 %v2914
        %v2916 = vpop.xlane.xlu0 %2915
        %v2917 = vadd.f32 %v2242, %v2244
        %v2918 = vadd.f32 %v2917, %v2595
        %v2919 = vadd.f32 %v2918, %v2597
        %2920 = vadd.xlane.f32.xlu0 %v2919
        %v2921 = vpop.xlane.xlu0 %2920
        %v2922 = vadd.f32 %v2248, %v2250
        %v2923 = vadd.f32 %v2922, %v2601
        %v2924 = vadd.f32 %v2923, %v2603
        %2925 = vadd.xlane.f32.xlu0 %v2924
        %v2926 = vpop.xlane.xlu0 %2925
        %v2927 = vadd.f32 %v2252, %v2254
        %v2928 = vadd.f32 %v2927, %v2605
        %v2929 = vadd.f32 %v2928, %v2607
        %2930 = vadd.xlane.f32.xlu0 %v2929
        %v2931 = vpop.xlane.xlu0 %2930
        %v2932 = vadd.f32 %v2258, %v2260
        %v2933 = vadd.f32 %v2932, %v2611
        %v2934 = vadd.f32 %v2933, %v2613
        %2935 = vadd.xlane.f32.xlu0 %v2934
        %v2936 = vpop.xlane.xlu0 %2935
        %v2937 = vadd.f32 %v2262, %v2264
        %v2938 = vadd.f32 %v2937, %v2615
        %v2939 = vadd.f32 %v2938, %v2617
        %2940 = vadd.xlane.f32.xlu0 %v2939
        %v2941 = vpop.xlane.xlu0 %2940
        %v2942 = vadd.f32 %v2268, %v2270
        %v2943 = vadd.f32 %v2942, %v2621
        %v2944 = vadd.f32 %v2943, %v2623
        %2945 = vadd.xlane.f32.xlu0 %v2944
        %v2946 = vpop.xlane.xlu0 %2945
        %v2947 = vadd.f32 %v2272, %v2274
        %v2948 = vadd.f32 %v2947, %v2625
        %v2949 = vadd.f32 %v2948, %v2627
        %2950 = vadd.xlane.f32.xlu0 %v2949
        %v2951 = vpop.xlane.xlu0 %2950
        %v2952 = vadd.f32 %v2278, %v2280
        %v2953 = vadd.f32 %v2952, %v2631
        %v2954 = vadd.f32 %v2953, %v2633
        %2955 = vadd.xlane.f32.xlu0 %v2954
        %v2956 = vpop.xlane.xlu0 %2955
        %v2957 = vadd.f32 %v2282, %v2284
        %v2958 = vadd.f32 %v2957, %v2635
        %v2959 = vadd.f32 %v2958, %v2637
        %2960 = vadd.xlane.f32.xlu0 %v2959
        %v2961 = vpop.xlane.xlu0 %2960
        %v2962 = vadd.f32 %v2288, %v2290
        %v2963 = vadd.f32 %v2962, %v2641
        %v2964 = vadd.f32 %v2963, %v2643
        %2965 = vadd.xlane.f32.xlu0 %v2964
        %v2966 = vpop.xlane.xlu0 %2965
        %v2967 = vadd.f32 %v2292, %v2294
        %v2968 = vadd.f32 %v2967, %v2645
        %v2969 = vadd.f32 %v2968, %v2647
        %2970 = vadd.xlane.f32.xlu0 %v2969
        %v2971 = vpop.xlane.xlu0 %2970
        %v2972 = vadd.f32 %v2298, %v2300
        %v2973 = vadd.f32 %v2972, %v2651
        %v2974 = vadd.f32 %v2973, %v2653
        %2975 = vadd.xlane.f32.xlu0 %v2974
        %v2976 = vpop.xlane.xlu0 %2975
        %v2977 = vadd.f32 %v2302, %v2304
        %v2978 = vadd.f32 %v2977, %v2655
        %v2979 = vadd.f32 %v2978, %v2657
        %2980 = vadd.xlane.f32.xlu0 %v2979
        %v2981 = vpop.xlane.xlu0 %2980
        %v2982 = vadd.f32 %v2308, %v2310
        %v2983 = vadd.f32 %v2982, %v2661
        %v2984 = vadd.f32 %v2983, %v2663
        %2985 = vadd.xlane.f32.xlu0 %v2984
        %v2986 = vpop.xlane.xlu0 %2985
        %v2987 = vadd.f32 %v2312, %v2314
        %v2988 = vadd.f32 %v2987, %v2665
        %v2989 = vadd.f32 %v2988, %v2667
        %2990 = vadd.xlane.f32.xlu0 %v2989
        %v2991 = vpop.xlane.xlu0 %2990
        %v2992 = vadd.f32 %v2318, %v2320
        %v2993 = vadd.f32 %v2992, %v2671
        %v2994 = vadd.f32 %v2993, %v2673
        %2995 = vadd.xlane.f32.xlu0 %v2994
        %v2996 = vpop.xlane.xlu0 %2995
        %v2997 = vadd.f32 %v2322, %v2324
        %v2998 = vadd.f32 %v2997, %v2675
        %v2999 = vadd.f32 %v2998, %v2677
        %3000 = vadd.xlane.f32.xlu0 %v2999
        %v3001 = vpop.xlane.xlu0 %3000
        %v3002 = vadd.f32 %v2328, %v2330
        %v3003 = vadd.f32 %v3002, %v2681
        %v3004 = vadd.f32 %v3003, %v2683
        %3005 = vadd.xlane.f32.xlu0 %v3004
        %v3006 = vpop.xlane.xlu0 %3005
        %v3007 = vadd.f32 %v2332, %v2334
        %v3008 = vadd.f32 %v3007, %v2685
        %v3009 = vadd.f32 %v3008, %v2687
        %3010 = vadd.xlane.f32.xlu0 %v3009
        %v3011 = vpop.xlane.xlu0 %3010
        %v3012 = vadd.f32 %v2338, %v2340
        %v3013 = vadd.f32 %v3012, %v2691
        %v3014 = vadd.f32 %v3013, %v2693
        %3015 = vadd.xlane.f32.xlu0 %v3014
        %v3016 = vpop.xlane.xlu0 %3015
        %v3017 = vadd.f32 %v2342, %v2344
        %v3018 = vadd.f32 %v3017, %v2695
        %v3019 = vadd.f32 %v3018, %v2697
        %3020 = vadd.xlane.f32.xlu0 %v3019
        %v3021 = vpop.xlane.xlu0 %3020
        %v3022 = vadd.f32 %v2348, %v2350
        %v3023 = vadd.f32 %v3022, %v2701
        %v3024 = vadd.f32 %v3023, %v2703
        %3025 = vadd.xlane.f32.xlu0 %v3024
        %v3026 = vpop.xlane.xlu0 %3025
        %v3027 = vadd.f32 %v2352, %v2354
        %v3028 = vadd.f32 %v3027, %v2705
        %v3029 = vadd.f32 %v3028, %v2707
        %3030 = vadd.xlane.f32.xlu0 %v3029
        %v3031 = vpop.xlane.xlu0 %3030
        %v3032 = vadd.f32 %v2358, %v2360
        %v3033 = vadd.f32 %v3032, %v2711
        %v3034 = vadd.f32 %v3033, %v2713
        %3035 = vadd.xlane.f32.xlu0 %v3034
        %v3036 = vpop.xlane.xlu0 %3035
        %v3037 = vadd.f32 %v2362, %v2364
        %v3038 = vadd.f32 %v3037, %v2715
        %v3039 = vadd.f32 %v3038, %v2717
        %3040 = vadd.xlane.f32.xlu0 %v3039
        %v3041 = vpop.xlane.xlu0 %3040
        %v3042 = vadd.f32 %v2368, %v2370
        %v3043 = vadd.f32 %v3042, %v2721
        %v3044 = vadd.f32 %v3043, %v2723
        %3045 = vadd.xlane.f32.xlu0 %v3044
        %v3046 = vpop.xlane.xlu0 %3045
        %v3047 = vadd.f32 %v2372, %v2374
        %v3048 = vadd.f32 %v3047, %v2725
        %v3049 = vadd.f32 %v3048, %v2727
        %3050 = vadd.xlane.f32.xlu0 %v3049
        %v3051 = vpop.xlane.xlu0 %3050
        %v3052 = vadd.f32 %v2378, %v2380
        %v3053 = vadd.f32 %v3052, %v2731
        %v3054 = vadd.f32 %v3053, %v2733
        %3055 = vadd.xlane.f32.xlu0 %v3054
        %v3056 = vpop.xlane.xlu0 %3055
        %v3057 = vadd.f32 %v2382, %v2384
        %v3058 = vadd.f32 %v3057, %v2735
        %v3059 = vadd.f32 %v3058, %v2737
        %3060 = vadd.xlane.f32.xlu0 %v3059
        %v3061 = vpop.xlane.xlu0 %3060
        %v3062 = vadd.f32 %v2388, %v2390
        %v3063 = vadd.f32 %v3062, %v2741
        %v3064 = vadd.f32 %v3063, %v2743
        %3065 = vadd.xlane.f32.xlu0 %v3064
        %v3066 = vpop.xlane.xlu0 %3065
        %v3067 = vadd.f32 %v2392, %v2394
        %v3068 = vadd.f32 %v3067, %v2745
        %v3069 = vadd.f32 %v3068, %v2747
        %3070 = vadd.xlane.f32.xlu0 %v3069
        %v3071 = vpop.xlane.xlu0 %3070
        %v3072 = vadd.f32 %v2398, %v2400
        %v3073 = vadd.f32 %v3072, %v2751
        %v3074 = vadd.f32 %v3073, %v2753
        %3075 = vadd.xlane.f32.xlu0 %v3074
        %v3076 = vpop.xlane.xlu0 %3075
        %v3077 = vadd.f32 %v2402, %v2404
        %v3078 = vadd.f32 %v3077, %v2755
        %v3079 = vadd.f32 %v3078, %v2757
        %3080 = vadd.xlane.f32.xlu0 %v3079
        %v3081 = vpop.xlane.xlu0 %3080
        %v3082 = vadd.f32 %v2408, %v2410
        %v3083 = vadd.f32 %v3082, %v2761
        %v3084 = vadd.f32 %v3083, %v2763
        %3085 = vadd.xlane.f32.xlu0 %v3084
        %v3086 = vpop.xlane.xlu0 %3085
        %v3087 = vadd.f32 %v2412, %v2414
        %v3088 = vadd.f32 %v3087, %v2765
        %v3089 = vadd.f32 %v3088, %v2767
        %3090 = vadd.xlane.f32.xlu0 %v3089
        %v3091 = vpop.xlane.xlu0 %3090
        %v3092 = vadd.f32 %v2418, %v2420
        %v3093 = vadd.f32 %v3092, %v2771
        %v3094 = vadd.f32 %v3093, %v2773
        %3095 = vadd.xlane.f32.xlu0 %v3094
        %v3096 = vpop.xlane.xlu0 %3095
        %v3097 = vadd.f32 %v2422, %v2424
        %v3098 = vadd.f32 %v3097, %v2775
        %v3099 = vadd.f32 %v3098, %v2777
        %3100 = vadd.xlane.f32.xlu0 %v3099
        %v3101 = vpop.xlane.xlu0 %3100
        %v3102 = vmul.f32 %v2108, %v2108
        %v3103 = vmul.f32 %v2110, %v2110
        %v3104 = vmul.f32 %v2461, %v2461
        %v3105 = vmul.f32 %v2463, %v2463
        %v3106 = vmul.f32 %v2112, %v2112
        %v3107 = vmul.f32 %v2114, %v2114
        %v3108 = vmul.f32 %v2465, %v2465
        %v3109 = vmul.f32 %v2467, %v2467
        %v3110 = vmul.f32 %v2118, %v2118
        %v3111 = vmul.f32 %v2120, %v2120
        %v3112 = vmul.f32 %v2471, %v2471
        %v3113 = vmul.f32 %v2473, %v2473
        %v3114 = vmul.f32 %v2122, %v2122
        %v3115 = vmul.f32 %v2124, %v2124
        %v3116 = vmul.f32 %v2475, %v2475
        %v3117 = vmul.f32 %v2477, %v2477
        %v3118 = vmul.f32 %v2128, %v2128
        %v3119 = vmul.f32 %v2130, %v2130
        %v3120 = vmul.f32 %v2481, %v2481
        %v3121 = vmul.f32 %v2483, %v2483
        %v3122 = vmul.f32 %v2132, %v2132
        %v3123 = vmul.f32 %v2134, %v2134
        %v3124 = vmul.f32 %v2485, %v2485
        %v3125 = vmul.f32 %v2487, %v2487
        %v3126 = vmul.f32 %v2138, %v2138
        %v3127 = vmul.f32 %v2140, %v2140
        %v3128 = vmul.f32 %v2491, %v2491
        %v3129 = vmul.f32 %v2493, %v2493
        %v3130 = vmul.f32 %v2142, %v2142
        %v3131 = vmul.f32 %v2144, %v2144
        %v3132 = vmul.f32 %v2495, %v2495
        %v3133 = vmul.f32 %v2497, %v2497
        %v3134 = vmul.f32 %v2148, %v2148
        %v3135 = vmul.f32 %v2150, %v2150
        %v3136 = vmul.f32 %v2501, %v2501
        %v3137 = vmul.f32 %v2503, %v2503
        %v3138 = vmul.f32 %v2152, %v2152
        %v3139 = vmul.f32 %v2154, %v2154
        %v3140 = vmul.f32 %v2505, %v2505
        %v3141 = vmul.f32 %v2507, %v2507
        %v3142 = vmul.f32 %v2158, %v2158
        %v3143 = vmul.f32 %v2160, %v2160
        %v3144 = vmul.f32 %v2511, %v2511
        %v3145 = vmul.f32 %v2513, %v2513
        %v3146 = vmul.f32 %v2162, %v2162
        %v3147 = vmul.f32 %v2164, %v2164
        %v3148 = vmul.f32 %v2515, %v2515
        %v3149 = vmul.f32 %v2517, %v2517
        %v3150 = vmul.f32 %v2168, %v2168
        %v3151 = vmul.f32 %v2170, %v2170
        %v3152 = vmul.f32 %v2521, %v2521
        %v3153 = vmul.f32 %v2523, %v2523
        %v3154 = vmul.f32 %v2172, %v2172
        %v3155 = vmul.f32 %v2174, %v2174
        %v3156 = vmul.f32 %v2525, %v2525
        %v3157 = vmul.f32 %v2527, %v2527
        %v3158 = vmul.f32 %v2178, %v2178
        %v3159 = vmul.f32 %v2180, %v2180
        %v3160 = vmul.f32 %v2531, %v2531
        %v3161 = vmul.f32 %v2533, %v2533
        %v3162 = vmul.f32 %v2182, %v2182
        %v3163 = vmul.f32 %v2184, %v2184
        %v3164 = vmul.f32 %v2535, %v2535
        %v3165 = vmul.f32 %v2537, %v2537
        %v3166 = vmul.f32 %v2188, %v2188
        %v3167 = vmul.f32 %v2190, %v2190
        %v3168 = vmul.f32 %v2541, %v2541
        %v3169 = vmul.f32 %v2543, %v2543
        %v3170 = vmul.f32 %v2192, %v2192
        %v3171 = vmul.f32 %v2194, %v2194
        %v3172 = vmul.f32 %v2545, %v2545
        %v3173 = vmul.f32 %v2547, %v2547
        %v3174 = vmul.f32 %v2198, %v2198
        %v3175 = vmul.f32 %v2200, %v2200
        %v3176 = vmul.f32 %v2551, %v2551
        %v3177 = vmul.f32 %v2553, %v2553
        %v3178 = vmul.f32 %v2202, %v2202
        %v3179 = vmul.f32 %v2204, %v2204
        %v3180 = vmul.f32 %v2555, %v2555
        %v3181 = vmul.f32 %v2557, %v2557
        %v3182 = vmul.f32 %v2208, %v2208
        %v3183 = vmul.f32 %v2210, %v2210
        %v3184 = vmul.f32 %v2561, %v2561
        %v3185 = vmul.f32 %v2563, %v2563
        %v3186 = vmul.f32 %v2212, %v2212
        %v3187 = vmul.f32 %v2214, %v2214
        %v3188 = vmul.f32 %v2565, %v2565
        %v3189 = vmul.f32 %v2567, %v2567
        %v3190 = vmul.f32 %v2218, %v2218
        %v3191 = vmul.f32 %v2220, %v2220
        %v3192 = vmul.f32 %v2571, %v2571
        %v3193 = vmul.f32 %v2573, %v2573
        %v3194 = vmul.f32 %v2222, %v2222
        %v3195 = vmul.f32 %v2224, %v2224
        %v3196 = vmul.f32 %v2575, %v2575
        %v3197 = vmul.f32 %v2577, %v2577
        %v3198 = vmul.f32 %v2228, %v2228
        %v3199 = vmul.f32 %v2230, %v2230
        %v3200 = vmul.f32 %v2581, %v2581
        %v3201 = vmul.f32 %v2583, %v2583
        %v3202 = vmul.f32 %v2232, %v2232
        %v3203 = vmul.f32 %v2234, %v2234
        %v3204 = vmul.f32 %v2585, %v2585
        %v3205 = vmul.f32 %v2587, %v2587
        %v3206 = vmul.f32 %v2238, %v2238
        %v3207 = vmul.f32 %v2240, %v2240
        %v3208 = vmul.f32 %v2591, %v2591
        %v3209 = vmul.f32 %v2593, %v2593
        %v3210 = vmul.f32 %v2242, %v2242
        %v3211 = vmul.f32 %v2244, %v2244
        %v3212 = vmul.f32 %v2595, %v2595
        %v3213 = vmul.f32 %v2597, %v2597
        %v3214 = vmul.f32 %v2248, %v2248
        %v3215 = vmul.f32 %v2250, %v2250
        %v3216 = vmul.f32 %v2601, %v2601
        %v3217 = vmul.f32 %v2603, %v2603
        %v3218 = vmul.f32 %v2252, %v2252
        %v3219 = vmul.f32 %v2254, %v2254
        %v3220 = vmul.f32 %v2605, %v2605
        %v3221 = vmul.f32 %v2607, %v2607
        %v3222 = vmul.f32 %v2258, %v2258
        %v3223 = vmul.f32 %v2260, %v2260
        %v3224 = vmul.f32 %v2611, %v2611
        %v3225 = vmul.f32 %v2613, %v2613
        %v3226 = vmul.f32 %v2262, %v2262
        %v3227 = vmul.f32 %v2264, %v2264
        %v3228 = vmul.f32 %v2615, %v2615
        %v3229 = vmul.f32 %v2617, %v2617
        %v3230 = vmul.f32 %v2268, %v2268
        %v3231 = vmul.f32 %v2270, %v2270
        %v3232 = vmul.f32 %v2621, %v2621
        %v3233 = vmul.f32 %v2623, %v2623
        %v3234 = vmul.f32 %v2272, %v2272
        %v3235 = vmul.f32 %v2274, %v2274
        %v3236 = vmul.f32 %v2625, %v2625
        %v3237 = vmul.f32 %v2627, %v2627
        %v3238 = vmul.f32 %v2278, %v2278
        %v3239 = vmul.f32 %v2280, %v2280
        %v3240 = vmul.f32 %v2631, %v2631
        %v3241 = vmul.f32 %v2633, %v2633
        %v3242 = vmul.f32 %v2282, %v2282
        %v3243 = vmul.f32 %v2284, %v2284
        %v3244 = vmul.f32 %v2635, %v2635
        %v3245 = vmul.f32 %v2637, %v2637
        %v3246 = vmul.f32 %v2288, %v2288
        %v3247 = vmul.f32 %v2290, %v2290
        %v3248 = vmul.f32 %v2641, %v2641
        %v3249 = vmul.f32 %v2643, %v2643
        %v3250 = vmul.f32 %v2292, %v2292
        %v3251 = vmul.f32 %v2294, %v2294
        %v3252 = vmul.f32 %v2645, %v2645
        %v3253 = vmul.f32 %v2647, %v2647
        %v3254 = vmul.f32 %v2298, %v2298
        %v3255 = vmul.f32 %v2300, %v2300
        %v3256 = vmul.f32 %v2651, %v2651
        %v3257 = vmul.f32 %v2653, %v2653
        %v3258 = vmul.f32 %v2302, %v2302
        %v3259 = vmul.f32 %v2304, %v2304
        %v3260 = vmul.f32 %v2655, %v2655
        %v3261 = vmul.f32 %v2657, %v2657
        %v3262 = vmul.f32 %v2308, %v2308
        %v3263 = vmul.f32 %v2310, %v2310
        %v3264 = vmul.f32 %v2661, %v2661
        %v3265 = vmul.f32 %v2663, %v2663
        %v3266 = vmul.f32 %v2312, %v2312
        %v3267 = vmul.f32 %v2314, %v2314
        %v3268 = vmul.f32 %v2665, %v2665
        %v3269 = vmul.f32 %v2667, %v2667
        %v3270 = vmul.f32 %v2318, %v2318
        %v3271 = vmul.f32 %v2320, %v2320
        %v3272 = vmul.f32 %v2671, %v2671
        %v3273 = vmul.f32 %v2673, %v2673
        %v3274 = vmul.f32 %v2322, %v2322
        %v3275 = vmul.f32 %v2324, %v2324
        %v3276 = vmul.f32 %v2675, %v2675
        %v3277 = vmul.f32 %v2677, %v2677
        %v3278 = vmul.f32 %v2328, %v2328
        %v3279 = vmul.f32 %v2330, %v2330
        %v3280 = vmul.f32 %v2681, %v2681
        %v3281 = vmul.f32 %v2683, %v2683
        %v3282 = vmul.f32 %v2332, %v2332
        %v3283 = vmul.f32 %v2334, %v2334
        %v3284 = vmul.f32 %v2685, %v2685
        %v3285 = vmul.f32 %v2687, %v2687
        %v3286 = vmul.f32 %v2338, %v2338
        %v3287 = vmul.f32 %v2340, %v2340
        %v3288 = vmul.f32 %v2691, %v2691
        %v3289 = vmul.f32 %v2693, %v2693
        %v3290 = vmul.f32 %v2342, %v2342
        %v3291 = vmul.f32 %v2344, %v2344
        %v3292 = vmul.f32 %v2695, %v2695
        %v3293 = vmul.f32 %v2697, %v2697
        %v3294 = vmul.f32 %v2348, %v2348
        %v3295 = vmul.f32 %v2350, %v2350
        %v3296 = vmul.f32 %v2701, %v2701
        %v3297 = vmul.f32 %v2703, %v2703
        %v3298 = vmul.f32 %v2352, %v2352
        %v3299 = vmul.f32 %v2354, %v2354
        %v3300 = vmul.f32 %v2705, %v2705
        %v3301 = vmul.f32 %v2707, %v2707
        %v3302 = vmul.f32 %v2358, %v2358
        %v3303 = vmul.f32 %v2360, %v2360
        %v3304 = vmul.f32 %v2711, %v2711
        %v3305 = vmul.f32 %v2713, %v2713
        %v3306 = vmul.f32 %v2362, %v2362
        %v3307 = vmul.f32 %v2364, %v2364
        %v3308 = vmul.f32 %v2715, %v2715
        %v3309 = vmul.f32 %v2717, %v2717
        %v3310 = vmul.f32 %v2368, %v2368
        %v3311 = vmul.f32 %v2370, %v2370
        %v3312 = vmul.f32 %v2721, %v2721
        %v3313 = vmul.f32 %v2723, %v2723
        %v3314 = vmul.f32 %v2372, %v2372
        %v3315 = vmul.f32 %v2374, %v2374
        %v3316 = vmul.f32 %v2725, %v2725
        %v3317 = vmul.f32 %v2727, %v2727
        %v3318 = vmul.f32 %v2378, %v2378
        %v3319 = vmul.f32 %v2380, %v2380
        %v3320 = vmul.f32 %v2731, %v2731
        %v3321 = vmul.f32 %v2733, %v2733
        %v3322 = vmul.f32 %v2382, %v2382
        %v3323 = vmul.f32 %v2384, %v2384
        %v3324 = vmul.f32 %v2735, %v2735
        %v3325 = vmul.f32 %v2737, %v2737
        %v3326 = vmul.f32 %v2388, %v2388
        %v3327 = vmul.f32 %v2390, %v2390
        %v3328 = vmul.f32 %v2741, %v2741
        %v3329 = vmul.f32 %v2743, %v2743
        %v3330 = vmul.f32 %v2392, %v2392
        %v3331 = vmul.f32 %v2394, %v2394
        %v3332 = vmul.f32 %v2745, %v2745
        %v3333 = vmul.f32 %v2747, %v2747
        %v3334 = vmul.f32 %v2398, %v2398
        %v3335 = vmul.f32 %v2400, %v2400
        %v3336 = vmul.f32 %v2751, %v2751
        %v3337 = vmul.f32 %v2753, %v2753
        %v3338 = vmul.f32 %v2402, %v2402
        %v3339 = vmul.f32 %v2404, %v2404
        %v3340 = vmul.f32 %v2755, %v2755
        %v3341 = vmul.f32 %v2757, %v2757
        %v3342 = vmul.f32 %v2408, %v2408
        %v3343 = vmul.f32 %v2410, %v2410
        %v3344 = vmul.f32 %v2761, %v2761
        %v3345 = vmul.f32 %v2763, %v2763
        %v3346 = vmul.f32 %v2412, %v2412
        %v3347 = vmul.f32 %v2414, %v2414
        %v3348 = vmul.f32 %v2765, %v2765
        %v3349 = vmul.f32 %v2767, %v2767
        %v3350 = vmul.f32 %v2418, %v2418
        %v3351 = vmul.f32 %v2420, %v2420
        %v3352 = vmul.f32 %v2771, %v2771
        %v3353 = vmul.f32 %v2773, %v2773
        %v3354 = vmul.f32 %v2422, %v2422
        %v3355 = vmul.f32 %v2424, %v2424
        %v3356 = vmul.f32 %v2775, %v2775
        %v3357 = vmul.f32 %v2777, %v2777
        %v3358 = vadd.f32 %v3102, %v3103
        %v3359 = vadd.f32 %v3358, %v3104
        %v3360 = vadd.f32 %v3359, %v3105
        %3361 = vadd.xlane.f32.xlu0 %v3360
        %v3362 = vpop.xlane.xlu0 %3361
        %v3363 = vadd.f32 %v3106, %v3107
        %v3364 = vadd.f32 %v3363, %v3108
        %v3365 = vadd.f32 %v3364, %v3109
        %3366 = vadd.xlane.f32.xlu0 %v3365
        %v3367 = vpop.xlane.xlu0 %3366
        %v3368 = vadd.f32 %v3110, %v3111
        %v3369 = vadd.f32 %v3368, %v3112
        %v3370 = vadd.f32 %v3369, %v3113
        %3371 = vadd.xlane.f32.xlu0 %v3370
        %v3372 = vpop.xlane.xlu0 %3371
        %v3373 = vadd.f32 %v3114, %v3115
        %v3374 = vadd.f32 %v3373, %v3116
        %v3375 = vadd.f32 %v3374, %v3117
        %3376 = vadd.xlane.f32.xlu0 %v3375
        %v3377 = vpop.xlane.xlu0 %3376
        %v3378 = vadd.f32 %v3118, %v3119
        %v3379 = vadd.f32 %v3378, %v3120
        %v3380 = vadd.f32 %v3379, %v3121
        %3381 = vadd.xlane.f32.xlu0 %v3380
        %v3382 = vpop.xlane.xlu0 %3381
        %v3383 = vadd.f32 %v3122, %v3123
        %v3384 = vadd.f32 %v3383, %v3124
        %v3385 = vadd.f32 %v3384, %v3125
        %3386 = vadd.xlane.f32.xlu0 %v3385
        %v3387 = vpop.xlane.xlu0 %3386
        %v3388 = vadd.f32 %v3126, %v3127
        %v3389 = vadd.f32 %v3388, %v3128
        %v3390 = vadd.f32 %v3389, %v3129
        %3391 = vadd.xlane.f32.xlu0 %v3390
        %v3392 = vpop.xlane.xlu0 %3391
        %v3393 = vadd.f32 %v3130, %v3131
        %v3394 = vadd.f32 %v3393, %v3132
        %v3395 = vadd.f32 %v3394, %v3133
        %3396 = vadd.xlane.f32.xlu0 %v3395
        %v3397 = vpop.xlane.xlu0 %3396
        %v3398 = vadd.f32 %v3134, %v3135
        %v3399 = vadd.f32 %v3398, %v3136
        %v3400 = vadd.f32 %v3399, %v3137
        %3401 = vadd.xlane.f32.xlu0 %v3400
        %v3402 = vpop.xlane.xlu0 %3401
        %v3403 = vadd.f32 %v3138, %v3139
        %v3404 = vadd.f32 %v3403, %v3140
        %v3405 = vadd.f32 %v3404, %v3141
        %3406 = vadd.xlane.f32.xlu0 %v3405
        %v3407 = vpop.xlane.xlu0 %3406
        %v3408 = vadd.f32 %v3142, %v3143
        %v3409 = vadd.f32 %v3408, %v3144
        %v3410 = vadd.f32 %v3409, %v3145
        %3411 = vadd.xlane.f32.xlu0 %v3410
        %v3412 = vpop.xlane.xlu0 %3411
        %v3413 = vadd.f32 %v3146, %v3147
        %v3414 = vadd.f32 %v3413, %v3148
        %v3415 = vadd.f32 %v3414, %v3149
        %3416 = vadd.xlane.f32.xlu0 %v3415
        %v3417 = vpop.xlane.xlu0 %3416
        %v3418 = vadd.f32 %v3150, %v3151
        %v3419 = vadd.f32 %v3418, %v3152
        %v3420 = vadd.f32 %v3419, %v3153
        %3421 = vadd.xlane.f32.xlu0 %v3420
        %v3422 = vpop.xlane.xlu0 %3421
        %v3423 = vadd.f32 %v3154, %v3155
        %v3424 = vadd.f32 %v3423, %v3156
        %v3425 = vadd.f32 %v3424, %v3157
        %3426 = vadd.xlane.f32.xlu0 %v3425
        %v3427 = vpop.xlane.xlu0 %3426
        %v3428 = vadd.f32 %v3158, %v3159
        %v3429 = vadd.f32 %v3428, %v3160
        %v3430 = vadd.f32 %v3429, %v3161
        %3431 = vadd.xlane.f32.xlu0 %v3430
        %v3432 = vpop.xlane.xlu0 %3431
        %v3433 = vadd.f32 %v3162, %v3163
        %v3434 = vadd.f32 %v3433, %v3164
        %v3435 = vadd.f32 %v3434, %v3165
        %3436 = vadd.xlane.f32.xlu0 %v3435
        %v3437 = vpop.xlane.xlu0 %3436
        %v3438 = vadd.f32 %v3166, %v3167
        %v3439 = vadd.f32 %v3438, %v3168
        %v3440 = vadd.f32 %v3439, %v3169
        %3441 = vadd.xlane.f32.xlu0 %v3440
        %v3442 = vpop.xlane.xlu0 %3441
        %v3443 = vadd.f32 %v3170, %v3171
        %v3444 = vadd.f32 %v3443, %v3172
        %v3445 = vadd.f32 %v3444, %v3173
        %3446 = vadd.xlane.f32.xlu0 %v3445
        %v3447 = vpop.xlane.xlu0 %3446
        %v3448 = vadd.f32 %v3174, %v3175
        %v3449 = vadd.f32 %v3448, %v3176
        %v3450 = vadd.f32 %v3449, %v3177
        %3451 = vadd.xlane.f32.xlu0 %v3450
        %v3452 = vpop.xlane.xlu0 %3451
        %v3453 = vadd.f32 %v3178, %v3179
        %v3454 = vadd.f32 %v3453, %v3180
        %v3455 = vadd.f32 %v3454, %v3181
        %3456 = vadd.xlane.f32.xlu0 %v3455
        %v3457 = vpop.xlane.xlu0 %3456
        %v3458 = vadd.f32 %v3182, %v3183
        %v3459 = vadd.f32 %v3458, %v3184
        %v3460 = vadd.f32 %v3459, %v3185
        %3461 = vadd.xlane.f32.xlu0 %v3460
        %v3462 = vpop.xlane.xlu0 %3461
        %v3463 = vadd.f32 %v3186, %v3187
        %v3464 = vadd.f32 %v3463, %v3188
        %v3465 = vadd.f32 %v3464, %v3189
        %3466 = vadd.xlane.f32.xlu0 %v3465
        %v3467 = vpop.xlane.xlu0 %3466
        %v3468 = vadd.f32 %v3190, %v3191
        %v3469 = vadd.f32 %v3468, %v3192
        %v3470 = vadd.f32 %v3469, %v3193
        %3471 = vadd.xlane.f32.xlu0 %v3470
        %v3472 = vpop.xlane.xlu0 %3471
        %v3473 = vadd.f32 %v3194, %v3195
        %v3474 = vadd.f32 %v3473, %v3196
        %v3475 = vadd.f32 %v3474, %v3197
        %3476 = vadd.xlane.f32.xlu0 %v3475
        %v3477 = vpop.xlane.xlu0 %3476
        %v3478 = vadd.f32 %v3198, %v3199
        %v3479 = vadd.f32 %v3478, %v3200
        %v3480 = vadd.f32 %v3479, %v3201
        %3481 = vadd.xlane.f32.xlu0 %v3480
        %v3482 = vpop.xlane.xlu0 %3481
        %v3483 = vadd.f32 %v3202, %v3203
        %v3484 = vadd.f32 %v3483, %v3204
        %v3485 = vadd.f32 %v3484, %v3205
        %3486 = vadd.xlane.f32.xlu0 %v3485
        %v3487 = vpop.xlane.xlu0 %3486
        %v3488 = vadd.f32 %v3206, %v3207
        %v3489 = vadd.f32 %v3488, %v3208
        %v3490 = vadd.f32 %v3489, %v3209
        %3491 = vadd.xlane.f32.xlu0 %v3490
        %v3492 = vpop.xlane.xlu0 %3491
        %v3493 = vadd.f32 %v3210, %v3211
        %v3494 = vadd.f32 %v3493, %v3212
        %v3495 = vadd.f32 %v3494, %v3213
        %3496 = vadd.xlane.f32.xlu0 %v3495
        %v3497 = vpop.xlane.xlu0 %3496
        %v3498 = vadd.f32 %v3214, %v3215
        %v3499 = vadd.f32 %v3498, %v3216
        %v3500 = vadd.f32 %v3499, %v3217
        %3501 = vadd.xlane.f32.xlu0 %v3500
        %v3502 = vpop.xlane.xlu0 %3501
        %v3503 = vadd.f32 %v3218, %v3219
        %v3504 = vadd.f32 %v3503, %v3220
        %v3505 = vadd.f32 %v3504, %v3221
        %3506 = vadd.xlane.f32.xlu0 %v3505
        %v3507 = vpop.xlane.xlu0 %3506
        %v3508 = vadd.f32 %v3222, %v3223
        %v3509 = vadd.f32 %v3508, %v3224
        %v3510 = vadd.f32 %v3509, %v3225
        %3511 = vadd.xlane.f32.xlu0 %v3510
        %v3512 = vpop.xlane.xlu0 %3511
        %v3513 = vadd.f32 %v3226, %v3227
        %v3514 = vadd.f32 %v3513, %v3228
        %v3515 = vadd.f32 %v3514, %v3229
        %3516 = vadd.xlane.f32.xlu0 %v3515
        %v3517 = vpop.xlane.xlu0 %3516
        %v3518 = vadd.f32 %v3230, %v3231
        %v3519 = vadd.f32 %v3518, %v3232
        %v3520 = vadd.f32 %v3519, %v3233
        %3521 = vadd.xlane.f32.xlu0 %v3520
        %v3522 = vpop.xlane.xlu0 %3521
        %v3523 = vadd.f32 %v3234, %v3235
        %v3524 = vadd.f32 %v3523, %v3236
        %v3525 = vadd.f32 %v3524, %v3237
        %3526 = vadd.xlane.f32.xlu0 %v3525
        %v3527 = vpop.xlane.xlu0 %3526
        %v3528 = vadd.f32 %v3238, %v3239
        %v3529 = vadd.f32 %v3528, %v3240
        %v3530 = vadd.f32 %v3529, %v3241
        %3531 = vadd.xlane.f32.xlu0 %v3530
        %v3532 = vpop.xlane.xlu0 %3531
        %v3533 = vadd.f32 %v3242, %v3243
        %v3534 = vadd.f32 %v3533, %v3244
        %v3535 = vadd.f32 %v3534, %v3245
        %3536 = vadd.xlane.f32.xlu0 %v3535
        %v3537 = vpop.xlane.xlu0 %3536
        %v3538 = vadd.f32 %v3246, %v3247
        %v3539 = vadd.f32 %v3538, %v3248
        %v3540 = vadd.f32 %v3539, %v3249
        %3541 = vadd.xlane.f32.xlu0 %v3540
        %v3542 = vpop.xlane.xlu0 %3541
        %v3543 = vadd.f32 %v3250, %v3251
        %v3544 = vadd.f32 %v3543, %v3252
        %v3545 = vadd.f32 %v3544, %v3253
        %3546 = vadd.xlane.f32.xlu0 %v3545
        %v3547 = vpop.xlane.xlu0 %3546
        %v3548 = vadd.f32 %v3254, %v3255
        %v3549 = vadd.f32 %v3548, %v3256
        %v3550 = vadd.f32 %v3549, %v3257
        %3551 = vadd.xlane.f32.xlu0 %v3550
        %v3552 = vpop.xlane.xlu0 %3551
        %v3553 = vadd.f32 %v3258, %v3259
        %v3554 = vadd.f32 %v3553, %v3260
        %v3555 = vadd.f32 %v3554, %v3261
        %3556 = vadd.xlane.f32.xlu0 %v3555
        %v3557 = vpop.xlane.xlu0 %3556
        %v3558 = vadd.f32 %v3262, %v3263
        %v3559 = vadd.f32 %v3558, %v3264
        %v3560 = vadd.f32 %v3559, %v3265
        %3561 = vadd.xlane.f32.xlu0 %v3560
        %v3562 = vpop.xlane.xlu0 %3561
        %v3563 = vadd.f32 %v3266, %v3267
        %v3564 = vadd.f32 %v3563, %v3268
        %v3565 = vadd.f32 %v3564, %v3269
        %3566 = vadd.xlane.f32.xlu0 %v3565
        %v3567 = vpop.xlane.xlu0 %3566
        %v3568 = vadd.f32 %v3270, %v3271
        %v3569 = vadd.f32 %v3568, %v3272
        %v3570 = vadd.f32 %v3569, %v3273
        %3571 = vadd.xlane.f32.xlu0 %v3570
        %v3572 = vpop.xlane.xlu0 %3571
        %v3573 = vadd.f32 %v3274, %v3275
        %v3574 = vadd.f32 %v3573, %v3276
        %v3575 = vadd.f32 %v3574, %v3277
        %3576 = vadd.xlane.f32.xlu0 %v3575
        %v3577 = vpop.xlane.xlu0 %3576
        %v3578 = vadd.f32 %v3278, %v3279
        %v3579 = vadd.f32 %v3578, %v3280
        %v3580 = vadd.f32 %v3579, %v3281
        %3581 = vadd.xlane.f32.xlu0 %v3580
        %v3582 = vpop.xlane.xlu0 %3581
        %v3583 = vadd.f32 %v3282, %v3283
        %v3584 = vadd.f32 %v3583, %v3284
        %v3585 = vadd.f32 %v3584, %v3285
        %3586 = vadd.xlane.f32.xlu0 %v3585
        %v3587 = vpop.xlane.xlu0 %3586
        %v3588 = vadd.f32 %v3286, %v3287
        %v3589 = vadd.f32 %v3588, %v3288
        %v3590 = vadd.f32 %v3589, %v3289
        %3591 = vadd.xlane.f32.xlu0 %v3590
        %v3592 = vpop.xlane.xlu0 %3591
        %v3593 = vadd.f32 %v3290, %v3291
        %v3594 = vadd.f32 %v3593, %v3292
        %v3595 = vadd.f32 %v3594, %v3293
        %3596 = vadd.xlane.f32.xlu0 %v3595
        %v3597 = vpop.xlane.xlu0 %3596
        %v3598 = vadd.f32 %v3294, %v3295
        %v3599 = vadd.f32 %v3598, %v3296
        %v3600 = vadd.f32 %v3599, %v3297
        %3601 = vadd.xlane.f32.xlu0 %v3600
        %v3602 = vpop.xlane.xlu0 %3601
        %v3603 = vadd.f32 %v3298, %v3299
        %v3604 = vadd.f32 %v3603, %v3300
        %v3605 = vadd.f32 %v3604, %v3301
        %3606 = vadd.xlane.f32.xlu0 %v3605
        %v3607 = vpop.xlane.xlu0 %3606
        %v3608 = vadd.f32 %v3302, %v3303
        %v3609 = vadd.f32 %v3608, %v3304
        %v3610 = vadd.f32 %v3609, %v3305
        %3611 = vadd.xlane.f32.xlu0 %v3610
        %v3612 = vpop.xlane.xlu0 %3611
        %v3613 = vadd.f32 %v3306, %v3307
        %v3614 = vadd.f32 %v3613, %v3308
        %v3615 = vadd.f32 %v3614, %v3309
        %3616 = vadd.xlane.f32.xlu0 %v3615
        %v3617 = vpop.xlane.xlu0 %3616
        %v3618 = vadd.f32 %v3310, %v3311
        %v3619 = vadd.f32 %v3618, %v3312
        %v3620 = vadd.f32 %v3619, %v3313
        %3621 = vadd.xlane.f32.xlu0 %v3620
        %v3622 = vpop.xlane.xlu0 %3621
        %v3623 = vadd.f32 %v3314, %v3315
        %v3624 = vadd.f32 %v3623, %v3316
        %v3625 = vadd.f32 %v3624, %v3317
        %3626 = vadd.xlane.f32.xlu0 %v3625
        %v3627 = vpop.xlane.xlu0 %3626
        %v3628 = vadd.f32 %v3318, %v3319
        %v3629 = vadd.f32 %v3628, %v3320
        %v3630 = vadd.f32 %v3629, %v3321
        %3631 = vadd.xlane.f32.xlu0 %v3630
        %v3632 = vpop.xlane.xlu0 %3631
        %v3633 = vadd.f32 %v3322, %v3323
        %v3634 = vadd.f32 %v3633, %v3324
        %v3635 = vadd.f32 %v3634, %v3325
        %3636 = vadd.xlane.f32.xlu0 %v3635
        %v3637 = vpop.xlane.xlu0 %3636
        %v3638 = vadd.f32 %v3326, %v3327
        %v3639 = vadd.f32 %v3638, %v3328
        %v3640 = vadd.f32 %v3639, %v3329
        %3641 = vadd.xlane.f32.xlu0 %v3640
        %v3642 = vpop.xlane.xlu0 %3641
        %v3643 = vadd.f32 %v3330, %v3331
        %v3644 = vadd.f32 %v3643, %v3332
        %v3645 = vadd.f32 %v3644, %v3333
        %3646 = vadd.xlane.f32.xlu0 %v3645
        %v3647 = vpop.xlane.xlu0 %3646
        %v3648 = vadd.f32 %v3334, %v3335
        %v3649 = vadd.f32 %v3648, %v3336
        %v3650 = vadd.f32 %v3649, %v3337
        %3651 = vadd.xlane.f32.xlu0 %v3650
        %v3652 = vpop.xlane.xlu0 %3651
        %v3653 = vadd.f32 %v3338, %v3339
        %v3654 = vadd.f32 %v3653, %v3340
        %v3655 = vadd.f32 %v3654, %v3341
        %3656 = vadd.xlane.f32.xlu0 %v3655
        %v3657 = vpop.xlane.xlu0 %3656
        %v3658 = vadd.f32 %v3342, %v3343
        %v3659 = vadd.f32 %v3658, %v3344
        %v3660 = vadd.f32 %v3659, %v3345
        %3661 = vadd.xlane.f32.xlu0 %v3660
        %v3662 = vpop.xlane.xlu0 %3661
        %v3663 = vadd.f32 %v3346, %v3347
        %v3664 = vadd.f32 %v3663, %v3348
        %v3665 = vadd.f32 %v3664, %v3349
        %3666 = vadd.xlane.f32.xlu0 %v3665
        %v3667 = vpop.xlane.xlu0 %3666
        %v3668 = vadd.f32 %v3350, %v3351
        %v3669 = vadd.f32 %v3668, %v3352
        %v3670 = vadd.f32 %v3669, %v3353
        %3671 = vadd.xlane.f32.xlu0 %v3670
        %v3672 = vpop.xlane.xlu0 %3671
        %v3673 = vadd.f32 %v3354, %v3355
        %v3674 = vadd.f32 %v3673, %v3356
        %v3675 = vadd.f32 %v3674, %v3357
        %3676 = vadd.xlane.f32.xlu0 %v3675
        %v3677 = vpop.xlane.xlu0 %3676
        %v3678 = vmul.f32 %v2786, 0.001953125
        %v3679 = vmul.f32 %v2791, 0.001953125
        %v3680 = vmul.f32 %v2796, 0.001953125
        %v3681 = vmul.f32 %v2801, 0.001953125
        %v3682 = vmul.f32 %v2806, 0.001953125
        %v3683 = vmul.f32 %v2811, 0.001953125
        %v3684 = vmul.f32 %v2816, 0.001953125
        %v3685 = vmul.f32 %v2821, 0.001953125
        %v3686 = vmul.f32 %v2826, 0.001953125
        %v3687 = vmul.f32 %v2831, 0.001953125
        %v3688 = vmul.f32 %v2836, 0.001953125
        %v3689 = vmul.f32 %v2841, 0.001953125
        %v3690 = vmul.f32 %v2846, 0.001953125
        %v3691 = vmul.f32 %v2851, 0.001953125
        %v3692 = vmul.f32 %v2856, 0.001953125
        %v3693 = vmul.f32 %v2861, 0.001953125
        %v3694 = vmul.f32 %v2866, 0.001953125
        %v3695 = vmul.f32 %v2871, 0.001953125
        %v3696 = vmul.f32 %v2876, 0.001953125
        %v3697 = vmul.f32 %v2881, 0.001953125
        %v3698 = vmul.f32 %v2886, 0.001953125
        %v3699 = vmul.f32 %v2891, 0.001953125
        %v3700 = vmul.f32 %v2896, 0.001953125
        %v3701 = vmul.f32 %v2901, 0.001953125
        %v3702 = vmul.f32 %v2906, 0.001953125
        %v3703 = vmul.f32 %v2911, 0.001953125
        %v3704 = vmul.f32 %v2916, 0.001953125
        %v3705 = vmul.f32 %v2921, 0.001953125
        %v3706 = vmul.f32 %v2926, 0.001953125
        %v3707 = vmul.f32 %v2931, 0.001953125
        %v3708 = vmul.f32 %v2936, 0.001953125
        %v3709 = vmul.f32 %v2941, 0.001953125
        %v3710 = vmul.f32 %v2946, 0.001953125
        %v3711 = vmul.f32 %v2951, 0.001953125
        %v3712 = vmul.f32 %v2956, 0.001953125
        %v3713 = vmul.f32 %v2961, 0.001953125
        %v3714 = vmul.f32 %v2966, 0.001953125
        %v3715 = vmul.f32 %v2971, 0.001953125
        %v3716 = vmul.f32 %v2976, 0.001953125
        %v3717 = vmul.f32 %v2981, 0.001953125
        %v3718 = vmul.f32 %v2986, 0.001953125
        %v3719 = vmul.f32 %v2991, 0.001953125
        %v3720 = vmul.f32 %v2996, 0.001953125
        %v3721 = vmul.f32 %v3001, 0.001953125
        %v3722 = vmul.f32 %v3006, 0.001953125
        %v3723 = vmul.f32 %v3011, 0.001953125
        %v3724 = vmul.f32 %v3016, 0.001953125
        %v3725 = vmul.f32 %v3021, 0.001953125
        %v3726 = vmul.f32 %v3026, 0.001953125
        %v3727 = vmul.f32 %v3031, 0.001953125
        %v3728 = vmul.f32 %v3036, 0.001953125
        %v3729 = vmul.f32 %v3041, 0.001953125
        %v3730 = vmul.f32 %v3046, 0.001953125
        %v3731 = vmul.f32 %v3051, 0.001953125
        %v3732 = vmul.f32 %v3056, 0.001953125
        %v3733 = vmul.f32 %v3061, 0.001953125
        %v3734 = vmul.f32 %v3066, 0.001953125
        %v3735 = vmul.f32 %v3071, 0.001953125
        %v3736 = vmul.f32 %v3076, 0.001953125
        %v3737 = vmul.f32 %v3081, 0.001953125
        %v3738 = vmul.f32 %v3086, 0.001953125
        %v3739 = vmul.f32 %v3091, 0.001953125
        %v3740 = vmul.f32 %v3096, 0.001953125
        %v3741 = vmul.f32 %v3101, 0.001953125
        %v3742 = vmul.f32 %v3362, 0.001953125
        %v3743 = vmul.f32 %v3367, 0.001953125
        %v3744 = vmul.f32 %v3372, 0.001953125
        %v3745 = vmul.f32 %v3377, 0.001953125
        %v3746 = vmul.f32 %v3382, 0.001953125
        %v3747 = vmul.f32 %v3387, 0.001953125
        %v3748 = vmul.f32 %v3392, 0.001953125
        %v3749 = vmul.f32 %v3397, 0.001953125
        %v3750 = vmul.f32 %v3402, 0.001953125
        %v3751 = vmul.f32 %v3407, 0.001953125
        %v3752 = vmul.f32 %v3412, 0.001953125
        %v3753 = vmul.f32 %v3417, 0.001953125
        %v3754 = vmul.f32 %v3422, 0.001953125
        %v3755 = vmul.f32 %v3427, 0.001953125
        %v3756 = vmul.f32 %v3432, 0.001953125
        %v3757 = vmul.f32 %v3437, 0.001953125
        %v3758 = vmul.f32 %v3442, 0.001953125
        %v3759 = vmul.f32 %v3447, 0.001953125
        %v3760 = vmul.f32 %v3452, 0.001953125
        %v3761 = vmul.f32 %v3457, 0.001953125
        %v3762 = vmul.f32 %v3462, 0.001953125
        %v3763 = vmul.f32 %v3467, 0.001953125
        %v3764 = vmul.f32 %v3472, 0.001953125
        %v3765 = vmul.f32 %v3477, 0.001953125
        %v3766 = vmul.f32 %v3482, 0.001953125
        %v3767 = vmul.f32 %v3487, 0.001953125
        %v3768 = vmul.f32 %v3492, 0.001953125
        %v3769 = vmul.f32 %v3497, 0.001953125
        %v3770 = vmul.f32 %v3502, 0.001953125
        %v3771 = vmul.f32 %v3507, 0.001953125
        %v3772 = vmul.f32 %v3512, 0.001953125
        %v3773 = vmul.f32 %v3517, 0.001953125
        %v3774 = vmul.f32 %v3522, 0.001953125
        %v3775 = vmul.f32 %v3527, 0.001953125
        %v3776 = vmul.f32 %v3532, 0.001953125
        %v3777 = vmul.f32 %v3537, 0.001953125
        %v3778 = vmul.f32 %v3542, 0.001953125
        %v3779 = vmul.f32 %v3547, 0.001953125
        %v3780 = vmul.f32 %v3552, 0.001953125
        %v3781 = vmul.f32 %v3557, 0.001953125
        %v3782 = vmul.f32 %v3562, 0.001953125
        %v3783 = vmul.f32 %v3567, 0.001953125
        %v3784 = vmul.f32 %v3572, 0.001953125
        %v3785 = vmul.f32 %v3577, 0.001953125
        %v3786 = vmul.f32 %v3582, 0.001953125
        %v3787 = vmul.f32 %v3587, 0.001953125
        %v3788 = vmul.f32 %v3592, 0.001953125
        %v3789 = vmul.f32 %v3597, 0.001953125
        %v3790 = vmul.f32 %v3602, 0.001953125
        %v3791 = vmul.f32 %v3607, 0.001953125
        %v3792 = vmul.f32 %v3612, 0.001953125
        %v3793 = vmul.f32 %v3617, 0.001953125
        %v3794 = vmul.f32 %v3622, 0.001953125
        %v3795 = vmul.f32 %v3627, 0.001953125
        %v3796 = vmul.f32 %v3632, 0.001953125
        %v3797 = vmul.f32 %v3637, 0.001953125
        %v3798 = vmul.f32 %v3642, 0.001953125
        %v3799 = vmul.f32 %v3647, 0.001953125
        %v3800 = vmul.f32 %v3652, 0.001953125
        %v3801 = vmul.f32 %v3657, 0.001953125
        %v3802 = vmul.f32 %v3662, 0.001953125
        %v3803 = vmul.f32 %v3667, 0.001953125
        %v3804 = vmul.f32 %v3672, 0.001953125
        %v3805 = vmul.f32 %v3677, 0.001953125
        %v3806 = vmul.f32 %v3678, %v3678
        %v3807 = vmul.f32 %v3679, %v3679
        %v3808 = vmul.f32 %v3680, %v3680
        %v3809 = vmul.f32 %v3681, %v3681
        %v3810 = vmul.f32 %v3682, %v3682
        %v3811 = vmul.f32 %v3683, %v3683
        %v3812 = vmul.f32 %v3684, %v3684
        %v3813 = vmul.f32 %v3685, %v3685
        %v3814 = vmul.f32 %v3686, %v3686
        %v3815 = vmul.f32 %v3687, %v3687
        %v3816 = vmul.f32 %v3688, %v3688
        %v3817 = vmul.f32 %v3689, %v3689
        %v3818 = vmul.f32 %v3690, %v3690
        %v3819 = vmul.f32 %v3691, %v3691
        %v3820 = vmul.f32 %v3692, %v3692
        %v3821 = vmul.f32 %v3693, %v3693
        %v3822 = vmul.f32 %v3694, %v3694
        %v3823 = vmul.f32 %v3695, %v3695
        %v3824 = vmul.f32 %v3696, %v3696
        %v3825 = vmul.f32 %v3697, %v3697
        %v3826 = vmul.f32 %v3698, %v3698
        %v3827 = vmul.f32 %v3699, %v3699
        %v3828 = vmul.f32 %v3700, %v3700
        %v3829 = vmul.f32 %v3701, %v3701
        %v3830 = vmul.f32 %v3702, %v3702
        %v3831 = vmul.f32 %v3703, %v3703
        %v3832 = vmul.f32 %v3704, %v3704
        %v3833 = vmul.f32 %v3705, %v3705
        %v3834 = vmul.f32 %v3706, %v3706
        %v3835 = vmul.f32 %v3707, %v3707
        %v3836 = vmul.f32 %v3708, %v3708
        %v3837 = vmul.f32 %v3709, %v3709
        %v3838 = vmul.f32 %v3710, %v3710
        %v3839 = vmul.f32 %v3711, %v3711
        %v3840 = vmul.f32 %v3712, %v3712
        %v3841 = vmul.f32 %v3713, %v3713
        %v3842 = vmul.f32 %v3714, %v3714
        %v3843 = vmul.f32 %v3715, %v3715
        %v3844 = vmul.f32 %v3716, %v3716
        %v3845 = vmul.f32 %v3717, %v3717
        %v3846 = vmul.f32 %v3718, %v3718
        %v3847 = vmul.f32 %v3719, %v3719
        %v3848 = vmul.f32 %v3720, %v3720
        %v3849 = vmul.f32 %v3721, %v3721
        %v3850 = vmul.f32 %v3722, %v3722
        %v3851 = vmul.f32 %v3723, %v3723
        %v3852 = vmul.f32 %v3724, %v3724
        %v3853 = vmul.f32 %v3725, %v3725
        %v3854 = vmul.f32 %v3726, %v3726
        %v3855 = vmul.f32 %v3727, %v3727
        %v3856 = vmul.f32 %v3728, %v3728
        %v3857 = vmul.f32 %v3729, %v3729
        %v3858 = vmul.f32 %v3730, %v3730
        %v3859 = vmul.f32 %v3731, %v3731
        %v3860 = vmul.f32 %v3732, %v3732
        %v3861 = vmul.f32 %v3733, %v3733
        %v3862 = vmul.f32 %v3734, %v3734
        %v3863 = vmul.f32 %v3735, %v3735
        %v3864 = vmul.f32 %v3736, %v3736
        %v3865 = vmul.f32 %v3737, %v3737
        %v3866 = vmul.f32 %v3738, %v3738
        %v3867 = vmul.f32 %v3739, %v3739
        %v3868 = vmul.f32 %v3740, %v3740
        %v3869 = vmul.f32 %v3741, %v3741
        %v3870 = vsub.f32 %v3742, %v3806
        %v3871 = vsub.f32 %v3743, %v3807
        %v3872 = vsub.f32 %v3744, %v3808
        %v3873 = vsub.f32 %v3745, %v3809
        %v3874 = vsub.f32 %v3746, %v3810
        %v3875 = vsub.f32 %v3747, %v3811
        %v3876 = vsub.f32 %v3748, %v3812
        %v3877 = vsub.f32 %v3749, %v3813
        %v3878 = vsub.f32 %v3750, %v3814
        %v3879 = vsub.f32 %v3751, %v3815
        %v3880 = vsub.f32 %v3752, %v3816
        %v3881 = vsub.f32 %v3753, %v3817
        %v3882 = vsub.f32 %v3754, %v3818
        %v3883 = vsub.f32 %v3755, %v3819
        %v3884 = vsub.f32 %v3756, %v3820
        %v3885 = vsub.f32 %v3757, %v3821
        %v3886 = vsub.f32 %v3758, %v3822
        %v3887 = vsub.f32 %v3759, %v3823
        %v3888 = vsub.f32 %v3760, %v3824
        %v3889 = vsub.f32 %v3761, %v3825
        %v3890 = vsub.f32 %v3762, %v3826
        %v3891 = vsub.f32 %v3763, %v3827
        %v3892 = vsub.f32 %v3764, %v3828
        %v3893 = vsub.f32 %v3765, %v3829
        %v3894 = vsub.f32 %v3766, %v3830
        %v3895 = vsub.f32 %v3767, %v3831
        %v3896 = vsub.f32 %v3768, %v3832
        %v3897 = vsub.f32 %v3769, %v3833
        %v3898 = vsub.f32 %v3770, %v3834
        %v3899 = vsub.f32 %v3771, %v3835
        %v3900 = vsub.f32 %v3772, %v3836
        %v3901 = vsub.f32 %v3773, %v3837
        %v3902 = vsub.f32 %v3774, %v3838
        %v3903 = vsub.f32 %v3775, %v3839
        %v3904 = vsub.f32 %v3776, %v3840
        %v3905 = vsub.f32 %v3777, %v3841
        %v3906 = vsub.f32 %v3778, %v3842
        %v3907 = vsub.f32 %v3779, %v3843
        %v3908 = vsub.f32 %v3780, %v3844
        %v3909 = vsub.f32 %v3781, %v3845
        %v3910 = vsub.f32 %v3782, %v3846
        %v3911 = vsub.f32 %v3783, %v3847
        %v3912 = vsub.f32 %v3784, %v3848
        %v3913 = vsub.f32 %v3785, %v3849
        %v3914 = vsub.f32 %v3786, %v3850
        %v3915 = vsub.f32 %v3787, %v3851
        %v3916 = vsub.f32 %v3788, %v3852
        %v3917 = vsub.f32 %v3789, %v3853
        %v3918 = vsub.f32 %v3790, %v3854
        %v3919 = vsub.f32 %v3791, %v3855
        %v3920 = vsub.f32 %v3792, %v3856
        %v3921 = vsub.f32 %v3793, %v3857
        %v3922 = vsub.f32 %v3794, %v3858
        %v3923 = vsub.f32 %v3795, %v3859
        %v3924 = vsub.f32 %v3796, %v3860
        %v3925 = vsub.f32 %v3797, %v3861
        %v3926 = vsub.f32 %v3798, %v3862
        %v3927 = vsub.f32 %v3799, %v3863
        %v3928 = vsub.f32 %v3800, %v3864
        %v3929 = vsub.f32 %v3801, %v3865
        %v3930 = vsub.f32 %v3802, %v3866
        %v3931 = vsub.f32 %v3803, %v3867
        %v3932 = vsub.f32 %v3804, %v3868
        %v3933 = vsub.f32 %v3805, %v3869
        %v3934 = vmax.f32 %v3870, 0.0
        %v3935 = vmax.f32 %v3871, 0.0
        %v3936 = vmax.f32 %v3872, 0.0
        %v3937 = vmax.f32 %v3873, 0.0
        %v3938 = vmax.f32 %v3874, 0.0
        %v3939 = vmax.f32 %v3875, 0.0
        %v3940 = vmax.f32 %v3876, 0.0
        %v3941 = vmax.f32 %v3877, 0.0
        %v3942 = vmax.f32 %v3878, 0.0
        %v3943 = vmax.f32 %v3879, 0.0
        %v3944 = vmax.f32 %v3880, 0.0
        %v3945 = vmax.f32 %v3881, 0.0
        %v3946 = vmax.f32 %v3882, 0.0
        %v3947 = vmax.f32 %v3883, 0.0
        %v3948 = vmax.f32 %v3884, 0.0
        %v3949 = vmax.f32 %v3885, 0.0
        %v3950 = vmax.f32 %v3886, 0.0
        %v3951 = vmax.f32 %v3887, 0.0
        %v3952 = vmax.f32 %v3888, 0.0
        %v3953 = vmax.f32 %v3889, 0.0
        %v3954 = vmax.f32 %v3890, 0.0
        %v3955 = vmax.f32 %v3891, 0.0
        %v3956 = vmax.f32 %v3892, 0.0
        %v3957 = vmax.f32 %v3893, 0.0
        %v3958 = vmax.f32 %v3894, 0.0
        %v3959 = vmax.f32 %v3895, 0.0
        %v3960 = vmax.f32 %v3896, 0.0
        %v3961 = vmax.f32 %v3897, 0.0
        %v3962 = vmax.f32 %v3898, 0.0
        %v3963 = vmax.f32 %v3899, 0.0
        %v3964 = vmax.f32 %v3900, 0.0
        %v3965 = vmax.f32 %v3901, 0.0
        %v3966 = vmax.f32 %v3902, 0.0
        %v3967 = vmax.f32 %v3903, 0.0
        %v3968 = vmax.f32 %v3904, 0.0
        %v3969 = vmax.f32 %v3905, 0.0
        %v3970 = vmax.f32 %v3906, 0.0
        %v3971 = vmax.f32 %v3907, 0.0
        %v3972 = vmax.f32 %v3908, 0.0
        %v3973 = vmax.f32 %v3909, 0.0
        %v3974 = vmax.f32 %v3910, 0.0
        %v3975 = vmax.f32 %v3911, 0.0
        %v3976 = vmax.f32 %v3912, 0.0
        %v3977 = vmax.f32 %v3913, 0.0
        %v3978 = vmax.f32 %v3914, 0.0
        %v3979 = vmax.f32 %v3915, 0.0
        %v3980 = vmax.f32 %v3916, 0.0
        %v3981 = vmax.f32 %v3917, 0.0
        %v3982 = vmax.f32 %v3918, 0.0
        %v3983 = vmax.f32 %v3919, 0.0
        %v3984 = vmax.f32 %v3920, 0.0
        %v3985 = vmax.f32 %v3921, 0.0
        %v3986 = vmax.f32 %v3922, 0.0
        %v3987 = vmax.f32 %v3923, 0.0
        %v3988 = vmax.f32 %v3924, 0.0
        %v3989 = vmax.f32 %v3925, 0.0
        %v3990 = vmax.f32 %v3926, 0.0
        %v3991 = vmax.f32 %v3927, 0.0
        %v3992 = vmax.f32 %v3928, 0.0
        %v3993 = vmax.f32 %v3929, 0.0
        %v3994 = vmax.f32 %v3930, 0.0
        %v3995 = vmax.f32 %v3931, 0.0
        %v3996 = vmax.f32 %v3932, 0.0
        %v3997 = vmax.f32 %v3933, 0.0
        %v3998 = vsub.f32 %v2108, %v3678
        %v3999 = vsub.f32 %v2110, %v3678
        %v4000 = vsub.f32 %v2461, %v3678
        %v4001 = vsub.f32 %v2463, %v3678
        %v4002 = vsub.f32 %v2112, %v3679
        %v4003 = vsub.f32 %v2114, %v3679
        %v4004 = vsub.f32 %v2465, %v3679
        %v4005 = vsub.f32 %v2467, %v3679
        %v4006 = vsub.f32 %v2118, %v3680
        %v4007 = vsub.f32 %v2120, %v3680
        %v4008 = vsub.f32 %v2471, %v3680
        %v4009 = vsub.f32 %v2473, %v3680
        %v4010 = vsub.f32 %v2122, %v3681
        %v4011 = vsub.f32 %v2124, %v3681
        %v4012 = vsub.f32 %v2475, %v3681
        %v4013 = vsub.f32 %v2477, %v3681
        %v4014 = vsub.f32 %v2128, %v3682
        %v4015 = vsub.f32 %v2130, %v3682
        %v4016 = vsub.f32 %v2481, %v3682
        %v4017 = vsub.f32 %v2483, %v3682
        %v4018 = vsub.f32 %v2132, %v3683
        %v4019 = vsub.f32 %v2134, %v3683
        %v4020 = vsub.f32 %v2485, %v3683
        %v4021 = vsub.f32 %v2487, %v3683
        %v4022 = vsub.f32 %v2138, %v3684
        %v4023 = vsub.f32 %v2140, %v3684
        %v4024 = vsub.f32 %v2491, %v3684
        %v4025 = vsub.f32 %v2493, %v3684
        %v4026 = vsub.f32 %v2142, %v3685
        %v4027 = vsub.f32 %v2144, %v3685
        %v4028 = vsub.f32 %v2495, %v3685
        %v4029 = vsub.f32 %v2497, %v3685
        %v4030 = vsub.f32 %v2148, %v3686
        %v4031 = vsub.f32 %v2150, %v3686
        %v4032 = vsub.f32 %v2501, %v3686
        %v4033 = vsub.f32 %v2503, %v3686
        %v4034 = vsub.f32 %v2152, %v3687
        %v4035 = vsub.f32 %v2154, %v3687
        %v4036 = vsub.f32 %v2505, %v3687
        %v4037 = vsub.f32 %v2507, %v3687
        %v4038 = vsub.f32 %v2158, %v3688
        %v4039 = vsub.f32 %v2160, %v3688
        %v4040 = vsub.f32 %v2511, %v3688
        %v4041 = vsub.f32 %v2513, %v3688
        %v4042 = vsub.f32 %v2162, %v3689
        %v4043 = vsub.f32 %v2164, %v3689
        %v4044 = vsub.f32 %v2515, %v3689
        %v4045 = vsub.f32 %v2517, %v3689
        %v4046 = vsub.f32 %v2168, %v3690
        %v4047 = vsub.f32 %v2170, %v3690
        %v4048 = vsub.f32 %v2521, %v3690
        %v4049 = vsub.f32 %v2523, %v3690
        %v4050 = vsub.f32 %v2172, %v3691
        %v4051 = vsub.f32 %v2174, %v3691
        %v4052 = vsub.f32 %v2525, %v3691
        %v4053 = vsub.f32 %v2527, %v3691
        %v4054 = vsub.f32 %v2178, %v3692
        %v4055 = vsub.f32 %v2180, %v3692
        %v4056 = vsub.f32 %v2531, %v3692
        %v4057 = vsub.f32 %v2533, %v3692
        %v4058 = vsub.f32 %v2182, %v3693
        %v4059 = vsub.f32 %v2184, %v3693
        %v4060 = vsub.f32 %v2535, %v3693
        %v4061 = vsub.f32 %v2537, %v3693
        %v4062 = vsub.f32 %v2188, %v3694
        %v4063 = vsub.f32 %v2190, %v3694
        %v4064 = vsub.f32 %v2541, %v3694
        %v4065 = vsub.f32 %v2543, %v3694
        %v4066 = vsub.f32 %v2192, %v3695
        %v4067 = vsub.f32 %v2194, %v3695
        %v4068 = vsub.f32 %v2545, %v3695
        %v4069 = vsub.f32 %v2547, %v3695
        %v4070 = vsub.f32 %v2198, %v3696
        %v4071 = vsub.f32 %v2200, %v3696
        %v4072 = vsub.f32 %v2551, %v3696
        %v4073 = vsub.f32 %v2553, %v3696
        %v4074 = vsub.f32 %v2202, %v3697
        %v4075 = vsub.f32 %v2204, %v3697
        %v4076 = vsub.f32 %v2555, %v3697
        %v4077 = vsub.f32 %v2557, %v3697
        %v4078 = vsub.f32 %v2208, %v3698
        %v4079 = vsub.f32 %v2210, %v3698
        %v4080 = vsub.f32 %v2561, %v3698
        %v4081 = vsub.f32 %v2563, %v3698
        %v4082 = vsub.f32 %v2212, %v3699
        %v4083 = vsub.f32 %v2214, %v3699
        %v4084 = vsub.f32 %v2565, %v3699
        %v4085 = vsub.f32 %v2567, %v3699
        %v4086 = vsub.f32 %v2218, %v3700
        %v4087 = vsub.f32 %v2220, %v3700
        %v4088 = vsub.f32 %v2571, %v3700
        %v4089 = vsub.f32 %v2573, %v3700
        %v4090 = vsub.f32 %v2222, %v3701
        %v4091 = vsub.f32 %v2224, %v3701
        %v4092 = vsub.f32 %v2575, %v3701
        %v4093 = vsub.f32 %v2577, %v3701
        %v4094 = vsub.f32 %v2228, %v3702
        %v4095 = vsub.f32 %v2230, %v3702
        %v4096 = vsub.f32 %v2581, %v3702
        %v4097 = vsub.f32 %v2583, %v3702
        %v4098 = vsub.f32 %v2232, %v3703
        %v4099 = vsub.f32 %v2234, %v3703
        %v4100 = vsub.f32 %v2585, %v3703
        %v4101 = vsub.f32 %v2587, %v3703
        %v4102 = vsub.f32 %v2238, %v3704
        %v4103 = vsub.f32 %v2240, %v3704
        %v4104 = vsub.f32 %v2591, %v3704
        %v4105 = vsub.f32 %v2593, %v3704
        %v4106 = vsub.f32 %v2242, %v3705
        %v4107 = vsub.f32 %v2244, %v3705
        %v4108 = vsub.f32 %v2595, %v3705
        %v4109 = vsub.f32 %v2597, %v3705
        %v4110 = vsub.f32 %v2248, %v3706
        %v4111 = vsub.f32 %v2250, %v3706
        %v4112 = vsub.f32 %v2601, %v3706
        %v4113 = vsub.f32 %v2603, %v3706
        %v4114 = vsub.f32 %v2252, %v3707
        %v4115 = vsub.f32 %v2254, %v3707
        %v4116 = vsub.f32 %v2605, %v3707
        %v4117 = vsub.f32 %v2607, %v3707
        %v4118 = vsub.f32 %v2258, %v3708
        %v4119 = vsub.f32 %v2260, %v3708
        %v4120 = vsub.f32 %v2611, %v3708
        %v4121 = vsub.f32 %v2613, %v3708
        %v4122 = vsub.f32 %v2262, %v3709
        %v4123 = vsub.f32 %v2264, %v3709
        %v4124 = vsub.f32 %v2615, %v3709
        %v4125 = vsub.f32 %v2617, %v3709
        %v4126 = vsub.f32 %v2268, %v3710
        %v4127 = vsub.f32 %v2270, %v3710
        %v4128 = vsub.f32 %v2621, %v3710
        %v4129 = vsub.f32 %v2623, %v3710
        %v4130 = vsub.f32 %v2272, %v3711
        %v4131 = vsub.f32 %v2274, %v3711
        %v4132 = vsub.f32 %v2625, %v3711
        %v4133 = vsub.f32 %v2627, %v3711
        %v4134 = vsub.f32 %v2278, %v3712
        %v4135 = vsub.f32 %v2280, %v3712
        %v4136 = vsub.f32 %v2631, %v3712
        %v4137 = vsub.f32 %v2633, %v3712
        %v4138 = vsub.f32 %v2282, %v3713
        %v4139 = vsub.f32 %v2284, %v3713
        %v4140 = vsub.f32 %v2635, %v3713
        %v4141 = vsub.f32 %v2637, %v3713
        %v4142 = vsub.f32 %v2288, %v3714
        %v4143 = vsub.f32 %v2290, %v3714
        %v4144 = vsub.f32 %v2641, %v3714
        %v4145 = vsub.f32 %v2643, %v3714
        %v4146 = vsub.f32 %v2292, %v3715
        %v4147 = vsub.f32 %v2294, %v3715
        %v4148 = vsub.f32 %v2645, %v3715
        %v4149 = vsub.f32 %v2647, %v3715
        %v4150 = vsub.f32 %v2298, %v3716
        %v4151 = vsub.f32 %v2300, %v3716
        %v4152 = vsub.f32 %v2651, %v3716
        %v4153 = vsub.f32 %v2653, %v3716
        %v4154 = vsub.f32 %v2302, %v3717
        %v4155 = vsub.f32 %v2304, %v3717
        %v4156 = vsub.f32 %v2655, %v3717
        %v4157 = vsub.f32 %v2657, %v3717
        %v4158 = vsub.f32 %v2308, %v3718
        %v4159 = vsub.f32 %v2310, %v3718
        %v4160 = vsub.f32 %v2661, %v3718
        %v4161 = vsub.f32 %v2663, %v3718
        %v4162 = vsub.f32 %v2312, %v3719
        %v4163 = vsub.f32 %v2314, %v3719
        %v4164 = vsub.f32 %v2665, %v3719
        %v4165 = vsub.f32 %v2667, %v3719
        %v4166 = vsub.f32 %v2318, %v3720
        %v4167 = vsub.f32 %v2320, %v3720
        %v4168 = vsub.f32 %v2671, %v3720
        %v4169 = vsub.f32 %v2673, %v3720
        %v4170 = vsub.f32 %v2322, %v3721
        %v4171 = vsub.f32 %v2324, %v3721
        %v4172 = vsub.f32 %v2675, %v3721
        %v4173 = vsub.f32 %v2677, %v3721
        %v4174 = vsub.f32 %v2328, %v3722
        %v4175 = vsub.f32 %v2330, %v3722
        %v4176 = vsub.f32 %v2681, %v3722
        %v4177 = vsub.f32 %v2683, %v3722
        %v4178 = vsub.f32 %v2332, %v3723
        %v4179 = vsub.f32 %v2334, %v3723
        %v4180 = vsub.f32 %v2685, %v3723
        %v4181 = vsub.f32 %v2687, %v3723
        %v4182 = vsub.f32 %v2338, %v3724
        %v4183 = vsub.f32 %v2340, %v3724
        %v4184 = vsub.f32 %v2691, %v3724
        %v4185 = vsub.f32 %v2693, %v3724
        %v4186 = vsub.f32 %v2342, %v3725
        %v4187 = vsub.f32 %v2344, %v3725
        %v4188 = vsub.f32 %v2695, %v3725
        %v4189 = vsub.f32 %v2697, %v3725
        %v4190 = vsub.f32 %v2348, %v3726
        %v4191 = vsub.f32 %v2350, %v3726
        %v4192 = vsub.f32 %v2701, %v3726
        %v4193 = vsub.f32 %v2703, %v3726
        %v4194 = vsub.f32 %v2352, %v3727
        %v4195 = vsub.f32 %v2354, %v3727
        %v4196 = vsub.f32 %v2705, %v3727
        %v4197 = vsub.f32 %v2707, %v3727
        %v4198 = vsub.f32 %v2358, %v3728
        %v4199 = vsub.f32 %v2360, %v3728
        %v4200 = vsub.f32 %v2711, %v3728
        %v4201 = vsub.f32 %v2713, %v3728
        %v4202 = vsub.f32 %v2362, %v3729
        %v4203 = vsub.f32 %v2364, %v3729
        %v4204 = vsub.f32 %v2715, %v3729
        %v4205 = vsub.f32 %v2717, %v3729
        %v4206 = vsub.f32 %v2368, %v3730
        %v4207 = vsub.f32 %v2370, %v3730
        %v4208 = vsub.f32 %v2721, %v3730
        %v4209 = vsub.f32 %v2723, %v3730
        %v4210 = vsub.f32 %v2372, %v3731
        %v4211 = vsub.f32 %v2374, %v3731
        %v4212 = vsub.f32 %v2725, %v3731
        %v4213 = vsub.f32 %v2727, %v3731
        %v4214 = vsub.f32 %v2378, %v3732
        %v4215 = vsub.f32 %v2380, %v3732
        %v4216 = vsub.f32 %v2731, %v3732
        %v4217 = vsub.f32 %v2733, %v3732
        %v4218 = vsub.f32 %v2382, %v3733
        %v4219 = vsub.f32 %v2384, %v3733
        %v4220 = vsub.f32 %v2735, %v3733
        %v4221 = vsub.f32 %v2737, %v3733
        %v4222 = vsub.f32 %v2388, %v3734
        %v4223 = vsub.f32 %v2390, %v3734
        %v4224 = vsub.f32 %v2741, %v3734
        %v4225 = vsub.f32 %v2743, %v3734
        %v4226 = vsub.f32 %v2392, %v3735
        %v4227 = vsub.f32 %v2394, %v3735
        %v4228 = vsub.f32 %v2745, %v3735
        %v4229 = vsub.f32 %v2747, %v3735
        %v4230 = vsub.f32 %v2398, %v3736
        %v4231 = vsub.f32 %v2400, %v3736
        %v4232 = vsub.f32 %v2751, %v3736
        %v4233 = vsub.f32 %v2753, %v3736
        %v4234 = vsub.f32 %v2402, %v3737
        %v4235 = vsub.f32 %v2404, %v3737
        %v4236 = vsub.f32 %v2755, %v3737
        %v4237 = vsub.f32 %v2757, %v3737
        %v4238 = vsub.f32 %v2408, %v3738
        %v4239 = vsub.f32 %v2410, %v3738
        %v4240 = vsub.f32 %v2761, %v3738
        %v4241 = vsub.f32 %v2763, %v3738
        %v4242 = vsub.f32 %v2412, %v3739
        %v4243 = vsub.f32 %v2414, %v3739
        %v4244 = vsub.f32 %v2765, %v3739
        %v4245 = vsub.f32 %v2767, %v3739
        %v4246 = vsub.f32 %v2418, %v3740
        %v4247 = vsub.f32 %v2420, %v3740
        %v4248 = vsub.f32 %v2771, %v3740
        %v4249 = vsub.f32 %v2773, %v3740
        %v4250 = vsub.f32 %v2422, %v3741
        %v4251 = vsub.f32 %v2424, %v3741
        %v4252 = vsub.f32 %v2775, %v3741
        %v4253 = vsub.f32 %v2777, %v3741
        %v4254 = vadd.f32 %v3934, 1e-05
        %v4255 = vadd.f32 %v3935, 1e-05
        %v4256 = vadd.f32 %v3936, 1e-05
        %v4257 = vadd.f32 %v3937, 1e-05
        %v4258 = vadd.f32 %v3938, 1e-05
        %v4259 = vadd.f32 %v3939, 1e-05
        %v4260 = vadd.f32 %v3940, 1e-05
        %v4261 = vadd.f32 %v3941, 1e-05
        %v4262 = vadd.f32 %v3942, 1e-05
        %v4263 = vadd.f32 %v3943, 1e-05
        %v4264 = vadd.f32 %v3944, 1e-05
        %v4265 = vadd.f32 %v3945, 1e-05
        %v4266 = vadd.f32 %v3946, 1e-05
        %v4267 = vadd.f32 %v3947, 1e-05
        %v4268 = vadd.f32 %v3948, 1e-05
        %v4269 = vadd.f32 %v3949, 1e-05
        %v4270 = vadd.f32 %v3950, 1e-05
        %v4271 = vadd.f32 %v3951, 1e-05
        %v4272 = vadd.f32 %v3952, 1e-05
        %v4273 = vadd.f32 %v3953, 1e-05
        %v4274 = vadd.f32 %v3954, 1e-05
        %v4275 = vadd.f32 %v3955, 1e-05
        %v4276 = vadd.f32 %v3956, 1e-05
        %v4277 = vadd.f32 %v3957, 1e-05
        %v4278 = vadd.f32 %v3958, 1e-05
        %v4279 = vadd.f32 %v3959, 1e-05
        %v4280 = vadd.f32 %v3960, 1e-05
        %v4281 = vadd.f32 %v3961, 1e-05
        %v4282 = vadd.f32 %v3962, 1e-05
        %v4283 = vadd.f32 %v3963, 1e-05
        %v4284 = vadd.f32 %v3964, 1e-05
        %v4285 = vadd.f32 %v3965, 1e-05
        %v4286 = vadd.f32 %v3966, 1e-05
        %v4287 = vadd.f32 %v3967, 1e-05
        %v4288 = vadd.f32 %v3968, 1e-05
        %v4289 = vadd.f32 %v3969, 1e-05
        %v4290 = vadd.f32 %v3970, 1e-05
        %v4291 = vadd.f32 %v3971, 1e-05
        %v4292 = vadd.f32 %v3972, 1e-05
        %v4293 = vadd.f32 %v3973, 1e-05
        %v4294 = vadd.f32 %v3974, 1e-05
        %v4295 = vadd.f32 %v3975, 1e-05
        %v4296 = vadd.f32 %v3976, 1e-05
        %v4297 = vadd.f32 %v3977, 1e-05
        %v4298 = vadd.f32 %v3978, 1e-05
        %v4299 = vadd.f32 %v3979, 1e-05
        %v4300 = vadd.f32 %v3980, 1e-05
        %v4301 = vadd.f32 %v3981, 1e-05
        %v4302 = vadd.f32 %v3982, 1e-05
        %v4303 = vadd.f32 %v3983, 1e-05
        %v4304 = vadd.f32 %v3984, 1e-05
        %v4305 = vadd.f32 %v3985, 1e-05
        %v4306 = vadd.f32 %v3986, 1e-05
        %v4307 = vadd.f32 %v3987, 1e-05
        %v4308 = vadd.f32 %v3988, 1e-05
        %v4309 = vadd.f32 %v3989, 1e-05
        %v4310 = vadd.f32 %v3990, 1e-05
        %v4311 = vadd.f32 %v3991, 1e-05
        %v4312 = vadd.f32 %v3992, 1e-05
        %v4313 = vadd.f32 %v3993, 1e-05
        %v4314 = vadd.f32 %v3994, 1e-05
        %v4315 = vadd.f32 %v3995, 1e-05
        %v4316 = vadd.f32 %v3996, 1e-05
        %v4317 = vadd.f32 %v3997, 1e-05
        %v4318 = vrsqrt.pop %v4254
        %v4319 = vrsqrt.pop %v4255
        %v4320 = vrsqrt.pop %v4256
        %v4321 = vrsqrt.pop %v4257
        %v4322 = vrsqrt.pop %v4258
        %v4323 = vrsqrt.pop %v4259
        %v4324 = vrsqrt.pop %v4260
        %v4325 = vrsqrt.pop %v4261
        %v4326 = vrsqrt.pop %v4262
        %v4327 = vrsqrt.pop %v4263
        %v4328 = vrsqrt.pop %v4264
        %v4329 = vrsqrt.pop %v4265
        %v4330 = vrsqrt.pop %v4266
        %v4331 = vrsqrt.pop %v4267
        %v4332 = vrsqrt.pop %v4268
        %v4333 = vrsqrt.pop %v4269
        %v4334 = vrsqrt.pop %v4270
        %v4335 = vrsqrt.pop %v4271
        %v4336 = vrsqrt.pop %v4272
        %v4337 = vrsqrt.pop %v4273
        %v4338 = vrsqrt.pop %v4274
        %v4339 = vrsqrt.pop %v4275
        %v4340 = vrsqrt.pop %v4276
        %v4341 = vrsqrt.pop %v4277
        %v4342 = vrsqrt.pop %v4278
        %v4343 = vrsqrt.pop %v4279
        %v4344 = vrsqrt.pop %v4280
        %v4345 = vrsqrt.pop %v4281
        %v4346 = vrsqrt.pop %v4282
        %v4347 = vrsqrt.pop %v4283
        %v4348 = vrsqrt.pop %v4284
        %v4349 = vrsqrt.pop %v4285
        %v4350 = vrsqrt.pop %v4286
        %v4351 = vrsqrt.pop %v4287
        %v4352 = vrsqrt.pop %v4288
        %v4353 = vrsqrt.pop %v4289
        %v4354 = vrsqrt.pop %v4290
        %v4355 = vrsqrt.pop %v4291
        %v4356 = vrsqrt.pop %v4292
        %v4357 = vrsqrt.pop %v4293
        %v4358 = vrsqrt.pop %v4294
        %v4359 = vrsqrt.pop %v4295
        %v4360 = vrsqrt.pop %v4296
        %v4361 = vrsqrt.pop %v4297
        %v4362 = vrsqrt.pop %v4298
        %v4363 = vrsqrt.pop %v4299
        %v4364 = vrsqrt.pop %v4300
        %v4365 = vrsqrt.pop %v4301
        %v4366 = vrsqrt.pop %v4302
        %v4367 = vrsqrt.pop %v4303
        %v4368 = vrsqrt.pop %v4304
        %v4369 = vrsqrt.pop %v4305
        %v4370 = vrsqrt.pop %v4306
        %v4371 = vrsqrt.pop %v4307
        %v4372 = vrsqrt.pop %v4308
        %v4373 = vrsqrt.pop %v4309
        %v4374 = vrsqrt.pop %v4310
        %v4375 = vrsqrt.pop %v4311
        %v4376 = vrsqrt.pop %v4312
        %v4377 = vrsqrt.pop %v4313
        %v4378 = vrsqrt.pop %v4314
        %v4379 = vrsqrt.pop %v4315
        %v4380 = vrsqrt.pop %v4316
        %v4381 = vrsqrt.pop %v4317
        %v4382 = vmul.f32 %v3998, %v4318
        %v4383 = vmul.f32 %v3999, %v4318
        %v4384 = vmul.f32 %v4000, %v4318
        %v4385 = vmul.f32 %v4001, %v4318
        %v4386 = vmul.f32 %v4002, %v4319
        %v4387 = vmul.f32 %v4003, %v4319
        %v4388 = vmul.f32 %v4004, %v4319
        %v4389 = vmul.f32 %v4005, %v4319
        %v4390 = vmul.f32 %v4006, %v4320
        %v4391 = vmul.f32 %v4007, %v4320
        %v4392 = vmul.f32 %v4008, %v4320
        %v4393 = vmul.f32 %v4009, %v4320
        %v4394 = vmul.f32 %v4010, %v4321
        %v4395 = vmul.f32 %v4011, %v4321
        %v4396 = vmul.f32 %v4012, %v4321
        %v4397 = vmul.f32 %v4013, %v4321
        %v4398 = vmul.f32 %v4014, %v4322
        %v4399 = vmul.f32 %v4015, %v4322
        %v4400 = vmul.f32 %v4016, %v4322
        %v4401 = vmul.f32 %v4017, %v4322
        %v4402 = vmul.f32 %v4018, %v4323
        %v4403 = vmul.f32 %v4019, %v4323
        %v4404 = vmul.f32 %v4020, %v4323
        %v4405 = vmul.f32 %v4021, %v4323
        %v4406 = vmul.f32 %v4022, %v4324
        %v4407 = vmul.f32 %v4023, %v4324
        %v4408 = vmul.f32 %v4024, %v4324
        %v4409 = vmul.f32 %v4025, %v4324
        %v4410 = vmul.f32 %v4026, %v4325
        %v4411 = vmul.f32 %v4027, %v4325
        %v4412 = vmul.f32 %v4028, %v4325
        %v4413 = vmul.f32 %v4029, %v4325
        %v4414 = vmul.f32 %v4030, %v4326
        %v4415 = vmul.f32 %v4031, %v4326
        %v4416 = vmul.f32 %v4032, %v4326
        %v4417 = vmul.f32 %v4033, %v4326
        %v4418 = vmul.f32 %v4034, %v4327
        %v4419 = vmul.f32 %v4035, %v4327
        %v4420 = vmul.f32 %v4036, %v4327
        %v4421 = vmul.f32 %v4037, %v4327
        %v4422 = vmul.f32 %v4038, %v4328
        %v4423 = vmul.f32 %v4039, %v4328
        %v4424 = vmul.f32 %v4040, %v4328
        %v4425 = vmul.f32 %v4041, %v4328
        %v4426 = vmul.f32 %v4042, %v4329
        %v4427 = vmul.f32 %v4043, %v4329
        %v4428 = vmul.f32 %v4044, %v4329
        %v4429 = vmul.f32 %v4045, %v4329
        %v4430 = vmul.f32 %v4046, %v4330
        %v4431 = vmul.f32 %v4047, %v4330
        %v4432 = vmul.f32 %v4048, %v4330
        %v4433 = vmul.f32 %v4049, %v4330
        %v4434 = vmul.f32 %v4050, %v4331
        %v4435 = vmul.f32 %v4051, %v4331
        %v4436 = vmul.f32 %v4052, %v4331
        %v4437 = vmul.f32 %v4053, %v4331
        %v4438 = vmul.f32 %v4054, %v4332
        %v4439 = vmul.f32 %v4055, %v4332
        %v4440 = vmul.f32 %v4056, %v4332
        %v4441 = vmul.f32 %v4057, %v4332
        %v4442 = vmul.f32 %v4058, %v4333
        %v4443 = vmul.f32 %v4059, %v4333
        %v4444 = vmul.f32 %v4060, %v4333
        %v4445 = vmul.f32 %v4061, %v4333
        %v4446 = vmul.f32 %v4062, %v4334
        %v4447 = vmul.f32 %v4063, %v4334
        %v4448 = vmul.f32 %v4064, %v4334
        %v4449 = vmul.f32 %v4065, %v4334
        %v4450 = vmul.f32 %v4066, %v4335
        %v4451 = vmul.f32 %v4067, %v4335
        %v4452 = vmul.f32 %v4068, %v4335
        %v4453 = vmul.f32 %v4069, %v4335
        %v4454 = vmul.f32 %v4070, %v4336
        %v4455 = vmul.f32 %v4071, %v4336
        %v4456 = vmul.f32 %v4072, %v4336
        %v4457 = vmul.f32 %v4073, %v4336
        %v4458 = vmul.f32 %v4074, %v4337
        %v4459 = vmul.f32 %v4075, %v4337
        %v4460 = vmul.f32 %v4076, %v4337
        %v4461 = vmul.f32 %v4077, %v4337
        %v4462 = vmul.f32 %v4078, %v4338
        %v4463 = vmul.f32 %v4079, %v4338
        %v4464 = vmul.f32 %v4080, %v4338
        %v4465 = vmul.f32 %v4081, %v4338
        %v4466 = vmul.f32 %v4082, %v4339
        %v4467 = vmul.f32 %v4083, %v4339
        %v4468 = vmul.f32 %v4084, %v4339
        %v4469 = vmul.f32 %v4085, %v4339
        %v4470 = vmul.f32 %v4086, %v4340
        %v4471 = vmul.f32 %v4087, %v4340
        %v4472 = vmul.f32 %v4088, %v4340
        %v4473 = vmul.f32 %v4089, %v4340
        %v4474 = vmul.f32 %v4090, %v4341
        %v4475 = vmul.f32 %v4091, %v4341
        %v4476 = vmul.f32 %v4092, %v4341
        %v4477 = vmul.f32 %v4093, %v4341
        %v4478 = vmul.f32 %v4094, %v4342
        %v4479 = vmul.f32 %v4095, %v4342
        %v4480 = vmul.f32 %v4096, %v4342
        %v4481 = vmul.f32 %v4097, %v4342
        %v4482 = vmul.f32 %v4098, %v4343
        %v4483 = vmul.f32 %v4099, %v4343
        %v4484 = vmul.f32 %v4100, %v4343
        %v4485 = vmul.f32 %v4101, %v4343
        %v4486 = vmul.f32 %v4102, %v4344
        %v4487 = vmul.f32 %v4103, %v4344
        %v4488 = vmul.f32 %v4104, %v4344
        %v4489 = vmul.f32 %v4105, %v4344
        %v4490 = vmul.f32 %v4106, %v4345
        %v4491 = vmul.f32 %v4107, %v4345
        %v4492 = vmul.f32 %v4108, %v4345
        %v4493 = vmul.f32 %v4109, %v4345
        %v4494 = vmul.f32 %v4110, %v4346
        %v4495 = vmul.f32 %v4111, %v4346
        %v4496 = vmul.f32 %v4112, %v4346
        %v4497 = vmul.f32 %v4113, %v4346
        %v4498 = vmul.f32 %v4114, %v4347
        %v4499 = vmul.f32 %v4115, %v4347
        %v4500 = vmul.f32 %v4116, %v4347
        %v4501 = vmul.f32 %v4117, %v4347
        %v4502 = vmul.f32 %v4118, %v4348
        %v4503 = vmul.f32 %v4119, %v4348
        %v4504 = vmul.f32 %v4120, %v4348
        %v4505 = vmul.f32 %v4121, %v4348
        %v4506 = vmul.f32 %v4122, %v4349
        %v4507 = vmul.f32 %v4123, %v4349
        %v4508 = vmul.f32 %v4124, %v4349
        %v4509 = vmul.f32 %v4125, %v4349
        %v4510 = vmul.f32 %v4126, %v4350
        %v4511 = vmul.f32 %v4127, %v4350
        %v4512 = vmul.f32 %v4128, %v4350
        %v4513 = vmul.f32 %v4129, %v4350
        %v4514 = vmul.f32 %v4130, %v4351
        %v4515 = vmul.f32 %v4131, %v4351
        %v4516 = vmul.f32 %v4132, %v4351
        %v4517 = vmul.f32 %v4133, %v4351
        %v4518 = vmul.f32 %v4134, %v4352
        %v4519 = vmul.f32 %v4135, %v4352
        %v4520 = vmul.f32 %v4136, %v4352
        %v4521 = vmul.f32 %v4137, %v4352
        %v4522 = vmul.f32 %v4138, %v4353
        %v4523 = vmul.f32 %v4139, %v4353
        %v4524 = vmul.f32 %v4140, %v4353
        %v4525 = vmul.f32 %v4141, %v4353
        %v4526 = vmul.f32 %v4142, %v4354
        %v4527 = vmul.f32 %v4143, %v4354
        %v4528 = vmul.f32 %v4144, %v4354
        %v4529 = vmul.f32 %v4145, %v4354
        %v4530 = vmul.f32 %v4146, %v4355
        %v4531 = vmul.f32 %v4147, %v4355
        %v4532 = vmul.f32 %v4148, %v4355
        %v4533 = vmul.f32 %v4149, %v4355
        %v4534 = vmul.f32 %v4150, %v4356
        %v4535 = vmul.f32 %v4151, %v4356
        %v4536 = vmul.f32 %v4152, %v4356
        %v4537 = vmul.f32 %v4153, %v4356
        %v4538 = vmul.f32 %v4154, %v4357
        %v4539 = vmul.f32 %v4155, %v4357
        %v4540 = vmul.f32 %v4156, %v4357
        %v4541 = vmul.f32 %v4157, %v4357
        %v4542 = vmul.f32 %v4158, %v4358
        %v4543 = vmul.f32 %v4159, %v4358
        %v4544 = vmul.f32 %v4160, %v4358
        %v4545 = vmul.f32 %v4161, %v4358
        %v4546 = vmul.f32 %v4162, %v4359
        %v4547 = vmul.f32 %v4163, %v4359
        %v4548 = vmul.f32 %v4164, %v4359
        %v4549 = vmul.f32 %v4165, %v4359
        %v4550 = vmul.f32 %v4166, %v4360
        %v4551 = vmul.f32 %v4167, %v4360
        %v4552 = vmul.f32 %v4168, %v4360
        %v4553 = vmul.f32 %v4169, %v4360
        %v4554 = vmul.f32 %v4170, %v4361
        %v4555 = vmul.f32 %v4171, %v4361
        %v4556 = vmul.f32 %v4172, %v4361
        %v4557 = vmul.f32 %v4173, %v4361
        %v4558 = vmul.f32 %v4174, %v4362
        %v4559 = vmul.f32 %v4175, %v4362
        %v4560 = vmul.f32 %v4176, %v4362
        %v4561 = vmul.f32 %v4177, %v4362
        %v4562 = vmul.f32 %v4178, %v4363
        %v4563 = vmul.f32 %v4179, %v4363
        %v4564 = vmul.f32 %v4180, %v4363
        %v4565 = vmul.f32 %v4181, %v4363
        %v4566 = vmul.f32 %v4182, %v4364
        %v4567 = vmul.f32 %v4183, %v4364
        %v4568 = vmul.f32 %v4184, %v4364
        %v4569 = vmul.f32 %v4185, %v4364
        %v4570 = vmul.f32 %v4186, %v4365
        %v4571 = vmul.f32 %v4187, %v4365
        %v4572 = vmul.f32 %v4188, %v4365
        %v4573 = vmul.f32 %v4189, %v4365
        %v4574 = vmul.f32 %v4190, %v4366
        %v4575 = vmul.f32 %v4191, %v4366
        %v4576 = vmul.f32 %v4192, %v4366
        %v4577 = vmul.f32 %v4193, %v4366
        %v4578 = vmul.f32 %v4194, %v4367
        %v4579 = vmul.f32 %v4195, %v4367
        %v4580 = vmul.f32 %v4196, %v4367
        %v4581 = vmul.f32 %v4197, %v4367
        %v4582 = vmul.f32 %v4198, %v4368
        %v4583 = vmul.f32 %v4199, %v4368
        %v4584 = vmul.f32 %v4200, %v4368
        %v4585 = vmul.f32 %v4201, %v4368
        %v4586 = vmul.f32 %v4202, %v4369
        %v4587 = vmul.f32 %v4203, %v4369
        %v4588 = vmul.f32 %v4204, %v4369
        %v4589 = vmul.f32 %v4205, %v4369
        %v4590 = vmul.f32 %v4206, %v4370
        %v4591 = vmul.f32 %v4207, %v4370
        %v4592 = vmul.f32 %v4208, %v4370
        %v4593 = vmul.f32 %v4209, %v4370
        %v4594 = vmul.f32 %v4210, %v4371
        %v4595 = vmul.f32 %v4211, %v4371
        %v4596 = vmul.f32 %v4212, %v4371
        %v4597 = vmul.f32 %v4213, %v4371
        %v4598 = vmul.f32 %v4214, %v4372
        %v4599 = vmul.f32 %v4215, %v4372
        %v4600 = vmul.f32 %v4216, %v4372
        %v4601 = vmul.f32 %v4217, %v4372
        %v4602 = vmul.f32 %v4218, %v4373
        %v4603 = vmul.f32 %v4219, %v4373
        %v4604 = vmul.f32 %v4220, %v4373
        %v4605 = vmul.f32 %v4221, %v4373
        %v4606 = vmul.f32 %v4222, %v4374
        %v4607 = vmul.f32 %v4223, %v4374
        %v4608 = vmul.f32 %v4224, %v4374
        %v4609 = vmul.f32 %v4225, %v4374
        %v4610 = vmul.f32 %v4226, %v4375
        %v4611 = vmul.f32 %v4227, %v4375
        %v4612 = vmul.f32 %v4228, %v4375
        %v4613 = vmul.f32 %v4229, %v4375
        %v4614 = vmul.f32 %v4230, %v4376
        %v4615 = vmul.f32 %v4231, %v4376
        %v4616 = vmul.f32 %v4232, %v4376
        %v4617 = vmul.f32 %v4233, %v4376
        %v4618 = vmul.f32 %v4234, %v4377
        %v4619 = vmul.f32 %v4235, %v4377
        %v4620 = vmul.f32 %v4236, %v4377
        %v4621 = vmul.f32 %v4237, %v4377
        %v4622 = vmul.f32 %v4238, %v4378
        %v4623 = vmul.f32 %v4239, %v4378
        %v4624 = vmul.f32 %v4240, %v4378
        %v4625 = vmul.f32 %v4241, %v4378
        %v4626 = vmul.f32 %v4242, %v4379
        %v4627 = vmul.f32 %v4243, %v4379
        %v4628 = vmul.f32 %v4244, %v4379
        %v4629 = vmul.f32 %v4245, %v4379
        %v4630 = vmul.f32 %v4246, %v4380
        %v4631 = vmul.f32 %v4247, %v4380
        %v4632 = vmul.f32 %v4248, %v4380
        %v4633 = vmul.f32 %v4249, %v4380
        %v4634 = vmul.f32 %v4250, %v4381
        %v4635 = vmul.f32 %v4251, %v4381
        %v4636 = vmul.f32 %v4252, %v4381
        %v4637 = vmul.f32 %v4253, %v4381
        %v4639 = vlaneseq
        %v4640 = vshrl.u32 %v4639, 7
        %v4641 = vsub.s32 0, %v4640
        %v4642 = vrot.slane %v2779, %v4641
        %v4643 = vlaneseq
        %v4644 = vshrl.u32 %v4643, 7
        %v4645 = vsub.s32 1, %v4644
        %v4646 = vrot.slane %v2779, %v4645
        %v4647 = vlaneseq
        %v4648 = vshrl.u32 %v4647, 7
        %v4649 = vsub.s32 2, %v4648
        %v4650 = vrot.slane %v2779, %v4649
        %v4651 = vlaneseq
        %v4652 = vshrl.u32 %v4651, 7
        %v4653 = vsub.s32 3, %v4652
        %v4654 = vrot.slane %v2779, %v4653
        %v4659 = vmul.f32 %v4382, %v4642
        %v4660 = vmul.f32 %v4383, %v4646
        %v4661 = vmul.f32 %v4384, %v4650
        %v4662 = vmul.f32 %v4385, %v4654
        %v4663 = vmul.f32 %v4386, %v4642
        %v4664 = vmul.f32 %v4387, %v4646
        %v4665 = vmul.f32 %v4388, %v4650
        %v4666 = vmul.f32 %v4389, %v4654
        %v4667 = vmul.f32 %v4390, %v4642
        %v4668 = vmul.f32 %v4391, %v4646
        %v4669 = vmul.f32 %v4392, %v4650
        %v4670 = vmul.f32 %v4393, %v4654
        %v4671 = vmul.f32 %v4394, %v4642
        %v4672 = vmul.f32 %v4395, %v4646
        %v4673 = vmul.f32 %v4396, %v4650
        %v4674 = vmul.f32 %v4397, %v4654
        %v4675 = vmul.f32 %v4398, %v4642
        %v4676 = vmul.f32 %v4399, %v4646
        %v4677 = vmul.f32 %v4400, %v4650
        %v4678 = vmul.f32 %v4401, %v4654
        %v4679 = vmul.f32 %v4402, %v4642
        %v4680 = vmul.f32 %v4403, %v4646
        %v4681 = vmul.f32 %v4404, %v4650
        %v4682 = vmul.f32 %v4405, %v4654
        %v4683 = vmul.f32 %v4406, %v4642
        %v4684 = vmul.f32 %v4407, %v4646
        %v4685 = vmul.f32 %v4408, %v4650
        %v4686 = vmul.f32 %v4409, %v4654
        %v4687 = vmul.f32 %v4410, %v4642
        %v4688 = vmul.f32 %v4411, %v4646
        %v4689 = vmul.f32 %v4412, %v4650
        %v4690 = vmul.f32 %v4413, %v4654
        %v4691 = vmul.f32 %v4414, %v4642
        %v4692 = vmul.f32 %v4415, %v4646
        %v4693 = vmul.f32 %v4416, %v4650
        %v4694 = vmul.f32 %v4417, %v4654
        %v4695 = vmul.f32 %v4418, %v4642
        %v4696 = vmul.f32 %v4419, %v4646
        %v4697 = vmul.f32 %v4420, %v4650
        %v4698 = vmul.f32 %v4421, %v4654
        %v4699 = vmul.f32 %v4422, %v4642
        %v4700 = vmul.f32 %v4423, %v4646
        %v4701 = vmul.f32 %v4424, %v4650
        %v4702 = vmul.f32 %v4425, %v4654
        %v4703 = vmul.f32 %v4426, %v4642
        %v4704 = vmul.f32 %v4427, %v4646
        %v4705 = vmul.f32 %v4428, %v4650
        %v4706 = vmul.f32 %v4429, %v4654
        %v4707 = vmul.f32 %v4430, %v4642
        %v4708 = vmul.f32 %v4431, %v4646
        %v4709 = vmul.f32 %v4432, %v4650
        %v4710 = vmul.f32 %v4433, %v4654
        %v4711 = vmul.f32 %v4434, %v4642
        %v4712 = vmul.f32 %v4435, %v4646
        %v4713 = vmul.f32 %v4436, %v4650
        %v4714 = vmul.f32 %v4437, %v4654
        %v4715 = vmul.f32 %v4438, %v4642
        %v4716 = vmul.f32 %v4439, %v4646
        %v4717 = vmul.f32 %v4440, %v4650
        %v4718 = vmul.f32 %v4441, %v4654
        %v4719 = vmul.f32 %v4442, %v4642
        %v4720 = vmul.f32 %v4443, %v4646
        %v4721 = vmul.f32 %v4444, %v4650
        %v4722 = vmul.f32 %v4445, %v4654
        %v4723 = vmul.f32 %v4446, %v4642
        %v4724 = vmul.f32 %v4447, %v4646
        %v4725 = vmul.f32 %v4448, %v4650
        %v4726 = vmul.f32 %v4449, %v4654
        %v4727 = vmul.f32 %v4450, %v4642
        %v4728 = vmul.f32 %v4451, %v4646
        %v4729 = vmul.f32 %v4452, %v4650
        %v4730 = vmul.f32 %v4453, %v4654
        %v4731 = vmul.f32 %v4454, %v4642
        %v4732 = vmul.f32 %v4455, %v4646
        %v4733 = vmul.f32 %v4456, %v4650
        %v4734 = vmul.f32 %v4457, %v4654
        %v4735 = vmul.f32 %v4458, %v4642
        %v4736 = vmul.f32 %v4459, %v4646
        %v4737 = vmul.f32 %v4460, %v4650
        %v4738 = vmul.f32 %v4461, %v4654
        %v4739 = vmul.f32 %v4462, %v4642
        %v4740 = vmul.f32 %v4463, %v4646
        %v4741 = vmul.f32 %v4464, %v4650
        %v4742 = vmul.f32 %v4465, %v4654
        %v4743 = vmul.f32 %v4466, %v4642
        %v4744 = vmul.f32 %v4467, %v4646
        %v4745 = vmul.f32 %v4468, %v4650
        %v4746 = vmul.f32 %v4469, %v4654
        %v4747 = vmul.f32 %v4470, %v4642
        %v4748 = vmul.f32 %v4471, %v4646
        %v4749 = vmul.f32 %v4472, %v4650
        %v4750 = vmul.f32 %v4473, %v4654
        %v4751 = vmul.f32 %v4474, %v4642
        %v4752 = vmul.f32 %v4475, %v4646
        %v4753 = vmul.f32 %v4476, %v4650
        %v4754 = vmul.f32 %v4477, %v4654
        %v4755 = vmul.f32 %v4478, %v4642
        %v4756 = vmul.f32 %v4479, %v4646
        %v4757 = vmul.f32 %v4480, %v4650
        %v4758 = vmul.f32 %v4481, %v4654
        %v4759 = vmul.f32 %v4482, %v4642
        %v4760 = vmul.f32 %v4483, %v4646
        %v4761 = vmul.f32 %v4484, %v4650
        %v4762 = vmul.f32 %v4485, %v4654
        %v4763 = vmul.f32 %v4486, %v4642
        %v4764 = vmul.f32 %v4487, %v4646
        %v4765 = vmul.f32 %v4488, %v4650
        %v4766 = vmul.f32 %v4489, %v4654
        %v4767 = vmul.f32 %v4490, %v4642
        %v4768 = vmul.f32 %v4491, %v4646
        %v4769 = vmul.f32 %v4492, %v4650
        %v4770 = vmul.f32 %v4493, %v4654
        %v4771 = vmul.f32 %v4494, %v4642
        %v4772 = vmul.f32 %v4495, %v4646
        %v4773 = vmul.f32 %v4496, %v4650
        %v4774 = vmul.f32 %v4497, %v4654
        %v4775 = vmul.f32 %v4498, %v4642
        %v4776 = vmul.f32 %v4499, %v4646
        %v4777 = vmul.f32 %v4500, %v4650
        %v4778 = vmul.f32 %v4501, %v4654
        %v4779 = vmul.f32 %v4502, %v4642
        %v4780 = vmul.f32 %v4503, %v4646
        %v4781 = vmul.f32 %v4504, %v4650
        %v4782 = vmul.f32 %v4505, %v4654
        %v4783 = vmul.f32 %v4506, %v4642
        %v4784 = vmul.f32 %v4507, %v4646
        %v4785 = vmul.f32 %v4508, %v4650
        %v4786 = vmul.f32 %v4509, %v4654
        %v4787 = vmul.f32 %v4510, %v4642
        %v4788 = vmul.f32 %v4511, %v4646
        %v4789 = vmul.f32 %v4512, %v4650
        %v4790 = vmul.f32 %v4513, %v4654
        %v4791 = vmul.f32 %v4514, %v4642
        %v4792 = vmul.f32 %v4515, %v4646
        %v4793 = vmul.f32 %v4516, %v4650
        %v4794 = vmul.f32 %v4517, %v4654
        %v4795 = vmul.f32 %v4518, %v4642
        %v4796 = vmul.f32 %v4519, %v4646
        %v4797 = vmul.f32 %v4520, %v4650
        %v4798 = vmul.f32 %v4521, %v4654
        %v4799 = vmul.f32 %v4522, %v4642
        %v4800 = vmul.f32 %v4523, %v4646
        %v4801 = vmul.f32 %v4524, %v4650
        %v4802 = vmul.f32 %v4525, %v4654
        %v4803 = vmul.f32 %v4526, %v4642
        %v4804 = vmul.f32 %v4527, %v4646
        %v4805 = vmul.f32 %v4528, %v4650
        %v4806 = vmul.f32 %v4529, %v4654
        %v4807 = vmul.f32 %v4530, %v4642
        %v4808 = vmul.f32 %v4531, %v4646
        %v4809 = vmul.f32 %v4532, %v4650
        %v4810 = vmul.f32 %v4533, %v4654
        %v4811 = vmul.f32 %v4534, %v4642
        %v4812 = vmul.f32 %v4535, %v4646
        %v4813 = vmul.f32 %v4536, %v4650
        %v4814 = vmul.f32 %v4537, %v4654
        %v4815 = vmul.f32 %v4538, %v4642
        %v4816 = vmul.f32 %v4539, %v4646
        %v4817 = vmul.f32 %v4540, %v4650
        %v4818 = vmul.f32 %v4541, %v4654
        %v4819 = vmul.f32 %v4542, %v4642
        %v4820 = vmul.f32 %v4543, %v4646
        %v4821 = vmul.f32 %v4544, %v4650
        %v4822 = vmul.f32 %v4545, %v4654
        %v4823 = vmul.f32 %v4546, %v4642
        %v4824 = vmul.f32 %v4547, %v4646
        %v4825 = vmul.f32 %v4548, %v4650
        %v4826 = vmul.f32 %v4549, %v4654
        %v4827 = vmul.f32 %v4550, %v4642
        %v4828 = vmul.f32 %v4551, %v4646
        %v4829 = vmul.f32 %v4552, %v4650
        %v4830 = vmul.f32 %v4553, %v4654
        %v4831 = vmul.f32 %v4554, %v4642
        %v4832 = vmul.f32 %v4555, %v4646
        %v4833 = vmul.f32 %v4556, %v4650
        %v4834 = vmul.f32 %v4557, %v4654
        %v4835 = vmul.f32 %v4558, %v4642
        %v4836 = vmul.f32 %v4559, %v4646
        %v4837 = vmul.f32 %v4560, %v4650
        %v4838 = vmul.f32 %v4561, %v4654
        %v4839 = vmul.f32 %v4562, %v4642
        %v4840 = vmul.f32 %v4563, %v4646
        %v4841 = vmul.f32 %v4564, %v4650
        %v4842 = vmul.f32 %v4565, %v4654
        %v4843 = vmul.f32 %v4566, %v4642
        %v4844 = vmul.f32 %v4567, %v4646
        %v4845 = vmul.f32 %v4568, %v4650
        %v4846 = vmul.f32 %v4569, %v4654
        %v4847 = vmul.f32 %v4570, %v4642
        %v4848 = vmul.f32 %v4571, %v4646
        %v4849 = vmul.f32 %v4572, %v4650
        %v4850 = vmul.f32 %v4573, %v4654
        %v4851 = vmul.f32 %v4574, %v4642
        %v4852 = vmul.f32 %v4575, %v4646
        %v4853 = vmul.f32 %v4576, %v4650
        %v4854 = vmul.f32 %v4577, %v4654
        %v4855 = vmul.f32 %v4578, %v4642
        %v4856 = vmul.f32 %v4579, %v4646
        %v4857 = vmul.f32 %v4580, %v4650
        %v4858 = vmul.f32 %v4581, %v4654
        %v4859 = vmul.f32 %v4582, %v4642
        %v4860 = vmul.f32 %v4583, %v4646
        %v4861 = vmul.f32 %v4584, %v4650
        %v4862 = vmul.f32 %v4585, %v4654
        %v4863 = vmul.f32 %v4586, %v4642
        %v4864 = vmul.f32 %v4587, %v4646
        %v4865 = vmul.f32 %v4588, %v4650
        %v4866 = vmul.f32 %v4589, %v4654
        %v4867 = vmul.f32 %v4590, %v4642
        %v4868 = vmul.f32 %v4591, %v4646
        %v4869 = vmul.f32 %v4592, %v4650
        %v4870 = vmul.f32 %v4593, %v4654
        %v4871 = vmul.f32 %v4594, %v4642
        %v4872 = vmul.f32 %v4595, %v4646
        %v4873 = vmul.f32 %v4596, %v4650
        %v4874 = vmul.f32 %v4597, %v4654
        %v4875 = vmul.f32 %v4598, %v4642
        %v4876 = vmul.f32 %v4599, %v4646
        %v4877 = vmul.f32 %v4600, %v4650
        %v4878 = vmul.f32 %v4601, %v4654
        %v4879 = vmul.f32 %v4602, %v4642
        %v4880 = vmul.f32 %v4603, %v4646
        %v4881 = vmul.f32 %v4604, %v4650
        %v4882 = vmul.f32 %v4605, %v4654
        %v4883 = vmul.f32 %v4606, %v4642
        %v4884 = vmul.f32 %v4607, %v4646
        %v4885 = vmul.f32 %v4608, %v4650
        %v4886 = vmul.f32 %v4609, %v4654
        %v4887 = vmul.f32 %v4610, %v4642
        %v4888 = vmul.f32 %v4611, %v4646
        %v4889 = vmul.f32 %v4612, %v4650
        %v4890 = vmul.f32 %v4613, %v4654
        %v4891 = vmul.f32 %v4614, %v4642
        %v4892 = vmul.f32 %v4615, %v4646
        %v4893 = vmul.f32 %v4616, %v4650
        %v4894 = vmul.f32 %v4617, %v4654
        %v4895 = vmul.f32 %v4618, %v4642
        %v4896 = vmul.f32 %v4619, %v4646
        %v4897 = vmul.f32 %v4620, %v4650
        %v4898 = vmul.f32 %v4621, %v4654
        %v4899 = vmul.f32 %v4622, %v4642
        %v4900 = vmul.f32 %v4623, %v4646
        %v4901 = vmul.f32 %v4624, %v4650
        %v4902 = vmul.f32 %v4625, %v4654
        %v4903 = vmul.f32 %v4626, %v4642
        %v4904 = vmul.f32 %v4627, %v4646
        %v4905 = vmul.f32 %v4628, %v4650
        %v4906 = vmul.f32 %v4629, %v4654
        %v4907 = vmul.f32 %v4630, %v4642
        %v4908 = vmul.f32 %v4631, %v4646
        %v4909 = vmul.f32 %v4632, %v4650
        %v4910 = vmul.f32 %v4633, %v4654
        %v4911 = vmul.f32 %v4634, %v4642
        %v4912 = vmul.f32 %v4635, %v4646
        %v4913 = vmul.f32 %v4636, %v4650
        %v4914 = vmul.f32 %v4637, %v4654
        %v4916 = vlaneseq
        %v4917 = vshrl.u32 %v4916, 7
        %v4918 = vsub.s32 0, %v4917
        %v4919 = vrot.slane %v2781, %v4918
        %v4920 = vlaneseq
        %v4921 = vshrl.u32 %v4920, 7
        %v4922 = vsub.s32 1, %v4921
        %v4923 = vrot.slane %v2781, %v4922
        %v4924 = vlaneseq
        %v4925 = vshrl.u32 %v4924, 7
        %v4926 = vsub.s32 2, %v4925
        %v4927 = vrot.slane %v2781, %v4926
        %v4928 = vlaneseq
        %v4929 = vshrl.u32 %v4928, 7
        %v4930 = vsub.s32 3, %v4929
        %v4931 = vrot.slane %v2781, %v4930
        %v4936 = vadd.f32 %v4659, %v4919
        %v4937 = vadd.f32 %v4660, %v4923
        %v4938 = vadd.f32 %v4661, %v4927
        %v4939 = vadd.f32 %v4662, %v4931
        %v4940 = vadd.f32 %v4663, %v4919
        %v4941 = vadd.f32 %v4664, %v4923
        %v4942 = vadd.f32 %v4665, %v4927
        %v4943 = vadd.f32 %v4666, %v4931
        %v4944 = vadd.f32 %v4667, %v4919
        %v4945 = vadd.f32 %v4668, %v4923
        %v4946 = vadd.f32 %v4669, %v4927
        %v4947 = vadd.f32 %v4670, %v4931
        %v4948 = vadd.f32 %v4671, %v4919
        %v4949 = vadd.f32 %v4672, %v4923
        %v4950 = vadd.f32 %v4673, %v4927
        %v4951 = vadd.f32 %v4674, %v4931
        %v4952 = vadd.f32 %v4675, %v4919
        %v4953 = vadd.f32 %v4676, %v4923
        %v4954 = vadd.f32 %v4677, %v4927
        %v4955 = vadd.f32 %v4678, %v4931
        %v4956 = vadd.f32 %v4679, %v4919
        %v4957 = vadd.f32 %v4680, %v4923
        %v4958 = vadd.f32 %v4681, %v4927
        %v4959 = vadd.f32 %v4682, %v4931
        %v4960 = vadd.f32 %v4683, %v4919
        %v4961 = vadd.f32 %v4684, %v4923
        %v4962 = vadd.f32 %v4685, %v4927
        %v4963 = vadd.f32 %v4686, %v4931
        %v4964 = vadd.f32 %v4687, %v4919
        %v4965 = vadd.f32 %v4688, %v4923
        %v4966 = vadd.f32 %v4689, %v4927
        %v4967 = vadd.f32 %v4690, %v4931
        %v4968 = vadd.f32 %v4691, %v4919
        %v4969 = vadd.f32 %v4692, %v4923
        %v4970 = vadd.f32 %v4693, %v4927
        %v4971 = vadd.f32 %v4694, %v4931
        %v4972 = vadd.f32 %v4695, %v4919
        %v4973 = vadd.f32 %v4696, %v4923
        %v4974 = vadd.f32 %v4697, %v4927
        %v4975 = vadd.f32 %v4698, %v4931
        %v4976 = vadd.f32 %v4699, %v4919
        %v4977 = vadd.f32 %v4700, %v4923
        %v4978 = vadd.f32 %v4701, %v4927
        %v4979 = vadd.f32 %v4702, %v4931
        %v4980 = vadd.f32 %v4703, %v4919
        %v4981 = vadd.f32 %v4704, %v4923
        %v4982 = vadd.f32 %v4705, %v4927
        %v4983 = vadd.f32 %v4706, %v4931
        %v4984 = vadd.f32 %v4707, %v4919
        %v4985 = vadd.f32 %v4708, %v4923
        %v4986 = vadd.f32 %v4709, %v4927
        %v4987 = vadd.f32 %v4710, %v4931
        %v4988 = vadd.f32 %v4711, %v4919
        %v4989 = vadd.f32 %v4712, %v4923
        %v4990 = vadd.f32 %v4713, %v4927
        %v4991 = vadd.f32 %v4714, %v4931
        %v4992 = vadd.f32 %v4715, %v4919
        %v4993 = vadd.f32 %v4716, %v4923
        %v4994 = vadd.f32 %v4717, %v4927
        %v4995 = vadd.f32 %v4718, %v4931
        %v4996 = vadd.f32 %v4719, %v4919
        %v4997 = vadd.f32 %v4720, %v4923
        %v4998 = vadd.f32 %v4721, %v4927
        %v4999 = vadd.f32 %v4722, %v4931
        %v5000 = vadd.f32 %v4723, %v4919
        %v5001 = vadd.f32 %v4724, %v4923
        %v5002 = vadd.f32 %v4725, %v4927
        %v5003 = vadd.f32 %v4726, %v4931
        %v5004 = vadd.f32 %v4727, %v4919
        %v5005 = vadd.f32 %v4728, %v4923
        %v5006 = vadd.f32 %v4729, %v4927
        %v5007 = vadd.f32 %v4730, %v4931
        %v5008 = vadd.f32 %v4731, %v4919
        %v5009 = vadd.f32 %v4732, %v4923
        %v5010 = vadd.f32 %v4733, %v4927
        %v5011 = vadd.f32 %v4734, %v4931
        %v5012 = vadd.f32 %v4735, %v4919
        %v5013 = vadd.f32 %v4736, %v4923
        %v5014 = vadd.f32 %v4737, %v4927
        %v5015 = vadd.f32 %v4738, %v4931
        %v5016 = vadd.f32 %v4739, %v4919
        %v5017 = vadd.f32 %v4740, %v4923
        %v5018 = vadd.f32 %v4741, %v4927
        %v5019 = vadd.f32 %v4742, %v4931
        %v5020 = vadd.f32 %v4743, %v4919
        %v5021 = vadd.f32 %v4744, %v4923
        %v5022 = vadd.f32 %v4745, %v4927
        %v5023 = vadd.f32 %v4746, %v4931
        %v5024 = vadd.f32 %v4747, %v4919
        %v5025 = vadd.f32 %v4748, %v4923
        %v5026 = vadd.f32 %v4749, %v4927
        %v5027 = vadd.f32 %v4750, %v4931
        %v5028 = vadd.f32 %v4751, %v4919
        %v5029 = vadd.f32 %v4752, %v4923
        %v5030 = vadd.f32 %v4753, %v4927
        %v5031 = vadd.f32 %v4754, %v4931
        %v5032 = vadd.f32 %v4755, %v4919
        %v5033 = vadd.f32 %v4756, %v4923
        %v5034 = vadd.f32 %v4757, %v4927
        %v5035 = vadd.f32 %v4758, %v4931
        %v5036 = vadd.f32 %v4759, %v4919
        %v5037 = vadd.f32 %v4760, %v4923
        %v5038 = vadd.f32 %v4761, %v4927
        %v5039 = vadd.f32 %v4762, %v4931
        %v5040 = vadd.f32 %v4763, %v4919
        %v5041 = vadd.f32 %v4764, %v4923
        %v5042 = vadd.f32 %v4765, %v4927
        %v5043 = vadd.f32 %v4766, %v4931
        %v5044 = vadd.f32 %v4767, %v4919
        %v5045 = vadd.f32 %v4768, %v4923
        %v5046 = vadd.f32 %v4769, %v4927
        %v5047 = vadd.f32 %v4770, %v4931
        %v5048 = vadd.f32 %v4771, %v4919
        %v5049 = vadd.f32 %v4772, %v4923
        %v5050 = vadd.f32 %v4773, %v4927
        %v5051 = vadd.f32 %v4774, %v4931
        %v5052 = vadd.f32 %v4775, %v4919
        %v5053 = vadd.f32 %v4776, %v4923
        %v5054 = vadd.f32 %v4777, %v4927
        %v5055 = vadd.f32 %v4778, %v4931
        %v5056 = vadd.f32 %v4779, %v4919
        %v5057 = vadd.f32 %v4780, %v4923
        %v5058 = vadd.f32 %v4781, %v4927
        %v5059 = vadd.f32 %v4782, %v4931
        %v5060 = vadd.f32 %v4783, %v4919
        %v5061 = vadd.f32 %v4784, %v4923
        %v5062 = vadd.f32 %v4785, %v4927
        %v5063 = vadd.f32 %v4786, %v4931
        %v5064 = vadd.f32 %v4787, %v4919
        %v5065 = vadd.f32 %v4788, %v4923
        %v5066 = vadd.f32 %v4789, %v4927
        %v5067 = vadd.f32 %v4790, %v4931
        %v5068 = vadd.f32 %v4791, %v4919
        %v5069 = vadd.f32 %v4792, %v4923
        %v5070 = vadd.f32 %v4793, %v4927
        %v5071 = vadd.f32 %v4794, %v4931
        %v5072 = vadd.f32 %v4795, %v4919
        %v5073 = vadd.f32 %v4796, %v4923
        %v5074 = vadd.f32 %v4797, %v4927
        %v5075 = vadd.f32 %v4798, %v4931
        %v5076 = vadd.f32 %v4799, %v4919
        %v5077 = vadd.f32 %v4800, %v4923
        %v5078 = vadd.f32 %v4801, %v4927
        %v5079 = vadd.f32 %v4802, %v4931
        %v5080 = vadd.f32 %v4803, %v4919
        %v5081 = vadd.f32 %v4804, %v4923
        %v5082 = vadd.f32 %v4805, %v4927
        %v5083 = vadd.f32 %v4806, %v4931
        %v5084 = vadd.f32 %v4807, %v4919
        %v5085 = vadd.f32 %v4808, %v4923
        %v5086 = vadd.f32 %v4809, %v4927
        %v5087 = vadd.f32 %v4810, %v4931
        %v5088 = vadd.f32 %v4811, %v4919
        %v5089 = vadd.f32 %v4812, %v4923
        %v5090 = vadd.f32 %v4813, %v4927
        %v5091 = vadd.f32 %v4814, %v4931
        %v5092 = vadd.f32 %v4815, %v4919
        %v5093 = vadd.f32 %v4816, %v4923
        %v5094 = vadd.f32 %v4817, %v4927
        %v5095 = vadd.f32 %v4818, %v4931
        %v5096 = vadd.f32 %v4819, %v4919
        %v5097 = vadd.f32 %v4820, %v4923
        %v5098 = vadd.f32 %v4821, %v4927
        %v5099 = vadd.f32 %v4822, %v4931
        %v5100 = vadd.f32 %v4823, %v4919
        %v5101 = vadd.f32 %v4824, %v4923
        %v5102 = vadd.f32 %v4825, %v4927
        %v5103 = vadd.f32 %v4826, %v4931
        %v5104 = vadd.f32 %v4827, %v4919
        %v5105 = vadd.f32 %v4828, %v4923
        %v5106 = vadd.f32 %v4829, %v4927
        %v5107 = vadd.f32 %v4830, %v4931
        %v5108 = vadd.f32 %v4831, %v4919
        %v5109 = vadd.f32 %v4832, %v4923
        %v5110 = vadd.f32 %v4833, %v4927
        %v5111 = vadd.f32 %v4834, %v4931
        %v5112 = vadd.f32 %v4835, %v4919
        %v5113 = vadd.f32 %v4836, %v4923
        %v5114 = vadd.f32 %v4837, %v4927
        %v5115 = vadd.f32 %v4838, %v4931
        %v5116 = vadd.f32 %v4839, %v4919
        %v5117 = vadd.f32 %v4840, %v4923
        %v5118 = vadd.f32 %v4841, %v4927
        %v5119 = vadd.f32 %v4842, %v4931
        %v5120 = vadd.f32 %v4843, %v4919
        %v5121 = vadd.f32 %v4844, %v4923
        %v5122 = vadd.f32 %v4845, %v4927
        %v5123 = vadd.f32 %v4846, %v4931
        %v5124 = vadd.f32 %v4847, %v4919
        %v5125 = vadd.f32 %v4848, %v4923
        %v5126 = vadd.f32 %v4849, %v4927
        %v5127 = vadd.f32 %v4850, %v4931
        %v5128 = vadd.f32 %v4851, %v4919
        %v5129 = vadd.f32 %v4852, %v4923
        %v5130 = vadd.f32 %v4853, %v4927
        %v5131 = vadd.f32 %v4854, %v4931
        %v5132 = vadd.f32 %v4855, %v4919
        %v5133 = vadd.f32 %v4856, %v4923
        %v5134 = vadd.f32 %v4857, %v4927
        %v5135 = vadd.f32 %v4858, %v4931
        %v5136 = vadd.f32 %v4859, %v4919
        %v5137 = vadd.f32 %v4860, %v4923
        %v5138 = vadd.f32 %v4861, %v4927
        %v5139 = vadd.f32 %v4862, %v4931
        %v5140 = vadd.f32 %v4863, %v4919
        %v5141 = vadd.f32 %v4864, %v4923
        %v5142 = vadd.f32 %v4865, %v4927
        %v5143 = vadd.f32 %v4866, %v4931
        %v5144 = vadd.f32 %v4867, %v4919
        %v5145 = vadd.f32 %v4868, %v4923
        %v5146 = vadd.f32 %v4869, %v4927
        %v5147 = vadd.f32 %v4870, %v4931
        %v5148 = vadd.f32 %v4871, %v4919
        %v5149 = vadd.f32 %v4872, %v4923
        %v5150 = vadd.f32 %v4873, %v4927
        %v5151 = vadd.f32 %v4874, %v4931
        %v5152 = vadd.f32 %v4875, %v4919
        %v5153 = vadd.f32 %v4876, %v4923
        %v5154 = vadd.f32 %v4877, %v4927
        %v5155 = vadd.f32 %v4878, %v4931
        %v5156 = vadd.f32 %v4879, %v4919
        %v5157 = vadd.f32 %v4880, %v4923
        %v5158 = vadd.f32 %v4881, %v4927
        %v5159 = vadd.f32 %v4882, %v4931
        %v5160 = vadd.f32 %v4883, %v4919
        %v5161 = vadd.f32 %v4884, %v4923
        %v5162 = vadd.f32 %v4885, %v4927
        %v5163 = vadd.f32 %v4886, %v4931
        %v5164 = vadd.f32 %v4887, %v4919
        %v5165 = vadd.f32 %v4888, %v4923
        %v5166 = vadd.f32 %v4889, %v4927
        %v5167 = vadd.f32 %v4890, %v4931
        %v5168 = vadd.f32 %v4891, %v4919
        %v5169 = vadd.f32 %v4892, %v4923
        %v5170 = vadd.f32 %v4893, %v4927
        %v5171 = vadd.f32 %v4894, %v4931
        %v5172 = vadd.f32 %v4895, %v4919
        %v5173 = vadd.f32 %v4896, %v4923
        %v5174 = vadd.f32 %v4897, %v4927
        %v5175 = vadd.f32 %v4898, %v4931
        %v5176 = vadd.f32 %v4899, %v4919
        %v5177 = vadd.f32 %v4900, %v4923
        %v5178 = vadd.f32 %v4901, %v4927
        %v5179 = vadd.f32 %v4902, %v4931
        %v5180 = vadd.f32 %v4903, %v4919
        %v5181 = vadd.f32 %v4904, %v4923
        %v5182 = vadd.f32 %v4905, %v4927
        %v5183 = vadd.f32 %v4906, %v4931
        %v5184 = vadd.f32 %v4907, %v4919
        %v5185 = vadd.f32 %v4908, %v4923
        %v5186 = vadd.f32 %v4909, %v4927
        %v5187 = vadd.f32 %v4910, %v4931
        %v5188 = vadd.f32 %v4911, %v4919
        %v5189 = vadd.f32 %v4912, %v4923
        %v5190 = vadd.f32 %v4913, %v4927
        %v5191 = vadd.f32 %v4914, %v4931
        %v5192 = vmax.f32 %v4936, 0.0
        %v5193 = vmax.f32 %v4937, 0.0
        %v5194 = vmax.f32 %v4938, 0.0
        %v5195 = vmax.f32 %v4939, 0.0
        %v5196 = vmax.f32 %v4940, 0.0
        %v5197 = vmax.f32 %v4941, 0.0
        %v5198 = vmax.f32 %v4942, 0.0
        %v5199 = vmax.f32 %v4943, 0.0
        %v5200 = vmax.f32 %v4944, 0.0
        %v5201 = vmax.f32 %v4945, 0.0
        %v5202 = vmax.f32 %v4946, 0.0
        %v5203 = vmax.f32 %v4947, 0.0
        %v5204 = vmax.f32 %v4948, 0.0
        %v5205 = vmax.f32 %v4949, 0.0
        %v5206 = vmax.f32 %v4950, 0.0
        %v5207 = vmax.f32 %v4951, 0.0
        %v5208 = vmax.f32 %v4952, 0.0
        %v5209 = vmax.f32 %v4953, 0.0
        %v5210 = vmax.f32 %v4954, 0.0
        %v5211 = vmax.f32 %v4955, 0.0
        %v5212 = vmax.f32 %v4956, 0.0
        %v5213 = vmax.f32 %v4957, 0.0
        %v5214 = vmax.f32 %v4958, 0.0
        %v5215 = vmax.f32 %v4959, 0.0
        %v5216 = vmax.f32 %v4960, 0.0
        %v5217 = vmax.f32 %v4961, 0.0
        %v5218 = vmax.f32 %v4962, 0.0
        %v5219 = vmax.f32 %v4963, 0.0
        %v5220 = vmax.f32 %v4964, 0.0
        %v5221 = vmax.f32 %v4965, 0.0
        %v5222 = vmax.f32 %v4966, 0.0
        %v5223 = vmax.f32 %v4967, 0.0
        %v5224 = vmax.f32 %v4968, 0.0
        %v5225 = vmax.f32 %v4969, 0.0
        %v5226 = vmax.f32 %v4970, 0.0
        %v5227 = vmax.f32 %v4971, 0.0
        %v5228 = vmax.f32 %v4972, 0.0
        %v5229 = vmax.f32 %v4973, 0.0
        %v5230 = vmax.f32 %v4974, 0.0
        %v5231 = vmax.f32 %v4975, 0.0
        %v5232 = vmax.f32 %v4976, 0.0
        %v5233 = vmax.f32 %v4977, 0.0
        %v5234 = vmax.f32 %v4978, 0.0
        %v5235 = vmax.f32 %v4979, 0.0
        %v5236 = vmax.f32 %v4980, 0.0
        %v5237 = vmax.f32 %v4981, 0.0
        %v5238 = vmax.f32 %v4982, 0.0
        %v5239 = vmax.f32 %v4983, 0.0
        %v5240 = vmax.f32 %v4984, 0.0
        %v5241 = vmax.f32 %v4985, 0.0
        %v5242 = vmax.f32 %v4986, 0.0
        %v5243 = vmax.f32 %v4987, 0.0
        %v5244 = vmax.f32 %v4988, 0.0
        %v5245 = vmax.f32 %v4989, 0.0
        %v5246 = vmax.f32 %v4990, 0.0
        %v5247 = vmax.f32 %v4991, 0.0
        %v5248 = vmax.f32 %v4992, 0.0
        %v5249 = vmax.f32 %v4993, 0.0
        %v5250 = vmax.f32 %v4994, 0.0
        %v5251 = vmax.f32 %v4995, 0.0
        %v5252 = vmax.f32 %v4996, 0.0
        %v5253 = vmax.f32 %v4997, 0.0
        %v5254 = vmax.f32 %v4998, 0.0
        %v5255 = vmax.f32 %v4999, 0.0
        %v5256 = vmax.f32 %v5000, 0.0
        %v5257 = vmax.f32 %v5001, 0.0
        %v5258 = vmax.f32 %v5002, 0.0
        %v5259 = vmax.f32 %v5003, 0.0
        %v5260 = vmax.f32 %v5004, 0.0
        %v5261 = vmax.f32 %v5005, 0.0
        %v5262 = vmax.f32 %v5006, 0.0
        %v5263 = vmax.f32 %v5007, 0.0
        %v5264 = vmax.f32 %v5008, 0.0
        %v5265 = vmax.f32 %v5009, 0.0
        %v5266 = vmax.f32 %v5010, 0.0
        %v5267 = vmax.f32 %v5011, 0.0
        %v5268 = vmax.f32 %v5012, 0.0
        %v5269 = vmax.f32 %v5013, 0.0
        %v5270 = vmax.f32 %v5014, 0.0
        %v5271 = vmax.f32 %v5015, 0.0
        %v5272 = vmax.f32 %v5016, 0.0
        %v5273 = vmax.f32 %v5017, 0.0
        %v5274 = vmax.f32 %v5018, 0.0
        %v5275 = vmax.f32 %v5019, 0.0
        %v5276 = vmax.f32 %v5020, 0.0
        %v5277 = vmax.f32 %v5021, 0.0
        %v5278 = vmax.f32 %v5022, 0.0
        %v5279 = vmax.f32 %v5023, 0.0
        %v5280 = vmax.f32 %v5024, 0.0
        %v5281 = vmax.f32 %v5025, 0.0
        %v5282 = vmax.f32 %v5026, 0.0
        %v5283 = vmax.f32 %v5027, 0.0
        %v5284 = vmax.f32 %v5028, 0.0
        %v5285 = vmax.f32 %v5029, 0.0
        %v5286 = vmax.f32 %v5030, 0.0
        %v5287 = vmax.f32 %v5031, 0.0
        %v5288 = vmax.f32 %v5032, 0.0
        %v5289 = vmax.f32 %v5033, 0.0
        %v5290 = vmax.f32 %v5034, 0.0
        %v5291 = vmax.f32 %v5035, 0.0
        %v5292 = vmax.f32 %v5036, 0.0
        %v5293 = vmax.f32 %v5037, 0.0
        %v5294 = vmax.f32 %v5038, 0.0
        %v5295 = vmax.f32 %v5039, 0.0
        %v5296 = vmax.f32 %v5040, 0.0
        %v5297 = vmax.f32 %v5041, 0.0
        %v5298 = vmax.f32 %v5042, 0.0
        %v5299 = vmax.f32 %v5043, 0.0
        %v5300 = vmax.f32 %v5044, 0.0
        %v5301 = vmax.f32 %v5045, 0.0
        %v5302 = vmax.f32 %v5046, 0.0
        %v5303 = vmax.f32 %v5047, 0.0
        %v5304 = vmax.f32 %v5048, 0.0
        %v5305 = vmax.f32 %v5049, 0.0
        %v5306 = vmax.f32 %v5050, 0.0
        %v5307 = vmax.f32 %v5051, 0.0
        %v5308 = vmax.f32 %v5052, 0.0
        %v5309 = vmax.f32 %v5053, 0.0
        %v5310 = vmax.f32 %v5054, 0.0
        %v5311 = vmax.f32 %v5055, 0.0
        %v5312 = vmax.f32 %v5056, 0.0
        %v5313 = vmax.f32 %v5057, 0.0
        %v5314 = vmax.f32 %v5058, 0.0
        %v5315 = vmax.f32 %v5059, 0.0
        %v5316 = vmax.f32 %v5060, 0.0
        %v5317 = vmax.f32 %v5061, 0.0
        %v5318 = vmax.f32 %v5062, 0.0
        %v5319 = vmax.f32 %v5063, 0.0
        %v5320 = vmax.f32 %v5064, 0.0
        %v5321 = vmax.f32 %v5065, 0.0
        %v5322 = vmax.f32 %v5066, 0.0
        %v5323 = vmax.f32 %v5067, 0.0
        %v5324 = vmax.f32 %v5068, 0.0
        %v5325 = vmax.f32 %v5069, 0.0
        %v5326 = vmax.f32 %v5070, 0.0
        %v5327 = vmax.f32 %v5071, 0.0
        %v5328 = vmax.f32 %v5072, 0.0
        %v5329 = vmax.f32 %v5073, 0.0
        %v5330 = vmax.f32 %v5074, 0.0
        %v5331 = vmax.f32 %v5075, 0.0
        %v5332 = vmax.f32 %v5076, 0.0
        %v5333 = vmax.f32 %v5077, 0.0
        %v5334 = vmax.f32 %v5078, 0.0
        %v5335 = vmax.f32 %v5079, 0.0
        %v5336 = vmax.f32 %v5080, 0.0
        %v5337 = vmax.f32 %v5081, 0.0
        %v5338 = vmax.f32 %v5082, 0.0
        %v5339 = vmax.f32 %v5083, 0.0
        %v5340 = vmax.f32 %v5084, 0.0
        %v5341 = vmax.f32 %v5085, 0.0
        %v5342 = vmax.f32 %v5086, 0.0
        %v5343 = vmax.f32 %v5087, 0.0
        %v5344 = vmax.f32 %v5088, 0.0
        %v5345 = vmax.f32 %v5089, 0.0
        %v5346 = vmax.f32 %v5090, 0.0
        %v5347 = vmax.f32 %v5091, 0.0
        %v5348 = vmax.f32 %v5092, 0.0
        %v5349 = vmax.f32 %v5093, 0.0
        %v5350 = vmax.f32 %v5094, 0.0
        %v5351 = vmax.f32 %v5095, 0.0
        %v5352 = vmax.f32 %v5096, 0.0
        %v5353 = vmax.f32 %v5097, 0.0
        %v5354 = vmax.f32 %v5098, 0.0
        %v5355 = vmax.f32 %v5099, 0.0
        %v5356 = vmax.f32 %v5100, 0.0
        %v5357 = vmax.f32 %v5101, 0.0
        %v5358 = vmax.f32 %v5102, 0.0
        %v5359 = vmax.f32 %v5103, 0.0
        %v5360 = vmax.f32 %v5104, 0.0
        %v5361 = vmax.f32 %v5105, 0.0
        %v5362 = vmax.f32 %v5106, 0.0
        %v5363 = vmax.f32 %v5107, 0.0
        %v5364 = vmax.f32 %v5108, 0.0
        %v5365 = vmax.f32 %v5109, 0.0
        %v5366 = vmax.f32 %v5110, 0.0
        %v5367 = vmax.f32 %v5111, 0.0
        %v5368 = vmax.f32 %v5112, 0.0
        %v5369 = vmax.f32 %v5113, 0.0
        %v5370 = vmax.f32 %v5114, 0.0
        %v5371 = vmax.f32 %v5115, 0.0
        %v5372 = vmax.f32 %v5116, 0.0
        %v5373 = vmax.f32 %v5117, 0.0
        %v5374 = vmax.f32 %v5118, 0.0
        %v5375 = vmax.f32 %v5119, 0.0
        %v5376 = vmax.f32 %v5120, 0.0
        %v5377 = vmax.f32 %v5121, 0.0
        %v5378 = vmax.f32 %v5122, 0.0
        %v5379 = vmax.f32 %v5123, 0.0
        %v5380 = vmax.f32 %v5124, 0.0
        %v5381 = vmax.f32 %v5125, 0.0
        %v5382 = vmax.f32 %v5126, 0.0
        %v5383 = vmax.f32 %v5127, 0.0
        %v5384 = vmax.f32 %v5128, 0.0
        %v5385 = vmax.f32 %v5129, 0.0
        %v5386 = vmax.f32 %v5130, 0.0
        %v5387 = vmax.f32 %v5131, 0.0
        %v5388 = vmax.f32 %v5132, 0.0
        %v5389 = vmax.f32 %v5133, 0.0
        %v5390 = vmax.f32 %v5134, 0.0
        %v5391 = vmax.f32 %v5135, 0.0
        %v5392 = vmax.f32 %v5136, 0.0
        %v5393 = vmax.f32 %v5137, 0.0
        %v5394 = vmax.f32 %v5138, 0.0
        %v5395 = vmax.f32 %v5139, 0.0
        %v5396 = vmax.f32 %v5140, 0.0
        %v5397 = vmax.f32 %v5141, 0.0
        %v5398 = vmax.f32 %v5142, 0.0
        %v5399 = vmax.f32 %v5143, 0.0
        %v5400 = vmax.f32 %v5144, 0.0
        %v5401 = vmax.f32 %v5145, 0.0
        %v5402 = vmax.f32 %v5146, 0.0
        %v5403 = vmax.f32 %v5147, 0.0
        %v5404 = vmax.f32 %v5148, 0.0
        %v5405 = vmax.f32 %v5149, 0.0
        %v5406 = vmax.f32 %v5150, 0.0
        %v5407 = vmax.f32 %v5151, 0.0
        %v5408 = vmax.f32 %v5152, 0.0
        %v5409 = vmax.f32 %v5153, 0.0
        %v5410 = vmax.f32 %v5154, 0.0
        %v5411 = vmax.f32 %v5155, 0.0
        %v5412 = vmax.f32 %v5156, 0.0
        %v5413 = vmax.f32 %v5157, 0.0
        %v5414 = vmax.f32 %v5158, 0.0
        %v5415 = vmax.f32 %v5159, 0.0
        %v5416 = vmax.f32 %v5160, 0.0
        %v5417 = vmax.f32 %v5161, 0.0
        %v5418 = vmax.f32 %v5162, 0.0
        %v5419 = vmax.f32 %v5163, 0.0
        %v5420 = vmax.f32 %v5164, 0.0
        %v5421 = vmax.f32 %v5165, 0.0
        %v5422 = vmax.f32 %v5166, 0.0
        %v5423 = vmax.f32 %v5167, 0.0
        %v5424 = vmax.f32 %v5168, 0.0
        %v5425 = vmax.f32 %v5169, 0.0
        %v5426 = vmax.f32 %v5170, 0.0
        %v5427 = vmax.f32 %v5171, 0.0
        %v5428 = vmax.f32 %v5172, 0.0
        %v5429 = vmax.f32 %v5173, 0.0
        %v5430 = vmax.f32 %v5174, 0.0
        %v5431 = vmax.f32 %v5175, 0.0
        %v5432 = vmax.f32 %v5176, 0.0
        %v5433 = vmax.f32 %v5177, 0.0
        %v5434 = vmax.f32 %v5178, 0.0
        %v5435 = vmax.f32 %v5179, 0.0
        %v5436 = vmax.f32 %v5180, 0.0
        %v5437 = vmax.f32 %v5181, 0.0
        %v5438 = vmax.f32 %v5182, 0.0
        %v5439 = vmax.f32 %v5183, 0.0
        %v5440 = vmax.f32 %v5184, 0.0
        %v5441 = vmax.f32 %v5185, 0.0
        %v5442 = vmax.f32 %v5186, 0.0
        %v5443 = vmax.f32 %v5187, 0.0
        %v5444 = vmax.f32 %v5188, 0.0
        %v5445 = vmax.f32 %v5189, 0.0
        %v5446 = vmax.f32 %v5190, 0.0
        %v5447 = vmax.f32 %v5191, 0.0
        %v5448 = vpack.c.bf16 %v5196, %v5192
        %v5449 = vpack.c.bf16 %v5197, %v5193
        %v5450 = vpack.c.bf16 %v5198, %v5194
        %v5451 = vpack.c.bf16 %v5199, %v5195
        %v5452 = vpack.c.bf16 %v5204, %v5200
        %v5453 = vpack.c.bf16 %v5205, %v5201
        %v5454 = vpack.c.bf16 %v5206, %v5202
        %v5455 = vpack.c.bf16 %v5207, %v5203
        %v5456 = vpack.c.bf16 %v5212, %v5208
        %v5457 = vpack.c.bf16 %v5213, %v5209
        %v5458 = vpack.c.bf16 %v5214, %v5210
        %v5459 = vpack.c.bf16 %v5215, %v5211
        %v5460 = vpack.c.bf16 %v5220, %v5216
        %v5461 = vpack.c.bf16 %v5221, %v5217
        %v5462 = vpack.c.bf16 %v5222, %v5218
        %v5463 = vpack.c.bf16 %v5223, %v5219
        %v5464 = vpack.c.bf16 %v5228, %v5224
        %v5465 = vpack.c.bf16 %v5229, %v5225
        %v5466 = vpack.c.bf16 %v5230, %v5226
        %v5467 = vpack.c.bf16 %v5231, %v5227
        %v5468 = vpack.c.bf16 %v5236, %v5232
        %v5469 = vpack.c.bf16 %v5237, %v5233
        %v5470 = vpack.c.bf16 %v5238, %v5234
        %v5471 = vpack.c.bf16 %v5239, %v5235
        %v5472 = vpack.c.bf16 %v5244, %v5240
        %v5473 = vpack.c.bf16 %v5245, %v5241
        %v5474 = vpack.c.bf16 %v5246, %v5242
        %v5475 = vpack.c.bf16 %v5247, %v5243
        %v5476 = vpack.c.bf16 %v5252, %v5248
        %v5477 = vpack.c.bf16 %v5253, %v5249
        %v5478 = vpack.c.bf16 %v5254, %v5250
        %v5479 = vpack.c.bf16 %v5255, %v5251
        %v5480 = vpack.c.bf16 %v5260, %v5256
        %v5481 = vpack.c.bf16 %v5261, %v5257
        %v5482 = vpack.c.bf16 %v5262, %v5258
        %v5483 = vpack.c.bf16 %v5263, %v5259
        %v5484 = vpack.c.bf16 %v5268, %v5264
        %v5485 = vpack.c.bf16 %v5269, %v5265
        %v5486 = vpack.c.bf16 %v5270, %v5266
        %v5487 = vpack.c.bf16 %v5271, %v5267
        %v5488 = vpack.c.bf16 %v5276, %v5272
        %v5489 = vpack.c.bf16 %v5277, %v5273
        %v5490 = vpack.c.bf16 %v5278, %v5274
        %v5491 = vpack.c.bf16 %v5279, %v5275
        %v5492 = vpack.c.bf16 %v5284, %v5280
        %v5493 = vpack.c.bf16 %v5285, %v5281
        %v5494 = vpack.c.bf16 %v5286, %v5282
        %v5495 = vpack.c.bf16 %v5287, %v5283
        %v5496 = vpack.c.bf16 %v5292, %v5288
        %v5497 = vpack.c.bf16 %v5293, %v5289
        %v5498 = vpack.c.bf16 %v5294, %v5290
        %v5499 = vpack.c.bf16 %v5295, %v5291
        %v5500 = vpack.c.bf16 %v5300, %v5296
        %v5501 = vpack.c.bf16 %v5301, %v5297
        %v5502 = vpack.c.bf16 %v5302, %v5298
        %v5503 = vpack.c.bf16 %v5303, %v5299
        %v5504 = vpack.c.bf16 %v5308, %v5304
        %v5505 = vpack.c.bf16 %v5309, %v5305
        %v5506 = vpack.c.bf16 %v5310, %v5306
        %v5507 = vpack.c.bf16 %v5311, %v5307
        %v5508 = vpack.c.bf16 %v5316, %v5312
        %v5509 = vpack.c.bf16 %v5317, %v5313
        %v5510 = vpack.c.bf16 %v5318, %v5314
        %v5511 = vpack.c.bf16 %v5319, %v5315
        %v5512 = vpack.c.bf16 %v5324, %v5320
        %v5513 = vpack.c.bf16 %v5325, %v5321
        %v5514 = vpack.c.bf16 %v5326, %v5322
        %v5515 = vpack.c.bf16 %v5327, %v5323
        %v5516 = vpack.c.bf16 %v5332, %v5328
        %v5517 = vpack.c.bf16 %v5333, %v5329
        %v5518 = vpack.c.bf16 %v5334, %v5330
        %v5519 = vpack.c.bf16 %v5335, %v5331
        %v5520 = vpack.c.bf16 %v5340, %v5336
        %v5521 = vpack.c.bf16 %v5341, %v5337
        %v5522 = vpack.c.bf16 %v5342, %v5338
        %v5523 = vpack.c.bf16 %v5343, %v5339
        %v5524 = vpack.c.bf16 %v5348, %v5344
        %v5525 = vpack.c.bf16 %v5349, %v5345
        %v5526 = vpack.c.bf16 %v5350, %v5346
        %v5527 = vpack.c.bf16 %v5351, %v5347
        %v5528 = vpack.c.bf16 %v5356, %v5352
        %v5529 = vpack.c.bf16 %v5357, %v5353
        %v5530 = vpack.c.bf16 %v5358, %v5354
        %v5531 = vpack.c.bf16 %v5359, %v5355
        %v5532 = vpack.c.bf16 %v5364, %v5360
        %v5533 = vpack.c.bf16 %v5365, %v5361
        %v5534 = vpack.c.bf16 %v5366, %v5362
        %v5535 = vpack.c.bf16 %v5367, %v5363
        %v5536 = vpack.c.bf16 %v5372, %v5368
        %v5537 = vpack.c.bf16 %v5373, %v5369
        %v5538 = vpack.c.bf16 %v5374, %v5370
        %v5539 = vpack.c.bf16 %v5375, %v5371
        %v5540 = vpack.c.bf16 %v5380, %v5376
        %v5541 = vpack.c.bf16 %v5381, %v5377
        %v5542 = vpack.c.bf16 %v5382, %v5378
        %v5543 = vpack.c.bf16 %v5383, %v5379
        %v5544 = vpack.c.bf16 %v5388, %v5384
        %v5545 = vpack.c.bf16 %v5389, %v5385
        %v5546 = vpack.c.bf16 %v5390, %v5386
        %v5547 = vpack.c.bf16 %v5391, %v5387
        %v5548 = vpack.c.bf16 %v5396, %v5392
        %v5549 = vpack.c.bf16 %v5397, %v5393
        %v5550 = vpack.c.bf16 %v5398, %v5394
        %v5551 = vpack.c.bf16 %v5399, %v5395
        %v5552 = vpack.c.bf16 %v5404, %v5400
        %v5553 = vpack.c.bf16 %v5405, %v5401
        %v5554 = vpack.c.bf16 %v5406, %v5402
        %v5555 = vpack.c.bf16 %v5407, %v5403
        %v5556 = vpack.c.bf16 %v5412, %v5408
        %v5557 = vpack.c.bf16 %v5413, %v5409
        %v5558 = vpack.c.bf16 %v5414, %v5410
        %v5559 = vpack.c.bf16 %v5415, %v5411
        %v5560 = vpack.c.bf16 %v5420, %v5416
        %v5561 = vpack.c.bf16 %v5421, %v5417
        %v5562 = vpack.c.bf16 %v5422, %v5418
        %v5563 = vpack.c.bf16 %v5423, %v5419
        %v5564 = vpack.c.bf16 %v5428, %v5424
        %v5565 = vpack.c.bf16 %v5429, %v5425
        %v5566 = vpack.c.bf16 %v5430, %v5426
        %v5567 = vpack.c.bf16 %v5431, %v5427
        %v5568 = vpack.c.bf16 %v5436, %v5432
        %v5569 = vpack.c.bf16 %v5437, %v5433
        %v5570 = vpack.c.bf16 %v5438, %v5434
        %v5571 = vpack.c.bf16 %v5439, %v5435
        %v5572 = vpack.c.bf16 %v5444, %v5440
        %v5573 = vpack.c.bf16 %v5445, %v5441
        %v5574 = vpack.c.bf16 %v5446, %v5442
        %v5575 = vpack.c.bf16 %v5447, %v5443
        %v5576 = vld [vmem:[#allocation8] sm:$0xf]
        %v5577 = vld [vmem:[#allocation8 + $0x4] sm:$0xf]
        %v5578 = vld [vmem:[#allocation8 + $0x8] sm:$0xf]
        %v5579 = vld [vmem:[#allocation8 + $0xc] sm:$0xf]
        %v5580 = vld [vmem:[#allocation8 + $0x10] sm:$0xf]
        %v5581 = vld [vmem:[#allocation8 + $0x14] sm:$0xf]
        %v5582 = vld [vmem:[#allocation8 + $0x18] sm:$0xf]
        %v5583 = vld [vmem:[#allocation8 + $0x1c] sm:$0xf]
        %v5584 = vld [vmem:[#allocation8 + $0x20] sm:$0xf]
        %v5585 = vld [vmem:[#allocation8 + $0x24] sm:$0xf]
        %v5586 = vld [vmem:[#allocation8 + $0x28] sm:$0xf]
        %v5587 = vld [vmem:[#allocation8 + $0x2c] sm:$0xf]
        %v5588 = vld [vmem:[#allocation8 + $0x30] sm:$0xf]
        %v5589 = vld [vmem:[#allocation8 + $0x34] sm:$0xf]
        %v5590 = vld [vmem:[#allocation8 + $0x38] sm:$0xf]
        %v5591 = vld [vmem:[#allocation8 + $0x3c] sm:$0xf]
        %v5592 = vld [vmem:[#allocation8 + $0x40] sm:$0xf]
        %v5593 = vld [vmem:[#allocation8 + $0x44] sm:$0xf]
        %v5594 = vld [vmem:[#allocation8 + $0x48] sm:$0xf]
        %v5595 = vld [vmem:[#allocation8 + $0x4c] sm:$0xf]
        %v5596 = vld [vmem:[#allocation8 + $0x50] sm:$0xf]
        %v5597 = vld [vmem:[#allocation8 + $0x54] sm:$0xf]
        %v5598 = vld [vmem:[#allocation8 + $0x58] sm:$0xf]
        %v5599 = vld [vmem:[#allocation8 + $0x5c] sm:$0xf]
        %v5600 = vld [vmem:[#allocation8 + $0x60] sm:$0xf]
        %v5601 = vld [vmem:[#allocation8 + $0x64] sm:$0xf]
        %v5602 = vld [vmem:[#allocation8 + $0x68] sm:$0xf]
        %v5603 = vld [vmem:[#allocation8 + $0x6c] sm:$0xf]
        %v5604 = vld [vmem:[#allocation8 + $0x70] sm:$0xf]
        %v5605 = vld [vmem:[#allocation8 + $0x74] sm:$0xf]
        %v5606 = vld [vmem:[#allocation8 + $0x78] sm:$0xf]
        %v5607 = vld [vmem:[#allocation8 + $0x7c] sm:$0xf]
        %v5608 = vld [vmem:[#allocation8 + $0x80] sm:$0xf]
        %v5609 = vld [vmem:[#allocation8 + $0x84] sm:$0xf]
        %v5610 = vld [vmem:[#allocation8 + $0x88] sm:$0xf]
        %v5611 = vld [vmem:[#allocation8 + $0x8c] sm:$0xf]
        %v5612 = vld [vmem:[#allocation8 + $0x90] sm:$0xf]
        %v5613 = vld [vmem:[#allocation8 + $0x94] sm:$0xf]
        %v5614 = vld [vmem:[#allocation8 + $0x98] sm:$0xf]
        %v5615 = vld [vmem:[#allocation8 + $0x9c] sm:$0xf]
        %v5616 = vld [vmem:[#allocation8 + $0xa0] sm:$0xf]
        %v5617 = vld [vmem:[#allocation8 + $0xa4] sm:$0xf]
        %v5618 = vld [vmem:[#allocation8 + $0xa8] sm:$0xf]
        %v5619 = vld [vmem:[#allocation8 + $0xac] sm:$0xf]
        %v5620 = vld [vmem:[#allocation8 + $0xb0] sm:$0xf]
        %v5621 = vld [vmem:[#allocation8 + $0xb4] sm:$0xf]
        %v5622 = vld [vmem:[#allocation8 + $0xb8] sm:$0xf]
        %v5623 = vld [vmem:[#allocation8 + $0xbc] sm:$0xf]
        %v5624 = vld [vmem:[#allocation8 + $0xc0] sm:$0xf]
        %v5625 = vld [vmem:[#allocation8 + $0xc4] sm:$0xf]
        %v5626 = vld [vmem:[#allocation8 + $0xc8] sm:$0xf]
        %v5627 = vld [vmem:[#allocation8 + $0xcc] sm:$0xf]
        %v5628 = vld [vmem:[#allocation8 + $0xd0] sm:$0xf]
        %v5629 = vld [vmem:[#allocation8 + $0xd4] sm:$0xf]
        %v5630 = vld [vmem:[#allocation8 + $0xd8] sm:$0xf]
        %v5631 = vld [vmem:[#allocation8 + $0xdc] sm:$0xf]
        %v5632 = vld [vmem:[#allocation8 + $0xe0] sm:$0xf]
        %v5633 = vld [vmem:[#allocation8 + $0xe4] sm:$0xf]
        %v5634 = vld [vmem:[#allocation8 + $0xe8] sm:$0xf]
        %v5635 = vld [vmem:[#allocation8 + $0xec] sm:$0xf]
        %v5636 = vld [vmem:[#allocation8 + $0xf0] sm:$0xf]
        %v5637 = vld [vmem:[#allocation8 + $0xf4] sm:$0xf]
        %v5638 = vld [vmem:[#allocation8 + $0xf8] sm:$0xf]
        %v5639 = vld [vmem:[#allocation8 + $0xfc] sm:$0xf]
        %v5640 = vld [vmem:[%s8] sm:$0x1]
        %v5642 = vlaneseq
        %v5643 = vshrl.u32 %v5642, 7
        %v5644 = vsub.s32 0, %v5643
        %v5645 = vrot.slane %v5640, %v5644
        %v5711 = vunpack.c.l.b16 %v5576
        %v5712 = vunpack.c.l.b16 %v5577
        %v5713 = vunpack.c.l.b16 %v5578
        %v5714 = vunpack.c.l.b16 %v5579
        %v5715 = vunpack.c.l.b16 %v5580
        %v5716 = vunpack.c.l.b16 %v5581
        %v5717 = vunpack.c.l.b16 %v5582
        %v5718 = vunpack.c.l.b16 %v5583
        %v5719 = vunpack.c.l.b16 %v5584
        %v5720 = vunpack.c.l.b16 %v5585
        %v5721 = vunpack.c.l.b16 %v5586
        %v5722 = vunpack.c.l.b16 %v5587
        %v5723 = vunpack.c.l.b16 %v5588
        %v5724 = vunpack.c.l.b16 %v5589
        %v5725 = vunpack.c.l.b16 %v5590
        %v5726 = vunpack.c.l.b16 %v5591
        %v5727 = vunpack.c.l.b16 %v5592
        %v5728 = vunpack.c.l.b16 %v5593
        %v5729 = vunpack.c.l.b16 %v5594
        %v5730 = vunpack.c.l.b16 %v5595
        %v5731 = vunpack.c.l.b16 %v5596
        %v5732 = vunpack.c.l.b16 %v5597
        %v5733 = vunpack.c.l.b16 %v5598
        %v5734 = vunpack.c.l.b16 %v5599
        %v5735 = vunpack.c.l.b16 %v5600
        %v5736 = vunpack.c.l.b16 %v5601
        %v5737 = vunpack.c.l.b16 %v5602
        %v5738 = vunpack.c.l.b16 %v5603
        %v5739 = vunpack.c.l.b16 %v5604
        %v5740 = vunpack.c.l.b16 %v5605
        %v5741 = vunpack.c.l.b16 %v5606
        %v5742 = vunpack.c.l.b16 %v5607
        %v5743 = vunpack.c.l.b16 %v5608
        %v5744 = vunpack.c.l.b16 %v5609
        %v5745 = vunpack.c.l.b16 %v5610
        %v5746 = vunpack.c.l.b16 %v5611
        %v5747 = vunpack.c.l.b16 %v5612
        %v5748 = vunpack.c.l.b16 %v5613
        %v5749 = vunpack.c.l.b16 %v5614
        %v5750 = vunpack.c.l.b16 %v5615
        %v5751 = vunpack.c.l.b16 %v5616
        %v5752 = vunpack.c.l.b16 %v5617
        %v5753 = vunpack.c.l.b16 %v5618
        %v5754 = vunpack.c.l.b16 %v5619
        %v5755 = vunpack.c.l.b16 %v5620
        %v5756 = vunpack.c.l.b16 %v5621
        %v5757 = vunpack.c.l.b16 %v5622
        %v5758 = vunpack.c.l.b16 %v5623
        %v5759 = vunpack.c.l.b16 %v5624
        %v5760 = vunpack.c.l.b16 %v5625
        %v5761 = vunpack.c.l.b16 %v5626
        %v5762 = vunpack.c.l.b16 %v5627
        %v5763 = vunpack.c.l.b16 %v5628
        %v5764 = vunpack.c.l.b16 %v5629
        %v5765 = vunpack.c.l.b16 %v5630
        %v5766 = vunpack.c.l.b16 %v5631
        %v5767 = vunpack.c.l.b16 %v5632
        %v5768 = vunpack.c.l.b16 %v5633
        %v5769 = vunpack.c.l.b16 %v5634
        %v5770 = vunpack.c.l.b16 %v5635
        %v5771 = vunpack.c.l.b16 %v5636
        %v5772 = vunpack.c.l.b16 %v5637
        %v5773 = vunpack.c.l.b16 %v5638
        %v5774 = vunpack.c.l.b16 %v5639
        %v5775 = vpack.c.b16 %v5712, %v5711
        %v5776 = vpack.c.b16 %v5714, %v5713
        %v5777 = vpack.c.b16 %v5716, %v5715
        %v5778 = vpack.c.b16 %v5718, %v5717
        %v5779 = vpack.c.b16 %v5720, %v5719
        %v5780 = vpack.c.b16 %v5722, %v5721
        %v5781 = vpack.c.b16 %v5724, %v5723
        %v5782 = vpack.c.b16 %v5726, %v5725
        %v5783 = vpack.c.b16 %v5728, %v5727
        %v5784 = vpack.c.b16 %v5730, %v5729
        %v5785 = vpack.c.b16 %v5732, %v5731
        %v5786 = vpack.c.b16 %v5734, %v5733
        %v5787 = vpack.c.b16 %v5736, %v5735
        %v5788 = vpack.c.b16 %v5738, %v5737
        %v5789 = vpack.c.b16 %v5740, %v5739
        %v5790 = vpack.c.b16 %v5742, %v5741
        %v5791 = vpack.c.b16 %v5744, %v5743
        %v5792 = vpack.c.b16 %v5746, %v5745
        %v5793 = vpack.c.b16 %v5748, %v5747
        %v5794 = vpack.c.b16 %v5750, %v5749
        %v5795 = vpack.c.b16 %v5752, %v5751
        %v5796 = vpack.c.b16 %v5754, %v5753
        %v5797 = vpack.c.b16 %v5756, %v5755
        %v5798 = vpack.c.b16 %v5758, %v5757
        %v5799 = vpack.c.b16 %v5760, %v5759
        %v5800 = vpack.c.b16 %v5762, %v5761
        %v5801 = vpack.c.b16 %v5764, %v5763
        %v5802 = vpack.c.b16 %v5766, %v5765
        %v5803 = vpack.c.b16 %v5768, %v5767
        %v5804 = vpack.c.b16 %v5770, %v5769
        %v5805 = vpack.c.b16 %v5772, %v5771
        %v5806 = vpack.c.b16 %v5774, %v5773
        %5839 = vmatprep.subr.bf16.mxu0 0
        %5840 = vmatpush1.bf16.msra.mxu0 %v5775
        %5841 = vmatprep.subr.bf16.mxu0 0
        %5842 = vmatpush1.bf16.msra.mxu0 %v5776
        %5843 = vmatprep.subr.bf16.mxu0 0
        %5844 = vmatpush1.bf16.msra.mxu0 %v5777
        %5845 = vmatprep.subr.bf16.mxu0 0
        %5846 = vmatpush1.bf16.msra.mxu0 %v5778
        %5847 = vmatprep.subr.bf16.mxu0 0
        %5848 = vmatpush1.bf16.msra.mxu0 %v5779
        %5849 = vmatprep.subr.bf16.mxu0 0
        %5850 = vmatpush1.bf16.msra.mxu0 %v5780
        %5851 = vmatprep.subr.bf16.mxu0 0
        %5852 = vmatpush1.bf16.msra.mxu0 %v5781
        %5853 = vmatprep.subr.bf16.mxu0 0
        %5854 = vmatpush1.bf16.msra.mxu0 %v5782
        %5855 = vmatprep.subr.bf16.mxu0 0
        %5856 = vmatpush1.bf16.msra.mxu0 %v5783
        %5857 = vmatprep.subr.bf16.mxu0 0
        %5858 = vmatpush1.bf16.msra.mxu0 %v5784
        %5859 = vmatprep.subr.bf16.mxu0 0
        %5860 = vmatpush1.bf16.msra.mxu0 %v5785
        %5861 = vmatprep.subr.bf16.mxu0 0
        %5862 = vmatpush1.bf16.msra.mxu0 %v5786
        %5863 = vmatprep.subr.bf16.mxu0 0
        %5864 = vmatpush1.bf16.msra.mxu0 %v5787
        %5865 = vmatprep.subr.bf16.mxu0 0
        %5866 = vmatpush1.bf16.msra.mxu0 %v5788
        %5867 = vmatprep.subr.bf16.mxu0 0
        %5868 = vmatpush1.bf16.msra.mxu0 %v5789
        %5869 = vmatprep.subr.bf16.mxu0 0
        %5870 = vmatpush1.bf16.msra.mxu0 %v5790
        %5871 = vmatprep.mubr.bf16.mxu0 %v5449
        %5872 = vmatmul.mubr.bf16.gmra.mrb[0].mxu0 %v5448
        %v5873 = vpop.f32.mrb[0].mxu0
        %v5874 = vadd.f32 %v5645, %v5873
        %v5875 = vpop.f32.mrb[0].mxu0
        %v5876 = vpop.f32.mrb[0].mxu0
        %v5877 = vadd.f32 %v5645, %v5876
        %v5878 = vpop.f32.mrb[0].mxu0
        %5879 = vmatprep.mubr.bf16.mxu0 %v5453
        %5880 = vmatmul.mubr.bf16.gmra.mrb[0].mxu0 %v5452
        %v5881 = vpop.f32.mrb[0].mxu0
        %v5882 = vadd.f32 %v5645, %v5881
        %v5883 = vpop.f32.mrb[0].mxu0
        %v5884 = vpop.f32.mrb[0].mxu0
        %v5885 = vadd.f32 %v5645, %v5884
        %v5886 = vpop.f32.mrb[0].mxu0
        %5887 = vmatprep.mubr.bf16.mxu0 %v5457
        %5888 = vmatmul.mubr.bf16.gmra.mrb[0].mxu0 %v5456
        %v5889 = vpop.f32.mrb[0].mxu0
        %v5890 = vadd.f32 %v5645, %v5889
        %v5891 = vpop.f32.mrb[0].mxu0
        %v5892 = vpop.f32.mrb[0].mxu0
        %v5893 = vadd.f32 %v5645, %v5892
        %v5894 = vpop.f32.mrb[0].mxu0
        %5895 = vmatprep.mubr.bf16.mxu0 %v5461
        %5896 = vmatmul.mubr.bf16.gmra.mrb[0].mxu0 %v5460
        %v5897 = vpop.f32.mrb[0].mxu0
        %v5898 = vadd.f32 %v5645, %v5897
        %v5899 = vpop.f32.mrb[0].mxu0
        %v5900 = vpop.f32.mrb[0].mxu0
        %v5901 = vadd.f32 %v5645, %v5900
        %v5902 = vpop.f32.mrb[0].mxu0
        %5903 = vmatprep.mubr.bf16.mxu0 %v5465
        %5904 = vmatmul.mubr.bf16.gmra.mrb[0].mxu0 %v5464
        %v5905 = vpop.f32.mrb[0].mxu0
        %v5906 = vadd.f32 %v5645, %v5905
        %v5907 = vpop.f32.mrb[0].mxu0
        %v5908 = vpop.f32.mrb[0].mxu0
        %v5909 = vadd.f32 %v5645, %v5908
        %v5910 = vpop.f32.mrb[0].mxu0
        %5911 = vmatprep.mubr.bf16.mxu0 %v5469
        %5912 = vmatmul.mubr.bf16.gmra.mrb[0].mxu0 %v5468
        %v5913 = vpop.f32.mrb[0].mxu0
        %v5914 = vadd.f32 %v5645, %v5913
        %v5915 = vpop.f32.mrb[0].mxu0
        %v5916 = vpop.f32.mrb[0].mxu0
        %v5917 = vadd.f32 %v5645, %v5916
        %v5918 = vpop.f32.mrb[0].mxu0
        %5919 = vmatprep.mubr.bf16.mxu0 %v5473
        %5920 = vmatmul.mubr.bf16.gmra.mrb[0].mxu0 %v5472
        %v5921 = vpop.f32.mrb[0].mxu0
        %v5922 = vadd.f32 %v5645, %v5921
        %v5923 = vpop.f32.mrb[0].mxu0
        %v5924 = vpop.f32.mrb[0].mxu0
        %v5925 = vadd.f32 %v5645, %v5924
        %v5926 = vpop.f32.mrb[0].mxu0
        %5927 = vmatprep.mubr.bf16.mxu0 %v5477
        %5928 = vmatmul.mubr.bf16.gmra.mrb[0].mxu0 %v5476
        %v5929 = vpop.f32.mrb[0].mxu0
        %v5930 = vadd.f32 %v5645, %v5929
        %v5931 = vpop.f32.mrb[0].mxu0
        %v5932 = vpop.f32.mrb[0].mxu0
        %v5933 = vadd.f32 %v5645, %v5932
        %v5934 = vpop.f32.mrb[0].mxu0
        %5935 = vmatprep.mubr.bf16.mxu0 %v5481
        %5936 = vmatmul.mubr.bf16.gmra.mrb[0].mxu0 %v5480
        %v5937 = vpop.f32.mrb[0].mxu0
        %v5938 = vadd.f32 %v5645, %v5937
        %v5939 = vpop.f32.mrb[0].mxu0
        %v5940 = vpop.f32.mrb[0].mxu0
        %v5941 = vadd.f32 %v5645, %v5940
        %v5942 = vpop.f32.mrb[0].mxu0
        %5943 = vmatprep.mubr.bf16.mxu0 %v5485
        %5944 = vmatmul.mubr.bf16.gmra.mrb[0].mxu0 %v5484
        %v5945 = vpop.f32.mrb[0].mxu0
        %v5946 = vadd.f32 %v5645, %v5945
        %v5947 = vpop.f32.mrb[0].mxu0
        %v5948 = vpop.f32.mrb[0].mxu0
        %v5949 = vadd.f32 %v5645, %v5948
        %v5950 = vpop.f32.mrb[0].mxu0
        %5951 = vmatprep.mubr.bf16.mxu0 %v5489
        %5952 = vmatmul.mubr.bf16.gmra.mrb[0].mxu0 %v5488
        %v5953 = vpop.f32.mrb[0].mxu0
        %v5954 = vadd.f32 %v5645, %v5953
        %v5955 = vpop.f32.mrb[0].mxu0
        %v5956 = vpop.f32.mrb[0].mxu0
        %v5957 = vadd.f32 %v5645, %v5956
        %v5958 = vpop.f32.mrb[0].mxu0
        %5959 = vmatprep.mubr.bf16.mxu0 %v5493
        %5960 = vmatmul.mubr.bf16.gmra.mrb[0].mxu0 %v5492
        %v5961 = vpop.f32.mrb[0].mxu0
        %v5962 = vadd.f32 %v5645, %v5961
        %v5963 = vpop.f32.mrb[0].mxu0
        %v5964 = vpop.f32.mrb[0].mxu0
        %v5965 = vadd.f32 %v5645, %v5964
        %v5966 = vpop.f32.mrb[0].mxu0
        %5967 = vmatprep.mubr.bf16.mxu0 %v5497
        %5968 = vmatmul.mubr.bf16.gmra.mrb[0].mxu0 %v5496
        %v5969 = vpop.f32.mrb[0].mxu0
        %v5970 = vadd.f32 %v5645, %v5969
        %v5971 = vpop.f32.mrb[0].mxu0
        %v5972 = vpop.f32.mrb[0].mxu0
        %v5973 = vadd.f32 %v5645, %v5972
        %v5974 = vpop.f32.mrb[0].mxu0
        %5975 = vmatprep.mubr.bf16.mxu0 %v5501
        %5976 = vmatmul.mubr.bf16.gmra.mrb[0].mxu0 %v5500
        %v5977 = vpop.f32.mrb[0].mxu0
        %v5978 = vadd.f32 %v5645, %v5977
        %v5979 = vpop.f32.mrb[0].mxu0
        %v5980 = vpop.f32.mrb[0].mxu0
        %v5981 = vadd.f32 %v5645, %v5980
        %v5982 = vpop.f32.mrb[0].mxu0
        %5983 = vmatprep.mubr.bf16.mxu0 %v5505
        %5984 = vmatmul.mubr.bf16.gmra.mrb[0].mxu0 %v5504
        %v5985 = vpop.f32.mrb[0].mxu0
        %v5986 = vadd.f32 %v5645, %v5985
        %v5987 = vpop.f32.mrb[0].mxu0
        %v5988 = vpop.f32.mrb[0].mxu0
        %v5989 = vadd.f32 %v5645, %v5988
        %v5990 = vpop.f32.mrb[0].mxu0
        %5991 = vmatprep.mubr.bf16.mxu0 %v5509
        %5992 = vmatmul.mubr.bf16.gmra.mrb[0].mxu0 %v5508
        %v5993 = vpop.f32.mrb[0].mxu0
        %v5994 = vadd.f32 %v5645, %v5993
        %v5995 = vpop.f32.mrb[0].mxu0
        %v5996 = vpop.f32.mrb[0].mxu0
        %v5997 = vadd.f32 %v5645, %v5996
        %v5998 = vpop.f32.mrb[0].mxu0
        %5999 = vmatprep.mubr.bf16.mxu0 %v5513
        %6000 = vmatmul.mubr.bf16.gmra.mrb[0].mxu0 %v5512
        %v6001 = vpop.f32.mrb[0].mxu0
        %v6002 = vadd.f32 %v5645, %v6001
        %v6003 = vpop.f32.mrb[0].mxu0
        %v6004 = vpop.f32.mrb[0].mxu0
        %v6005 = vadd.f32 %v5645, %v6004
        %v6006 = vpop.f32.mrb[0].mxu0
        %6007 = vmatprep.mubr.bf16.mxu0 %v5517
        %6008 = vmatmul.mubr.bf16.gmra.mrb[0].mxu0 %v5516
        %v6009 = vpop.f32.mrb[0].mxu0
        %v6010 = vadd.f32 %v5645, %v6009
        %v6011 = vpop.f32.mrb[0].mxu0
        %v6012 = vpop.f32.mrb[0].mxu0
        %v6013 = vadd.f32 %v5645, %v6012
        %v6014 = vpop.f32.mrb[0].mxu0
        %6015 = vmatprep.mubr.bf16.mxu0 %v5521
        %6016 = vmatmul.mubr.bf16.gmra.mrb[0].mxu0 %v5520
        %v6017 = vpop.f32.mrb[0].mxu0
        %v6018 = vadd.f32 %v5645, %v6017
        %v6019 = vpop.f32.mrb[0].mxu0
        %v6020 = vpop.f32.mrb[0].mxu0
        %v6021 = vadd.f32 %v5645, %v6020
        %v6022 = vpop.f32.mrb[0].mxu0
        %6023 = vmatprep.mubr.bf16.mxu0 %v5525
        %6024 = vmatmul.mubr.bf16.gmra.mrb[0].mxu0 %v5524
        %v6025 = vpop.f32.mrb[0].mxu0
        %v6026 = vadd.f32 %v5645, %v6025
        %v6027 = vpop.f32.mrb[0].mxu0
        %v6028 = vpop.f32.mrb[0].mxu0
        %v6029 = vadd.f32 %v5645, %v6028
        %v6030 = vpop.f32.mrb[0].mxu0
        %6031 = vmatprep.mubr.bf16.mxu0 %v5529
        %6032 = vmatmul.mubr.bf16.gmra.mrb[0].mxu0 %v5528
        %v6033 = vpop.f32.mrb[0].mxu0
        %v6034 = vadd.f32 %v5645, %v6033
        %v6035 = vpop.f32.mrb[0].mxu0
        %v6036 = vpop.f32.mrb[0].mxu0
        %v6037 = vadd.f32 %v5645, %v6036
        %v6038 = vpop.f32.mrb[0].mxu0
        %6039 = vmatprep.mubr.bf16.mxu0 %v5533
        %6040 = vmatmul.mubr.bf16.gmra.mrb[0].mxu0 %v5532
        %v6041 = vpop.f32.mrb[0].mxu0
        %v6042 = vadd.f32 %v5645, %v6041
        %v6043 = vpop.f32.mrb[0].mxu0
        %v6044 = vpop.f32.mrb[0].mxu0
        %v6045 = vadd.f32 %v5645, %v6044
        %v6046 = vpop.f32.mrb[0].mxu0
        %6047 = vmatprep.mubr.bf16.mxu0 %v5537
        %6048 = vmatmul.mubr.bf16.gmra.mrb[0].mxu0 %v5536
        %v6049 = vpop.f32.mrb[0].mxu0
        %v6050 = vadd.f32 %v5645, %v6049
        %v6051 = vpop.f32.mrb[0].mxu0
        %v6052 = vpop.f32.mrb[0].mxu0
        %v6053 = vadd.f32 %v5645, %v6052
        %v6054 = vpop.f32.mrb[0].mxu0
        %6055 = vmatprep.mubr.bf16.mxu0 %v5541
        %6056 = vmatmul.mubr.bf16.gmra.mrb[0].mxu0 %v5540
        %v6057 = vpop.f32.mrb[0].mxu0
        %v6058 = vadd.f32 %v5645, %v6057
        %v6059 = vpop.f32.mrb[0].mxu0
        %v6060 = vpop.f32.mrb[0].mxu0
        %v6061 = vadd.f32 %v5645, %v6060
        %v6062 = vpop.f32.mrb[0].mxu0
        %6063 = vmatprep.mubr.bf16.mxu0 %v5545
        %6064 = vmatmul.mubr.bf16.gmra.mrb[0].mxu0 %v5544
        %v6065 = vpop.f32.mrb[0].mxu0
        %v6066 = vadd.f32 %v5645, %v6065
        %v6067 = vpop.f32.mrb[0].mxu0
        %v6068 = vpop.f32.mrb[0].mxu0
        %v6069 = vadd.f32 %v5645, %v6068
        %v6070 = vpop.f32.mrb[0].mxu0
        %6071 = vmatprep.mubr.bf16.mxu0 %v5549
        %6072 = vmatmul.mubr.bf16.gmra.mrb[0].mxu0 %v5548
        %v6073 = vpop.f32.mrb[0].mxu0
        %v6074 = vadd.f32 %v5645, %v6073
        %v6075 = vpop.f32.mrb[0].mxu0
        %v6076 = vpop.f32.mrb[0].mxu0
        %v6077 = vadd.f32 %v5645, %v6076
        %v6078 = vpop.f32.mrb[0].mxu0
        %6079 = vmatprep.mubr.bf16.mxu0 %v5553
        %6080 = vmatmul.mubr.bf16.gmra.mrb[0].mxu0 %v5552
        %v6081 = vpop.f32.mrb[0].mxu0
        %v6082 = vadd.f32 %v5645, %v6081
        %v6083 = vpop.f32.mrb[0].mxu0
        %v6084 = vpop.f32.mrb[0].mxu0
        %v6085 = vadd.f32 %v5645, %v6084
        %v6086 = vpop.f32.mrb[0].mxu0
        %6087 = vmatprep.mubr.bf16.mxu0 %v5557
        %6088 = vmatmul.mubr.bf16.gmra.mrb[0].mxu0 %v5556
        %v6089 = vpop.f32.mrb[0].mxu0
        %v6090 = vadd.f32 %v5645, %v6089
        %v6091 = vpop.f32.mrb[0].mxu0
        %v6092 = vpop.f32.mrb[0].mxu0
        %v6093 = vadd.f32 %v5645, %v6092
        %v6094 = vpop.f32.mrb[0].mxu0
        %6095 = vmatprep.mubr.bf16.mxu0 %v5561
        %6096 = vmatmul.mubr.bf16.gmra.mrb[0].mxu0 %v5560
        %v6097 = vpop.f32.mrb[0].mxu0
        %v6098 = vadd.f32 %v5645, %v6097
        %v6099 = vpop.f32.mrb[0].mxu0
        %v6100 = vpop.f32.mrb[0].mxu0
        %v6101 = vadd.f32 %v5645, %v6100
        %v6102 = vpop.f32.mrb[0].mxu0
        %6103 = vmatprep.mubr.bf16.mxu0 %v5565
        %6104 = vmatmul.mubr.bf16.gmra.mrb[0].mxu0 %v5564
        %v6105 = vpop.f32.mrb[0].mxu0
        %v6106 = vadd.f32 %v5645, %v6105
        %v6107 = vpop.f32.mrb[0].mxu0
        %v6108 = vpop.f32.mrb[0].mxu0
        %v6109 = vadd.f32 %v5645, %v6108
        %v6110 = vpop.f32.mrb[0].mxu0
        %6111 = vmatprep.mubr.bf16.mxu0 %v5569
        %6112 = vmatmul.mubr.bf16.gmra.mrb[0].mxu0 %v5568
        %v6113 = vpop.f32.mrb[0].mxu0
        %v6114 = vadd.f32 %v5645, %v6113
        %v6115 = vpop.f32.mrb[0].mxu0
        %v6116 = vpop.f32.mrb[0].mxu0
        %v6117 = vadd.f32 %v5645, %v6116
        %v6118 = vpop.f32.mrb[0].mxu0
        %6119 = vmatprep.mubr.bf16.mxu0 %v5573
        %6120 = vmatmul.mubr.bf16.gmra.mrb[0].mxu0 %v5572
        %v6121 = vpop.f32.mrb[0].mxu0
        %v6122 = vadd.f32 %v5645, %v6121
        %v6123 = vpop.f32.mrb[0].mxu0
        %v6124 = vpop.f32.mrb[0].mxu0
        %v6125 = vadd.f32 %v5645, %v6124
        %v6126 = vpop.f32.mrb[0].mxu0
        %6127 = vdwg.mxu0
        %6128 = vmatprep.subr.bf16.mxu0 0
        %6129 = vmatpush1.bf16.msra.mxu0 %v5791
        %6130 = vmatprep.subr.bf16.mxu0 0
        %6131 = vmatpush1.bf16.msra.mxu0 %v5792
        %6132 = vmatprep.subr.bf16.mxu0 0
        %6133 = vmatpush1.bf16.msra.mxu0 %v5793
        %6134 = vmatprep.subr.bf16.mxu0 0
        %6135 = vmatpush1.bf16.msra.mxu0 %v5794
        %6136 = vmatprep.subr.bf16.mxu0 0
        %6137 = vmatpush1.bf16.msra.mxu0 %v5795
        %6138 = vmatprep.subr.bf16.mxu0 0
        %6139 = vmatpush1.bf16.msra.mxu0 %v5796
        %6140 = vmatprep.subr.bf16.mxu0 0
        %6141 = vmatpush1.bf16.msra.mxu0 %v5797
        %6142 = vmatprep.subr.bf16.mxu0 0
        %6143 = vmatpush1.bf16.msra.mxu0 %v5798
        %6144 = vmatprep.subr.bf16.mxu0 0
        %6145 = vmatpush1.bf16.msra.mxu0 %v5799
        %6146 = vmatprep.subr.bf16.mxu0 0
        %6147 = vmatpush1.bf16.msra.mxu0 %v5800
        %6148 = vmatprep.subr.bf16.mxu0 0
        %6149 = vmatpush1.bf16.msra.mxu0 %v5801
        %6150 = vmatprep.subr.bf16.mxu0 0
        %6151 = vmatpush1.bf16.msra.mxu0 %v5802
        %6152 = vmatprep.subr.bf16.mxu0 0
        %6153 = vmatpush1.bf16.msra.mxu0 %v5803
        %6154 = vmatprep.subr.bf16.mxu0 0
        %6155 = vmatpush1.bf16.msra.mxu0 %v5804
        %6156 = vmatprep.subr.bf16.mxu0 0
        %6157 = vmatpush1.bf16.msra.mxu0 %v5805
        %6158 = vmatprep.subr.bf16.mxu0 0
        %6159 = vmatpush1.bf16.msra.mxu0 %v5806
        %6160 = vmatprep.mubr.bf16.mxu0 %v5451
        %6161 = vmatmul.mubr.bf16.gmra.mrb[0].mxu0 %v5450
        %v6162 = vpop.f32.mrb[0].mxu0
        %v6163 = vadd.f32 %v5874, %v6162
        %v6164 = vpop.f32.mrb[0].mxu0
        %v6165 = vpop.f32.mrb[0].mxu0
        %v6166 = vadd.f32 %v5877, %v6165
        %v6167 = vpop.f32.mrb[0].mxu0
        %6168 = vmatprep.mubr.bf16.mxu0 %v5455
        %6169 = vmatmul.mubr.bf16.gmra.mrb[0].mxu0 %v5454
        %v6170 = vpop.f32.mrb[0].mxu0
        %v6171 = vadd.f32 %v5882, %v6170
        %v6172 = vpop.f32.mrb[0].mxu0
        %v6173 = vpop.f32.mrb[0].mxu0
        %v6174 = vadd.f32 %v5885, %v6173
        %v6175 = vpop.f32.mrb[0].mxu0
        %6176 = vmatprep.mubr.bf16.mxu0 %v5459
        %6177 = vmatmul.mubr.bf16.gmra.mrb[0].mxu0 %v5458
        %v6178 = vpop.f32.mrb[0].mxu0
        %v6179 = vadd.f32 %v5890, %v6178
        %v6180 = vpop.f32.mrb[0].mxu0
        %v6181 = vpop.f32.mrb[0].mxu0
        %v6182 = vadd.f32 %v5893, %v6181
        %v6183 = vpop.f32.mrb[0].mxu0
        %6184 = vmatprep.mubr.bf16.mxu0 %v5463
        %6185 = vmatmul.mubr.bf16.gmra.mrb[0].mxu0 %v5462
        %v6186 = vpop.f32.mrb[0].mxu0
        %v6187 = vadd.f32 %v5898, %v6186
        %v6188 = vpop.f32.mrb[0].mxu0
        %v6189 = vpop.f32.mrb[0].mxu0
        %v6190 = vadd.f32 %v5901, %v6189
        %v6191 = vpop.f32.mrb[0].mxu0
        %6192 = vmatprep.mubr.bf16.mxu0 %v5467
        %6193 = vmatmul.mubr.bf16.gmra.mrb[0].mxu0 %v5466
        %v6194 = vpop.f32.mrb[0].mxu0
        %v6195 = vadd.f32 %v5906, %v6194
        %v6196 = vpop.f32.mrb[0].mxu0
        %v6197 = vpop.f32.mrb[0].mxu0
        %v6198 = vadd.f32 %v5909, %v6197
        %v6199 = vpop.f32.mrb[0].mxu0
        %6200 = vmatprep.mubr.bf16.mxu0 %v5471
        %6201 = vmatmul.mubr.bf16.gmra.mrb[0].mxu0 %v5470
        %v6202 = vpop.f32.mrb[0].mxu0
        %v6203 = vadd.f32 %v5914, %v6202
        %v6204 = vpop.f32.mrb[0].mxu0
        %v6205 = vpop.f32.mrb[0].mxu0
        %v6206 = vadd.f32 %v5917, %v6205
        %v6207 = vpop.f32.mrb[0].mxu0
        %6208 = vmatprep.mubr.bf16.mxu0 %v5475
        %6209 = vmatmul.mubr.bf16.gmra.mrb[0].mxu0 %v5474
        %v6210 = vpop.f32.mrb[0].mxu0
        %v6211 = vadd.f32 %v5922, %v6210
        %v6212 = vpop.f32.mrb[0].mxu0
        %v6213 = vpop.f32.mrb[0].mxu0
        %v6214 = vadd.f32 %v5925, %v6213
        %v6215 = vpop.f32.mrb[0].mxu0
        %6216 = vmatprep.mubr.bf16.mxu0 %v5479
        %6217 = vmatmul.mubr.bf16.gmra.mrb[0].mxu0 %v5478
        %v6218 = vpop.f32.mrb[0].mxu0
        %v6219 = vadd.f32 %v5930, %v6218
        %v6220 = vpop.f32.mrb[0].mxu0
        %v6221 = vpop.f32.mrb[0].mxu0
        %v6222 = vadd.f32 %v5933, %v6221
        %v6223 = vpop.f32.mrb[0].mxu0
        %6224 = vmatprep.mubr.bf16.mxu0 %v5483
        %6225 = vmatmul.mubr.bf16.gmra.mrb[0].mxu0 %v5482
        %v6226 = vpop.f32.mrb[0].mxu0
        %v6227 = vadd.f32 %v5938, %v6226
        %v6228 = vpop.f32.mrb[0].mxu0
        %v6229 = vpop.f32.mrb[0].mxu0
        %v6230 = vadd.f32 %v5941, %v6229
        %v6231 = vpop.f32.mrb[0].mxu0
        %6232 = vmatprep.mubr.bf16.mxu0 %v5487
        %6233 = vmatmul.mubr.bf16.gmra.mrb[0].mxu0 %v5486
        %v6234 = vpop.f32.mrb[0].mxu0
        %v6235 = vadd.f32 %v5946, %v6234
        %v6236 = vpop.f32.mrb[0].mxu0
        %v6237 = vpop.f32.mrb[0].mxu0
        %v6238 = vadd.f32 %v5949, %v6237
        %v6239 = vpop.f32.mrb[0].mxu0
        %6240 = vmatprep.mubr.bf16.mxu0 %v5491
        %6241 = vmatmul.mubr.bf16.gmra.mrb[0].mxu0 %v5490
        %v6242 = vpop.f32.mrb[0].mxu0
        %v6243 = vadd.f32 %v5954, %v6242
        %v6244 = vpop.f32.mrb[0].mxu0
        %v6245 = vpop.f32.mrb[0].mxu0
        %v6246 = vadd.f32 %v5957, %v6245
        %v6247 = vpop.f32.mrb[0].mxu0
        %6248 = vmatprep.mubr.bf16.mxu0 %v5495
        %6249 = vmatmul.mubr.bf16.gmra.mrb[0].mxu0 %v5494
        %v6250 = vpop.f32.mrb[0].mxu0
        %v6251 = vadd.f32 %v5962, %v6250
        %v6252 = vpop.f32.mrb[0].mxu0
        %v6253 = vpop.f32.mrb[0].mxu0
        %v6254 = vadd.f32 %v5965, %v6253
        %v6255 = vpop.f32.mrb[0].mxu0
        %6256 = vmatprep.mubr.bf16.mxu0 %v5499
        %6257 = vmatmul.mubr.bf16.gmra.mrb[0].mxu0 %v5498
        %v6258 = vpop.f32.mrb[0].mxu0
        %v6259 = vadd.f32 %v5970, %v6258
        %v6260 = vpop.f32.mrb[0].mxu0
        %v6261 = vpop.f32.mrb[0].mxu0
        %v6262 = vadd.f32 %v5973, %v6261
        %v6263 = vpop.f32.mrb[0].mxu0
        %6264 = vmatprep.mubr.bf16.mxu0 %v5503
        %6265 = vmatmul.mubr.bf16.gmra.mrb[0].mxu0 %v5502
        %v6266 = vpop.f32.mrb[0].mxu0
        %v6267 = vadd.f32 %v5978, %v6266
        %v6268 = vpop.f32.mrb[0].mxu0
        %v6269 = vpop.f32.mrb[0].mxu0
        %v6270 = vadd.f32 %v5981, %v6269
        %v6271 = vpop.f32.mrb[0].mxu0
        %6272 = vmatprep.mubr.bf16.mxu0 %v5507
        %6273 = vmatmul.mubr.bf16.gmra.mrb[0].mxu0 %v5506
        %v6274 = vpop.f32.mrb[0].mxu0
        %v6275 = vadd.f32 %v5986, %v6274
        %v6276 = vpop.f32.mrb[0].mxu0
        %v6277 = vpop.f32.mrb[0].mxu0
        %v6278 = vadd.f32 %v5989, %v6277
        %v6279 = vpop.f32.mrb[0].mxu0
        %6280 = vmatprep.mubr.bf16.mxu0 %v5511
        %6281 = vmatmul.mubr.bf16.gmra.mrb[0].mxu0 %v5510
        %v6282 = vpop.f32.mrb[0].mxu0
        %v6283 = vadd.f32 %v5994, %v6282
        %v6284 = vpop.f32.mrb[0].mxu0
        %v6285 = vpop.f32.mrb[0].mxu0
        %v6286 = vadd.f32 %v5997, %v6285
        %v6287 = vpop.f32.mrb[0].mxu0
        %6288 = vmatprep.mubr.bf16.mxu0 %v5515
        %6289 = vmatmul.mubr.bf16.gmra.mrb[0].mxu0 %v5514
        %v6290 = vpop.f32.mrb[0].mxu0
        %v6291 = vadd.f32 %v6002, %v6290
        %v6292 = vpop.f32.mrb[0].mxu0
        %v6293 = vpop.f32.mrb[0].mxu0
        %v6294 = vadd.f32 %v6005, %v6293
        %v6295 = vpop.f32.mrb[0].mxu0
        %6296 = vmatprep.mubr.bf16.mxu0 %v5519
        %6297 = vmatmul.mubr.bf16.gmra.mrb[0].mxu0 %v5518
        %v6298 = vpop.f32.mrb[0].mxu0
        %v6299 = vadd.f32 %v6010, %v6298
        %v6300 = vpop.f32.mrb[0].mxu0
        %v6301 = vpop.f32.mrb[0].mxu0
        %v6302 = vadd.f32 %v6013, %v6301
        %v6303 = vpop.f32.mrb[0].mxu0
        %6304 = vmatprep.mubr.bf16.mxu0 %v5523
        %6305 = vmatmul.mubr.bf16.gmra.mrb[0].mxu0 %v5522
        %v6306 = vpop.f32.mrb[0].mxu0
        %v6307 = vadd.f32 %v6018, %v6306
        %v6308 = vpop.f32.mrb[0].mxu0
        %v6309 = vpop.f32.mrb[0].mxu0
        %v6310 = vadd.f32 %v6021, %v6309
        %v6311 = vpop.f32.mrb[0].mxu0
        %6312 = vmatprep.mubr.bf16.mxu0 %v5527
        %6313 = vmatmul.mubr.bf16.gmra.mrb[0].mxu0 %v5526
        %v6314 = vpop.f32.mrb[0].mxu0
        %v6315 = vadd.f32 %v6026, %v6314
        %v6316 = vpop.f32.mrb[0].mxu0
        %v6317 = vpop.f32.mrb[0].mxu0
        %v6318 = vadd.f32 %v6029, %v6317
        %v6319 = vpop.f32.mrb[0].mxu0
        %6320 = vmatprep.mubr.bf16.mxu0 %v5531
        %6321 = vmatmul.mubr.bf16.gmra.mrb[0].mxu0 %v5530
        %v6322 = vpop.f32.mrb[0].mxu0
        %v6323 = vadd.f32 %v6034, %v6322
        %v6324 = vpop.f32.mrb[0].mxu0
        %v6325 = vpop.f32.mrb[0].mxu0
        %v6326 = vadd.f32 %v6037, %v6325
        %v6327 = vpop.f32.mrb[0].mxu0
        %6328 = vmatprep.mubr.bf16.mxu0 %v5535
        %6329 = vmatmul.mubr.bf16.gmra.mrb[0].mxu0 %v5534
        %v6330 = vpop.f32.mrb[0].mxu0
        %v6331 = vadd.f32 %v6042, %v6330
        %v6332 = vpop.f32.mrb[0].mxu0
        %v6333 = vpop.f32.mrb[0].mxu0
        %v6334 = vadd.f32 %v6045, %v6333
        %v6335 = vpop.f32.mrb[0].mxu0
        %6336 = vmatprep.mubr.bf16.mxu0 %v5539
        %6337 = vmatmul.mubr.bf16.gmra.mrb[0].mxu0 %v5538
        %v6338 = vpop.f32.mrb[0].mxu0
        %v6339 = vadd.f32 %v6050, %v6338
        %v6340 = vpop.f32.mrb[0].mxu0
        %v6341 = vpop.f32.mrb[0].mxu0
        %v6342 = vadd.f32 %v6053, %v6341
        %v6343 = vpop.f32.mrb[0].mxu0
        %6344 = vmatprep.mubr.bf16.mxu0 %v5543
        %6345 = vmatmul.mubr.bf16.gmra.mrb[0].mxu0 %v5542
        %v6346 = vpop.f32.mrb[0].mxu0
        %v6347 = vadd.f32 %v6058, %v6346
        %v6348 = vpop.f32.mrb[0].mxu0
        %v6349 = vpop.f32.mrb[0].mxu0
        %v6350 = vadd.f32 %v6061, %v6349
        %v6351 = vpop.f32.mrb[0].mxu0
        %6352 = vmatprep.mubr.bf16.mxu0 %v5547
        %6353 = vmatmul.mubr.bf16.gmra.mrb[0].mxu0 %v5546
        %v6354 = vpop.f32.mrb[0].mxu0
        %v6355 = vadd.f32 %v6066, %v6354
        %v6356 = vpop.f32.mrb[0].mxu0
        %v6357 = vpop.f32.mrb[0].mxu0
        %v6358 = vadd.f32 %v6069, %v6357
        %v6359 = vpop.f32.mrb[0].mxu0
        %6360 = vmatprep.mubr.bf16.mxu0 %v5551
        %6361 = vmatmul.mubr.bf16.gmra.mrb[0].mxu0 %v5550
        %v6362 = vpop.f32.mrb[0].mxu0
        %v6363 = vadd.f32 %v6074, %v6362
        %v6364 = vpop.f32.mrb[0].mxu0
        %v6365 = vpop.f32.mrb[0].mxu0
        %v6366 = vadd.f32 %v6077, %v6365
        %v6367 = vpop.f32.mrb[0].mxu0
        %6368 = vmatprep.mubr.bf16.mxu0 %v5555
        %6369 = vmatmul.mubr.bf16.gmra.mrb[0].mxu0 %v5554
        %v6370 = vpop.f32.mrb[0].mxu0
        %v6371 = vadd.f32 %v6082, %v6370
        %v6372 = vpop.f32.mrb[0].mxu0
        %v6373 = vpop.f32.mrb[0].mxu0
        %v6374 = vadd.f32 %v6085, %v6373
        %v6375 = vpop.f32.mrb[0].mxu0
        %6376 = vmatprep.mubr.bf16.mxu0 %v5559
        %6377 = vmatmul.mubr.bf16.gmra.mrb[0].mxu0 %v5558
        %v6378 = vpop.f32.mrb[0].mxu0
        %v6379 = vadd.f32 %v6090, %v6378
        %v6380 = vpop.f32.mrb[0].mxu0
        %v6381 = vpop.f32.mrb[0].mxu0
        %v6382 = vadd.f32 %v6093, %v6381
        %v6383 = vpop.f32.mrb[0].mxu0
        %6384 = vmatprep.mubr.bf16.mxu0 %v5563
        %6385 = vmatmul.mubr.bf16.gmra.mrb[0].mxu0 %v5562
        %v6386 = vpop.f32.mrb[0].mxu0
        %v6387 = vadd.f32 %v6098, %v6386
        %v6388 = vpop.f32.mrb[0].mxu0
        %v6389 = vpop.f32.mrb[0].mxu0
        %v6390 = vadd.f32 %v6101, %v6389
        %v6391 = vpop.f32.mrb[0].mxu0
        %6392 = vmatprep.mubr.bf16.mxu0 %v5567
        %6393 = vmatmul.mubr.bf16.gmra.mrb[0].mxu0 %v5566
        %v6394 = vpop.f32.mrb[0].mxu0
        %v6395 = vadd.f32 %v6106, %v6394
        %v6396 = vpop.f32.mrb[0].mxu0
        %v6397 = vpop.f32.mrb[0].mxu0
        %v6398 = vadd.f32 %v6109, %v6397
        %v6399 = vpop.f32.mrb[0].mxu0
        %6400 = vmatprep.mubr.bf16.mxu0 %v5571
        %6401 = vmatmul.mubr.bf16.gmra.mrb[0].mxu0 %v5570
        %v6402 = vpop.f32.mrb[0].mxu0
        %v6403 = vadd.f32 %v6114, %v6402
        %v6404 = vpop.f32.mrb[0].mxu0
        %v6405 = vpop.f32.mrb[0].mxu0
        %v6406 = vadd.f32 %v6117, %v6405
        %v6407 = vpop.f32.mrb[0].mxu0
        %6408 = vmatprep.mubr.bf16.mxu0 %v5575
        %6409 = vmatmul.mubr.bf16.gmra.mrb[0].mxu0 %v5574
        %v6410 = vpop.f32.mrb[0].mxu0
        %v6411 = vadd.f32 %v6122, %v6410
        %v6412 = vpop.f32.mrb[0].mxu0
        %v6413 = vpop.f32.mrb[0].mxu0
        %v6414 = vadd.f32 %v6125, %v6413
        %v6415 = vpop.f32.mrb[0].mxu0
        %6416 = vdwg.mxu0
        %v6417 = vpack.c.bf16 %v6166, %v6163
        %v6418 = vpack.c.bf16 %v6174, %v6171
        %v6419 = vpack.c.bf16 %v6182, %v6179
        %v6420 = vpack.c.bf16 %v6190, %v6187
        %v6421 = vpack.c.bf16 %v6198, %v6195
        %v6422 = vpack.c.bf16 %v6206, %v6203
        %v6423 = vpack.c.bf16 %v6214, %v6211
        %v6424 = vpack.c.bf16 %v6222, %v6219
        %v6425 = vpack.c.bf16 %v6230, %v6227
        %v6426 = vpack.c.bf16 %v6238, %v6235
        %v6427 = vpack.c.bf16 %v6246, %v6243
        %v6428 = vpack.c.bf16 %v6254, %v6251
        %v6429 = vpack.c.bf16 %v6262, %v6259
        %v6430 = vpack.c.bf16 %v6270, %v6267
        %v6431 = vpack.c.bf16 %v6278, %v6275
        %v6432 = vpack.c.bf16 %v6286, %v6283
        %v6433 = vpack.c.bf16 %v6294, %v6291
        %v6434 = vpack.c.bf16 %v6302, %v6299
        %v6435 = vpack.c.bf16 %v6310, %v6307
        %v6436 = vpack.c.bf16 %v6318, %v6315
        %v6437 = vpack.c.bf16 %v6326, %v6323
        %v6438 = vpack.c.bf16 %v6334, %v6331
        %v6439 = vpack.c.bf16 %v6342, %v6339
        %v6440 = vpack.c.bf16 %v6350, %v6347
        %v6441 = vpack.c.bf16 %v6358, %v6355
        %v6442 = vpack.c.bf16 %v6366, %v6363
        %v6443 = vpack.c.bf16 %v6374, %v6371
        %v6444 = vpack.c.bf16 %v6382, %v6379
        %v6445 = vpack.c.bf16 %v6390, %v6387
        %v6446 = vpack.c.bf16 %v6398, %v6395
        %v6447 = vpack.c.bf16 %v6406, %v6403
        %v6448 = vpack.c.bf16 %v6414, %v6411
        %v6481 = vunpack.c.l.b16 %v6417
        %v6482 = vunpack.c.h.b16 %v6417
        %v6483 = vunpack.c.l.b16 %v6418
        %v6484 = vunpack.c.h.b16 %v6418
        %v6485 = vunpack.c.l.b16 %v6419
        %v6486 = vunpack.c.h.b16 %v6419
        %v6487 = vunpack.c.l.b16 %v6420
        %v6488 = vunpack.c.h.b16 %v6420
        %v6489 = vunpack.c.l.b16 %v6421
        %v6490 = vunpack.c.h.b16 %v6421
        %v6491 = vunpack.c.l.b16 %v6422
        %v6492 = vunpack.c.h.b16 %v6422
        %v6493 = vunpack.c.l.b16 %v6423
        %v6494 = vunpack.c.h.b16 %v6423
        %v6495 = vunpack.c.l.b16 %v6424
        %v6496 = vunpack.c.h.b16 %v6424
        %v6497 = vunpack.c.l.b16 %v6425
        %v6498 = vunpack.c.h.b16 %v6425
        %v6499 = vunpack.c.l.b16 %v6426
        %v6500 = vunpack.c.h.b16 %v6426
        %v6501 = vunpack.c.l.b16 %v6427
        %v6502 = vunpack.c.h.b16 %v6427
        %v6503 = vunpack.c.l.b16 %v6428
        %v6504 = vunpack.c.h.b16 %v6428
        %v6505 = vunpack.c.l.b16 %v6429
        %v6506 = vunpack.c.h.b16 %v6429
        %v6507 = vunpack.c.l.b16 %v6430
        %v6508 = vunpack.c.h.b16 %v6430
        %v6509 = vunpack.c.l.b16 %v6431
        %v6510 = vunpack.c.h.b16 %v6431
        %v6511 = vunpack.c.l.b16 %v6432
        %v6512 = vunpack.c.h.b16 %v6432
        %v6513 = vunpack.c.l.b16 %v6433
        %v6514 = vunpack.c.h.b16 %v6433
        %v6515 = vunpack.c.l.b16 %v6434
        %v6516 = vunpack.c.h.b16 %v6434
        %v6517 = vunpack.c.l.b16 %v6435
        %v6518 = vunpack.c.h.b16 %v6435
        %v6519 = vunpack.c.l.b16 %v6436
        %v6520 = vunpack.c.h.b16 %v6436
        %v6521 = vunpack.c.l.b16 %v6437
        %v6522 = vunpack.c.h.b16 %v6437
        %v6523 = vunpack.c.l.b16 %v6438
        %v6524 = vunpack.c.h.b16 %v6438
        %v6525 = vunpack.c.l.b16 %v6439
        %v6526 = vunpack.c.h.b16 %v6439
        %v6527 = vunpack.c.l.b16 %v6440
        %v6528 = vunpack.c.h.b16 %v6440
        %v6529 = vunpack.c.l.b16 %v6441
        %v6530 = vunpack.c.h.b16 %v6441
        %v6531 = vunpack.c.l.b16 %v6442
        %v6532 = vunpack.c.h.b16 %v6442
        %v6533 = vunpack.c.l.b16 %v6443
        %v6534 = vunpack.c.h.b16 %v6443
        %v6535 = vunpack.c.l.b16 %v6444
        %v6536 = vunpack.c.h.b16 %v6444
        %v6537 = vunpack.c.l.b16 %v6445
        %v6538 = vunpack.c.h.b16 %v6445
        %v6539 = vunpack.c.l.b16 %v6446
        %v6540 = vunpack.c.h.b16 %v6446
        %v6541 = vunpack.c.l.b16 %v6447
        %v6542 = vunpack.c.h.b16 %v6447
        %v6543 = vunpack.c.l.b16 %v6448
        %v6544 = vunpack.c.h.b16 %v6448
        %v6545 = vpack.c.b16 %v6481, %v6481
        %v6546 = vpack.c.b16 %v6482, %v6482
        %v6547 = vpack.c.b16 %v6483, %v6483
        %v6548 = vpack.c.b16 %v6484, %v6484
        %v6549 = vpack.c.b16 %v6485, %v6485
        %v6550 = vpack.c.b16 %v6486, %v6486
        %v6551 = vpack.c.b16 %v6487, %v6487
        %v6552 = vpack.c.b16 %v6488, %v6488
        %v6553 = vpack.c.b16 %v6489, %v6489
        %v6554 = vpack.c.b16 %v6490, %v6490
        %v6555 = vpack.c.b16 %v6491, %v6491
        %v6556 = vpack.c.b16 %v6492, %v6492
        %v6557 = vpack.c.b16 %v6493, %v6493
        %v6558 = vpack.c.b16 %v6494, %v6494
        %v6559 = vpack.c.b16 %v6495, %v6495
        %v6560 = vpack.c.b16 %v6496, %v6496
        %v6561 = vpack.c.b16 %v6497, %v6497
        %v6562 = vpack.c.b16 %v6498, %v6498
        %v6563 = vpack.c.b16 %v6499, %v6499
        %v6564 = vpack.c.b16 %v6500, %v6500
        %v6565 = vpack.c.b16 %v6501, %v6501
        %v6566 = vpack.c.b16 %v6502, %v6502
        %v6567 = vpack.c.b16 %v6503, %v6503
        %v6568 = vpack.c.b16 %v6504, %v6504
        %v6569 = vpack.c.b16 %v6505, %v6505
        %v6570 = vpack.c.b16 %v6506, %v6506
        %v6571 = vpack.c.b16 %v6507, %v6507
        %v6572 = vpack.c.b16 %v6508, %v6508
        %v6573 = vpack.c.b16 %v6509, %v6509
        %v6574 = vpack.c.b16 %v6510, %v6510
        %v6575 = vpack.c.b16 %v6511, %v6511
        %v6576 = vpack.c.b16 %v6512, %v6512
        %v6577 = vpack.c.b16 %v6513, %v6513
        %v6578 = vpack.c.b16 %v6514, %v6514
        %v6579 = vpack.c.b16 %v6515, %v6515
        %v6580 = vpack.c.b16 %v6516, %v6516
        %v6581 = vpack.c.b16 %v6517, %v6517
        %v6582 = vpack.c.b16 %v6518, %v6518
        %v6583 = vpack.c.b16 %v6519, %v6519
        %v6584 = vpack.c.b16 %v6520, %v6520
        %v6585 = vpack.c.b16 %v6521, %v6521
        %v6586 = vpack.c.b16 %v6522, %v6522
        %v6587 = vpack.c.b16 %v6523, %v6523
        %v6588 = vpack.c.b16 %v6524, %v6524
        %v6589 = vpack.c.b16 %v6525, %v6525
        %v6590 = vpack.c.b16 %v6526, %v6526
        %v6591 = vpack.c.b16 %v6527, %v6527
        %v6592 = vpack.c.b16 %v6528, %v6528
        %v6593 = vpack.c.b16 %v6529, %v6529
        %v6594 = vpack.c.b16 %v6530, %v6530
        %v6595 = vpack.c.b16 %v6531, %v6531
        %v6596 = vpack.c.b16 %v6532, %v6532
        %v6597 = vpack.c.b16 %v6533, %v6533
        %v6598 = vpack.c.b16 %v6534, %v6534
        %v6599 = vpack.c.b16 %v6535, %v6535
        %v6600 = vpack.c.b16 %v6536, %v6536
        %v6601 = vpack.c.b16 %v6537, %v6537
        %v6602 = vpack.c.b16 %v6538, %v6538
        %v6603 = vpack.c.b16 %v6539, %v6539
        %v6604 = vpack.c.b16 %v6540, %v6540
        %v6605 = vpack.c.b16 %v6541, %v6541
        %v6606 = vpack.c.b16 %v6542, %v6542
        %v6607 = vpack.c.b16 %v6543, %v6543
        %v6608 = vpack.c.b16 %v6544, %v6544
        %6673 = vst [vmem:[%s402] sm:$0xf] %v6545
        %6674 = vst [vmem:[%s402 + $0x4] sm:$0xf] %v6546
        %6675 = vst [vmem:[%s402 + $0x8] sm:$0xf] %v6547
        %6676 = vst [vmem:[%s402 + $0xc] sm:$0xf] %v6548
        %6677 = vst [vmem:[%s402 + $0x10] sm:$0xf] %v6549
        %6678 = vst [vmem:[%s402 + $0x14] sm:$0xf] %v6550
        %6679 = vst [vmem:[%s402 + $0x18] sm:$0xf] %v6551
        %6680 = vst [vmem:[%s402 + $0x1c] sm:$0xf] %v6552
        %6681 = vst [vmem:[%s402 + $0x20] sm:$0xf] %v6553
        %6682 = vst [vmem:[%s402 + $0x24] sm:$0xf] %v6554
        %6683 = vst [vmem:[%s402 + $0x28] sm:$0xf] %v6555
        %6684 = vst [vmem:[%s402 + $0x2c] sm:$0xf] %v6556
        %6685 = vst [vmem:[%s402 + $0x30] sm:$0xf] %v6557
        %6686 = vst [vmem:[%s402 + $0x34] sm:$0xf] %v6558
        %6687 = vst [vmem:[%s402 + $0x38] sm:$0xf] %v6559
        %6688 = vst [vmem:[%s402 + $0x3c] sm:$0xf] %v6560
        %6689 = vst [vmem:[%s402 + $0x40] sm:$0xf] %v6561
        %6690 = vst [vmem:[%s402 + $0x44] sm:$0xf] %v6562
        %6691 = vst [vmem:[%s402 + $0x48] sm:$0xf] %v6563
        %6692 = vst [vmem:[%s402 + $0x4c] sm:$0xf] %v6564
        %6693 = vst [vmem:[%s402 + $0x50] sm:$0xf] %v6565
        %6694 = vst [vmem:[%s402 + $0x54] sm:$0xf] %v6566
        %6695 = vst [vmem:[%s402 + $0x58] sm:$0xf] %v6567
        %6696 = vst [vmem:[%s402 + $0x5c] sm:$0xf] %v6568
        %6697 = vst [vmem:[%s402 + $0x60] sm:$0xf] %v6569
        %6698 = vst [vmem:[%s402 + $0x64] sm:$0xf] %v6570
        %6699 = vst [vmem:[%s402 + $0x68] sm:$0xf] %v6571
        %6700 = vst [vmem:[%s402 + $0x6c] sm:$0xf] %v6572
        %6701 = vst [vmem:[%s402 + $0x70] sm:$0xf] %v6573
        %6702 = vst [vmem:[%s402 + $0x74] sm:$0xf] %v6574
        %6703 = vst [vmem:[%s402 + $0x78] sm:$0xf] %v6575
        %6704 = vst [vmem:[%s402 + $0x7c] sm:$0xf] %v6576
        %6705 = vst [vmem:[%s402 + $0x80] sm:$0xf] %v6577
        %6706 = vst [vmem:[%s402 + $0x84] sm:$0xf] %v6578
        %6707 = vst [vmem:[%s402 + $0x88] sm:$0xf] %v6579
        %6708 = vst [vmem:[%s402 + $0x8c] sm:$0xf] %v6580
        %6709 = vst [vmem:[%s402 + $0x90] sm:$0xf] %v6581
        %6710 = vst [vmem:[%s402 + $0x94] sm:$0xf] %v6582
        %6711 = vst [vmem:[%s402 + $0x98] sm:$0xf] %v6583
        %6712 = vst [vmem:[%s402 + $0x9c] sm:$0xf] %v6584
        %6713 = vst [vmem:[%s402 + $0xa0] sm:$0xf] %v6585
        %6714 = vst [vmem:[%s402 + $0xa4] sm:$0xf] %v6586
        %6715 = vst [vmem:[%s402 + $0xa8] sm:$0xf] %v6587
        %6716 = vst [vmem:[%s402 + $0xac] sm:$0xf] %v6588
        %6717 = vst [vmem:[%s402 + $0xb0] sm:$0xf] %v6589
        %6718 = vst [vmem:[%s402 + $0xb4] sm:$0xf] %v6590
        %6719 = vst [vmem:[%s402 + $0xb8] sm:$0xf] %v6591
        %6720 = vst [vmem:[%s402 + $0xbc] sm:$0xf] %v6592
        %6721 = vst [vmem:[%s402 + $0xc0] sm:$0xf] %v6593
        %6722 = vst [vmem:[%s402 + $0xc4] sm:$0xf] %v6594
        %6723 = vst [vmem:[%s402 + $0xc8] sm:$0xf] %v6595
        %6724 = vst [vmem:[%s402 + $0xcc] sm:$0xf] %v6596
        %6725 = vst [vmem:[%s402 + $0xd0] sm:$0xf] %v6597
        %6726 = vst [vmem:[%s402 + $0xd4] sm:$0xf] %v6598
        %6727 = vst [vmem:[%s402 + $0xd8] sm:$0xf] %v6599
        %6728 = vst [vmem:[%s402 + $0xdc] sm:$0xf] %v6600
        %6729 = vst [vmem:[%s402 + $0xe0] sm:$0xf] %v6601
        %6730 = vst [vmem:[%s402 + $0xe4] sm:$0xf] %v6602
        %6731 = vst [vmem:[%s402 + $0xe8] sm:$0xf] %v6603
        %6732 = vst [vmem:[%s402 + $0xec] sm:$0xf] %v6604
        %6733 = vst [vmem:[%s402 + $0xf0] sm:$0xf] %v6605
        %6734 = vst [vmem:[%s402 + $0xf4] sm:$0xf] %v6606
        %6735 = vst [vmem:[%s402 + $0xf8] sm:$0xf] %v6607
        %6736 = vst [vmem:[%s402 + $0xfc] sm:$0xf] %v6608
        %s6737 = sand.u32 %s235, 1
        %s6738 = scalar_lea.sflag [#allocation4], %s6737
        %s6739 = sand.u32 %s235, 1
        %s6740 = smul.addr %s6739, 256
        %s6741 = scalar_lea.vmem [#allocation10], %s6740
        // Predicated region
        $region73: #{map_latent_encoder.3} parent=55 // pred_check
          %p6742 = pneg %p245
        $region74: #{map_latent_encoder.3} parent=55 // pred_check_branch
          %6744 = sbr.rel (%p6742) target = $region76
        $region75: #{map_latent_encoder.3} parent=55 // pred_region
          %s6745 = smul.u32 64, %s28
          %s6747 = ssub.s32 4096, 4096
          %6748 = vsyncadd %s6738, %s6747
          %s6749 = smul.addr %s6745, 64
          %s6750 = scalar_lea.hbm %s9, %s6749
          %s6751 = sshll.u32 %s6741, 4
          %s6752 = int_to_ptr.vmem [resolvable:$true] %s6751
          %6757 = dma.vmem_to_hbm [thread:$0]  %s6752, 4096, %s6750, %s6738, 64, 64, 4
        $region76: #{map_latent_encoder.3} parent=55 // pred_fallthru
          _
      $region56: #{map_latent_encoder.3} parent=5 // pred_fallthru
        _
      %p6758 = scmp.le.s32.totalorder 2, %s23
      // Predicated region
      $region77: #{map_latent_encoder.3} parent=5 // pred_check
        %p6759 = pneg %p6758
      $region78: #{map_latent_encoder.3} parent=5 // pred_check_branch
        %6761 = sbr.rel (%p6759) target = $region80
      $region79: #{map_latent_encoder.3} parent=5 // pred_region
        %s6762 = ssub.s32 %s23, 2
        // Predicated region
        $region81: #{map_latent_encoder.3} parent=79 // pred_check
          %p6763 = pneg %p251
        $region82: #{map_latent_encoder.3} parent=79 // pred_check_branch
          %6765 = sbr.rel (%p6763) target = $region84
        $region83: #{map_latent_encoder.3} parent=79 // pred_region
          %s6766 = sand.u32 %s236, 1
          %s6767 = scalar_lea.sflag [#allocation4], %s6766
          %s6768 = sand.u32 %s236, 1
          %s6769 = smul.addr %s6768, 256
          %s6770 = scalar_lea.vmem [#allocation10], %s6769
          %6771 = dma.done %s6767, 4096
        $region84: #{map_latent_encoder.3} parent=79 // pred_fallthru
          _
      $region80: #{map_latent_encoder.3} parent=5 // pred_fallthru
        _
    $region6: #{map_latent_encoder.3} parent=1 // loop_footer
      %s27 = sadd.s32 1, %s23
    $region7: #{map_latent_encoder.3} parent=1 // loop_footer_branch
      %22 = sbr.rel target = $region3
    $region8: #{map_latent_encoder.3} parent=1 // loop_exit
      _
    %6772 = vsyncpa [#allocation3], 1
    %s6773 = scalar_lea.sflag [#allocation3], 1
    %6774 = vsyncpa %s6773, 1
    %6775 = vsyncpa [#allocation6], 1
    %6776 = vsyncpa [#allocation9], 1
    %6777 = vsyncpa [#allocation4], 1
    %s6778 = scalar_lea.sflag [#allocation4], 1
    %6779 = vsyncpa %s6778, 1

</llo_original>
